<compile_context>
chip_gen: v7x
topology: tpu7x:2x2x1
jax: 0.10.0
libtpu: 0.0.40
codegen_flags: <defaults>
</compile_context>

<pallas_src>
import numpy as np
import jax
import jax.numpy as jnp
from jax.experimental import pallas as pl
from jax.experimental.pallas import tpu as pltpu

# ----------------- scaled-down GenConViTVAE configuration ---------------------
IMG = 32              # original img_size = 224
B = 2
LATENT = 256          # original latent_dims = 12544 ; decoder unflattens to (256, 1, 1)
BACKBONE_EMBED = 32
BACKBONE_OUT = 16     # stand-in for convnext head.fc.out_features (1000 originally)
NUM_FEATURE = 2 * BACKBONE_OUT
NUM_CLASSES = 2
LEAKY_SLOPE = 0.01
BN_EPS = 1e-5

F32 = jnp.float32
BF16 = jnp.bfloat16
VMEM = pltpu.MemorySpace.VMEM


def _leaky(y):
    return jnp.where(y >= 0.0, y, LEAKY_SLOPE * y)


# ------------------------------- the fused kernel ------------------------------
def _genconvit_kernel(
        cols1_ref, colsx_ref, eps_ref,
        w1_ref, b1_ref,
        s2_ref, w2_ref, b2_ref,
        s3_ref, w3_ref, b3_ref,
        s4_ref, w4_ref, b4_ref,
        mvw_ref, mvb_ref,
        dw1_ref, db1_ref, dw2_ref, db2_ref, dw3_ref, db3_ref, dw4_ref, db4_ref,
        rzt_ref,
        embx_ref, embxh_ref, embb_ref,
        headw_ref, headb_ref,
        fcw_ref, fcb_ref, fc2w_ref, fc2b_ref,
        logits_ref, xrs_ref, kl_ref):
    P1 = (IMG // 2) ** 2          # 256 pixels after encoder conv1 / decoder output pixels

    # ---------------- encoder (conv stack 3->16->32->64->128, BN folded, LeakyReLU) ----
    y1 = _leaky(jnp.dot(cols1_ref[...].astype(BF16), w1_ref[...],
                        preferred_element_type=F32) + b1_ref[...])          # (B*256, 16)

    enc_layers = ((s2_ref, w2_ref, b2_ref),
                  (s3_ref, w3_ref, b3_ref),
                  (s4_ref, w4_ref, b4_ref))

    y4_rows = []
    for b in range(B):                                   # per-sample: selection mats are shared
        yb = y1[b * P1:(b + 1) * P1, :]
        for s_ref, w_ref, bias_ref in enc_layers:
            yb16 = yb.astype(BF16)
            # tap-selection first (9 gathers), then ONE tap-concatenated weight matmul
            gathered = jnp.concatenate(
                [jnp.dot(s_ref[k], yb16, preferred_element_type=F32) for k in range(9)],
                axis=1)                                                      # (Pout, 9*Cin)
            yb = _leaky(jnp.dot(gathered.astype(BF16), w_ref[...],
                                preferred_element_type=F32) + bias_ref[...])
        # yb: (4, 128) -> one (1, 512) row; torch's (c,h,w) flatten order is baked into mv_w
        y4_rows.append(jnp.concatenate([yb[p:p + 1, :] for p in range(4)], axis=1))
    y4_flat = jnp.concatenate(y4_rows, axis=0)                               # (B, 512)

    # fused mu|var head: single (B,512)@(512,2*LATENT) matmul
    mv = jnp.dot(y4_flat.astype(BF16), mvw_ref[...],
                 preferred_element_type=F32) + mvb_ref[...]
    mu = mv[:, :LATENT]
    var = mv[:, LATENT:]
    # reproduces Encoder.reparameterize exactly: std = exp(0.5 * mu(x)) (mu, not var)
    std = jnp.exp(0.5 * mu)
    z = eps_ref[...] * std + mu                                              # (B, 256)
    per = -0.5 * jnp.sum(1.0 + var - mu * mu - jnp.exp(var), axis=1, keepdims=True)
    kl_ref[...] = 0.5 * jnp.mean(per, axis=0, keepdims=True)                 # kl_weight = 0.5

    # ---------------- decoder + bilinear resize + backbone(x_hat) branch ----------------
    dec_layers = ((dw1_ref, db1_ref, 64), (dw2_ref, db2_ref, 32),
                  (dw3_ref, db3_ref, 16), (dw4_ref, db4_ref, 3))

    pooled_xh = []
    for b in range(B):
        yb = z[b:b + 1, :]                                                   # (1, 256)
        for w_ref, bias_ref, cout in dec_layers:
            # ConvTranspose2d(k=2, s=2): one matmul, then regroup the 4 offset column
            # blocks into rows (pure slicing; no scatter matrices needed)
            t = _leaky(jnp.dot(yb.astype(BF16), w_ref[...],
                               preferred_element_type=F32) + bias_ref[...])  # (P, 4*Cout)
            yb = jnp.concatenate([t[:, d * cout:(d + 1) * cout] for d in range(4)], axis=0)
        # yb == x_hat for sample b: (256, 3), rows in decoder pixel order (host-side maps it)

        # bilinear 16->32 resize, channel-major rows -> lane-dense (3, 1024) store
        xrs_ref[3 * b:3 * b + 3, :] = jnp.dot(yb.T.astype(BF16), rzt_ref[...],
                                              preferred_element_type=F32)

        # 4x4 patch im2col of x_hat via row slicing: each within-patch offset is a
        # contiguous 16-row block in decoder pixel order (patch order is GAP-invariant)
        cols = jnp.concatenate([yb[g * 16:(g + 1) * 16, :] for g in range(16)], axis=1)
        e = jnp.maximum(jnp.dot(cols.astype(BF16), embxh_ref[...],
                                preferred_element_type=F32) + embb_ref[...], 0.0)
        pooled_xh.append(jnp.mean(e, axis=0, keepdims=True))                 # GAP over patches
    pooled_xh = jnp.concatenate(pooled_xh, axis=0)                           # (B, 32)

    # ---------------- backbone(x) branch + classifier head ----------------
    # TODO(synk): pretrained timm ConvNeXt + HybridEmbed replaced by a synthetic
    #             4x4 patch-embed + GAP + linear head (same weights for both branches).
    ex = jnp.maximum(jnp.dot(colsx_ref[...].astype(BF16), embx_ref[...],
                             preferred_element_type=F32) + embb_ref[...], 0.0)   # (B*64, 32)
    npatch = (IMG // 4) ** 2
    pooled_x = jnp.concatenate(
        [jnp.mean(ex[b * npatch:(b + 1) * npatch, :], axis=0, keepdims=True) for b in range(B)],
        axis=0)                                                               # (B, 32)
    x1 = jnp.dot(pooled_x.astype(BF16), headw_ref[...],
                 preferred_element_type=F32) + headb_ref[...]                 # backbone(x)
    x2 = jnp.dot(pooled_xh.astype(BF16), headw_ref[...],
                 preferred_element_type=F32) + headb_ref[...]                 # backbone(x_hat)
    # fc2(relu(fc(relu(cat(x1, x2)))))
    cat = jnp.concatenate([jnp.maximum(x1, 0.0), jnp.maximum(x2, 0.0)], axis=1)
    h = jnp.maximum(jnp.dot(cat.astype(BF16), fcw_ref[...],
                            preferred_element_type=F32) + fcb_ref[...], 0.0)
    logits_ref[...] = jnp.dot(h.astype(BF16), fc2w_ref[...],
                              preferred_element_type=F32) + fc2b_ref[...]


# ----------------------------- host-side constant builders --------------------
def _fold_bn(w, b, gamma, beta, rm, rv):
    # TODO(synk): BatchNorm2d reproduced in eval mode (running-stats affine), not batch stats.
    w, b, gamma, beta, rm, rv = map(np.asarray, (w, b, gamma, beta, rm, rv))
    scale = gamma / np.sqrt(rv + BN_EPS)
    return w * scale[:, None, None, None], (b - rm) * scale + beta


def _conv_sel_single(H, W):
    """(9, Ho*Wo, H*W) per-sample 0/1 matrices selecting input pixel (2ho+kh-1, 2wo+kw-1)."""
    Ho, Wo = H // 2, W // 2
    S = np.zeros((9, Ho * Wo, H * W), np.float32)
    for kh in range(3):
        for kw in range(3):
            k = kh * 3 + kw
            for ho in range(Ho):
                hi = 2 * ho + kh - 1
                if not (0 <= hi < H):
                    continue
                for wo in range(Wo):
                    wi = 2 * wo + kw - 1
                    if not (0 <= wi < W):
                        continue
                    S[k, ho * Wo + wo, hi * W + wi] = 1.0
    return S


def _resize_matrix(n_out, n_in):
    # Bilinear, align_corners=False (antialias only affects downsampling -> irrelevant here).
    R = np.zeros((n_out, n_in), np.float32)
    scale = n_in / n_out
    for o in range(n_out):
        src = min(max((o + 0.5) * scale - 0.5, 0.0), n_in - 1)
        i0 = int(np.floor(src))
        i1 = min(i0 + 1, n_in - 1)
        f = src - i0
        R[o, i0] += 1.0 - f
        R[o, i1] += f
    return R


def _dec_row_to_hw():
    """Decoder row order after 4x (slice + row-concat): row = d4*64 + d3*16 + d2*4 + d1."""
    hw = []
    for r in range((IMG // 2) ** 2):
        d4, d3, d2, d1 = r // 64, (r // 16) % 4, (r // 4) % 4, r % 4
        h = 8 * (d1 // 2) + 4 * (d2 // 2) + 2 * (d3 // 2) + (d4 // 2)
        w = 8 * (d1 % 2) + 4 * (d2 % 2) + 2 * (d3 % 2) + (d4 % 2)
        hw.append((h, w))
    return hw


# ----------------------------- parameters --------------------------------------
def _init(key, shape, scale=0.05):
    return scale * jax.random.normal(key, shape, dtype=jnp.float32)


def init_params(key):
    keys = iter(jax.random.split(key, 64))
    p = {"enc": []}
    for cin, cout in [(3, 16), (16, 32), (32, 64), (64, 128)]:
        p["enc"].append(dict(
            w=_init(next(keys), (cout, cin, 3, 3)),
            b=_init(next(keys), (cout,)),
            gamma=1.0 + _init(next(keys), (cout,)),
            beta=_init(next(keys), (cout,)),
            rm=_init(next(keys), (cout,)),
            rv=jnp.abs(1.0 + _init(next(keys), (cout,))),
        ))
    enc_feat = 128 * (IMG // 16) ** 2                     # 512 (original 128*14*14)
    p["mu_w"] = _init(next(keys), (LATENT, enc_feat));  p["mu_b"] = _init(next(keys), (LATENT,))
    p["var_w"] = _init(next(keys), (LATENT, enc_feat)); p["var_b"] = _init(next(keys), (LATENT,))
    p["dec"] = []
    for cin, cout in [(256, 64), (64, 32), (32, 16), (16, 3)]:
        p["dec"].append((_init(next(keys), (cin, cout, 2, 2)), _init(next(keys), (cout,))))
    p["backbone"] = dict(
        embed_w=_init(next(keys), (BACKBONE_EMBED, 3, 4, 4)),
        embed_b=_init(next(keys), (BACKBONE_EMBED,)),
        head_w=_init(next(keys), (BACKBONE_OUT, BACKBONE_EMBED)),
        head_b=_init(next(keys), (BACKBONE_OUT,)),
    )
    p["fc_w"] = _init(next(keys), (NUM_FEATURE // 4, NUM_FEATURE))
    p["fc_b"] = _init(next(keys), (NUM_FEATURE // 4,))
    p["fc2_w"] = _init(next(keys), (NUM_CLASSES, NUM_FEATURE // 4))
    p["fc2_b"] = _init(next(keys), (NUM_CLASSES,))
    # fc3 / encoder.fc1 / encoder.fc2 exist in __init__ but are unused in forward -> omitted.
    return p


def prepare_params(p):
    """One-time host prep: fold BN, pack weights to kernel layouts (bf16), build constants."""
    pp = {}
    # encoder layer 1 (im2col columns ordered (c, kh, kw) by the XLA wrapper)
    l = p["enc"][0]
    w, b = _fold_bn(l["w"], l["b"], l["gamma"], l["beta"], l["rm"], l["rv"])
    pp["enc_w1"] = jnp.asarray(w.reshape(w.shape[0], -1).T, BF16)            # (27, 16)
    pp["enc_b1"] = jnp.asarray(b.reshape(1, -1), F32)
    # encoder layers 2..4: per-sample tap selections + tap-concatenated weight
    for i, H in zip((2, 3, 4), (16, 8, 4)):
        l = p["enc"][i - 1]
        w, b = _fold_bn(l["w"], l["b"], l["gamma"], l["beta"], l["rm"], l["rv"])
        wcat = np.concatenate([w[:, :, kh, kw].T for kh in range(3) for kw in range(3)], axis=0)
        pp[f"enc_s{i}"] = jnp.asarray(_conv_sel_single(H, H), BF16)          # (9, Pout, Pin)
        pp[f"enc_w{i}"] = jnp.asarray(wcat, BF16)                            # (9*Cin, Cout)
        pp[f"enc_b{i}"] = jnp.asarray(b.reshape(1, -1), F32)

    # mu/var head fused into one (512, 2*LATENT) matmul; rows permuted to the kernel's
    # (p, c) flatten order, reproducing torch's (c, h, w) flatten of (128, 2, 2).
    def head(wm):
        wm = np.asarray(wm).reshape(LATENT, 128, 4)                          # (l, c, p)
        return np.transpose(wm, (2, 1, 0)).reshape(4 * 128, LATENT)          # rows (p, c)
    pp["mv_w"] = jnp.asarray(np.concatenate([head(p["mu_w"]), head(p["var_w"])], axis=1), BF16)
    pp["mv_b"] = jnp.asarray(np.concatenate([np.asarray(p["mu_b"]),
                                             np.asarray(p["var_b"])]).reshape(1, -1), F32)

    # decoder ConvTranspose(k=2,s=2): one (Cin, 4*Cout) matrix per layer, bias tiled per offset
    for i, (w, b) in enumerate(p["dec"], 1):
        w, b = np.asarray(w), np.asarray(b)
        wf = np.concatenate([w[:, :, dh, dw] for dh in range(2) for dw in range(2)], axis=1)
        pp[f"dec_w{i}"] = jnp.asarray(wf, BF16)                              # (Cin, 4*Cout)
        pp[f"dec_b{i}"] = jnp.asarray(np.tile(b, 4).reshape(1, -1), F32)

    # bilinear 16->32 resize as a single per-sample (256, 1024) matrix indexed by the
    # decoder's pixel order; applied to x_hat^T so the output is channel-major/lane-dense.
    R = _resize_matrix(IMG, IMG // 2)
    rzt = np.zeros(((IMG // 2) ** 2, IMG * IMG), np.float32)
    for r, (h, w_) in enumerate(_dec_row_to_hw()):
        rzt[r, :] = np.kron(R[:, h], R[:, w_])
    pp["rz_t"] = jnp.asarray(rzt, BF16)

    # synthetic backbone: two packings of the same 4x4 patch-embed weight
    bb = p["backbone"]
    ew = np.asarray(bb["embed_w"])                                           # (32, 3, 4, 4)
    pp["emb_x"] = jnp.asarray(ew.reshape(BACKBONE_EMBED, -1).T, BF16)        # rows (c, dh, dw)
    exh = np.zeros((48, BACKBONE_EMBED), np.float32)                         # rows (block g, c)
    for g in range(16):
        d3, d4 = g % 4, g // 4
        oh = 2 * (d3 // 2) + (d4 // 2)
        ow = 2 * (d3 % 2) + (d4 % 2)
        for c in range(3):
            exh[g * 3 + c, :] = ew[:, c, oh, ow]
    pp["emb_xh"] = jnp.asarray(exh, BF16)
    pp["emb_b"] = jnp.asarray(np.asarray(bb["embed_b"]).reshape(1, -1), F32)
    pp["head_w"] = jnp.asarray(np.asarray(bb["head_w"]).T, BF16)
    pp["head_b"] = jnp.asarray(np.asarray(bb["head_b"]).reshape(1, -1), F32)
    pp["fc_w"] = jnp.asarray(np.asarray(p["fc_w"]).T, BF16)
    pp["fc_b"] = jnp.asarray(np.asarray(p["fc_b"]).reshape(1, -1), F32)
    pp["fc2_w"] = jnp.asarray(np.asarray(p["fc2_w"]).T, BF16)
    pp["fc2_b"] = jnp.asarray(np.asarray(p["fc2_b"]).reshape(1, -1), F32)
    return pp


# ----------------------------- XLA-side glue (before the single call) -----------
def _im2col_3x3_s2(x):
    Bn, C, H, W = x.shape
    Ho, Wo = H // 2, W // 2
    xp = jnp.pad(x, ((0, 0), (0, 0), (1, 1), (1, 1)))
    cols = [xp[:, :, kh:kh + 2 * Ho:2, kw:kw + 2 * Wo:2] for kh in range(3) for kw in range(3)]
    cols = jnp.stack(cols, 0).reshape(3, 3, Bn, C, Ho, Wo)
    return cols.transpose(2, 4, 5, 3, 0, 1).reshape(Bn * Ho * Wo, C * 9)


def _patch_cols_4x4(x):
    Bn, C, H, W = x.shape
    Hp, Wp = H // 4, W // 4
    return x.reshape(Bn, C, Hp, 4, Wp, 4).transpose(0, 2, 4, 1, 3, 5).reshape(Bn * Hp * Wp, C * 16)


# ----------------------------- forward ------------------------------------------
def genconvit_vae_forward(pp, x, eps):
    cols1 = _im2col_3x3_s2(x)        # (B*256, 27): only conv1's im2col is XLA-side
    cols_x = _patch_cols_4x4(x)      # (B*64, 48): patch-embed columns for backbone(x)

    n_in = 34
    logits, xrs_rows, kl = pl.pallas_call(
        _genconvit_kernel,
        out_shape=(jax.ShapeDtypeStruct((B, NUM_CLASSES), jnp.float32),
                   jax.ShapeDtypeStruct((B * 3, IMG * IMG), jnp.float32),   # lane-dense
                   jax.ShapeDtypeStruct((1, 1), jnp.float32)),
        in_specs=[pl.BlockSpec(memory_space=VMEM)] * n_in,
        out_specs=(pl.BlockSpec(memory_space=VMEM),
                   pl.BlockSpec(memory_space=VMEM),
                   pl.BlockSpec(memory_space=VMEM)),
        compiler_params=pltpu.CompilerParams(vmem_limit_bytes=32 * 1024 * 1024),
        cost_estimate=pl.CostEstimate(flops=16_000_000, transcendentals=1_024,
                                      bytes_accessed=2_500_000),
    )(cols1, cols_x, eps,
      pp["enc_w1"], pp["enc_b1"],
      pp["enc_s2"], pp["enc_w2"], pp["enc_b2"],
      pp["enc_s3"], pp["enc_w3"], pp["enc_b3"],
      pp["enc_s4"], pp["enc_w4"], pp["enc_b4"],
      pp["mv_w"], pp["mv_b"],
      pp["dec_w1"], pp["dec_b1"], pp["dec_w2"], pp["dec_b2"],
      pp["dec_w3"], pp["dec_b3"], pp["dec_w4"], pp["dec_b4"],
      pp["rz_t"],
      pp["emb_x"], pp["emb_xh"], pp["emb_b"],
      pp["head_w"], pp["head_b"],
      pp["fc_w"], pp["fc_b"], pp["fc2_w"], pp["fc2_b"])

    # channel-major rows -> NCHW is a pure reshape (no transpose)
    x_hat_resized = xrs_rows.reshape(B, 3, IMG, IMG)
    return logits, x_hat_resized, kl[0, 0]


if __name__ == "__main__":
    root = jax.random.PRNGKey(0)
    pkey, xkey, ekey = jax.random.split(root, 3)
    params = init_params(pkey)
    pp = prepare_params(params)
    x = jax.random.normal(xkey, (B, 3, IMG, IMG), dtype=jnp.float32)
    eps = jax.random.normal(ekey, (B, LATENT), dtype=jnp.float32)   # torch.randn_like substitute

    fwd = jax.jit(genconvit_vae_forward)
    logits, x_hat_resized, kl = fwd(pp, x, eps)
    jax.block_until_ready((logits, x_hat_resized, kl))

    assert logits.shape == (B, NUM_CLASSES)
    assert x_hat_resized.shape == (B, 3, IMG, IMG)
    assert jnp.all(jnp.isfinite(logits)) and jnp.all(jnp.isfinite(x_hat_resized))
    assert jnp.isfinite(kl)
    print("KERNEL_OK")
</pallas_src>

<mosaic_0001>
module attributes {stable_mosaic.version = 11 : i64} {
  func.func @_genconvit_kernel(%arg0: memref<512x27xf32, #tpu.memory_space<vmem>>, %arg1: memref<128x48xf32, #tpu.memory_space<vmem>>, %arg2: memref<2x256xf32, #tpu.memory_space<vmem>>, %arg3: memref<27x16xbf16, #tpu.memory_space<vmem>>, %arg4: memref<1x16xf32, #tpu.memory_space<vmem>>, %arg5: memref<9x64x256xbf16, #tpu.memory_space<vmem>>, %arg6: memref<144x32xbf16, #tpu.memory_space<vmem>>, %arg7: memref<1x32xf32, #tpu.memory_space<vmem>>, %arg8: memref<9x16x64xbf16, #tpu.memory_space<vmem>>, %arg9: memref<288x64xbf16, #tpu.memory_space<vmem>>, %arg10: memref<1x64xf32, #tpu.memory_space<vmem>>, %arg11: memref<9x4x16xbf16, #tpu.memory_space<vmem>>, %arg12: memref<576x128xbf16, #tpu.memory_space<vmem>>, %arg13: memref<1x128xf32, #tpu.memory_space<vmem>>, %arg14: memref<512x512xbf16, #tpu.memory_space<vmem>>, %arg15: memref<1x512xf32, #tpu.memory_space<vmem>>, %arg16: memref<256x256xbf16, #tpu.memory_space<vmem>>, %arg17: memref<1x256xf32, #tpu.memory_space<vmem>>, %arg18: memref<64x128xbf16, #tpu.memory_space<vmem>>, %arg19: memref<1x128xf32, #tpu.memory_space<vmem>>, %arg20: memref<32x64xbf16, #tpu.memory_space<vmem>>, %arg21: memref<1x64xf32, #tpu.memory_space<vmem>>, %arg22: memref<16x12xbf16, #tpu.memory_space<vmem>>, %arg23: memref<1x12xf32, #tpu.memory_space<vmem>>, %arg24: memref<256x1024xbf16, #tpu.memory_space<vmem>>, %arg25: memref<48x32xbf16, #tpu.memory_space<vmem>>, %arg26: memref<48x32xbf16, #tpu.memory_space<vmem>>, %arg27: memref<1x32xf32, #tpu.memory_space<vmem>>, %arg28: memref<32x16xbf16, #tpu.memory_space<vmem>>, %arg29: memref<1x16xf32, #tpu.memory_space<vmem>>, %arg30: memref<32x8xbf16, #tpu.memory_space<vmem>>, %arg31: memref<1x8xf32, #tpu.memory_space<vmem>>, %arg32: memref<8x2xbf16, #tpu.memory_space<vmem>>, %arg33: memref<1x2xf32, #tpu.memory_space<vmem>>, %arg34: memref<2x2xf32, #tpu.memory_space<vmem>>, %arg35: memref<6x1024xf32, #tpu.memory_space<vmem>>, %arg36: memref<1x1xf32, #tpu.memory_space<vmem>>) attributes {dimension_semantics = [], scalar_prefetch = 0 : i64, scratch_operands = 0 : i64, tpu.core_type = #tpu.core_type<tc>} {
    %c0 = arith.constant 0 : index
    %c0_0 = arith.constant 0 : index
    %0 = vector.load %arg0[%c0, %c0_0] : memref<512x27xf32, #tpu.memory_space<vmem>>, vector<512x27xf32>
    %1 = arith.truncf %0 : vector<512x27xf32> to vector<512x27xbf16>
    %c0_1 = arith.constant 0 : index
    %c0_2 = arith.constant 0 : index
    %2 = vector.load %arg3[%c0_1, %c0_2] : memref<27x16xbf16, #tpu.memory_space<vmem>>, vector<27x16xbf16>
    %cst = arith.constant dense<0.000000e+00> : vector<512x16xf32>
    %3 = tpu.matmul %1, %2, %cst {dimension_numbers = #tpu.dot_dimension_numbers<[1], [0], [0], [1], [0, 0, 1, 1], [], []>} : vector<512x27xbf16>, vector<27x16xbf16>, vector<512x16xf32> -> vector<512x16xf32>
    %c0_3 = arith.constant 0 : index
    %c0_4 = arith.constant 0 : index
    %4 = vector.load %arg4[%c0_3, %c0_4] : memref<1x16xf32, #tpu.memory_space<vmem>>, vector<1x16xf32>
    %5 = vector.broadcast %4 : vector<1x16xf32> to vector<512x16xf32>
    %6 = arith.addf %3, %5 : vector<512x16xf32>
    %cst_5 = arith.constant 0.000000e+00 : f32
    %7 = vector.broadcast %cst_5 : f32 to vector<512x16xf32>
    %8 = arith.cmpf oge, %6, %7 : vector<512x16xf32>
    %cst_6 = arith.constant 0.00999999977 : f32
    %9 = vector.broadcast %cst_6 : f32 to vector<512x16xf32>
    %10 = arith.mulf %9, %6 : vector<512x16xf32>
    %11 = arith.select %8, %6, %10 : vector<512x16xi1>, vector<512x16xf32>
    %12 = vector.extract_strided_slice %11 {offsets = [0, 0], sizes = [256, 16], strides = [1, 1]} : vector<512x16xf32> to vector<256x16xf32>
    %13 = arith.truncf %12 : vector<256x16xf32> to vector<256x16xbf16>
    %c0_7 = arith.constant 0 : index
    %c0_8 = arith.constant 0 : index
    %c0_9 = arith.constant 0 : index
    %14 = vector.load %arg5[%c0_7, %c0_8, %c0_9] : memref<9x64x256xbf16, #tpu.memory_space<vmem>>, vector<1x64x256xbf16>
    %15 = vector.shape_cast %14 : vector<1x64x256xbf16> to vector<64x256xbf16>
    %cst_10 = arith.constant dense<0.000000e+00> : vector<64x16xf32>
    %16 = tpu.matmul %15, %13, %cst_10 {dimension_numbers = #tpu.dot_dimension_numbers<[1], [0], [0], [1], [0, 0, 1, 1], [], []>} : vector<64x256xbf16>, vector<256x16xbf16>, vector<64x16xf32> -> vector<64x16xf32>
    %c1 = arith.constant 1 : index
    %c0_11 = arith.constant 0 : index
    %c0_12 = arith.constant 0 : index
    %17 = vector.load %arg5[%c1, %c0_11, %c0_12] : memref<9x64x256xbf16, #tpu.memory_space<vmem>>, vector<1x64x256xbf16>
    %18 = vector.shape_cast %17 : vector<1x64x256xbf16> to vector<64x256xbf16>
    %cst_13 = arith.constant dense<0.000000e+00> : vector<64x16xf32>
    %19 = tpu.matmul %18, %13, %cst_13 {dimension_numbers = #tpu.dot_dimension_numbers<[1], [0], [0], [1], [0, 0, 1, 1], [], []>} : vector<64x256xbf16>, vector<256x16xbf16>, vector<64x16xf32> -> vector<64x16xf32>
    %c2 = arith.constant 2 : index
    %c0_14 = arith.constant 0 : index
    %c0_15 = arith.constant 0 : index
    %20 = vector.load %arg5[%c2, %c0_14, %c0_15] : memref<9x64x256xbf16, #tpu.memory_space<vmem>>, vector<1x64x256xbf16>
    %21 = vector.shape_cast %20 : vector<1x64x256xbf16> to vector<64x256xbf16>
    %cst_16 = arith.constant dense<0.000000e+00> : vector<64x16xf32>
    %22 = tpu.matmul %21, %13, %cst_16 {dimension_numbers = #tpu.dot_dimension_numbers<[1], [0], [0], [1], [0, 0, 1, 1], [], []>} : vector<64x256xbf16>, vector<256x16xbf16>, vector<64x16xf32> -> vector<64x16xf32>
    %c3 = arith.constant 3 : index
    %c0_17 = arith.constant 0 : index
    %c0_18 = arith.constant 0 : index
    %23 = vector.load %arg5[%c3, %c0_17, %c0_18] : memref<9x64x256xbf16, #tpu.memory_space<vmem>>, vector<1x64x256xbf16>
    %24 = vector.shape_cast %23 : vector<1x64x256xbf16> to vector<64x256xbf16>
    %cst_19 = arith.constant dense<0.000000e+00> : vector<64x16xf32>
    %25 = tpu.matmul %24, %13, %cst_19 {dimension_numbers = #tpu.dot_dimension_numbers<[1], [0], [0], [1], [0, 0, 1, 1], [], []>} : vector<64x256xbf16>, vector<256x16xbf16>, vector<64x16xf32> -> vector<64x16xf32>
    %c4 = arith.constant 4 : index
    %c0_20 = arith.constant 0 : index
    %c0_21 = arith.constant 0 : index
    %26 = vector.load %arg5[%c4, %c0_20, %c0_21] : memref<9x64x256xbf16, #tpu.memory_space<vmem>>, vector<1x64x256xbf16>
    %27 = vector.shape_cast %26 : vector<1x64x256xbf16> to vector<64x256xbf16>
    %cst_22 = arith.constant dense<0.000000e+00> : vector<64x16xf32>
    %28 = tpu.matmul %27, %13, %cst_22 {dimension_numbers = #tpu.dot_dimension_numbers<[1], [0], [0], [1], [0, 0, 1, 1], [], []>} : vector<64x256xbf16>, vector<256x16xbf16>, vector<64x16xf32> -> vector<64x16xf32>
    %c5 = arith.constant 5 : index
    %c0_23 = arith.constant 0 : index
    %c0_24 = arith.constant 0 : index
    %29 = vector.load %arg5[%c5, %c0_23, %c0_24] : memref<9x64x256xbf16, #tpu.memory_space<vmem>>, vector<1x64x256xbf16>
    %30 = vector.shape_cast %29 : vector<1x64x256xbf16> to vector<64x256xbf16>
    %cst_25 = arith.constant dense<0.000000e+00> : vector<64x16xf32>
    %31 = tpu.matmul %30, %13, %cst_25 {dimension_numbers = #tpu.dot_dimension_numbers<[1], [0], [0], [1], [0, 0, 1, 1], [], []>} : vector<64x256xbf16>, vector<256x16xbf16>, vector<64x16xf32> -> vector<64x16xf32>
    %c6 = arith.constant 6 : index
    %c0_26 = arith.constant 0 : index
    %c0_27 = arith.constant 0 : index
    %32 = vector.load %arg5[%c6, %c0_26, %c0_27] : memref<9x64x256xbf16, #tpu.memory_space<vmem>>, vector<1x64x256xbf16>
    %33 = vector.shape_cast %32 : vector<1x64x256xbf16> to vector<64x256xbf16>
    %cst_28 = arith.constant dense<0.000000e+00> : vector<64x16xf32>
    %34 = tpu.matmul %33, %13, %cst_28 {dimension_numbers = #tpu.dot_dimension_numbers<[1], [0], [0], [1], [0, 0, 1, 1], [], []>} : vector<64x256xbf16>, vector<256x16xbf16>, vector<64x16xf32> -> vector<64x16xf32>
    %c7 = arith.constant 7 : index
    %c0_29 = arith.constant 0 : index
    %c0_30 = arith.constant 0 : index
    %35 = vector.load %arg5[%c7, %c0_29, %c0_30] : memref<9x64x256xbf16, #tpu.memory_space<vmem>>, vector<1x64x256xbf16>
    %36 = vector.shape_cast %35 : vector<1x64x256xbf16> to vector<64x256xbf16>
    %cst_31 = arith.constant dense<0.000000e+00> : vector<64x16xf32>
    %37 = tpu.matmul %36, %13, %cst_31 {dimension_numbers = #tpu.dot_dimension_numbers<[1], [0], [0], [1], [0, 0, 1, 1], [], []>} : vector<64x256xbf16>, vector<256x16xbf16>, vector<64x16xf32> -> vector<64x16xf32>
    %c8 = arith.constant 8 : index
    %c0_32 = arith.constant 0 : index
    %c0_33 = arith.constant 0 : index
    %38 = vector.load %arg5[%c8, %c0_32, %c0_33] : memref<9x64x256xbf16, #tpu.memory_space<vmem>>, vector<1x64x256xbf16>
    %39 = vector.shape_cast %38 : vector<1x64x256xbf16> to vector<64x256xbf16>
    %cst_34 = arith.constant dense<0.000000e+00> : vector<64x16xf32>
    %40 = tpu.matmul %39, %13, %cst_34 {dimension_numbers = #tpu.dot_dimension_numbers<[1], [0], [0], [1], [0, 0, 1, 1], [], []>} : vector<64x256xbf16>, vector<256x16xbf16>, vector<64x16xf32> -> vector<64x16xf32>
    %41 = tpu.concatenate %16, %19, %22, %25, %28, %31, %34, %37, %40 in 1 : vector<64x16xf32>, vector<64x16xf32>, vector<64x16xf32>, vector<64x16xf32>, vector<64x16xf32>, vector<64x16xf32>, vector<64x16xf32>, vector<64x16xf32>, vector<64x16xf32> -> vector<64x144xf32>
    %42 = arith.truncf %41 : vector<64x144xf32> to vector<64x144xbf16>
    %c0_35 = arith.constant 0 : index
    %c0_36 = arith.constant 0 : index
    %43 = vector.load %arg6[%c0_35, %c0_36] : memref<144x32xbf16, #tpu.memory_space<vmem>>, vector<144x32xbf16>
    %cst_37 = arith.constant dense<0.000000e+00> : vector<64x32xf32>
    %44 = tpu.matmul %42, %43, %cst_37 {dimension_numbers = #tpu.dot_dimension_numbers<[1], [0], [0], [1], [0, 0, 1, 1], [], []>} : vector<64x144xbf16>, vector<144x32xbf16>, vector<64x32xf32> -> vector<64x32xf32>
    %c0_38 = arith.constant 0 : index
    %c0_39 = arith.constant 0 : index
    %45 = vector.load %arg7[%c0_38, %c0_39] : memref<1x32xf32, #tpu.memory_space<vmem>>, vector<1x32xf32>
    %46 = vector.broadcast %45 : vector<1x32xf32> to vector<64x32xf32>
    %47 = arith.addf %44, %46 : vector<64x32xf32>
    %cst_40 = arith.constant 0.000000e+00 : f32
    %48 = vector.broadcast %cst_40 : f32 to vector<64x32xf32>
    %49 = arith.cmpf oge, %47, %48 : vector<64x32xf32>
    %cst_41 = arith.constant 0.00999999977 : f32
    %50 = vector.broadcast %cst_41 : f32 to vector<64x32xf32>
    %51 = arith.mulf %50, %47 : vector<64x32xf32>
    %52 = arith.select %49, %47, %51 : vector<64x32xi1>, vector<64x32xf32>
    %53 = arith.truncf %52 : vector<64x32xf32> to vector<64x32xbf16>
    %c0_42 = arith.constant 0 : index
    %c0_43 = arith.constant 0 : index
    %c0_44 = arith.constant 0 : index
    %54 = vector.load %arg8[%c0_42, %c0_43, %c0_44] : memref<9x16x64xbf16, #tpu.memory_space<vmem>>, vector<1x16x64xbf16>
    %55 = vector.shape_cast %54 : vector<1x16x64xbf16> to vector<16x64xbf16>
    %cst_45 = arith.constant dense<0.000000e+00> : vector<16x32xf32>
    %56 = tpu.matmul %55, %53, %cst_45 {dimension_numbers = #tpu.dot_dimension_numbers<[1], [0], [0], [1], [0, 0, 1, 1], [], []>} : vector<16x64xbf16>, vector<64x32xbf16>, vector<16x32xf32> -> vector<16x32xf32>
    %c1_46 = arith.constant 1 : index
    %c0_47 = arith.constant 0 : index
    %c0_48 = arith.constant 0 : index
    %57 = vector.load %arg8[%c1_46, %c0_47, %c0_48] : memref<9x16x64xbf16, #tpu.memory_space<vmem>>, vector<1x16x64xbf16>
    %58 = vector.shape_cast %57 : vector<1x16x64xbf16> to vector<16x64xbf16>
    %cst_49 = arith.constant dense<0.000000e+00> : vector<16x32xf32>
    %59 = tpu.matmul %58, %53, %cst_49 {dimension_numbers = #tpu.dot_dimension_numbers<[1], [0], [0], [1], [0, 0, 1, 1], [], []>} : vector<16x64xbf16>, vector<64x32xbf16>, vector<16x32xf32> -> vector<16x32xf32>
    %c2_50 = arith.constant 2 : index
    %c0_51 = arith.constant 0 : index
    %c0_52 = arith.constant 0 : index
    %60 = vector.load %arg8[%c2_50, %c0_51, %c0_52] : memref<9x16x64xbf16, #tpu.memory_space<vmem>>, vector<1x16x64xbf16>
    %61 = vector.shape_cast %60 : vector<1x16x64xbf16> to vector<16x64xbf16>
    %cst_53 = arith.constant dense<0.000000e+00> : vector<16x32xf32>
    %62 = tpu.matmul %61, %53, %cst_53 {dimension_numbers = #tpu.dot_dimension_numbers<[1], [0], [0], [1], [0, 0, 1, 1], [], []>} : vector<16x64xbf16>, vector<64x32xbf16>, vector<16x32xf32> -> vector<16x32xf32>
    %c3_54 = arith.constant 3 : index
    %c0_55 = arith.constant 0 : index
    %c0_56 = arith.constant 0 : index
    %63 = vector.load %arg8[%c3_54, %c0_55, %c0_56] : memref<9x16x64xbf16, #tpu.memory_space<vmem>>, vector<1x16x64xbf16>
    %64 = vector.shape_cast %63 : vector<1x16x64xbf16> to vector<16x64xbf16>
    %cst_57 = arith.constant dense<0.000000e+00> : vector<16x32xf32>
    %65 = tpu.matmul %64, %53, %cst_57 {dimension_numbers = #tpu.dot_dimension_numbers<[1], [0], [0], [1], [0, 0, 1, 1], [], []>} : vector<16x64xbf16>, vector<64x32xbf16>, vector<16x32xf32> -> vector<16x32xf32>
    %c4_58 = arith.constant 4 : index
    %c0_59 = arith.constant 0 : index
    %c0_60 = arith.constant 0 : index
    %66 = vector.load %arg8[%c4_58, %c0_59, %c0_60] : memref<9x16x64xbf16, #tpu.memory_space<vmem>>, vector<1x16x64xbf16>
    %67 = vector.shape_cast %66 : vector<1x16x64xbf16> to vector<16x64xbf16>
    %cst_61 = arith.constant dense<0.000000e+00> : vector<16x32xf32>
    %68 = tpu.matmul %67, %53, %cst_61 {dimension_numbers = #tpu.dot_dimension_numbers<[1], [0], [0], [1], [0, 0, 1, 1], [], []>} : vector<16x64xbf16>, vector<64x32xbf16>, vector<16x32xf32> -> vector<16x32xf32>
    %c5_62 = arith.constant 5 : index
    %c0_63 = arith.constant 0 : index
    %c0_64 = arith.constant 0 : index
    %69 = vector.load %arg8[%c5_62, %c0_63, %c0_64] : memref<9x16x64xbf16, #tpu.memory_space<vmem>>, vector<1x16x64xbf16>
    %70 = vector.shape_cast %69 : vector<1x16x64xbf16> to vector<16x64xbf16>
    %cst_65 = arith.constant dense<0.000000e+00> : vector<16x32xf32>
    %71 = tpu.matmul %70, %53, %cst_65 {dimension_numbers = #tpu.dot_dimension_numbers<[1], [0], [0], [1], [0, 0, 1, 1], [], []>} : vector<16x64xbf16>, vector<64x32xbf16>, vector<16x32xf32> -> vector<16x32xf32>
    %c6_66 = arith.constant 6 : index
    %c0_67 = arith.constant 0 : index
    %c0_68 = arith.constant 0 : index
    %72 = vector.load %arg8[%c6_66, %c0_67, %c0_68] : memref<9x16x64xbf16, #tpu.memory_space<vmem>>, vector<1x16x64xbf16>
    %73 = vector.shape_cast %72 : vector<1x16x64xbf16> to vector<16x64xbf16>
    %cst_69 = arith.constant dense<0.000000e+00> : vector<16x32xf32>
    %74 = tpu.matmul %73, %53, %cst_69 {dimension_numbers = #tpu.dot_dimension_numbers<[1], [0], [0], [1], [0, 0, 1, 1], [], []>} : vector<16x64xbf16>, vector<64x32xbf16>, vector<16x32xf32> -> vector<16x32xf32>
    %c7_70 = arith.constant 7 : index
    %c0_71 = arith.constant 0 : index
    %c0_72 = arith.constant 0 : index
    %75 = vector.load %arg8[%c7_70, %c0_71, %c0_72] : memref<9x16x64xbf16, #tpu.memory_space<vmem>>, vector<1x16x64xbf16>
    %76 = vector.shape_cast %75 : vector<1x16x64xbf16> to vector<16x64xbf16>
    %cst_73 = arith.constant dense<0.000000e+00> : vector<16x32xf32>
    %77 = tpu.matmul %76, %53, %cst_73 {dimension_numbers = #tpu.dot_dimension_numbers<[1], [0], [0], [1], [0, 0, 1, 1], [], []>} : vector<16x64xbf16>, vector<64x32xbf16>, vector<16x32xf32> -> vector<16x32xf32>
    %c8_74 = arith.constant 8 : index
    %c0_75 = arith.constant 0 : index
    %c0_76 = arith.constant 0 : index
    %78 = vector.load %arg8[%c8_74, %c0_75, %c0_76] : memref<9x16x64xbf16, #tpu.memory_space<vmem>>, vector<1x16x64xbf16>
    %79 = vector.shape_cast %78 : vector<1x16x64xbf16> to vector<16x64xbf16>
    %cst_77 = arith.constant dense<0.000000e+00> : vector<16x32xf32>
    %80 = tpu.matmul %79, %53, %cst_77 {dimension_numbers = #tpu.dot_dimension_numbers<[1], [0], [0], [1], [0, 0, 1, 1], [], []>} : vector<16x64xbf16>, vector<64x32xbf16>, vector<16x32xf32> -> vector<16x32xf32>
    %81 = tpu.concatenate %56, %59, %62, %65, %68, %71, %74, %77, %80 in 1 : vector<16x32xf32>, vector<16x32xf32>, vector<16x32xf32>, vector<16x32xf32>, vector<16x32xf32>, vector<16x32xf32>, vector<16x32xf32>, vector<16x32xf32>, vector<16x32xf32> -> vector<16x288xf32>
    %82 = arith.truncf %81 : vector<16x288xf32> to vector<16x288xbf16>
    %c0_78 = arith.constant 0 : index
    %c0_79 = arith.constant 0 : index
    %83 = vector.load %arg9[%c0_78, %c0_79] : memref<288x64xbf16, #tpu.memory_space<vmem>>, vector<288x64xbf16>
    %cst_80 = arith.constant dense<0.000000e+00> : vector<16x64xf32>
    %84 = tpu.matmul %82, %83, %cst_80 {dimension_numbers = #tpu.dot_dimension_numbers<[1], [0], [0], [1], [0, 0, 1, 1], [], []>} : vector<16x288xbf16>, vector<288x64xbf16>, vector<16x64xf32> -> vector<16x64xf32>
    %c0_81 = arith.constant 0 : index
    %c0_82 = arith.constant 0 : index
    %85 = vector.load %arg10[%c0_81, %c0_82] : memref<1x64xf32, #tpu.memory_space<vmem>>, vector<1x64xf32>
    %86 = vector.broadcast %85 : vector<1x64xf32> to vector<16x64xf32>
    %87 = arith.addf %84, %86 : vector<16x64xf32>
    %cst_83 = arith.constant 0.000000e+00 : f32
    %88 = vector.broadcast %cst_83 : f32 to vector<16x64xf32>
    %89 = arith.cmpf oge, %87, %88 : vector<16x64xf32>
    %cst_84 = arith.constant 0.00999999977 : f32
    %90 = vector.broadcast %cst_84 : f32 to vector<16x64xf32>
    %91 = arith.mulf %90, %87 : vector<16x64xf32>
    %92 = arith.select %89, %87, %91 : vector<16x64xi1>, vector<16x64xf32>
    %93 = arith.truncf %92 : vector<16x64xf32> to vector<16x64xbf16>
    %c0_85 = arith.constant 0 : index
    %c0_86 = arith.constant 0 : index
    %c0_87 = arith.constant 0 : index
    %94 = vector.load %arg11[%c0_85, %c0_86, %c0_87] : memref<9x4x16xbf16, #tpu.memory_space<vmem>>, vector<1x4x16xbf16>
    %95 = vector.shape_cast %94 : vector<1x4x16xbf16> to vector<4x16xbf16>
    %cst_88 = arith.constant dense<0.000000e+00> : vector<4x64xf32>
    %96 = tpu.matmul %95, %93, %cst_88 {dimension_numbers = #tpu.dot_dimension_numbers<[1], [0], [0], [1], [0, 0, 1, 1], [], []>} : vector<4x16xbf16>, vector<16x64xbf16>, vector<4x64xf32> -> vector<4x64xf32>
    %c1_89 = arith.constant 1 : index
    %c0_90 = arith.constant 0 : index
    %c0_91 = arith.constant 0 : index
    %97 = vector.load %arg11[%c1_89, %c0_90, %c0_91] : memref<9x4x16xbf16, #tpu.memory_space<vmem>>, vector<1x4x16xbf16>
    %98 = vector.shape_cast %97 : vector<1x4x16xbf16> to vector<4x16xbf16>
    %cst_92 = arith.constant dense<0.000000e+00> : vector<4x64xf32>
    %99 = tpu.matmul %98, %93, %cst_92 {dimension_numbers = #tpu.dot_dimension_numbers<[1], [0], [0], [1], [0, 0, 1, 1], [], []>} : vector<4x16xbf16>, vector<16x64xbf16>, vector<4x64xf32> -> vector<4x64xf32>
    %c2_93 = arith.constant 2 : index
    %c0_94 = arith.constant 0 : index
    %c0_95 = arith.constant 0 : index
    %100 = vector.load %arg11[%c2_93, %c0_94, %c0_95] : memref<9x4x16xbf16, #tpu.memory_space<vmem>>, vector<1x4x16xbf16>
    %101 = vector.shape_cast %100 : vector<1x4x16xbf16> to vector<4x16xbf16>
    %cst_96 = arith.constant dense<0.000000e+00> : vector<4x64xf32>
    %102 = tpu.matmul %101, %93, %cst_96 {dimension_numbers = #tpu.dot_dimension_numbers<[1], [0], [0], [1], [0, 0, 1, 1], [], []>} : vector<4x16xbf16>, vector<16x64xbf16>, vector<4x64xf32> -> vector<4x64xf32>
    %c3_97 = arith.constant 3 : index
    %c0_98 = arith.constant 0 : index
    %c0_99 = arith.constant 0 : index
    %103 = vector.load %arg11[%c3_97, %c0_98, %c0_99] : memref<9x4x16xbf16, #tpu.memory_space<vmem>>, vector<1x4x16xbf16>
    %104 = vector.shape_cast %103 : vector<1x4x16xbf16> to vector<4x16xbf16>
    %cst_100 = arith.constant dense<0.000000e+00> : vector<4x64xf32>
    %105 = tpu.matmul %104, %93, %cst_100 {dimension_numbers = #tpu.dot_dimension_numbers<[1], [0], [0], [1], [0, 0, 1, 1], [], []>} : vector<4x16xbf16>, vector<16x64xbf16>, vector<4x64xf32> -> vector<4x64xf32>
    %c4_101 = arith.constant 4 : index
    %c0_102 = arith.constant 0 : index
    %c0_103 = arith.constant 0 : index
    %106 = vector.load %arg11[%c4_101, %c0_102, %c0_103] : memref<9x4x16xbf16, #tpu.memory_space<vmem>>, vector<1x4x16xbf16>
    %107 = vector.shape_cast %106 : vector<1x4x16xbf16> to vector<4x16xbf16>
    %cst_104 = arith.constant dense<0.000000e+00> : vector<4x64xf32>
    %108 = tpu.matmul %107, %93, %cst_104 {dimension_numbers = #tpu.dot_dimension_numbers<[1], [0], [0], [1], [0, 0, 1, 1], [], []>} : vector<4x16xbf16>, vector<16x64xbf16>, vector<4x64xf32> -> vector<4x64xf32>
    %c5_105 = arith.constant 5 : index
    %c0_106 = arith.constant 0 : index
    %c0_107 = arith.constant 0 : index
    %109 = vector.load %arg11[%c5_105, %c0_106, %c0_107] : memref<9x4x16xbf16, #tpu.memory_space<vmem>>, vector<1x4x16xbf16>
    %110 = vector.shape_cast %109 : vector<1x4x16xbf16> to vector<4x16xbf16>
    %cst_108 = arith.constant dense<0.000000e+00> : vector<4x64xf32>
    %111 = tpu.matmul %110, %93, %cst_108 {dimension_numbers = #tpu.dot_dimension_numbers<[1], [0], [0], [1], [0, 0, 1, 1], [], []>} : vector<4x16xbf16>, vector<16x64xbf16>, vector<4x64xf32> -> vector<4x64xf32>
    %c6_109 = arith.constant 6 : index
    %c0_110 = arith.constant 0 : index
    %c0_111 = arith.constant 0 : index
    %112 = vector.load %arg11[%c6_109, %c0_110, %c0_111] : memref<9x4x16xbf16, #tpu.memory_space<vmem>>, vector<1x4x16xbf16>
    %113 = vector.shape_cast %112 : vector<1x4x16xbf16> to vector<4x16xbf16>
    %cst_112 = arith.constant dense<0.000000e+00> : vector<4x64xf32>
    %114 = tpu.matmul %113, %93, %cst_112 {dimension_numbers = #tpu.dot_dimension_numbers<[1], [0], [0], [1], [0, 0, 1, 1], [], []>} : vector<4x16xbf16>, vector<16x64xbf16>, vector<4x64xf32> -> vector<4x64xf32>
    %c7_113 = arith.constant 7 : index
    %c0_114 = arith.constant 0 : index
    %c0_115 = arith.constant 0 : index
    %115 = vector.load %arg11[%c7_113, %c0_114, %c0_115] : memref<9x4x16xbf16, #tpu.memory_space<vmem>>, vector<1x4x16xbf16>
    %116 = vector.shape_cast %115 : vector<1x4x16xbf16> to vector<4x16xbf16>
    %cst_116 = arith.constant dense<0.000000e+00> : vector<4x64xf32>
    %117 = tpu.matmul %116, %93, %cst_116 {dimension_numbers = #tpu.dot_dimension_numbers<[1], [0], [0], [1], [0, 0, 1, 1], [], []>} : vector<4x16xbf16>, vector<16x64xbf16>, vector<4x64xf32> -> vector<4x64xf32>
    %c8_117 = arith.constant 8 : index
    %c0_118 = arith.constant 0 : index
    %c0_119 = arith.constant 0 : index
    %118 = vector.load %arg11[%c8_117, %c0_118, %c0_119] : memref<9x4x16xbf16, #tpu.memory_space<vmem>>, vector<1x4x16xbf16>
    %119 = vector.shape_cast %118 : vector<1x4x16xbf16> to vector<4x16xbf16>
    %cst_120 = arith.constant dense<0.000000e+00> : vector<4x64xf32>
    %120 = tpu.matmul %119, %93, %cst_120 {dimension_numbers = #tpu.dot_dimension_numbers<[1], [0], [0], [1], [0, 0, 1, 1], [], []>} : vector<4x16xbf16>, vector<16x64xbf16>, vector<4x64xf32> -> vector<4x64xf32>
    %121 = tpu.concatenate %96, %99, %102, %105, %108, %111, %114, %117, %120 in 1 : vector<4x64xf32>, vector<4x64xf32>, vector<4x64xf32>, vector<4x64xf32>, vector<4x64xf32>, vector<4x64xf32>, vector<4x64xf32>, vector<4x64xf32>, vector<4x64xf32> -> vector<4x576xf32>
    %122 = arith.truncf %121 : vector<4x576xf32> to vector<4x576xbf16>
    %c0_121 = arith.constant 0 : index
    %c0_122 = arith.constant 0 : index
    %123 = vector.load %arg12[%c0_121, %c0_122] : memref<576x128xbf16, #tpu.memory_space<vmem>>, vector<576x128xbf16>
    %cst_123 = arith.constant dense<0.000000e+00> : vector<4x128xf32>
    %124 = tpu.matmul %122, %123, %cst_123 {dimension_numbers = #tpu.dot_dimension_numbers<[1], [0], [0], [1], [0, 0, 1, 1], [], []>} : vector<4x576xbf16>, vector<576x128xbf16>, vector<4x128xf32> -> vector<4x128xf32>
    %c0_124 = arith.constant 0 : index
    %c0_125 = arith.constant 0 : index
    %125 = vector.load %arg13[%c0_124, %c0_125] : memref<1x128xf32, #tpu.memory_space<vmem>>, vector<1x128xf32>
    %126 = vector.broadcast %125 : vector<1x128xf32> to vector<4x128xf32>
    %127 = arith.addf %124, %126 : vector<4x128xf32>
    %cst_126 = arith.constant 0.000000e+00 : f32
    %128 = vector.broadcast %cst_126 : f32 to vector<4x128xf32>
    %129 = arith.cmpf oge, %127, %128 : vector<4x128xf32>
    %cst_127 = arith.constant 0.00999999977 : f32
    %130 = vector.broadcast %cst_127 : f32 to vector<4x128xf32>
    %131 = arith.mulf %130, %127 : vector<4x128xf32>
    %132 = arith.select %129, %127, %131 : vector<4x128xi1>, vector<4x128xf32>
    %133 = vector.extract_strided_slice %132 {offsets = [0, 0], sizes = [1, 128], strides = [1, 1]} : vector<4x128xf32> to vector<1x128xf32>
    %134 = vector.extract_strided_slice %132 {offsets = [1, 0], sizes = [1, 128], strides = [1, 1]} : vector<4x128xf32> to vector<1x128xf32>
    %135 = vector.extract_strided_slice %132 {offsets = [2, 0], sizes = [1, 128], strides = [1, 1]} : vector<4x128xf32> to vector<1x128xf32>
    %136 = vector.extract_strided_slice %132 {offsets = [3, 0], sizes = [1, 128], strides = [1, 1]} : vector<4x128xf32> to vector<1x128xf32>
    %137 = tpu.concatenate %133, %134, %135, %136 in 1 : vector<1x128xf32>, vector<1x128xf32>, vector<1x128xf32>, vector<1x128xf32> -> vector<1x512xf32>
    %138 = vector.extract_strided_slice %11 {offsets = [256, 0], sizes = [256, 16], strides = [1, 1]} : vector<512x16xf32> to vector<256x16xf32>
    %139 = arith.truncf %138 : vector<256x16xf32> to vector<256x16xbf16>
    %c0_128 = arith.constant 0 : index
    %c0_129 = arith.constant 0 : index
    %c0_130 = arith.constant 0 : index
    %140 = vector.load %arg5[%c0_128, %c0_129, %c0_130] : memref<9x64x256xbf16, #tpu.memory_space<vmem>>, vector<1x64x256xbf16>
    %141 = vector.shape_cast %140 : vector<1x64x256xbf16> to vector<64x256xbf16>
    %cst_131 = arith.constant dense<0.000000e+00> : vector<64x16xf32>
    %142 = tpu.matmul %141, %139, %cst_131 {dimension_numbers = #tpu.dot_dimension_numbers<[1], [0], [0], [1], [0, 0, 1, 1], [], []>} : vector<64x256xbf16>, vector<256x16xbf16>, vector<64x16xf32> -> vector<64x16xf32>
    %c1_132 = arith.constant 1 : index
    %c0_133 = arith.constant 0 : index
    %c0_134 = arith.constant 0 : index
    %143 = vector.load %arg5[%c1_132, %c0_133, %c0_134] : memref<9x64x256xbf16, #tpu.memory_space<vmem>>, vector<1x64x256xbf16>
    %144 = vector.shape_cast %143 : vector<1x64x256xbf16> to vector<64x256xbf16>
    %cst_135 = arith.constant dense<0.000000e+00> : vector<64x16xf32>
    %145 = tpu.matmul %144, %139, %cst_135 {dimension_numbers = #tpu.dot_dimension_numbers<[1], [0], [0], [1], [0, 0, 1, 1], [], []>} : vector<64x256xbf16>, vector<256x16xbf16>, vector<64x16xf32> -> vector<64x16xf32>
    %c2_136 = arith.constant 2 : index
    %c0_137 = arith.constant 0 : index
    %c0_138 = arith.constant 0 : index
    %146 = vector.load %arg5[%c2_136, %c0_137, %c0_138] : memref<9x64x256xbf16, #tpu.memory_space<vmem>>, vector<1x64x256xbf16>
    %147 = vector.shape_cast %146 : vector<1x64x256xbf16> to vector<64x256xbf16>
    %cst_139 = arith.constant dense<0.000000e+00> : vector<64x16xf32>
    %148 = tpu.matmul %147, %139, %cst_139 {dimension_numbers = #tpu.dot_dimension_numbers<[1], [0], [0], [1], [0, 0, 1, 1], [], []>} : vector<64x256xbf16>, vector<256x16xbf16>, vector<64x16xf32> -> vector<64x16xf32>
    %c3_140 = arith.constant 3 : index
    %c0_141 = arith.constant 0 : index
    %c0_142 = arith.constant 0 : index
    %149 = vector.load %arg5[%c3_140, %c0_141, %c0_142] : memref<9x64x256xbf16, #tpu.memory_space<vmem>>, vector<1x64x256xbf16>
    %150 = vector.shape_cast %149 : vector<1x64x256xbf16> to vector<64x256xbf16>
    %cst_143 = arith.constant dense<0.000000e+00> : vector<64x16xf32>
    %151 = tpu.matmul %150, %139, %cst_143 {dimension_numbers = #tpu.dot_dimension_numbers<[1], [0], [0], [1], [0, 0, 1, 1], [], []>} : vector<64x256xbf16>, vector<256x16xbf16>, vector<64x16xf32> -> vector<64x16xf32>
    %c4_144 = arith.constant 4 : index
    %c0_145 = arith.constant 0 : index
    %c0_146 = arith.constant 0 : index
    %152 = vector.load %arg5[%c4_144, %c0_145, %c0_146] : memref<9x64x256xbf16, #tpu.memory_space<vmem>>, vector<1x64x256xbf16>
    %153 = vector.shape_cast %152 : vector<1x64x256xbf16> to vector<64x256xbf16>
    %cst_147 = arith.constant dense<0.000000e+00> : vector<64x16xf32>
    %154 = tpu.matmul %153, %139, %cst_147 {dimension_numbers = #tpu.dot_dimension_numbers<[1], [0], [0], [1], [0, 0, 1, 1], [], []>} : vector<64x256xbf16>, vector<256x16xbf16>, vector<64x16xf32> -> vector<64x16xf32>
    %c5_148 = arith.constant 5 : index
    %c0_149 = arith.constant 0 : index
    %c0_150 = arith.constant 0 : index
    %155 = vector.load %arg5[%c5_148, %c0_149, %c0_150] : memref<9x64x256xbf16, #tpu.memory_space<vmem>>, vector<1x64x256xbf16>
    %156 = vector.shape_cast %155 : vector<1x64x256xbf16> to vector<64x256xbf16>
    %cst_151 = arith.constant dense<0.000000e+00> : vector<64x16xf32>
    %157 = tpu.matmul %156, %139, %cst_151 {dimension_numbers = #tpu.dot_dimension_numbers<[1], [0], [0], [1], [0, 0, 1, 1], [], []>} : vector<64x256xbf16>, vector<256x16xbf16>, vector<64x16xf32> -> vector<64x16xf32>
    %c6_152 = arith.constant 6 : index
    %c0_153 = arith.constant 0 : index
    %c0_154 = arith.constant 0 : index
    %158 = vector.load %arg5[%c6_152, %c0_153, %c0_154] : memref<9x64x256xbf16, #tpu.memory_space<vmem>>, vector<1x64x256xbf16>
    %159 = vector.shape_cast %158 : vector<1x64x256xbf16> to vector<64x256xbf16>
    %cst_155 = arith.constant dense<0.000000e+00> : vector<64x16xf32>
    %160 = tpu.matmul %159, %139, %cst_155 {dimension_numbers = #tpu.dot_dimension_numbers<[1], [0], [0], [1], [0, 0, 1, 1], [], []>} : vector<64x256xbf16>, vector<256x16xbf16>, vector<64x16xf32> -> vector<64x16xf32>
    %c7_156 = arith.constant 7 : index
    %c0_157 = arith.constant 0 : index
    %c0_158 = arith.constant 0 : index
    %161 = vector.load %arg5[%c7_156, %c0_157, %c0_158] : memref<9x64x256xbf16, #tpu.memory_space<vmem>>, vector<1x64x256xbf16>
    %162 = vector.shape_cast %161 : vector<1x64x256xbf16> to vector<64x256xbf16>
    %cst_159 = arith.constant dense<0.000000e+00> : vector<64x16xf32>
    %163 = tpu.matmul %162, %139, %cst_159 {dimension_numbers = #tpu.dot_dimension_numbers<[1], [0], [0], [1], [0, 0, 1, 1], [], []>} : vector<64x256xbf16>, vector<256x16xbf16>, vector<64x16xf32> -> vector<64x16xf32>
    %c8_160 = arith.constant 8 : index
    %c0_161 = arith.constant 0 : index
    %c0_162 = arith.constant 0 : index
    %164 = vector.load %arg5[%c8_160, %c0_161, %c0_162] : memref<9x64x256xbf16, #tpu.memory_space<vmem>>, vector<1x64x256xbf16>
    %165 = vector.shape_cast %164 : vector<1x64x256xbf16> to vector<64x256xbf16>
    %cst_163 = arith.constant dense<0.000000e+00> : vector<64x16xf32>
    %166 = tpu.matmul %165, %139, %cst_163 {dimension_numbers = #tpu.dot_dimension_numbers<[1], [0], [0], [1], [0, 0, 1, 1], [], []>} : vector<64x256xbf16>, vector<256x16xbf16>, vector<64x16xf32> -> vector<64x16xf32>
    %167 = tpu.concatenate %142, %145, %148, %151, %154, %157, %160, %163, %166 in 1 : vector<64x16xf32>, vector<64x16xf32>, vector<64x16xf32>, vector<64x16xf32>, vector<64x16xf32>, vector<64x16xf32>, vector<64x16xf32>, vector<64x16xf32>, vector<64x16xf32> -> vector<64x144xf32>
    %168 = arith.truncf %167 : vector<64x144xf32> to vector<64x144xbf16>
    %c0_164 = arith.constant 0 : index
    %c0_165 = arith.constant 0 : index
    %169 = vector.load %arg6[%c0_164, %c0_165] : memref<144x32xbf16, #tpu.memory_space<vmem>>, vector<144x32xbf16>
    %cst_166 = arith.constant dense<0.000000e+00> : vector<64x32xf32>
    %170 = tpu.matmul %168, %169, %cst_166 {dimension_numbers = #tpu.dot_dimension_numbers<[1], [0], [0], [1], [0, 0, 1, 1], [], []>} : vector<64x144xbf16>, vector<144x32xbf16>, vector<64x32xf32> -> vector<64x32xf32>
    %c0_167 = arith.constant 0 : index
    %c0_168 = arith.constant 0 : index
    %171 = vector.load %arg7[%c0_167, %c0_168] : memref<1x32xf32, #tpu.memory_space<vmem>>, vector<1x32xf32>
    %172 = vector.broadcast %171 : vector<1x32xf32> to vector<64x32xf32>
    %173 = arith.addf %170, %172 : vector<64x32xf32>
    %cst_169 = arith.constant 0.000000e+00 : f32
    %174 = vector.broadcast %cst_169 : f32 to vector<64x32xf32>
    %175 = arith.cmpf oge, %173, %174 : vector<64x32xf32>
    %cst_170 = arith.constant 0.00999999977 : f32
    %176 = vector.broadcast %cst_170 : f32 to vector<64x32xf32>
    %177 = arith.mulf %176, %173 : vector<64x32xf32>
    %178 = arith.select %175, %173, %177 : vector<64x32xi1>, vector<64x32xf32>
    %179 = arith.truncf %178 : vector<64x32xf32> to vector<64x32xbf16>
    %c0_171 = arith.constant 0 : index
    %c0_172 = arith.constant 0 : index
    %c0_173 = arith.constant 0 : index
    %180 = vector.load %arg8[%c0_171, %c0_172, %c0_173] : memref<9x16x64xbf16, #tpu.memory_space<vmem>>, vector<1x16x64xbf16>
    %181 = vector.shape_cast %180 : vector<1x16x64xbf16> to vector<16x64xbf16>
    %cst_174 = arith.constant dense<0.000000e+00> : vector<16x32xf32>
    %182 = tpu.matmul %181, %179, %cst_174 {dimension_numbers = #tpu.dot_dimension_numbers<[1], [0], [0], [1], [0, 0, 1, 1], [], []>} : vector<16x64xbf16>, vector<64x32xbf16>, vector<16x32xf32> -> vector<16x32xf32>
    %c1_175 = arith.constant 1 : index
    %c0_176 = arith.constant 0 : index
    %c0_177 = arith.constant 0 : index
    %183 = vector.load %arg8[%c1_175, %c0_176, %c0_177] : memref<9x16x64xbf16, #tpu.memory_space<vmem>>, vector<1x16x64xbf16>
    %184 = vector.shape_cast %183 : vector<1x16x64xbf16> to vector<16x64xbf16>
    %cst_178 = arith.constant dense<0.000000e+00> : vector<16x32xf32>
    %185 = tpu.matmul %184, %179, %cst_178 {dimension_numbers = #tpu.dot_dimension_numbers<[1], [0], [0], [1], [0, 0, 1, 1], [], []>} : vector<16x64xbf16>, vector<64x32xbf16>, vector<16x32xf32> -> vector<16x32xf32>
    %c2_179 = arith.constant 2 : index
    %c0_180 = arith.constant 0 : index
    %c0_181 = arith.constant 0 : index
    %186 = vector.load %arg8[%c2_179, %c0_180, %c0_181] : memref<9x16x64xbf16, #tpu.memory_space<vmem>>, vector<1x16x64xbf16>
    %187 = vector.shape_cast %186 : vector<1x16x64xbf16> to vector<16x64xbf16>
    %cst_182 = arith.constant dense<0.000000e+00> : vector<16x32xf32>
    %188 = tpu.matmul %187, %179, %cst_182 {dimension_numbers = #tpu.dot_dimension_numbers<[1], [0], [0], [1], [0, 0, 1, 1], [], []>} : vector<16x64xbf16>, vector<64x32xbf16>, vector<16x32xf32> -> vector<16x32xf32>
    %c3_183 = arith.constant 3 : index
    %c0_184 = arith.constant 0 : index
    %c0_185 = arith.constant 0 : index
    %189 = vector.load %arg8[%c3_183, %c0_184, %c0_185] : memref<9x16x64xbf16, #tpu.memory_space<vmem>>, vector<1x16x64xbf16>
    %190 = vector.shape_cast %189 : vector<1x16x64xbf16> to vector<16x64xbf16>
    %cst_186 = arith.constant dense<0.000000e+00> : vector<16x32xf32>
    %191 = tpu.matmul %190, %179, %cst_186 {dimension_numbers = #tpu.dot_dimension_numbers<[1], [0], [0], [1], [0, 0, 1, 1], [], []>} : vector<16x64xbf16>, vector<64x32xbf16>, vector<16x32xf32> -> vector<16x32xf32>
    %c4_187 = arith.constant 4 : index
    %c0_188 = arith.constant 0 : index
    %c0_189 = arith.constant 0 : index
    %192 = vector.load %arg8[%c4_187, %c0_188, %c0_189] : memref<9x16x64xbf16, #tpu.memory_space<vmem>>, vector<1x16x64xbf16>
    %193 = vector.shape_cast %192 : vector<1x16x64xbf16> to vector<16x64xbf16>
    %cst_190 = arith.constant dense<0.000000e+00> : vector<16x32xf32>
    %194 = tpu.matmul %193, %179, %cst_190 {dimension_numbers = #tpu.dot_dimension_numbers<[1], [0], [0], [1], [0, 0, 1, 1], [], []>} : vector<16x64xbf16>, vector<64x32xbf16>, vector<16x32xf32> -> vector<16x32xf32>
    %c5_191 = arith.constant 5 : index
    %c0_192 = arith.constant 0 : index
    %c0_193 = arith.constant 0 : index
    %195 = vector.load %arg8[%c5_191, %c0_192, %c0_193] : memref<9x16x64xbf16, #tpu.memory_space<vmem>>, vector<1x16x64xbf16>
    %196 = vector.shape_cast %195 : vector<1x16x64xbf16> to vector<16x64xbf16>
    %cst_194 = arith.constant dense<0.000000e+00> : vector<16x32xf32>
    %197 = tpu.matmul %196, %179, %cst_194 {dimension_numbers = #tpu.dot_dimension_numbers<[1], [0], [0], [1], [0, 0, 1, 1], [], []>} : vector<16x64xbf16>, vector<64x32xbf16>, vector<16x32xf32> -> vector<16x32xf32>
    %c6_195 = arith.constant 6 : index
    %c0_196 = arith.constant 0 : index
    %c0_197 = arith.constant 0 : index
    %198 = vector.load %arg8[%c6_195, %c0_196, %c0_197] : memref<9x16x64xbf16, #tpu.memory_space<vmem>>, vector<1x16x64xbf16>
    %199 = vector.shape_cast %198 : vector<1x16x64xbf16> to vector<16x64xbf16>
    %cst_198 = arith.constant dense<0.000000e+00> : vector<16x32xf32>
    %200 = tpu.matmul %199, %179, %cst_198 {dimension_numbers = #tpu.dot_dimension_numbers<[1], [0], [0], [1], [0, 0, 1, 1], [], []>} : vector<16x64xbf16>, vector<64x32xbf16>, vector<16x32xf32> -> vector<16x32xf32>
    %c7_199 = arith.constant 7 : index
    %c0_200 = arith.constant 0 : index
    %c0_201 = arith.constant 0 : index
    %201 = vector.load %arg8[%c7_199, %c0_200, %c0_201] : memref<9x16x64xbf16, #tpu.memory_space<vmem>>, vector<1x16x64xbf16>
    %202 = vector.shape_cast %201 : vector<1x16x64xbf16> to vector<16x64xbf16>
    %cst_202 = arith.constant dense<0.000000e+00> : vector<16x32xf32>
    %203 = tpu.matmul %202, %179, %cst_202 {dimension_numbers = #tpu.dot_dimension_numbers<[1], [0], [0], [1], [0, 0, 1, 1], [], []>} : vector<16x64xbf16>, vector<64x32xbf16>, vector<16x32xf32> -> vector<16x32xf32>
    %c8_203 = arith.constant 8 : index
    %c0_204 = arith.constant 0 : index
    %c0_205 = arith.constant 0 : index
    %204 = vector.load %arg8[%c8_203, %c0_204, %c0_205] : memref<9x16x64xbf16, #tpu.memory_space<vmem>>, vector<1x16x64xbf16>
    %205 = vector.shape_cast %204 : vector<1x16x64xbf16> to vector<16x64xbf16>
    %cst_206 = arith.constant dense<0.000000e+00> : vector<16x32xf32>
    %206 = tpu.matmul %205, %179, %cst_206 {dimension_numbers = #tpu.dot_dimension_numbers<[1], [0], [0], [1], [0, 0, 1, 1], [], []>} : vector<16x64xbf16>, vector<64x32xbf16>, vector<16x32xf32> -> vector<16x32xf32>
    %207 = tpu.concatenate %182, %185, %188, %191, %194, %197, %200, %203, %206 in 1 : vector<16x32xf32>, vector<16x32xf32>, vector<16x32xf32>, vector<16x32xf32>, vector<16x32xf32>, vector<16x32xf32>, vector<16x32xf32>, vector<16x32xf32>, vector<16x32xf32> -> vector<16x288xf32>
    %208 = arith.truncf %207 : vector<16x288xf32> to vector<16x288xbf16>
    %c0_207 = arith.constant 0 : index
    %c0_208 = arith.constant 0 : index
    %209 = vector.load %arg9[%c0_207, %c0_208] : memref<288x64xbf16, #tpu.memory_space<vmem>>, vector<288x64xbf16>
    %cst_209 = arith.constant dense<0.000000e+00> : vector<16x64xf32>
    %210 = tpu.matmul %208, %209, %cst_209 {dimension_numbers = #tpu.dot_dimension_numbers<[1], [0], [0], [1], [0, 0, 1, 1], [], []>} : vector<16x288xbf16>, vector<288x64xbf16>, vector<16x64xf32> -> vector<16x64xf32>
    %c0_210 = arith.constant 0 : index
    %c0_211 = arith.constant 0 : index
    %211 = vector.load %arg10[%c0_210, %c0_211] : memref<1x64xf32, #tpu.memory_space<vmem>>, vector<1x64xf32>
    %212 = vector.broadcast %211 : vector<1x64xf32> to vector<16x64xf32>
    %213 = arith.addf %210, %212 : vector<16x64xf32>
    %cst_212 = arith.constant 0.000000e+00 : f32
    %214 = vector.broadcast %cst_212 : f32 to vector<16x64xf32>
    %215 = arith.cmpf oge, %213, %214 : vector<16x64xf32>
    %cst_213 = arith.constant 0.00999999977 : f32
    %216 = vector.broadcast %cst_213 : f32 to vector<16x64xf32>
    %217 = arith.mulf %216, %213 : vector<16x64xf32>
    %218 = arith.select %215, %213, %217 : vector<16x64xi1>, vector<16x64xf32>
    %219 = arith.truncf %218 : vector<16x64xf32> to vector<16x64xbf16>
    %c0_214 = arith.constant 0 : index
    %c0_215 = arith.constant 0 : index
    %c0_216 = arith.constant 0 : index
    %220 = vector.load %arg11[%c0_214, %c0_215, %c0_216] : memref<9x4x16xbf16, #tpu.memory_space<vmem>>, vector<1x4x16xbf16>
    %221 = vector.shape_cast %220 : vector<1x4x16xbf16> to vector<4x16xbf16>
    %cst_217 = arith.constant dense<0.000000e+00> : vector<4x64xf32>
    %222 = tpu.matmul %221, %219, %cst_217 {dimension_numbers = #tpu.dot_dimension_numbers<[1], [0], [0], [1], [0, 0, 1, 1], [], []>} : vector<4x16xbf16>, vector<16x64xbf16>, vector<4x64xf32> -> vector<4x64xf32>
    %c1_218 = arith.constant 1 : index
    %c0_219 = arith.constant 0 : index
    %c0_220 = arith.constant 0 : index
    %223 = vector.load %arg11[%c1_218, %c0_219, %c0_220] : memref<9x4x16xbf16, #tpu.memory_space<vmem>>, vector<1x4x16xbf16>
    %224 = vector.shape_cast %223 : vector<1x4x16xbf16> to vector<4x16xbf16>
    %cst_221 = arith.constant dense<0.000000e+00> : vector<4x64xf32>
    %225 = tpu.matmul %224, %219, %cst_221 {dimension_numbers = #tpu.dot_dimension_numbers<[1], [0], [0], [1], [0, 0, 1, 1], [], []>} : vector<4x16xbf16>, vector<16x64xbf16>, vector<4x64xf32> -> vector<4x64xf32>
    %c2_222 = arith.constant 2 : index
    %c0_223 = arith.constant 0 : index
    %c0_224 = arith.constant 0 : index
    %226 = vector.load %arg11[%c2_222, %c0_223, %c0_224] : memref<9x4x16xbf16, #tpu.memory_space<vmem>>, vector<1x4x16xbf16>
    %227 = vector.shape_cast %226 : vector<1x4x16xbf16> to vector<4x16xbf16>
    %cst_225 = arith.constant dense<0.000000e+00> : vector<4x64xf32>
    %228 = tpu.matmul %227, %219, %cst_225 {dimension_numbers = #tpu.dot_dimension_numbers<[1], [0], [0], [1], [0, 0, 1, 1], [], []>} : vector<4x16xbf16>, vector<16x64xbf16>, vector<4x64xf32> -> vector<4x64xf32>
    %c3_226 = arith.constant 3 : index
    %c0_227 = arith.constant 0 : index
    %c0_228 = arith.constant 0 : index
    %229 = vector.load %arg11[%c3_226, %c0_227, %c0_228] : memref<9x4x16xbf16, #tpu.memory_space<vmem>>, vector<1x4x16xbf16>
    %230 = vector.shape_cast %229 : vector<1x4x16xbf16> to vector<4x16xbf16>
    %cst_229 = arith.constant dense<0.000000e+00> : vector<4x64xf32>
    %231 = tpu.matmul %230, %219, %cst_229 {dimension_numbers = #tpu.dot_dimension_numbers<[1], [0], [0], [1], [0, 0, 1, 1], [], []>} : vector<4x16xbf16>, vector<16x64xbf16>, vector<4x64xf32> -> vector<4x64xf32>
    %c4_230 = arith.constant 4 : index
    %c0_231 = arith.constant 0 : index
    %c0_232 = arith.constant 0 : index
    %232 = vector.load %arg11[%c4_230, %c0_231, %c0_232] : memref<9x4x16xbf16, #tpu.memory_space<vmem>>, vector<1x4x16xbf16>
    %233 = vector.shape_cast %232 : vector<1x4x16xbf16> to vector<4x16xbf16>
    %cst_233 = arith.constant dense<0.000000e+00> : vector<4x64xf32>
    %234 = tpu.matmul %233, %219, %cst_233 {dimension_numbers = #tpu.dot_dimension_numbers<[1], [0], [0], [1], [0, 0, 1, 1], [], []>} : vector<4x16xbf16>, vector<16x64xbf16>, vector<4x64xf32> -> vector<4x64xf32>
    %c5_234 = arith.constant 5 : index
    %c0_235 = arith.constant 0 : index
    %c0_236 = arith.constant 0 : index
    %235 = vector.load %arg11[%c5_234, %c0_235, %c0_236] : memref<9x4x16xbf16, #tpu.memory_space<vmem>>, vector<1x4x16xbf16>
    %236 = vector.shape_cast %235 : vector<1x4x16xbf16> to vector<4x16xbf16>
    %cst_237 = arith.constant dense<0.000000e+00> : vector<4x64xf32>
    %237 = tpu.matmul %236, %219, %cst_237 {dimension_numbers = #tpu.dot_dimension_numbers<[1], [0], [0], [1], [0, 0, 1, 1], [], []>} : vector<4x16xbf16>, vector<16x64xbf16>, vector<4x64xf32> -> vector<4x64xf32>
    %c6_238 = arith.constant 6 : index
    %c0_239 = arith.constant 0 : index
    %c0_240 = arith.constant 0 : index
    %238 = vector.load %arg11[%c6_238, %c0_239, %c0_240] : memref<9x4x16xbf16, #tpu.memory_space<vmem>>, vector<1x4x16xbf16>
    %239 = vector.shape_cast %238 : vector<1x4x16xbf16> to vector<4x16xbf16>
    %cst_241 = arith.constant dense<0.000000e+00> : vector<4x64xf32>
    %240 = tpu.matmul %239, %219, %cst_241 {dimension_numbers = #tpu.dot_dimension_numbers<[1], [0], [0], [1], [0, 0, 1, 1], [], []>} : vector<4x16xbf16>, vector<16x64xbf16>, vector<4x64xf32> -> vector<4x64xf32>
    %c7_242 = arith.constant 7 : index
    %c0_243 = arith.constant 0 : index
    %c0_244 = arith.constant 0 : index
    %241 = vector.load %arg11[%c7_242, %c0_243, %c0_244] : memref<9x4x16xbf16, #tpu.memory_space<vmem>>, vector<1x4x16xbf16>
    %242 = vector.shape_cast %241 : vector<1x4x16xbf16> to vector<4x16xbf16>
    %cst_245 = arith.constant dense<0.000000e+00> : vector<4x64xf32>
    %243 = tpu.matmul %242, %219, %cst_245 {dimension_numbers = #tpu.dot_dimension_numbers<[1], [0], [0], [1], [0, 0, 1, 1], [], []>} : vector<4x16xbf16>, vector<16x64xbf16>, vector<4x64xf32> -> vector<4x64xf32>
    %c8_246 = arith.constant 8 : index
    %c0_247 = arith.constant 0 : index
    %c0_248 = arith.constant 0 : index
    %244 = vector.load %arg11[%c8_246, %c0_247, %c0_248] : memref<9x4x16xbf16, #tpu.memory_space<vmem>>, vector<1x4x16xbf16>
    %245 = vector.shape_cast %244 : vector<1x4x16xbf16> to vector<4x16xbf16>
    %cst_249 = arith.constant dense<0.000000e+00> : vector<4x64xf32>
    %246 = tpu.matmul %245, %219, %cst_249 {dimension_numbers = #tpu.dot_dimension_numbers<[1], [0], [0], [1], [0, 0, 1, 1], [], []>} : vector<4x16xbf16>, vector<16x64xbf16>, vector<4x64xf32> -> vector<4x64xf32>
    %247 = tpu.concatenate %222, %225, %228, %231, %234, %237, %240, %243, %246 in 1 : vector<4x64xf32>, vector<4x64xf32>, vector<4x64xf32>, vector<4x64xf32>, vector<4x64xf32>, vector<4x64xf32>, vector<4x64xf32>, vector<4x64xf32>, vector<4x64xf32> -> vector<4x576xf32>
    %248 = arith.truncf %247 : vector<4x576xf32> to vector<4x576xbf16>
    %c0_250 = arith.constant 0 : index
    %c0_251 = arith.constant 0 : index
    %249 = vector.load %arg12[%c0_250, %c0_251] : memref<576x128xbf16, #tpu.memory_space<vmem>>, vector<576x128xbf16>
    %cst_252 = arith.constant dense<0.000000e+00> : vector<4x128xf32>
    %250 = tpu.matmul %248, %249, %cst_252 {dimension_numbers = #tpu.dot_dimension_numbers<[1], [0], [0], [1], [0, 0, 1, 1], [], []>} : vector<4x576xbf16>, vector<576x128xbf16>, vector<4x128xf32> -> vector<4x128xf32>
    %c0_253 = arith.constant 0 : index
    %c0_254 = arith.constant 0 : index
    %251 = vector.load %arg13[%c0_253, %c0_254] : memref<1x128xf32, #tpu.memory_space<vmem>>, vector<1x128xf32>
    %252 = vector.broadcast %251 : vector<1x128xf32> to vector<4x128xf32>
    %253 = arith.addf %250, %252 : vector<4x128xf32>
    %cst_255 = arith.constant 0.000000e+00 : f32
    %254 = vector.broadcast %cst_255 : f32 to vector<4x128xf32>
    %255 = arith.cmpf oge, %253, %254 : vector<4x128xf32>
    %cst_256 = arith.constant 0.00999999977 : f32
    %256 = vector.broadcast %cst_256 : f32 to vector<4x128xf32>
    %257 = arith.mulf %256, %253 : vector<4x128xf32>
    %258 = arith.select %255, %253, %257 : vector<4x128xi1>, vector<4x128xf32>
    %259 = vector.extract_strided_slice %258 {offsets = [0, 0], sizes = [1, 128], strides = [1, 1]} : vector<4x128xf32> to vector<1x128xf32>
    %260 = vector.extract_strided_slice %258 {offsets = [1, 0], sizes = [1, 128], strides = [1, 1]} : vector<4x128xf32> to vector<1x128xf32>
    %261 = vector.extract_strided_slice %258 {offsets = [2, 0], sizes = [1, 128], strides = [1, 1]} : vector<4x128xf32> to vector<1x128xf32>
    %262 = vector.extract_strided_slice %258 {offsets = [3, 0], sizes = [1, 128], strides = [1, 1]} : vector<4x128xf32> to vector<1x128xf32>
    %263 = tpu.concatenate %259, %260, %261, %262 in 1 : vector<1x128xf32>, vector<1x128xf32>, vector<1x128xf32>, vector<1x128xf32> -> vector<1x512xf32>
    %264 = tpu.concatenate %137, %263 in 0 : vector<1x512xf32>, vector<1x512xf32> -> vector<2x512xf32>
    %265 = arith.truncf %264 : vector<2x512xf32> to vector<2x512xbf16>
    %c0_257 = arith.constant 0 : index
    %c0_258 = arith.constant 0 : index
    %266 = vector.load %arg14[%c0_257, %c0_258] : memref<512x512xbf16, #tpu.memory_space<vmem>>, vector<512x512xbf16>
    %cst_259 = arith.constant dense<0.000000e+00> : vector<2x512xf32>
    %267 = tpu.matmul %265, %266, %cst_259 {dimension_numbers = #tpu.dot_dimension_numbers<[1], [0], [0], [1], [0, 0, 1, 1], [], []>} : vector<2x512xbf16>, vector<512x512xbf16>, vector<2x512xf32> -> vector<2x512xf32>
    %c0_260 = arith.constant 0 : index
    %c0_261 = arith.constant 0 : index
    %268 = vector.load %arg15[%c0_260, %c0_261] : memref<1x512xf32, #tpu.memory_space<vmem>>, vector<1x512xf32>
    %269 = vector.broadcast %268 : vector<1x512xf32> to vector<2x512xf32>
    %270 = arith.addf %267, %269 : vector<2x512xf32>
    %271 = vector.extract_strided_slice %270 {offsets = [0, 0], sizes = [2, 256], strides = [1, 1]} : vector<2x512xf32> to vector<2x256xf32>
    %272 = vector.extract_strided_slice %270 {offsets = [0, 256], sizes = [2, 256], strides = [1, 1]} : vector<2x512xf32> to vector<2x256xf32>
    %cst_262 = arith.constant 5.000000e-01 : f32
    %273 = vector.broadcast %cst_262 : f32 to vector<2x256xf32>
    %274 = arith.mulf %273, %271 : vector<2x256xf32>
    %275 = math.exp %274 : vector<2x256xf32>
    %c0_263 = arith.constant 0 : index
    %c0_264 = arith.constant 0 : index
    %276 = vector.load %arg2[%c0_263, %c0_264] : memref<2x256xf32, #tpu.memory_space<vmem>>, vector<2x256xf32>
    %277 = arith.mulf %276, %275 : vector<2x256xf32>
    %278 = arith.addf %277, %271 : vector<2x256xf32>
    %cst_265 = arith.constant 1.000000e+00 : f32
    %279 = vector.broadcast %cst_265 : f32 to vector<2x256xf32>
    %280 = arith.addf %279, %272 : vector<2x256xf32>
    %281 = arith.mulf %271, %271 : vector<2x256xf32>
    %282 = arith.subf %280, %281 : vector<2x256xf32>
    %283 = math.exp %272 : vector<2x256xf32>
    %284 = arith.subf %282, %283 : vector<2x256xf32>
    %cst_266 = arith.constant dense<0.000000e+00> : vector<2xf32>
    %285 = vector.multi_reduction <add>, %284, %cst_266 [1] : vector<2x256xf32> to vector<2xf32>
    %286 = vector.shape_cast %285 : vector<2xf32> to vector<2x1xf32>
    %cst_267 = arith.constant -5.000000e-01 : f32
    %287 = vector.broadcast %cst_267 : f32 to vector<2x1xf32>
    %288 = arith.mulf %287, %286 : vector<2x1xf32>
    %cst_268 = arith.constant dense<0.000000e+00> : vector<1xf32>
    %289 = vector.multi_reduction <add>, %288, %cst_268 [0] : vector<2x1xf32> to vector<1xf32>
    %290 = vector.shape_cast %289 : vector<1xf32> to vector<1x1xf32>
    %cst_269 = arith.constant 2.000000e+00 : f32
    %291 = vector.broadcast %cst_269 : f32 to vector<1x1xf32>
    %292 = arith.divf %290, %291 : vector<1x1xf32>
    %cst_270 = arith.constant 5.000000e-01 : f32
    %293 = vector.broadcast %cst_270 : f32 to vector<1x1xf32>
    %294 = arith.mulf %293, %292 : vector<1x1xf32>
    %c0_271 = arith.constant 0 : index
    %c0_272 = arith.constant 0 : index
    %295 = vector.load %arg36[%c0_271, %c0_272] : memref<1x1xf32, #tpu.memory_space<vmem>>, vector<1x1xf32>
    tpu.vector_store %arg36[%c0_271, %c0_272], %294 {strides = array<i32>} : memref<1x1xf32, #tpu.memory_space<vmem>>, vector<1x1xf32>,
    %296 = vector.extract_strided_slice %278 {offsets = [0, 0], sizes = [1, 256], strides = [1, 1]} : vector<2x256xf32> to vector<1x256xf32>
    %297 = arith.truncf %296 : vector<1x256xf32> to vector<1x256xbf16>
    %c0_273 = arith.constant 0 : index
    %c0_274 = arith.constant 0 : index
    %298 = vector.load %arg16[%c0_273, %c0_274] : memref<256x256xbf16, #tpu.memory_space<vmem>>, vector<256x256xbf16>
    %cst_275 = arith.constant dense<0.000000e+00> : vector<1x256xf32>
    %299 = tpu.matmul %297, %298, %cst_275 {dimension_numbers = #tpu.dot_dimension_numbers<[1], [0], [0], [1], [0, 0, 1, 1], [], []>} : vector<1x256xbf16>, vector<256x256xbf16>, vector<1x256xf32> -> vector<1x256xf32>
    %c0_276 = arith.constant 0 : index
    %c0_277 = arith.constant 0 : index
    %300 = vector.load %arg17[%c0_276, %c0_277] : memref<1x256xf32, #tpu.memory_space<vmem>>, vector<1x256xf32>
    %301 = arith.addf %299, %300 : vector<1x256xf32>
    %cst_278 = arith.constant 0.000000e+00 : f32
    %302 = vector.broadcast %cst_278 : f32 to vector<1x256xf32>
    %303 = arith.cmpf oge, %301, %302 : vector<1x256xf32>
    %cst_279 = arith.constant 0.00999999977 : f32
    %304 = vector.broadcast %cst_279 : f32 to vector<1x256xf32>
    %305 = arith.mulf %304, %301 : vector<1x256xf32>
    %306 = arith.select %303, %301, %305 : vector<1x256xi1>, vector<1x256xf32>
    %307 = vector.extract_strided_slice %306 {offsets = [0, 0], sizes = [1, 64], strides = [1, 1]} : vector<1x256xf32> to vector<1x64xf32>
    %308 = vector.extract_strided_slice %306 {offsets = [0, 64], sizes = [1, 64], strides = [1, 1]} : vector<1x256xf32> to vector<1x64xf32>
    %309 = vector.extract_strided_slice %306 {offsets = [0, 128], sizes = [1, 64], strides = [1, 1]} : vector<1x256xf32> to vector<1x64xf32>
    %310 = vector.extract_strided_slice %306 {offsets = [0, 192], sizes = [1, 64], strides = [1, 1]} : vector<1x256xf32> to vector<1x64xf32>
    %311 = tpu.concatenate %307, %308, %309, %310 in 0 : vector<1x64xf32>, vector<1x64xf32>, vector<1x64xf32>, vector<1x64xf32> -> vector<4x64xf32>
    %312 = arith.truncf %311 : vector<4x64xf32> to vector<4x64xbf16>
    %c0_280 = arith.constant 0 : index
    %c0_281 = arith.constant 0 : index
    %313 = vector.load %arg18[%c0_280, %c0_281] : memref<64x128xbf16, #tpu.memory_space<vmem>>, vector<64x128xbf16>
    %cst_282 = arith.constant dense<0.000000e+00> : vector<4x128xf32>
    %314 = tpu.matmul %312, %313, %cst_282 {dimension_numbers = #tpu.dot_dimension_numbers<[1], [0], [0], [1], [0, 0, 1, 1], [], []>} : vector<4x64xbf16>, vector<64x128xbf16>, vector<4x128xf32> -> vector<4x128xf32>
    %c0_283 = arith.constant 0 : index
    %c0_284 = arith.constant 0 : index
    %315 = vector.load %arg19[%c0_283, %c0_284] : memref<1x128xf32, #tpu.memory_space<vmem>>, vector<1x128xf32>
    %316 = vector.broadcast %315 : vector<1x128xf32> to vector<4x128xf32>
    %317 = arith.addf %314, %316 : vector<4x128xf32>
    %cst_285 = arith.constant 0.000000e+00 : f32
    %318 = vector.broadcast %cst_285 : f32 to vector<4x128xf32>
    %319 = arith.cmpf oge, %317, %318 : vector<4x128xf32>
    %cst_286 = arith.constant 0.00999999977 : f32
    %320 = vector.broadcast %cst_286 : f32 to vector<4x128xf32>
    %321 = arith.mulf %320, %317 : vector<4x128xf32>
    %322 = arith.select %319, %317, %321 : vector<4x128xi1>, vector<4x128xf32>
    %323 = vector.extract_strided_slice %322 {offsets = [0, 0], sizes = [4, 32], strides = [1, 1]} : vector<4x128xf32> to vector<4x32xf32>
    %324 = vector.extract_strided_slice %322 {offsets = [0, 32], sizes = [4, 32], strides = [1, 1]} : vector<4x128xf32> to vector<4x32xf32>
    %325 = vector.extract_strided_slice %322 {offsets = [0, 64], sizes = [4, 32], strides = [1, 1]} : vector<4x128xf32> to vector<4x32xf32>
    %326 = vector.extract_strided_slice %322 {offsets = [0, 96], sizes = [4, 32], strides = [1, 1]} : vector<4x128xf32> to vector<4x32xf32>
    %327 = tpu.concatenate %323, %324, %325, %326 in 0 : vector<4x32xf32>, vector<4x32xf32>, vector<4x32xf32>, vector<4x32xf32> -> vector<16x32xf32>
    %328 = arith.truncf %327 : vector<16x32xf32> to vector<16x32xbf16>
    %c0_287 = arith.constant 0 : index
    %c0_288 = arith.constant 0 : index
    %329 = vector.load %arg20[%c0_287, %c0_288] : memref<32x64xbf16, #tpu.memory_space<vmem>>, vector<32x64xbf16>
    %cst_289 = arith.constant dense<0.000000e+00> : vector<16x64xf32>
    %330 = tpu.matmul %328, %329, %cst_289 {dimension_numbers = #tpu.dot_dimension_numbers<[1], [0], [0], [1], [0, 0, 1, 1], [], []>} : vector<16x32xbf16>, vector<32x64xbf16>, vector<16x64xf32> -> vector<16x64xf32>
    %c0_290 = arith.constant 0 : index
    %c0_291 = arith.constant 0 : index
    %331 = vector.load %arg21[%c0_290, %c0_291] : memref<1x64xf32, #tpu.memory_space<vmem>>, vector<1x64xf32>
    %332 = vector.broadcast %331 : vector<1x64xf32> to vector<16x64xf32>
    %333 = arith.addf %330, %332 : vector<16x64xf32>
    %cst_292 = arith.constant 0.000000e+00 : f32
    %334 = vector.broadcast %cst_292 : f32 to vector<16x64xf32>
    %335 = arith.cmpf oge, %333, %334 : vector<16x64xf32>
    %cst_293 = arith.constant 0.00999999977 : f32
    %336 = vector.broadcast %cst_293 : f32 to vector<16x64xf32>
    %337 = arith.mulf %336, %333 : vector<16x64xf32>
    %338 = arith.select %335, %333, %337 : vector<16x64xi1>, vector<16x64xf32>
    %339 = vector.extract_strided_slice %338 {offsets = [0, 0], sizes = [16, 16], strides = [1, 1]} : vector<16x64xf32> to vector<16x16xf32>
    %340 = vector.extract_strided_slice %338 {offsets = [0, 16], sizes = [16, 16], strides = [1, 1]} : vector<16x64xf32> to vector<16x16xf32>
    %341 = vector.extract_strided_slice %338 {offsets = [0, 32], sizes = [16, 16], strides = [1, 1]} : vector<16x64xf32> to vector<16x16xf32>
    %342 = vector.extract_strided_slice %338 {offsets = [0, 48], sizes = [16, 16], strides = [1, 1]} : vector<16x64xf32> to vector<16x16xf32>
    %343 = tpu.concatenate %339, %340, %341, %342 in 0 : vector<16x16xf32>, vector<16x16xf32>, vector<16x16xf32>, vector<16x16xf32> -> vector<64x16xf32>
    %344 = arith.truncf %343 : vector<64x16xf32> to vector<64x16xbf16>
    %c0_294 = arith.constant 0 : index
    %c0_295 = arith.constant 0 : index
    %345 = vector.load %arg22[%c0_294, %c0_295] : memref<16x12xbf16, #tpu.memory_space<vmem>>, vector<16x12xbf16>
    %cst_296 = arith.constant dense<0.000000e+00> : vector<64x12xf32>
    %346 = tpu.matmul %344, %345, %cst_296 {dimension_numbers = #tpu.dot_dimension_numbers<[1], [0], [0], [1], [0, 0, 1, 1], [], []>} : vector<64x16xbf16>, vector<16x12xbf16>, vector<64x12xf32> -> vector<64x12xf32>
    %c0_297 = arith.constant 0 : index
    %c0_298 = arith.constant 0 : index
    %347 = vector.load %arg23[%c0_297, %c0_298] : memref<1x12xf32, #tpu.memory_space<vmem>>, vector<1x12xf32>
    %348 = vector.broadcast %347 : vector<1x12xf32> to vector<64x12xf32>
    %349 = arith.addf %346, %348 : vector<64x12xf32>
    %cst_299 = arith.constant 0.000000e+00 : f32
    %350 = vector.broadcast %cst_299 : f32 to vector<64x12xf32>
    %351 = arith.cmpf oge, %349, %350 : vector<64x12xf32>
    %cst_300 = arith.constant 0.00999999977 : f32
    %352 = vector.broadcast %cst_300 : f32 to vector<64x12xf32>
    %353 = arith.mulf %352, %349 : vector<64x12xf32>
    %354 = arith.select %351, %349, %353 : vector<64x12xi1>, vector<64x12xf32>
    %355 = vector.extract_strided_slice %354 {offsets = [0, 0], sizes = [64, 3], strides = [1, 1]} : vector<64x12xf32> to vector<64x3xf32>
    %356 = vector.extract_strided_slice %354 {offsets = [0, 3], sizes = [64, 3], strides = [1, 1]} : vector<64x12xf32> to vector<64x3xf32>
    %357 = vector.extract_strided_slice %354 {offsets = [0, 6], sizes = [64, 3], strides = [1, 1]} : vector<64x12xf32> to vector<64x3xf32>
    %358 = vector.extract_strided_slice %354 {offsets = [0, 9], sizes = [64, 3], strides = [1, 1]} : vector<64x12xf32> to vector<64x3xf32>
    %359 = tpu.concatenate %355, %356, %357, %358 in 0 : vector<64x3xf32>, vector<64x3xf32>, vector<64x3xf32>, vector<64x3xf32> -> vector<256x3xf32>
    %360 = tpu.transpose %359, [1, 0] : vector<256x3xf32> -> vector<3x256xf32>
    %361 = arith.truncf %360 : vector<3x256xf32> to vector<3x256xbf16>
    %c0_301 = arith.constant 0 : index
    %c0_302 = arith.constant 0 : index
    %362 = vector.load %arg24[%c0_301, %c0_302] : memref<256x1024xbf16, #tpu.memory_space<vmem>>, vector<256x1024xbf16>
    %cst_303 = arith.constant dense<0.000000e+00> : vector<3x1024xf32>
    %363 = tpu.matmul %361, %362, %cst_303 {dimension_numbers = #tpu.dot_dimension_numbers<[1], [0], [0], [1], [0, 0, 1, 1], [], []>} : vector<3x256xbf16>, vector<256x1024xbf16>, vector<3x1024xf32> -> vector<3x1024xf32>
    %c0_304 = arith.constant 0 : index
    %c0_305 = arith.constant 0 : index
    %364 = vector.load %arg35[%c0_304, %c0_305] : memref<6x1024xf32, #tpu.memory_space<vmem>>, vector<3x1024xf32>
    tpu.vector_store %arg35[%c0_304, %c0_305], %363 {strides = array<i32>} : memref<6x1024xf32, #tpu.memory_space<vmem>>, vector<3x1024xf32>,
    %365 = vector.extract_strided_slice %359 {offsets = [0, 0], sizes = [16, 3], strides = [1, 1]} : vector<256x3xf32> to vector<16x3xf32>
    %366 = vector.extract_strided_slice %359 {offsets = [16, 0], sizes = [16, 3], strides = [1, 1]} : vector<256x3xf32> to vector<16x3xf32>
    %367 = vector.extract_strided_slice %359 {offsets = [32, 0], sizes = [16, 3], strides = [1, 1]} : vector<256x3xf32> to vector<16x3xf32>
    %368 = vector.extract_strided_slice %359 {offsets = [48, 0], sizes = [16, 3], strides = [1, 1]} : vector<256x3xf32> to vector<16x3xf32>
    %369 = vector.extract_strided_slice %359 {offsets = [64, 0], sizes = [16, 3], strides = [1, 1]} : vector<256x3xf32> to vector<16x3xf32>
    %370 = vector.extract_strided_slice %359 {offsets = [80, 0], sizes = [16, 3], strides = [1, 1]} : vector<256x3xf32> to vector<16x3xf32>
    %371 = vector.extract_strided_slice %359 {offsets = [96, 0], sizes = [16, 3], strides = [1, 1]} : vector<256x3xf32> to vector<16x3xf32>
    %372 = vector.extract_strided_slice %359 {offsets = [112, 0], sizes = [16, 3], strides = [1, 1]} : vector<256x3xf32> to vector<16x3xf32>
    %373 = vector.extract_strided_slice %359 {offsets = [128, 0], sizes = [16, 3], strides = [1, 1]} : vector<256x3xf32> to vector<16x3xf32>
    %374 = vector.extract_strided_slice %359 {offsets = [144, 0], sizes = [16, 3], strides = [1, 1]} : vector<256x3xf32> to vector<16x3xf32>
    %375 = vector.extract_strided_slice %359 {offsets = [160, 0], sizes = [16, 3], strides = [1, 1]} : vector<256x3xf32> to vector<16x3xf32>
    %376 = vector.extract_strided_slice %359 {offsets = [176, 0], sizes = [16, 3], strides = [1, 1]} : vector<256x3xf32> to vector<16x3xf32>
    %377 = vector.extract_strided_slice %359 {offsets = [192, 0], sizes = [16, 3], strides = [1, 1]} : vector<256x3xf32> to vector<16x3xf32>
    %378 = vector.extract_strided_slice %359 {offsets = [208, 0], sizes = [16, 3], strides = [1, 1]} : vector<256x3xf32> to vector<16x3xf32>
    %379 = vector.extract_strided_slice %359 {offsets = [224, 0], sizes = [16, 3], strides = [1, 1]} : vector<256x3xf32> to vector<16x3xf32>
    %380 = vector.extract_strided_slice %359 {offsets = [240, 0], sizes = [16, 3], strides = [1, 1]} : vector<256x3xf32> to vector<16x3xf32>
    %381 = tpu.concatenate %365, %366, %367, %368, %369, %370, %371, %372, %373, %374, %375, %376, %377, %378, %379, %380 in 1 : vector<16x3xf32>, vector<16x3xf32>, vector<16x3xf32>, vector<16x3xf32>, vector<16x3xf32>, vector<16x3xf32>, vector<16x3xf32>, vector<16x3xf32>, vector<16x3xf32>, vector<16x3xf32>, vector<16x3xf32>, vector<16x3xf32>, vector<16x3xf32>, vector<16x3xf32>, vector<16x3xf32>, vector<16x3xf32> -> vector<16x48xf32>
    %382 = arith.truncf %381 : vector<16x48xf32> to vector<16x48xbf16>
    %c0_306 = arith.constant 0 : index
    %c0_307 = arith.constant 0 : index
    %383 = vector.load %arg26[%c0_306, %c0_307] : memref<48x32xbf16, #tpu.memory_space<vmem>>, vector<48x32xbf16>
    %cst_308 = arith.constant dense<0.000000e+00> : vector<16x32xf32>
    %384 = tpu.matmul %382, %383, %cst_308 {dimension_numbers = #tpu.dot_dimension_numbers<[1], [0], [0], [1], [0, 0, 1, 1], [], []>} : vector<16x48xbf16>, vector<48x32xbf16>, vector<16x32xf32> -> vector<16x32xf32>
    %c0_309 = arith.constant 0 : index
    %c0_310 = arith.constant 0 : index
    %385 = vector.load %arg27[%c0_309, %c0_310] : memref<1x32xf32, #tpu.memory_space<vmem>>, vector<1x32xf32>
    %386 = vector.broadcast %385 : vector<1x32xf32> to vector<16x32xf32>
    %387 = arith.addf %384, %386 : vector<16x32xf32>
    %cst_311 = arith.constant 0.000000e+00 : f32
    %388 = vector.broadcast %cst_311 : f32 to vector<16x32xf32>
    %389 = arith.maximumf %387, %388 : vector<16x32xf32>
    %cst_312 = arith.constant dense<0.000000e+00> : vector<32xf32>
    %390 = vector.multi_reduction <add>, %389, %cst_312 [0] : vector<16x32xf32> to vector<32xf32>
    %391 = vector.shape_cast %390 : vector<32xf32> to vector<1x32xf32>
    %cst_313 = arith.constant 1.600000e+01 : f32
    %392 = vector.broadcast %cst_313 : f32 to vector<1x32xf32>
    %393 = arith.divf %391, %392 : vector<1x32xf32>
    %394 = vector.extract_strided_slice %278 {offsets = [1, 0], sizes = [1, 256], strides = [1, 1]} : vector<2x256xf32> to vector<1x256xf32>
    %395 = arith.truncf %394 : vector<1x256xf32> to vector<1x256xbf16>
    %c0_314 = arith.constant 0 : index
    %c0_315 = arith.constant 0 : index
    %396 = vector.load %arg16[%c0_314, %c0_315] : memref<256x256xbf16, #tpu.memory_space<vmem>>, vector<256x256xbf16>
    %cst_316 = arith.constant dense<0.000000e+00> : vector<1x256xf32>
    %397 = tpu.matmul %395, %396, %cst_316 {dimension_numbers = #tpu.dot_dimension_numbers<[1], [0], [0], [1], [0, 0, 1, 1], [], []>} : vector<1x256xbf16>, vector<256x256xbf16>, vector<1x256xf32> -> vector<1x256xf32>
    %c0_317 = arith.constant 0 : index
    %c0_318 = arith.constant 0 : index
    %398 = vector.load %arg17[%c0_317, %c0_318] : memref<1x256xf32, #tpu.memory_space<vmem>>, vector<1x256xf32>
    %399 = arith.addf %397, %398 : vector<1x256xf32>
    %cst_319 = arith.constant 0.000000e+00 : f32
    %400 = vector.broadcast %cst_319 : f32 to vector<1x256xf32>
    %401 = arith.cmpf oge, %399, %400 : vector<1x256xf32>
    %cst_320 = arith.constant 0.00999999977 : f32
    %402 = vector.broadcast %cst_320 : f32 to vector<1x256xf32>
    %403 = arith.mulf %402, %399 : vector<1x256xf32>
    %404 = arith.select %401, %399, %403 : vector<1x256xi1>, vector<1x256xf32>
    %405 = vector.extract_strided_slice %404 {offsets = [0, 0], sizes = [1, 64], strides = [1, 1]} : vector<1x256xf32> to vector<1x64xf32>
    %406 = vector.extract_strided_slice %404 {offsets = [0, 64], sizes = [1, 64], strides = [1, 1]} : vector<1x256xf32> to vector<1x64xf32>
    %407 = vector.extract_strided_slice %404 {offsets = [0, 128], sizes = [1, 64], strides = [1, 1]} : vector<1x256xf32> to vector<1x64xf32>
    %408 = vector.extract_strided_slice %404 {offsets = [0, 192], sizes = [1, 64], strides = [1, 1]} : vector<1x256xf32> to vector<1x64xf32>
    %409 = tpu.concatenate %405, %406, %407, %408 in 0 : vector<1x64xf32>, vector<1x64xf32>, vector<1x64xf32>, vector<1x64xf32> -> vector<4x64xf32>
    %410 = arith.truncf %409 : vector<4x64xf32> to vector<4x64xbf16>
    %c0_321 = arith.constant 0 : index
    %c0_322 = arith.constant 0 : index
    %411 = vector.load %arg18[%c0_321, %c0_322] : memref<64x128xbf16, #tpu.memory_space<vmem>>, vector<64x128xbf16>
    %cst_323 = arith.constant dense<0.000000e+00> : vector<4x128xf32>
    %412 = tpu.matmul %410, %411, %cst_323 {dimension_numbers = #tpu.dot_dimension_numbers<[1], [0], [0], [1], [0, 0, 1, 1], [], []>} : vector<4x64xbf16>, vector<64x128xbf16>, vector<4x128xf32> -> vector<4x128xf32>
    %c0_324 = arith.constant 0 : index
    %c0_325 = arith.constant 0 : index
    %413 = vector.load %arg19[%c0_324, %c0_325] : memref<1x128xf32, #tpu.memory_space<vmem>>, vector<1x128xf32>
    %414 = vector.broadcast %413 : vector<1x128xf32> to vector<4x128xf32>
    %415 = arith.addf %412, %414 : vector<4x128xf32>
    %cst_326 = arith.constant 0.000000e+00 : f32
    %416 = vector.broadcast %cst_326 : f32 to vector<4x128xf32>
    %417 = arith.cmpf oge, %415, %416 : vector<4x128xf32>
    %cst_327 = arith.constant 0.00999999977 : f32
    %418 = vector.broadcast %cst_327 : f32 to vector<4x128xf32>
    %419 = arith.mulf %418, %415 : vector<4x128xf32>
    %420 = arith.select %417, %415, %419 : vector<4x128xi1>, vector<4x128xf32>
    %421 = vector.extract_strided_slice %420 {offsets = [0, 0], sizes = [4, 32], strides = [1, 1]} : vector<4x128xf32> to vector<4x32xf32>
    %422 = vector.extract_strided_slice %420 {offsets = [0, 32], sizes = [4, 32], strides = [1, 1]} : vector<4x128xf32> to vector<4x32xf32>
    %423 = vector.extract_strided_slice %420 {offsets = [0, 64], sizes = [4, 32], strides = [1, 1]} : vector<4x128xf32> to vector<4x32xf32>
    %424 = vector.extract_strided_slice %420 {offsets = [0, 96], sizes = [4, 32], strides = [1, 1]} : vector<4x128xf32> to vector<4x32xf32>
    %425 = tpu.concatenate %421, %422, %423, %424 in 0 : vector<4x32xf32>, vector<4x32xf32>, vector<4x32xf32>, vector<4x32xf32> -> vector<16x32xf32>
    %426 = arith.truncf %425 : vector<16x32xf32> to vector<16x32xbf16>
    %c0_328 = arith.constant 0 : index
    %c0_329 = arith.constant 0 : index
    %427 = vector.load %arg20[%c0_328, %c0_329] : memref<32x64xbf16, #tpu.memory_space<vmem>>, vector<32x64xbf16>
    %cst_330 = arith.constant dense<0.000000e+00> : vector<16x64xf32>
    %428 = tpu.matmul %426, %427, %cst_330 {dimension_numbers = #tpu.dot_dimension_numbers<[1], [0], [0], [1], [0, 0, 1, 1], [], []>} : vector<16x32xbf16>, vector<32x64xbf16>, vector<16x64xf32> -> vector<16x64xf32>
    %c0_331 = arith.constant 0 : index
    %c0_332 = arith.constant 0 : index
    %429 = vector.load %arg21[%c0_331, %c0_332] : memref<1x64xf32, #tpu.memory_space<vmem>>, vector<1x64xf32>
    %430 = vector.broadcast %429 : vector<1x64xf32> to vector<16x64xf32>
    %431 = arith.addf %428, %430 : vector<16x64xf32>
    %cst_333 = arith.constant 0.000000e+00 : f32
    %432 = vector.broadcast %cst_333 : f32 to vector<16x64xf32>
    %433 = arith.cmpf oge, %431, %432 : vector<16x64xf32>
    %cst_334 = arith.constant 0.00999999977 : f32
    %434 = vector.broadcast %cst_334 : f32 to vector<16x64xf32>
    %435 = arith.mulf %434, %431 : vector<16x64xf32>
    %436 = arith.select %433, %431, %435 : vector<16x64xi1>, vector<16x64xf32>
    %437 = vector.extract_strided_slice %436 {offsets = [0, 0], sizes = [16, 16], strides = [1, 1]} : vector<16x64xf32> to vector<16x16xf32>
    %438 = vector.extract_strided_slice %436 {offsets = [0, 16], sizes = [16, 16], strides = [1, 1]} : vector<16x64xf32> to vector<16x16xf32>
    %439 = vector.extract_strided_slice %436 {offsets = [0, 32], sizes = [16, 16], strides = [1, 1]} : vector<16x64xf32> to vector<16x16xf32>
    %440 = vector.extract_strided_slice %436 {offsets = [0, 48], sizes = [16, 16], strides = [1, 1]} : vector<16x64xf32> to vector<16x16xf32>
    %441 = tpu.concatenate %437, %438, %439, %440 in 0 : vector<16x16xf32>, vector<16x16xf32>, vector<16x16xf32>, vector<16x16xf32> -> vector<64x16xf32>
    %442 = arith.truncf %441 : vector<64x16xf32> to vector<64x16xbf16>
    %c0_335 = arith.constant 0 : index
    %c0_336 = arith.constant 0 : index
    %443 = vector.load %arg22[%c0_335, %c0_336] : memref<16x12xbf16, #tpu.memory_space<vmem>>, vector<16x12xbf16>
    %cst_337 = arith.constant dense<0.000000e+00> : vector<64x12xf32>
    %444 = tpu.matmul %442, %443, %cst_337 {dimension_numbers = #tpu.dot_dimension_numbers<[1], [0], [0], [1], [0, 0, 1, 1], [], []>} : vector<64x16xbf16>, vector<16x12xbf16>, vector<64x12xf32> -> vector<64x12xf32>
    %c0_338 = arith.constant 0 : index
    %c0_339 = arith.constant 0 : index
    %445 = vector.load %arg23[%c0_338, %c0_339] : memref<1x12xf32, #tpu.memory_space<vmem>>, vector<1x12xf32>
    %446 = vector.broadcast %445 : vector<1x12xf32> to vector<64x12xf32>
    %447 = arith.addf %444, %446 : vector<64x12xf32>
    %cst_340 = arith.constant 0.000000e+00 : f32
    %448 = vector.broadcast %cst_340 : f32 to vector<64x12xf32>
    %449 = arith.cmpf oge, %447, %448 : vector<64x12xf32>
    %cst_341 = arith.constant 0.00999999977 : f32
    %450 = vector.broadcast %cst_341 : f32 to vector<64x12xf32>
    %451 = arith.mulf %450, %447 : vector<64x12xf32>
    %452 = arith.select %449, %447, %451 : vector<64x12xi1>, vector<64x12xf32>
    %453 = vector.extract_strided_slice %452 {offsets = [0, 0], sizes = [64, 3], strides = [1, 1]} : vector<64x12xf32> to vector<64x3xf32>
    %454 = vector.extract_strided_slice %452 {offsets = [0, 3], sizes = [64, 3], strides = [1, 1]} : vector<64x12xf32> to vector<64x3xf32>
    %455 = vector.extract_strided_slice %452 {offsets = [0, 6], sizes = [64, 3], strides = [1, 1]} : vector<64x12xf32> to vector<64x3xf32>
    %456 = vector.extract_strided_slice %452 {offsets = [0, 9], sizes = [64, 3], strides = [1, 1]} : vector<64x12xf32> to vector<64x3xf32>
    %457 = tpu.concatenate %453, %454, %455, %456 in 0 : vector<64x3xf32>, vector<64x3xf32>, vector<64x3xf32>, vector<64x3xf32> -> vector<256x3xf32>
    %458 = tpu.transpose %457, [1, 0] : vector<256x3xf32> -> vector<3x256xf32>
    %459 = arith.truncf %458 : vector<3x256xf32> to vector<3x256xbf16>
    %c0_342 = arith.constant 0 : index
    %c0_343 = arith.constant 0 : index
    %460 = vector.load %arg24[%c0_342, %c0_343] : memref<256x1024xbf16, #tpu.memory_space<vmem>>, vector<256x1024xbf16>
    %cst_344 = arith.constant dense<0.000000e+00> : vector<3x1024xf32>
    %461 = tpu.matmul %459, %460, %cst_344 {dimension_numbers = #tpu.dot_dimension_numbers<[1], [0], [0], [1], [0, 0, 1, 1], [], []>} : vector<3x256xbf16>, vector<256x1024xbf16>, vector<3x1024xf32> -> vector<3x1024xf32>
    %c3_345 = arith.constant 3 : index
    %c0_346 = arith.constant 0 : index
    %462 = vector.load %arg35[%c3_345, %c0_346] : memref<6x1024xf32, #tpu.memory_space<vmem>>, vector<3x1024xf32>
    tpu.vector_store %arg35[%c3_345, %c0_346], %461 {strides = array<i32>} : memref<6x1024xf32, #tpu.memory_space<vmem>>, vector<3x1024xf32>,
    %463 = vector.extract_strided_slice %457 {offsets = [0, 0], sizes = [16, 3], strides = [1, 1]} : vector<256x3xf32> to vector<16x3xf32>
    %464 = vector.extract_strided_slice %457 {offsets = [16, 0], sizes = [16, 3], strides = [1, 1]} : vector<256x3xf32> to vector<16x3xf32>
    %465 = vector.extract_strided_slice %457 {offsets = [32, 0], sizes = [16, 3], strides = [1, 1]} : vector<256x3xf32> to vector<16x3xf32>
    %466 = vector.extract_strided_slice %457 {offsets = [48, 0], sizes = [16, 3], strides = [1, 1]} : vector<256x3xf32> to vector<16x3xf32>
    %467 = vector.extract_strided_slice %457 {offsets = [64, 0], sizes = [16, 3], strides = [1, 1]} : vector<256x3xf32> to vector<16x3xf32>
    %468 = vector.extract_strided_slice %457 {offsets = [80, 0], sizes = [16, 3], strides = [1, 1]} : vector<256x3xf32> to vector<16x3xf32>
    %469 = vector.extract_strided_slice %457 {offsets = [96, 0], sizes = [16, 3], strides = [1, 1]} : vector<256x3xf32> to vector<16x3xf32>
    %470 = vector.extract_strided_slice %457 {offsets = [112, 0], sizes = [16, 3], strides = [1, 1]} : vector<256x3xf32> to vector<16x3xf32>
    %471 = vector.extract_strided_slice %457 {offsets = [128, 0], sizes = [16, 3], strides = [1, 1]} : vector<256x3xf32> to vector<16x3xf32>
    %472 = vector.extract_strided_slice %457 {offsets = [144, 0], sizes = [16, 3], strides = [1, 1]} : vector<256x3xf32> to vector<16x3xf32>
    %473 = vector.extract_strided_slice %457 {offsets = [160, 0], sizes = [16, 3], strides = [1, 1]} : vector<256x3xf32> to vector<16x3xf32>
    %474 = vector.extract_strided_slice %457 {offsets = [176, 0], sizes = [16, 3], strides = [1, 1]} : vector<256x3xf32> to vector<16x3xf32>
    %475 = vector.extract_strided_slice %457 {offsets = [192, 0], sizes = [16, 3], strides = [1, 1]} : vector<256x3xf32> to vector<16x3xf32>
    %476 = vector.extract_strided_slice %457 {offsets = [208, 0], sizes = [16, 3], strides = [1, 1]} : vector<256x3xf32> to vector<16x3xf32>
    %477 = vector.extract_strided_slice %457 {offsets = [224, 0], sizes = [16, 3], strides = [1, 1]} : vector<256x3xf32> to vector<16x3xf32>
    %478 = vector.extract_strided_slice %457 {offsets = [240, 0], sizes = [16, 3], strides = [1, 1]} : vector<256x3xf32> to vector<16x3xf32>
    %479 = tpu.concatenate %463, %464, %465, %466, %467, %468, %469, %470, %471, %472, %473, %474, %475, %476, %477, %478 in 1 : vector<16x3xf32>, vector<16x3xf32>, vector<16x3xf32>, vector<16x3xf32>, vector<16x3xf32>, vector<16x3xf32>, vector<16x3xf32>, vector<16x3xf32>, vector<16x3xf32>, vector<16x3xf32>, vector<16x3xf32>, vector<16x3xf32>, vector<16x3xf32>, vector<16x3xf32>, vector<16x3xf32>, vector<16x3xf32> -> vector<16x48xf32>
    %480 = arith.truncf %479 : vector<16x48xf32> to vector<16x48xbf16>
    %c0_347 = arith.constant 0 : index
    %c0_348 = arith.constant 0 : index
    %481 = vector.load %arg26[%c0_347, %c0_348] : memref<48x32xbf16, #tpu.memory_space<vmem>>, vector<48x32xbf16>
    %cst_349 = arith.constant dense<0.000000e+00> : vector<16x32xf32>
    %482 = tpu.matmul %480, %481, %cst_349 {dimension_numbers = #tpu.dot_dimension_numbers<[1], [0], [0], [1], [0, 0, 1, 1], [], []>} : vector<16x48xbf16>, vector<48x32xbf16>, vector<16x32xf32> -> vector<16x32xf32>
    %c0_350 = arith.constant 0 : index
    %c0_351 = arith.constant 0 : index
    %483 = vector.load %arg27[%c0_350, %c0_351] : memref<1x32xf32, #tpu.memory_space<vmem>>, vector<1x32xf32>
    %484 = vector.broadcast %483 : vector<1x32xf32> to vector<16x32xf32>
    %485 = arith.addf %482, %484 : vector<16x32xf32>
    %cst_352 = arith.constant 0.000000e+00 : f32
    %486 = vector.broadcast %cst_352 : f32 to vector<16x32xf32>
    %487 = arith.maximumf %485, %486 : vector<16x32xf32>
    %cst_353 = arith.constant dense<0.000000e+00> : vector<32xf32>
    %488 = vector.multi_reduction <add>, %487, %cst_353 [0] : vector<16x32xf32> to vector<32xf32>
    %489 = vector.shape_cast %488 : vector<32xf32> to vector<1x32xf32>
    %cst_354 = arith.constant 1.600000e+01 : f32
    %490 = vector.broadcast %cst_354 : f32 to vector<1x32xf32>
    %491 = arith.divf %489, %490 : vector<1x32xf32>
    %492 = tpu.concatenate %393, %491 in 0 : vector<1x32xf32>, vector<1x32xf32> -> vector<2x32xf32>
    %c0_355 = arith.constant 0 : index
    %c0_356 = arith.constant 0 : index
    %493 = vector.load %arg1[%c0_355, %c0_356] : memref<128x48xf32, #tpu.memory_space<vmem>>, vector<128x48xf32>
    %494 = arith.truncf %493 : vector<128x48xf32> to vector<128x48xbf16>
    %c0_357 = arith.constant 0 : index
    %c0_358 = arith.constant 0 : index
    %495 = vector.load %arg25[%c0_357, %c0_358] : memref<48x32xbf16, #tpu.memory_space<vmem>>, vector<48x32xbf16>
    %cst_359 = arith.constant dense<0.000000e+00> : vector<128x32xf32>
    %496 = tpu.matmul %494, %495, %cst_359 {dimension_numbers = #tpu.dot_dimension_numbers<[1], [0], [0], [1], [0, 0, 1, 1], [], []>} : vector<128x48xbf16>, vector<48x32xbf16>, vector<128x32xf32> -> vector<128x32xf32>
    %c0_360 = arith.constant 0 : index
    %c0_361 = arith.constant 0 : index
    %497 = vector.load %arg27[%c0_360, %c0_361] : memref<1x32xf32, #tpu.memory_space<vmem>>, vector<1x32xf32>
    %498 = vector.broadcast %497 : vector<1x32xf32> to vector<128x32xf32>
    %499 = arith.addf %496, %498 : vector<128x32xf32>
    %cst_362 = arith.constant 0.000000e+00 : f32
    %500 = vector.broadcast %cst_362 : f32 to vector<128x32xf32>
    %501 = arith.maximumf %499, %500 : vector<128x32xf32>
    %502 = vector.extract_strided_slice %501 {offsets = [0, 0], sizes = [64, 32], strides = [1, 1]} : vector<128x32xf32> to vector<64x32xf32>
    %cst_363 = arith.constant dense<0.000000e+00> : vector<32xf32>
    %503 = vector.multi_reduction <add>, %502, %cst_363 [0] : vector<64x32xf32> to vector<32xf32>
    %504 = vector.shape_cast %503 : vector<32xf32> to vector<1x32xf32>
    %cst_364 = arith.constant 6.400000e+01 : f32
    %505 = vector.broadcast %cst_364 : f32 to vector<1x32xf32>
    %506 = arith.divf %504, %505 : vector<1x32xf32>
    %507 = vector.extract_strided_slice %501 {offsets = [64, 0], sizes = [64, 32], strides = [1, 1]} : vector<128x32xf32> to vector<64x32xf32>
    %cst_365 = arith.constant dense<0.000000e+00> : vector<32xf32>
    %508 = vector.multi_reduction <add>, %507, %cst_365 [0] : vector<64x32xf32> to vector<32xf32>
    %509 = vector.shape_cast %508 : vector<32xf32> to vector<1x32xf32>
    %cst_366 = arith.constant 6.400000e+01 : f32
    %510 = vector.broadcast %cst_366 : f32 to vector<1x32xf32>
    %511 = arith.divf %509, %510 : vector<1x32xf32>
    %512 = tpu.concatenate %506, %511 in 0 : vector<1x32xf32>, vector<1x32xf32> -> vector<2x32xf32>
    %513 = arith.truncf %512 : vector<2x32xf32> to vector<2x32xbf16>
    %c0_367 = arith.constant 0 : index
    %c0_368 = arith.constant 0 : index
    %514 = vector.load %arg28[%c0_367, %c0_368] : memref<32x16xbf16, #tpu.memory_space<vmem>>, vector<32x16xbf16>
    %cst_369 = arith.constant dense<0.000000e+00> : vector<2x16xf32>
    %515 = tpu.matmul %513, %514, %cst_369 {dimension_numbers = #tpu.dot_dimension_numbers<[1], [0], [0], [1], [0, 0, 1, 1], [], []>} : vector<2x32xbf16>, vector<32x16xbf16>, vector<2x16xf32> -> vector<2x16xf32>
    %c0_370 = arith.constant 0 : index
    %c0_371 = arith.constant 0 : index
    %516 = vector.load %arg29[%c0_370, %c0_371] : memref<1x16xf32, #tpu.memory_space<vmem>>, vector<1x16xf32>
    %517 = vector.broadcast %516 : vector<1x16xf32> to vector<2x16xf32>
    %518 = arith.addf %515, %517 : vector<2x16xf32>
    %519 = arith.truncf %492 : vector<2x32xf32> to vector<2x32xbf16>
    %c0_372 = arith.constant 0 : index
    %c0_373 = arith.constant 0 : index
    %520 = vector.load %arg28[%c0_372, %c0_373] : memref<32x16xbf16, #tpu.memory_space<vmem>>, vector<32x16xbf16>
    %cst_374 = arith.constant dense<0.000000e+00> : vector<2x16xf32>
    %521 = tpu.matmul %519, %520, %cst_374 {dimension_numbers = #tpu.dot_dimension_numbers<[1], [0], [0], [1], [0, 0, 1, 1], [], []>} : vector<2x32xbf16>, vector<32x16xbf16>, vector<2x16xf32> -> vector<2x16xf32>
    %c0_375 = arith.constant 0 : index
    %c0_376 = arith.constant 0 : index
    %522 = vector.load %arg29[%c0_375, %c0_376] : memref<1x16xf32, #tpu.memory_space<vmem>>, vector<1x16xf32>
    %523 = vector.broadcast %522 : vector<1x16xf32> to vector<2x16xf32>
    %524 = arith.addf %521, %523 : vector<2x16xf32>
    %cst_377 = arith.constant 0.000000e+00 : f32
    %525 = vector.broadcast %cst_377 : f32 to vector<2x16xf32>
    %526 = arith.maximumf %518, %525 : vector<2x16xf32>
    %cst_378 = arith.constant 0.000000e+00 : f32
    %527 = vector.broadcast %cst_378 : f32 to vector<2x16xf32>
    %528 = arith.maximumf %524, %527 : vector<2x16xf32>
    %529 = tpu.concatenate %526, %528 in 1 : vector<2x16xf32>, vector<2x16xf32> -> vector<2x32xf32>
    %530 = arith.truncf %529 : vector<2x32xf32> to vector<2x32xbf16>
    %c0_379 = arith.constant 0 : index
    %c0_380 = arith.constant 0 : index
    %531 = vector.load %arg30[%c0_379, %c0_380] : memref<32x8xbf16, #tpu.memory_space<vmem>>, vector<32x8xbf16>
    %cst_381 = arith.constant dense<0.000000e+00> : vector<2x8xf32>
    %532 = tpu.matmul %530, %531, %cst_381 {dimension_numbers = #tpu.dot_dimension_numbers<[1], [0], [0], [1], [0, 0, 1, 1], [], []>} : vector<2x32xbf16>, vector<32x8xbf16>, vector<2x8xf32> -> vector<2x8xf32>
    %c0_382 = arith.constant 0 : index
    %c0_383 = arith.constant 0 : index
    %533 = vector.load %arg31[%c0_382, %c0_383] : memref<1x8xf32, #tpu.memory_space<vmem>>, vector<1x8xf32>
    %534 = vector.broadcast %533 : vector<1x8xf32> to vector<2x8xf32>
    %535 = arith.addf %532, %534 : vector<2x8xf32>
    %cst_384 = arith.constant 0.000000e+00 : f32
    %536 = vector.broadcast %cst_384 : f32 to vector<2x8xf32>
    %537 = arith.maximumf %535, %536 : vector<2x8xf32>
    %538 = arith.truncf %537 : vector<2x8xf32> to vector<2x8xbf16>
    %c0_385 = arith.constant 0 : index
    %c0_386 = arith.constant 0 : index
    %539 = vector.load %arg32[%c0_385, %c0_386] : memref<8x2xbf16, #tpu.memory_space<vmem>>, vector<8x2xbf16>
    %cst_387 = arith.constant dense<0.000000e+00> : vector<2x2xf32>
    %540 = tpu.matmul %538, %539, %cst_387 {dimension_numbers = #tpu.dot_dimension_numbers<[1], [0], [0], [1], [0, 0, 1, 1], [], []>} : vector<2x8xbf16>, vector<8x2xbf16>, vector<2x2xf32> -> vector<2x2xf32>
    %c0_388 = arith.constant 0 : index
    %c0_389 = arith.constant 0 : index
    %541 = vector.load %arg33[%c0_388, %c0_389] : memref<1x2xf32, #tpu.memory_space<vmem>>, vector<1x2xf32>
    %542 = vector.broadcast %541 : vector<1x2xf32> to vector<2x2xf32>
    %543 = arith.addf %540, %542 : vector<2x2xf32>
    %c0_390 = arith.constant 0 : index
    %c0_391 = arith.constant 0 : index
    %544 = vector.load %arg34[%c0_390, %c0_391] : memref<2x2xf32, #tpu.memory_space<vmem>>, vector<2x2xf32>
    tpu.vector_store %arg34[%c0_390, %c0_391], %543 {strides = array<i32>} : memref<2x2xf32, #tpu.memory_space<vmem>>, vector<2x2xf32>,
    return
  }
}

</mosaic_0001>

<llo_original>
// kernel: genconvit_vae_forward.1
$region0: #{genconvit_vae_forward.1}
  #allocation0 [shape = 'u32[]', space=smem, size = 0x4, offset = 0x4, fixed_abs, tag = 'smem constant byte address 0x4 - core index']
  #allocation1 [shape = 'u32[144,128]{1,0:T(1,128)}', space=vmem, size = 0x12000, scoped, tag = 'internal scratch']
  %s0 = inlined_call_operand.smem [shape: u32[37], index: -1, kind: input, shape index: {}]
  %s1 = sld [smem:[%s0]]
  %s2 = scalar_lea.smem %s0, 1
  %s3 = sld [smem:[%s2]]
  %s4 = scalar_lea.smem %s0, 2
  %s5 = sld [smem:[%s4]]
  %s6 = scalar_lea.smem %s0, 3
  %s7 = sld [smem:[%s6]]
  %s8 = scalar_lea.smem %s0, 4
  %s9 = sld [smem:[%s8]]
  %s10 = scalar_lea.smem %s0, 5
  %s11 = sld [smem:[%s10]]
  %s12 = scalar_lea.smem %s0, 6
  %s13 = sld [smem:[%s12]]
  %s14 = scalar_lea.smem %s0, 7
  %s15 = sld [smem:[%s14]]
  %s16 = scalar_lea.smem %s0, 8
  %s17 = sld [smem:[%s16]]
  %s18 = scalar_lea.smem %s0, 9
  %s19 = sld [smem:[%s18]]
  %s20 = scalar_lea.smem %s0, 10
  %s21 = sld [smem:[%s20]]
  %s22 = scalar_lea.smem %s0, 11
  %s23 = sld [smem:[%s22]]
  %s24 = scalar_lea.smem %s0, 12
  %s25 = sld [smem:[%s24]]
  %s26 = scalar_lea.smem %s0, 13
  %s27 = sld [smem:[%s26]]
  %s28 = scalar_lea.smem %s0, 14
  %s29 = sld [smem:[%s28]]
  %s30 = scalar_lea.smem %s0, 15
  %s31 = sld [smem:[%s30]]
  %s32 = scalar_lea.smem %s0, 16
  %s33 = sld [smem:[%s32]]
  %s34 = scalar_lea.smem %s0, 17
  %s35 = sld [smem:[%s34]]
  %s36 = scalar_lea.smem %s0, 18
  %s37 = sld [smem:[%s36]]
  %s38 = scalar_lea.smem %s0, 19
  %s39 = sld [smem:[%s38]]
  %s40 = scalar_lea.smem %s0, 20
  %s41 = sld [smem:[%s40]]
  %s42 = scalar_lea.smem %s0, 21
  %s43 = sld [smem:[%s42]]
  %s44 = scalar_lea.smem %s0, 22
  %s45 = sld [smem:[%s44]]
  %s46 = scalar_lea.smem %s0, 23
  %s47 = sld [smem:[%s46]]
  %s48 = scalar_lea.smem %s0, 24
  %s49 = sld [smem:[%s48]]
  %s50 = scalar_lea.smem %s0, 25
  %s51 = sld [smem:[%s50]]
  %s52 = scalar_lea.smem %s0, 26
  %s53 = sld [smem:[%s52]]
  %s54 = scalar_lea.smem %s0, 27
  %s55 = sld [smem:[%s54]]
  %s56 = scalar_lea.smem %s0, 28
  %s57 = sld [smem:[%s56]]
  %s58 = scalar_lea.smem %s0, 29
  %s59 = sld [smem:[%s58]]
  %s60 = scalar_lea.smem %s0, 30
  %s61 = sld [smem:[%s60]]
  %s62 = scalar_lea.smem %s0, 31
  %s63 = sld [smem:[%s62]]
  %s64 = scalar_lea.smem %s0, 32
  %s65 = sld [smem:[%s64]]
  %s66 = scalar_lea.smem %s0, 33
  %s67 = sld [smem:[%s66]]
  %s68 = scalar_lea.smem %s0, 34
  %s69 = sld [smem:[%s68]]
  %s70 = scalar_lea.smem %s0, 35
  %s71 = sld [smem:[%s70]]
  %s72 = scalar_lea.smem %s0, 36
  %s73 = sld [smem:[%s72]]
  %74 = xla_tuple %s69, %s71, %s73
  %s75 = sld [smem:[#allocation0]]
  $region162: #{genconvit_vae_forward.1} parent=0
    _
  %s77 = ssub.s32 1, %s75
  %s78 = scalar_select 0, %s77, %s75
  $region1: #{genconvit_vae_forward.1} parent=0
    #allocation2 [shape = 'u8[1024]{0}', space=vmem, size = 0x400, scoped, tag = 'output window, operand 0, single buffered']
    #allocation3 [shape = 's32[1]{0}', space=sflag, size = 0x4, scoped, tag = 'scoped memory for genconvit_vae_forward.1']
    #allocation4 [shape = 'u8[512]{0}', space=vmem, size = 0x400, scoped, tag = 'output window, operand 2, single buffered']
    #allocation5 [shape = 's32[1]{0}', space=sflag, size = 0x4, scoped, tag = 'scoped memory for genconvit_vae_forward.1']
    %79 = vsyncpa [#allocation3], 0
    %80 = vsyncpa [#allocation5], 0
    // Predicated region
    $region2: #{genconvit_vae_forward.1} parent=1 // pred_check
      _
    $region3: #{genconvit_vae_forward.1} parent=1 // pred_check_branch
      %82 = sbr.rel (0) target = $region5
    $region4: #{genconvit_vae_forward.1} parent=1 // pred_region
      _
    $region5: #{genconvit_vae_forward.1} parent=1 // pred_fallthru
      _
    // Predicated region
    $region6: #{genconvit_vae_forward.1} parent=1 // pred_check
      _
    $region7: #{genconvit_vae_forward.1} parent=1 // pred_check_branch
      %84 = sbr.rel (0) target = $region9
    $region8: #{genconvit_vae_forward.1} parent=1 // pred_region
      _
    $region9: #{genconvit_vae_forward.1} parent=1 // pred_fallthru
      _
    // Predicated region
    $region10: #{genconvit_vae_forward.1} parent=1 // pred_check
      _
    $region11: #{genconvit_vae_forward.1} parent=1 // pred_check_branch
      %86 = sbr.rel (0) target = $region13
    $region12: #{genconvit_vae_forward.1} parent=1 // pred_region
      _
    $region13: #{genconvit_vae_forward.1} parent=1 // pred_fallthru
      _
    // Predicated region
    $region14: #{genconvit_vae_forward.1} parent=1 // pred_check
      _
    $region15: #{genconvit_vae_forward.1} parent=1 // pred_check_branch
      %88 = sbr.rel (0) target = $region17
    $region16: #{genconvit_vae_forward.1} parent=1 // pred_region
      _
    $region17: #{genconvit_vae_forward.1} parent=1 // pred_fallthru
      _
    // Predicated region
    $region18: #{genconvit_vae_forward.1} parent=1 // pred_check
      _
    $region19: #{genconvit_vae_forward.1} parent=1 // pred_check_branch
      %90 = sbr.rel (0) target = $region21
    $region20: #{genconvit_vae_forward.1} parent=1 // pred_region
      _
    $region21: #{genconvit_vae_forward.1} parent=1 // pred_fallthru
      _
    // Predicated region
    $region22: #{genconvit_vae_forward.1} parent=1 // pred_check
      _
    $region23: #{genconvit_vae_forward.1} parent=1 // pred_check_branch
      %92 = sbr.rel (0) target = $region25
    $region24: #{genconvit_vae_forward.1} parent=1 // pred_region
      _
    $region25: #{genconvit_vae_forward.1} parent=1 // pred_fallthru
      _
    // Predicated region
    $region26: #{genconvit_vae_forward.1} parent=1 // pred_check
      _
    $region27: #{genconvit_vae_forward.1} parent=1 // pred_check_branch
      %94 = sbr.rel (0) target = $region29
    $region28: #{genconvit_vae_forward.1} parent=1 // pred_region
      _
    $region29: #{genconvit_vae_forward.1} parent=1 // pred_fallthru
      _
    // Predicated region
    $region30: #{genconvit_vae_forward.1} parent=1 // pred_check
      _
    $region31: #{genconvit_vae_forward.1} parent=1 // pred_check_branch
      %96 = sbr.rel (0) target = $region33
    $region32: #{genconvit_vae_forward.1} parent=1 // pred_region
      _
    $region33: #{genconvit_vae_forward.1} parent=1 // pred_fallthru
      _
    // Predicated region
    $region34: #{genconvit_vae_forward.1} parent=1 // pred_check
      _
    $region35: #{genconvit_vae_forward.1} parent=1 // pred_check_branch
      %98 = sbr.rel (0) target = $region37
    $region36: #{genconvit_vae_forward.1} parent=1 // pred_region
      _
    $region37: #{genconvit_vae_forward.1} parent=1 // pred_fallthru
      _
    // Predicated region
    $region38: #{genconvit_vae_forward.1} parent=1 // pred_check
      _
    $region39: #{genconvit_vae_forward.1} parent=1 // pred_check_branch
      %100 = sbr.rel (0) target = $region41
    $region40: #{genconvit_vae_forward.1} parent=1 // pred_region
      _
    $region41: #{genconvit_vae_forward.1} parent=1 // pred_fallthru
      _
    // Predicated region
    $region42: #{genconvit_vae_forward.1} parent=1 // pred_check
      _
    $region43: #{genconvit_vae_forward.1} parent=1 // pred_check_branch
      %102 = sbr.rel (0) target = $region45
    $region44: #{genconvit_vae_forward.1} parent=1 // pred_region
      _
    $region45: #{genconvit_vae_forward.1} parent=1 // pred_fallthru
      _
    // Predicated region
    $region46: #{genconvit_vae_forward.1} parent=1 // pred_check
      _
    $region47: #{genconvit_vae_forward.1} parent=1 // pred_check_branch
      %104 = sbr.rel (0) target = $region49
    $region48: #{genconvit_vae_forward.1} parent=1 // pred_region
      _
    $region49: #{genconvit_vae_forward.1} parent=1 // pred_fallthru
      _
    // Predicated region
    $region50: #{genconvit_vae_forward.1} parent=1 // pred_check
      _
    $region51: #{genconvit_vae_forward.1} parent=1 // pred_check_branch
      %106 = sbr.rel (0) target = $region53
    $region52: #{genconvit_vae_forward.1} parent=1 // pred_region
      _
    $region53: #{genconvit_vae_forward.1} parent=1 // pred_fallthru
      _
    // Predicated region
    $region54: #{genconvit_vae_forward.1} parent=1 // pred_check
      _
    $region55: #{genconvit_vae_forward.1} parent=1 // pred_check_branch
      %108 = sbr.rel (0) target = $region57
    $region56: #{genconvit_vae_forward.1} parent=1 // pred_region
      _
    $region57: #{genconvit_vae_forward.1} parent=1 // pred_fallthru
      _
    // Predicated region
    $region58: #{genconvit_vae_forward.1} parent=1 // pred_check
      _
    $region59: #{genconvit_vae_forward.1} parent=1 // pred_check_branch
      %110 = sbr.rel (0) target = $region61
    $region60: #{genconvit_vae_forward.1} parent=1 // pred_region
      _
    $region61: #{genconvit_vae_forward.1} parent=1 // pred_fallthru
      _
    // Predicated region
    $region62: #{genconvit_vae_forward.1} parent=1 // pred_check
      _
    $region63: #{genconvit_vae_forward.1} parent=1 // pred_check_branch
      %112 = sbr.rel (0) target = $region65
    $region64: #{genconvit_vae_forward.1} parent=1 // pred_region
      _
    $region65: #{genconvit_vae_forward.1} parent=1 // pred_fallthru
      _
    // Predicated region
    $region66: #{genconvit_vae_forward.1} parent=1 // pred_check
      _
    $region67: #{genconvit_vae_forward.1} parent=1 // pred_check_branch
      %114 = sbr.rel (0) target = $region69
    $region68: #{genconvit_vae_forward.1} parent=1 // pred_region
      _
    $region69: #{genconvit_vae_forward.1} parent=1 // pred_fallthru
      _
    // Predicated region
    $region70: #{genconvit_vae_forward.1} parent=1 // pred_check
      _
    $region71: #{genconvit_vae_forward.1} parent=1 // pred_check_branch
      %116 = sbr.rel (0) target = $region73
    $region72: #{genconvit_vae_forward.1} parent=1 // pred_region
      _
    $region73: #{genconvit_vae_forward.1} parent=1 // pred_fallthru
      _
    // Predicated region
    $region74: #{genconvit_vae_forward.1} parent=1 // pred_check
      _
    $region75: #{genconvit_vae_forward.1} parent=1 // pred_check_branch
      %118 = sbr.rel (0) target = $region77
    $region76: #{genconvit_vae_forward.1} parent=1 // pred_region
      _
    $region77: #{genconvit_vae_forward.1} parent=1 // pred_fallthru
      _
    // Predicated region
    $region78: #{genconvit_vae_forward.1} parent=1 // pred_check
      _
    $region79: #{genconvit_vae_forward.1} parent=1 // pred_check_branch
      %120 = sbr.rel (0) target = $region81
    $region80: #{genconvit_vae_forward.1} parent=1 // pred_region
      _
    $region81: #{genconvit_vae_forward.1} parent=1 // pred_fallthru
      _
    // Predicated region
    $region82: #{genconvit_vae_forward.1} parent=1 // pred_check
      _
    $region83: #{genconvit_vae_forward.1} parent=1 // pred_check_branch
      %122 = sbr.rel (0) target = $region85
    $region84: #{genconvit_vae_forward.1} parent=1 // pred_region
      _
    $region85: #{genconvit_vae_forward.1} parent=1 // pred_fallthru
      _
    // Predicated region
    $region86: #{genconvit_vae_forward.1} parent=1 // pred_check
      _
    $region87: #{genconvit_vae_forward.1} parent=1 // pred_check_branch
      %124 = sbr.rel (0) target = $region89
    $region88: #{genconvit_vae_forward.1} parent=1 // pred_region
      _
    $region89: #{genconvit_vae_forward.1} parent=1 // pred_fallthru
      _
    // Predicated region
    $region90: #{genconvit_vae_forward.1} parent=1 // pred_check
      _
    $region91: #{genconvit_vae_forward.1} parent=1 // pred_check_branch
      %126 = sbr.rel (0) target = $region93
    $region92: #{genconvit_vae_forward.1} parent=1 // pred_region
      _
    $region93: #{genconvit_vae_forward.1} parent=1 // pred_fallthru
      _
    // Predicated region
    $region94: #{genconvit_vae_forward.1} parent=1 // pred_check
      _
    $region95: #{genconvit_vae_forward.1} parent=1 // pred_check_branch
      %128 = sbr.rel (0) target = $region97
    $region96: #{genconvit_vae_forward.1} parent=1 // pred_region
      _
    $region97: #{genconvit_vae_forward.1} parent=1 // pred_fallthru
      _
    // Predicated region
    $region98: #{genconvit_vae_forward.1} parent=1 // pred_check
      _
    $region99: #{genconvit_vae_forward.1} parent=1 // pred_check_branch
      %130 = sbr.rel (0) target = $region101
    $region100: #{genconvit_vae_forward.1} parent=1 // pred_region
      _
    $region101: #{genconvit_vae_forward.1} parent=1 // pred_fallthru
      _
    // Predicated region
    $region102: #{genconvit_vae_forward.1} parent=1 // pred_check
      _
    $region103: #{genconvit_vae_forward.1} parent=1 // pred_check_branch
      %132 = sbr.rel (0) target = $region105
    $region104: #{genconvit_vae_forward.1} parent=1 // pred_region
      _
    $region105: #{genconvit_vae_forward.1} parent=1 // pred_fallthru
      _
    // Predicated region
    $region106: #{genconvit_vae_forward.1} parent=1 // pred_check
      _
    $region107: #{genconvit_vae_forward.1} parent=1 // pred_check_branch
      %134 = sbr.rel (0) target = $region109
    $region108: #{genconvit_vae_forward.1} parent=1 // pred_region
      _
    $region109: #{genconvit_vae_forward.1} parent=1 // pred_fallthru
      _
    // Predicated region
    $region110: #{genconvit_vae_forward.1} parent=1 // pred_check
      _
    $region111: #{genconvit_vae_forward.1} parent=1 // pred_check_branch
      %136 = sbr.rel (0) target = $region113
    $region112: #{genconvit_vae_forward.1} parent=1 // pred_region
      _
    $region113: #{genconvit_vae_forward.1} parent=1 // pred_fallthru
      _
    // Predicated region
    $region114: #{genconvit_vae_forward.1} parent=1 // pred_check
      _
    $region115: #{genconvit_vae_forward.1} parent=1 // pred_check_branch
      %138 = sbr.rel (0) target = $region117
    $region116: #{genconvit_vae_forward.1} parent=1 // pred_region
      _
    $region117: #{genconvit_vae_forward.1} parent=1 // pred_fallthru
      _
    // Predicated region
    $region118: #{genconvit_vae_forward.1} parent=1 // pred_check
      _
    $region119: #{genconvit_vae_forward.1} parent=1 // pred_check_branch
      %140 = sbr.rel (0) target = $region121
    $region120: #{genconvit_vae_forward.1} parent=1 // pred_region
      _
    $region121: #{genconvit_vae_forward.1} parent=1 // pred_fallthru
      _
    // Predicated region
    $region122: #{genconvit_vae_forward.1} parent=1 // pred_check
      _
    $region123: #{genconvit_vae_forward.1} parent=1 // pred_check_branch
      %142 = sbr.rel (0) target = $region125
    $region124: #{genconvit_vae_forward.1} parent=1 // pred_region
      _
    $region125: #{genconvit_vae_forward.1} parent=1 // pred_fallthru
      _
    // Predicated region
    $region126: #{genconvit_vae_forward.1} parent=1 // pred_check
      _
    $region127: #{genconvit_vae_forward.1} parent=1 // pred_check_branch
      %144 = sbr.rel (0) target = $region129
    $region128: #{genconvit_vae_forward.1} parent=1 // pred_region
      _
    $region129: #{genconvit_vae_forward.1} parent=1 // pred_fallthru
      _
    // Predicated region
    $region130: #{genconvit_vae_forward.1} parent=1 // pred_check
      _
    $region131: #{genconvit_vae_forward.1} parent=1 // pred_check_branch
      %146 = sbr.rel (0) target = $region133
    $region132: #{genconvit_vae_forward.1} parent=1 // pred_region
      _
    $region133: #{genconvit_vae_forward.1} parent=1 // pred_fallthru
      _
    // Predicated region
    $region134: #{genconvit_vae_forward.1} parent=1 // pred_check
      _
    $region135: #{genconvit_vae_forward.1} parent=1 // pred_check_branch
      %148 = sbr.rel (0) target = $region137
    $region136: #{genconvit_vae_forward.1} parent=1 // pred_region
      _
    $region137: #{genconvit_vae_forward.1} parent=1 // pred_fallthru
      _
    %v150 = vld [vmem:[%s1] sm:$0xff]
    %v151 = vld [vmem:[%s1 + $0x8] sm:$0xff]
    %v152 = vld [vmem:[%s1 + $0x10] sm:$0xff]
    %v153 = vld [vmem:[%s1 + $0x18] sm:$0xff]
    %v154 = vld [vmem:[%s1 + $0x20] sm:$0xff]
    %v155 = vld [vmem:[%s1 + $0x28] sm:$0xff]
    %v156 = vld [vmem:[%s1 + $0x30] sm:$0xff]
    %v157 = vld [vmem:[%s1 + $0x38] sm:$0xff]
    %v158 = vld [vmem:[%s1 + $0x40] sm:$0xff]
    %v159 = vld [vmem:[%s1 + $0x48] sm:$0xff]
    %v160 = vld [vmem:[%s1 + $0x50] sm:$0xff]
    %v161 = vld [vmem:[%s1 + $0x58] sm:$0xff]
    %v162 = vld [vmem:[%s1 + $0x60] sm:$0xff]
    %v163 = vld [vmem:[%s1 + $0x68] sm:$0xff]
    %v164 = vld [vmem:[%s1 + $0x70] sm:$0xff]
    %v165 = vld [vmem:[%s1 + $0x78] sm:$0xff]
    %v166 = vld [vmem:[%s1 + $0x80] sm:$0xff]
    %v167 = vld [vmem:[%s1 + $0x88] sm:$0xff]
    %v168 = vld [vmem:[%s1 + $0x90] sm:$0xff]
    %v169 = vld [vmem:[%s1 + $0x98] sm:$0xff]
    %v170 = vld [vmem:[%s1 + $0xa0] sm:$0xff]
    %v171 = vld [vmem:[%s1 + $0xa8] sm:$0xff]
    %v172 = vld [vmem:[%s1 + $0xb0] sm:$0xff]
    %v173 = vld [vmem:[%s1 + $0xb8] sm:$0xff]
    %v174 = vld [vmem:[%s1 + $0xc0] sm:$0xff]
    %v175 = vld [vmem:[%s1 + $0xc8] sm:$0xff]
    %v176 = vld [vmem:[%s1 + $0xd0] sm:$0xff]
    %v177 = vld [vmem:[%s1 + $0xd8] sm:$0xff]
    %v178 = vld [vmem:[%s1 + $0xe0] sm:$0xff]
    %v179 = vld [vmem:[%s1 + $0xe8] sm:$0xff]
    %v180 = vld [vmem:[%s1 + $0xf0] sm:$0xff]
    %v181 = vld [vmem:[%s1 + $0xf8] sm:$0xff]
    %v182 = vld [vmem:[%s1 + $0x100] sm:$0xff]
    %v183 = vld [vmem:[%s1 + $0x108] sm:$0xff]
    %v184 = vld [vmem:[%s1 + $0x110] sm:$0xff]
    %v185 = vld [vmem:[%s1 + $0x118] sm:$0xff]
    %v186 = vld [vmem:[%s1 + $0x120] sm:$0xff]
    %v187 = vld [vmem:[%s1 + $0x128] sm:$0xff]
    %v188 = vld [vmem:[%s1 + $0x130] sm:$0xff]
    %v189 = vld [vmem:[%s1 + $0x138] sm:$0xff]
    %v190 = vld [vmem:[%s1 + $0x140] sm:$0xff]
    %v191 = vld [vmem:[%s1 + $0x148] sm:$0xff]
    %v192 = vld [vmem:[%s1 + $0x150] sm:$0xff]
    %v193 = vld [vmem:[%s1 + $0x158] sm:$0xff]
    %v194 = vld [vmem:[%s1 + $0x160] sm:$0xff]
    %v195 = vld [vmem:[%s1 + $0x168] sm:$0xff]
    %v196 = vld [vmem:[%s1 + $0x170] sm:$0xff]
    %v197 = vld [vmem:[%s1 + $0x178] sm:$0xff]
    %v198 = vld [vmem:[%s1 + $0x180] sm:$0xff]
    %v199 = vld [vmem:[%s1 + $0x188] sm:$0xff]
    %v200 = vld [vmem:[%s1 + $0x190] sm:$0xff]
    %v201 = vld [vmem:[%s1 + $0x198] sm:$0xff]
    %v202 = vld [vmem:[%s1 + $0x1a0] sm:$0xff]
    %v203 = vld [vmem:[%s1 + $0x1a8] sm:$0xff]
    %v204 = vld [vmem:[%s1 + $0x1b0] sm:$0xff]
    %v205 = vld [vmem:[%s1 + $0x1b8] sm:$0xff]
    %v206 = vld [vmem:[%s1 + $0x1c0] sm:$0xff]
    %v207 = vld [vmem:[%s1 + $0x1c8] sm:$0xff]
    %v208 = vld [vmem:[%s1 + $0x1d0] sm:$0xff]
    %v209 = vld [vmem:[%s1 + $0x1d8] sm:$0xff]
    %v210 = vld [vmem:[%s1 + $0x1e0] sm:$0xff]
    %v211 = vld [vmem:[%s1 + $0x1e8] sm:$0xff]
    %v212 = vld [vmem:[%s1 + $0x1f0] sm:$0xff]
    %v213 = vld [vmem:[%s1 + $0x1f8] sm:$0xff]
    %v214 = vpack.c.bf16 %v151, %v150
    %v215 = vpack.c.bf16 %v153, %v152
    %v216 = vpack.c.bf16 %v155, %v154
    %v217 = vpack.c.bf16 %v157, %v156
    %v218 = vpack.c.bf16 %v159, %v158
    %v219 = vpack.c.bf16 %v161, %v160
    %v220 = vpack.c.bf16 %v163, %v162
    %v221 = vpack.c.bf16 %v165, %v164
    %v222 = vpack.c.bf16 %v167, %v166
    %v223 = vpack.c.bf16 %v169, %v168
    %v224 = vpack.c.bf16 %v171, %v170
    %v225 = vpack.c.bf16 %v173, %v172
    %v226 = vpack.c.bf16 %v175, %v174
    %v227 = vpack.c.bf16 %v177, %v176
    %v228 = vpack.c.bf16 %v179, %v178
    %v229 = vpack.c.bf16 %v181, %v180
    %v230 = vpack.c.bf16 %v183, %v182
    %v231 = vpack.c.bf16 %v185, %v184
    %v232 = vpack.c.bf16 %v187, %v186
    %v233 = vpack.c.bf16 %v189, %v188
    %v234 = vpack.c.bf16 %v191, %v190
    %v235 = vpack.c.bf16 %v193, %v192
    %v236 = vpack.c.bf16 %v195, %v194
    %v237 = vpack.c.bf16 %v197, %v196
    %v238 = vpack.c.bf16 %v199, %v198
    %v239 = vpack.c.bf16 %v201, %v200
    %v240 = vpack.c.bf16 %v203, %v202
    %v241 = vpack.c.bf16 %v205, %v204
    %v242 = vpack.c.bf16 %v207, %v206
    %v243 = vpack.c.bf16 %v209, %v208
    %v244 = vpack.c.bf16 %v211, %v210
    %v245 = vpack.c.bf16 %v213, %v212
    %v246 = vld [vmem:[%s7] sm:$0xf]
    %v247 = vld [vmem:[%s7 + $0x4] sm:$0xf]
    %v248 = vld [vmem:[%s7 + $0x8] sm:$0xf]
    %v249 = vld [vmem:[%s7 + $0xc] sm:$0x3]
    %v250 = vld [vmem:[%s9] sm:$0x1]
    %v252 = vlaneseq
    %v253 = vshrl.u32 %v252, 7
    %v254 = vsub.s32 0, %v253
    %v255 = vrot.slane %v250, %v254
    %v261 = vunpack.c.l.b16 %v246
    %v262 = vunpack.c.l.b16 %v247
    %v263 = vunpack.c.l.b16 %v248
    %v264 = vunpack.c.l.b16 %v249
    %v265 = vpack.c.b16 %v262, %v261
    %v266 = vpack.c.b16 %v264, %v263
    %vm268 = vcmask 220160
    %v270 = vsel %vm268, %v214, 0
    %v273 = vsel %vm268, %v215, 0
    %v276 = vsel %vm268, %v216, 0
    %v279 = vsel %vm268, %v217, 0
    %v282 = vsel %vm268, %v218, 0
    %v285 = vsel %vm268, %v219, 0
    %v288 = vsel %vm268, %v220, 0
    %v291 = vsel %vm268, %v221, 0
    %v294 = vsel %vm268, %v222, 0
    %v297 = vsel %vm268, %v223, 0
    %v300 = vsel %vm268, %v224, 0
    %v303 = vsel %vm268, %v225, 0
    %v306 = vsel %vm268, %v226, 0
    %v309 = vsel %vm268, %v227, 0
    %v312 = vsel %vm268, %v228, 0
    %v315 = vsel %vm268, %v229, 0
    %v318 = vsel %vm268, %v230, 0
    %v321 = vsel %vm268, %v231, 0
    %v324 = vsel %vm268, %v232, 0
    %v327 = vsel %vm268, %v233, 0
    %v330 = vsel %vm268, %v234, 0
    %v333 = vsel %vm268, %v235, 0
    %v336 = vsel %vm268, %v236, 0
    %v339 = vsel %vm268, %v237, 0
    %v342 = vsel %vm268, %v238, 0
    %v345 = vsel %vm268, %v239, 0
    %v348 = vsel %vm268, %v240, 0
    %v351 = vsel %vm268, %v241, 0
    %v354 = vsel %vm268, %v242, 0
    %v357 = vsel %vm268, %v243, 0
    %v360 = vsel %vm268, %v244, 0
    %v363 = vsel %vm268, %v245, 0
    %vm365 = vcmask 1044480
    %vm366 = vcmask 1045504
    %v367 = vsel %vm365, 4294967295, 65535
    %v368 = vsel %vm366, %v367, 0
    %v370 = vand.u32 %v266, %v368
    %372 = vmatprep.subr.bf16.mxu0 0
    %373 = vmatpush1.bf16.msra.mxu0 %v265
    %374 = vmatprep.subr.bf16.mxu0 0
    %375 = vmatpush1.bf16.msra.mxu0 %v370
    %376 = vmatprep.subr.bf16.mxu0 0
    %377 = vmatpush1.bf16.msra.mxu0 0
    %378 = vmatprep.subr.bf16.mxu0 0
    %379 = vmatpush1.bf16.msra.mxu0 0
    %380 = vmatprep.subr.bf16.mxu0 0
    %381 = vmatpush1.bf16.msra.mxu0 0
    %382 = vmatprep.subr.bf16.mxu0 0
    %383 = vmatpush1.bf16.msra.mxu0 0
    %384 = vmatprep.subr.bf16.mxu0 0
    %385 = vmatpush1.bf16.msra.mxu0 0
    %386 = vmatprep.subr.bf16.mxu0 0
    %387 = vmatpush1.bf16.msra.mxu0 0
    %388 = vmatprep.subr.bf16.mxu0 0
    %389 = vmatpush1.bf16.msra.mxu0 0
    %390 = vmatprep.subr.bf16.mxu0 0
    %391 = vmatpush1.bf16.msra.mxu0 0
    %392 = vmatprep.subr.bf16.mxu0 0
    %393 = vmatpush1.bf16.msra.mxu0 0
    %394 = vmatprep.subr.bf16.mxu0 0
    %395 = vmatpush1.bf16.msra.mxu0 0
    %396 = vmatprep.subr.bf16.mxu0 0
    %397 = vmatpush1.bf16.msra.mxu0 0
    %398 = vmatprep.subr.bf16.mxu0 0
    %399 = vmatpush1.bf16.msra.mxu0 0
    %400 = vmatprep.subr.bf16.mxu0 0
    %401 = vmatpush1.bf16.msra.mxu0 0
    %402 = vmatprep.subr.bf16.mxu0 0
    %403 = vmatpush1.bf16.msra.mxu0 0
    %404 = vmatprep.mubr.bf16.mxu0 0
    %405 = vmatmul.mubr.bf16.gmra.mrb[0].mxu0 %v270
    %v406 = vpop.f32.mrb[0].mxu0
    %v407 = vadd.f32 %v255, %v406
    %v408 = vpop.f32.mrb[0].mxu0
    %v409 = vpop.f32.mrb[0].mxu0
    %v410 = vadd.f32 %v255, %v409
    %v411 = vpop.f32.mrb[0].mxu0
    %412 = vmatprep.mubr.bf16.mxu0 0
    %413 = vmatmul.mubr.bf16.gmra.mrb[0].mxu0 %v273
    %v414 = vpop.f32.mrb[0].mxu0
    %v415 = vadd.f32 %v255, %v414
    %v416 = vpop.f32.mrb[0].mxu0
    %v417 = vpop.f32.mrb[0].mxu0
    %v418 = vadd.f32 %v255, %v417
    %v419 = vpop.f32.mrb[0].mxu0
    %420 = vmatprep.mubr.bf16.mxu0 0
    %421 = vmatmul.mubr.bf16.gmra.mrb[0].mxu0 %v276
    %v422 = vpop.f32.mrb[0].mxu0
    %v423 = vadd.f32 %v255, %v422
    %v424 = vpop.f32.mrb[0].mxu0
    %v425 = vpop.f32.mrb[0].mxu0
    %v426 = vadd.f32 %v255, %v425
    %v427 = vpop.f32.mrb[0].mxu0
    %428 = vmatprep.mubr.bf16.mxu0 0
    %429 = vmatmul.mubr.bf16.gmra.mrb[0].mxu0 %v279
    %v430 = vpop.f32.mrb[0].mxu0
    %v431 = vadd.f32 %v255, %v430
    %v432 = vpop.f32.mrb[0].mxu0
    %v433 = vpop.f32.mrb[0].mxu0
    %v434 = vadd.f32 %v255, %v433
    %v435 = vpop.f32.mrb[0].mxu0
    %436 = vmatprep.mubr.bf16.mxu0 0
    %437 = vmatmul.mubr.bf16.gmra.mrb[0].mxu0 %v282
    %v438 = vpop.f32.mrb[0].mxu0
    %v439 = vadd.f32 %v255, %v438
    %v440 = vpop.f32.mrb[0].mxu0
    %v441 = vpop.f32.mrb[0].mxu0
    %v442 = vadd.f32 %v255, %v441
    %v443 = vpop.f32.mrb[0].mxu0
    %444 = vmatprep.mubr.bf16.mxu0 0
    %445 = vmatmul.mubr.bf16.gmra.mrb[0].mxu0 %v285
    %v446 = vpop.f32.mrb[0].mxu0
    %v447 = vadd.f32 %v255, %v446
    %v448 = vpop.f32.mrb[0].mxu0
    %v449 = vpop.f32.mrb[0].mxu0
    %v450 = vadd.f32 %v255, %v449
    %v451 = vpop.f32.mrb[0].mxu0
    %452 = vmatprep.mubr.bf16.mxu0 0
    %453 = vmatmul.mubr.bf16.gmra.mrb[0].mxu0 %v288
    %v454 = vpop.f32.mrb[0].mxu0
    %v455 = vadd.f32 %v255, %v454
    %v456 = vpop.f32.mrb[0].mxu0
    %v457 = vpop.f32.mrb[0].mxu0
    %v458 = vadd.f32 %v255, %v457
    %v459 = vpop.f32.mrb[0].mxu0
    %460 = vmatprep.mubr.bf16.mxu0 0
    %461 = vmatmul.mubr.bf16.gmra.mrb[0].mxu0 %v291
    %v462 = vpop.f32.mrb[0].mxu0
    %v463 = vadd.f32 %v255, %v462
    %v464 = vpop.f32.mrb[0].mxu0
    %v465 = vpop.f32.mrb[0].mxu0
    %v466 = vadd.f32 %v255, %v465
    %v467 = vpop.f32.mrb[0].mxu0
    %468 = vmatprep.mubr.bf16.mxu0 0
    %469 = vmatmul.mubr.bf16.gmra.mrb[0].mxu0 %v294
    %v470 = vpop.f32.mrb[0].mxu0
    %v471 = vadd.f32 %v255, %v470
    %v472 = vpop.f32.mrb[0].mxu0
    %v473 = vpop.f32.mrb[0].mxu0
    %v474 = vadd.f32 %v255, %v473
    %v475 = vpop.f32.mrb[0].mxu0
    %476 = vmatprep.mubr.bf16.mxu0 0
    %477 = vmatmul.mubr.bf16.gmra.mrb[0].mxu0 %v297
    %v478 = vpop.f32.mrb[0].mxu0
    %v479 = vadd.f32 %v255, %v478
    %v480 = vpop.f32.mrb[0].mxu0
    %v481 = vpop.f32.mrb[0].mxu0
    %v482 = vadd.f32 %v255, %v481
    %v483 = vpop.f32.mrb[0].mxu0
    %484 = vmatprep.mubr.bf16.mxu0 0
    %485 = vmatmul.mubr.bf16.gmra.mrb[0].mxu0 %v300
    %v486 = vpop.f32.mrb[0].mxu0
    %v487 = vadd.f32 %v255, %v486
    %v488 = vpop.f32.mrb[0].mxu0
    %v489 = vpop.f32.mrb[0].mxu0
    %v490 = vadd.f32 %v255, %v489
    %v491 = vpop.f32.mrb[0].mxu0
    %492 = vmatprep.mubr.bf16.mxu0 0
    %493 = vmatmul.mubr.bf16.gmra.mrb[0].mxu0 %v303
    %v494 = vpop.f32.mrb[0].mxu0
    %v495 = vadd.f32 %v255, %v494
    %v496 = vpop.f32.mrb[0].mxu0
    %v497 = vpop.f32.mrb[0].mxu0
    %v498 = vadd.f32 %v255, %v497
    %v499 = vpop.f32.mrb[0].mxu0
    %500 = vmatprep.mubr.bf16.mxu0 0
    %501 = vmatmul.mubr.bf16.gmra.mrb[0].mxu0 %v306
    %v502 = vpop.f32.mrb[0].mxu0
    %v503 = vadd.f32 %v255, %v502
    %v504 = vpop.f32.mrb[0].mxu0
    %v505 = vpop.f32.mrb[0].mxu0
    %v506 = vadd.f32 %v255, %v505
    %v507 = vpop.f32.mrb[0].mxu0
    %508 = vmatprep.mubr.bf16.mxu0 0
    %509 = vmatmul.mubr.bf16.gmra.mrb[0].mxu0 %v309
    %v510 = vpop.f32.mrb[0].mxu0
    %v511 = vadd.f32 %v255, %v510
    %v512 = vpop.f32.mrb[0].mxu0
    %v513 = vpop.f32.mrb[0].mxu0
    %v514 = vadd.f32 %v255, %v513
    %v515 = vpop.f32.mrb[0].mxu0
    %516 = vmatprep.mubr.bf16.mxu0 0
    %517 = vmatmul.mubr.bf16.gmra.mrb[0].mxu0 %v312
    %v518 = vpop.f32.mrb[0].mxu0
    %v519 = vadd.f32 %v255, %v518
    %v520 = vpop.f32.mrb[0].mxu0
    %v521 = vpop.f32.mrb[0].mxu0
    %v522 = vadd.f32 %v255, %v521
    %v523 = vpop.f32.mrb[0].mxu0
    %524 = vmatprep.mubr.bf16.mxu0 0
    %525 = vmatmul.mubr.bf16.gmra.mrb[0].mxu0 %v315
    %v526 = vpop.f32.mrb[0].mxu0
    %v527 = vadd.f32 %v255, %v526
    %v528 = vpop.f32.mrb[0].mxu0
    %v529 = vpop.f32.mrb[0].mxu0
    %v530 = vadd.f32 %v255, %v529
    %v531 = vpop.f32.mrb[0].mxu0
    %532 = vmatprep.mubr.bf16.mxu0 0
    %533 = vmatmul.mubr.bf16.gmra.mrb[0].mxu0 %v318
    %v534 = vpop.f32.mrb[0].mxu0
    %v535 = vadd.f32 %v255, %v534
    %v536 = vpop.f32.mrb[0].mxu0
    %v537 = vpop.f32.mrb[0].mxu0
    %v538 = vadd.f32 %v255, %v537
    %v539 = vpop.f32.mrb[0].mxu0
    %540 = vmatprep.mubr.bf16.mxu0 0
    %541 = vmatmul.mubr.bf16.gmra.mrb[0].mxu0 %v321
    %v542 = vpop.f32.mrb[0].mxu0
    %v543 = vadd.f32 %v255, %v542
    %v544 = vpop.f32.mrb[0].mxu0
    %v545 = vpop.f32.mrb[0].mxu0
    %v546 = vadd.f32 %v255, %v545
    %v547 = vpop.f32.mrb[0].mxu0
    %548 = vmatprep.mubr.bf16.mxu0 0
    %549 = vmatmul.mubr.bf16.gmra.mrb[0].mxu0 %v324
    %v550 = vpop.f32.mrb[0].mxu0
    %v551 = vadd.f32 %v255, %v550
    %v552 = vpop.f32.mrb[0].mxu0
    %v553 = vpop.f32.mrb[0].mxu0
    %v554 = vadd.f32 %v255, %v553
    %v555 = vpop.f32.mrb[0].mxu0
    %556 = vmatprep.mubr.bf16.mxu0 0
    %557 = vmatmul.mubr.bf16.gmra.mrb[0].mxu0 %v327
    %v558 = vpop.f32.mrb[0].mxu0
    %v559 = vadd.f32 %v255, %v558
    %v560 = vpop.f32.mrb[0].mxu0
    %v561 = vpop.f32.mrb[0].mxu0
    %v562 = vadd.f32 %v255, %v561
    %v563 = vpop.f32.mrb[0].mxu0
    %564 = vmatprep.mubr.bf16.mxu0 0
    %565 = vmatmul.mubr.bf16.gmra.mrb[0].mxu0 %v330
    %v566 = vpop.f32.mrb[0].mxu0
    %v567 = vadd.f32 %v255, %v566
    %v568 = vpop.f32.mrb[0].mxu0
    %v569 = vpop.f32.mrb[0].mxu0
    %v570 = vadd.f32 %v255, %v569
    %v571 = vpop.f32.mrb[0].mxu0
    %572 = vmatprep.mubr.bf16.mxu0 0
    %573 = vmatmul.mubr.bf16.gmra.mrb[0].mxu0 %v333
    %v574 = vpop.f32.mrb[0].mxu0
    %v575 = vadd.f32 %v255, %v574
    %v576 = vpop.f32.mrb[0].mxu0
    %v577 = vpop.f32.mrb[0].mxu0
    %v578 = vadd.f32 %v255, %v577
    %v579 = vpop.f32.mrb[0].mxu0
    %580 = vmatprep.mubr.bf16.mxu0 0
    %581 = vmatmul.mubr.bf16.gmra.mrb[0].mxu0 %v336
    %v582 = vpop.f32.mrb[0].mxu0
    %v583 = vadd.f32 %v255, %v582
    %v584 = vpop.f32.mrb[0].mxu0
    %v585 = vpop.f32.mrb[0].mxu0
    %v586 = vadd.f32 %v255, %v585
    %v587 = vpop.f32.mrb[0].mxu0
    %588 = vmatprep.mubr.bf16.mxu0 0
    %589 = vmatmul.mubr.bf16.gmra.mrb[0].mxu0 %v339
    %v590 = vpop.f32.mrb[0].mxu0
    %v591 = vadd.f32 %v255, %v590
    %v592 = vpop.f32.mrb[0].mxu0
    %v593 = vpop.f32.mrb[0].mxu0
    %v594 = vadd.f32 %v255, %v593
    %v595 = vpop.f32.mrb[0].mxu0
    %596 = vmatprep.mubr.bf16.mxu0 0
    %597 = vmatmul.mubr.bf16.gmra.mrb[0].mxu0 %v342
    %v598 = vpop.f32.mrb[0].mxu0
    %v599 = vadd.f32 %v255, %v598
    %v600 = vpop.f32.mrb[0].mxu0
    %v601 = vpop.f32.mrb[0].mxu0
    %v602 = vadd.f32 %v255, %v601
    %v603 = vpop.f32.mrb[0].mxu0
    %604 = vmatprep.mubr.bf16.mxu0 0
    %605 = vmatmul.mubr.bf16.gmra.mrb[0].mxu0 %v345
    %v606 = vpop.f32.mrb[0].mxu0
    %v607 = vadd.f32 %v255, %v606
    %v608 = vpop.f32.mrb[0].mxu0
    %v609 = vpop.f32.mrb[0].mxu0
    %v610 = vadd.f32 %v255, %v609
    %v611 = vpop.f32.mrb[0].mxu0
    %612 = vmatprep.mubr.bf16.mxu0 0
    %613 = vmatmul.mubr.bf16.gmra.mrb[0].mxu0 %v348
    %v614 = vpop.f32.mrb[0].mxu0
    %v615 = vadd.f32 %v255, %v614
    %v616 = vpop.f32.mrb[0].mxu0
    %v617 = vpop.f32.mrb[0].mxu0
    %v618 = vadd.f32 %v255, %v617
    %v619 = vpop.f32.mrb[0].mxu0
    %620 = vmatprep.mubr.bf16.mxu0 0
    %621 = vmatmul.mubr.bf16.gmra.mrb[0].mxu0 %v351
    %v622 = vpop.f32.mrb[0].mxu0
    %v623 = vadd.f32 %v255, %v622
    %v624 = vpop.f32.mrb[0].mxu0
    %v625 = vpop.f32.mrb[0].mxu0
    %v626 = vadd.f32 %v255, %v625
    %v627 = vpop.f32.mrb[0].mxu0
    %628 = vmatprep.mubr.bf16.mxu0 0
    %629 = vmatmul.mubr.bf16.gmra.mrb[0].mxu0 %v354
    %v630 = vpop.f32.mrb[0].mxu0
    %v631 = vadd.f32 %v255, %v630
    %v632 = vpop.f32.mrb[0].mxu0
    %v633 = vpop.f32.mrb[0].mxu0
    %v634 = vadd.f32 %v255, %v633
    %v635 = vpop.f32.mrb[0].mxu0
    %636 = vmatprep.mubr.bf16.mxu0 0
    %637 = vmatmul.mubr.bf16.gmra.mrb[0].mxu0 %v357
    %v638 = vpop.f32.mrb[0].mxu0
    %v639 = vadd.f32 %v255, %v638
    %v640 = vpop.f32.mrb[0].mxu0
    %v641 = vpop.f32.mrb[0].mxu0
    %v642 = vadd.f32 %v255, %v641
    %v643 = vpop.f32.mrb[0].mxu0
    %644 = vmatprep.mubr.bf16.mxu0 0
    %645 = vmatmul.mubr.bf16.gmra.mrb[0].mxu0 %v360
    %v646 = vpop.f32.mrb[0].mxu0
    %v647 = vadd.f32 %v255, %v646
    %v648 = vpop.f32.mrb[0].mxu0
    %v649 = vpop.f32.mrb[0].mxu0
    %v650 = vadd.f32 %v255, %v649
    %v651 = vpop.f32.mrb[0].mxu0
    %652 = vmatprep.mubr.bf16.mxu0 0
    %653 = vmatmul.mubr.bf16.gmra.mrb[0].mxu0 %v363
    %v654 = vpop.f32.mrb[0].mxu0
    %v655 = vadd.f32 %v255, %v654
    %v656 = vpop.f32.mrb[0].mxu0
    %v657 = vpop.f32.mrb[0].mxu0
    %v658 = vadd.f32 %v255, %v657
    %v659 = vpop.f32.mrb[0].mxu0
    %660 = vdwg.mxu0
    %vm661 = vcmp.ge.f32.partialorder %v407, 0.0
    %vm662 = vcmp.ge.f32.partialorder %v410, 0.0
    %vm663 = vcmp.ge.f32.partialorder %v415, 0.0
    %vm664 = vcmp.ge.f32.partialorder %v418, 0.0
    %vm665 = vcmp.ge.f32.partialorder %v423, 0.0
    %vm666 = vcmp.ge.f32.partialorder %v426, 0.0
    %vm667 = vcmp.ge.f32.partialorder %v431, 0.0
    %vm668 = vcmp.ge.f32.partialorder %v434, 0.0
    %vm669 = vcmp.ge.f32.partialorder %v439, 0.0
    %vm670 = vcmp.ge.f32.partialorder %v442, 0.0
    %vm671 = vcmp.ge.f32.partialorder %v447, 0.0
    %vm672 = vcmp.ge.f32.partialorder %v450, 0.0
    %vm673 = vcmp.ge.f32.partialorder %v455, 0.0
    %vm674 = vcmp.ge.f32.partialorder %v458, 0.0
    %vm675 = vcmp.ge.f32.partialorder %v463, 0.0
    %vm676 = vcmp.ge.f32.partialorder %v466, 0.0
    %vm677 = vcmp.ge.f32.partialorder %v471, 0.0
    %vm678 = vcmp.ge.f32.partialorder %v474, 0.0
    %vm679 = vcmp.ge.f32.partialorder %v479, 0.0
    %vm680 = vcmp.ge.f32.partialorder %v482, 0.0
    %vm681 = vcmp.ge.f32.partialorder %v487, 0.0
    %vm682 = vcmp.ge.f32.partialorder %v490, 0.0
    %vm683 = vcmp.ge.f32.partialorder %v495, 0.0
    %vm684 = vcmp.ge.f32.partialorder %v498, 0.0
    %vm685 = vcmp.ge.f32.partialorder %v503, 0.0
    %vm686 = vcmp.ge.f32.partialorder %v506, 0.0
    %vm687 = vcmp.ge.f32.partialorder %v511, 0.0
    %vm688 = vcmp.ge.f32.partialorder %v514, 0.0
    %vm689 = vcmp.ge.f32.partialorder %v519, 0.0
    %vm690 = vcmp.ge.f32.partialorder %v522, 0.0
    %vm691 = vcmp.ge.f32.partialorder %v527, 0.0
    %vm692 = vcmp.ge.f32.partialorder %v530, 0.0
    %vm693 = vcmp.ge.f32.partialorder %v535, 0.0
    %vm694 = vcmp.ge.f32.partialorder %v538, 0.0
    %vm695 = vcmp.ge.f32.partialorder %v543, 0.0
    %vm696 = vcmp.ge.f32.partialorder %v546, 0.0
    %vm697 = vcmp.ge.f32.partialorder %v551, 0.0
    %vm698 = vcmp.ge.f32.partialorder %v554, 0.0
    %vm699 = vcmp.ge.f32.partialorder %v559, 0.0
    %vm700 = vcmp.ge.f32.partialorder %v562, 0.0
    %vm701 = vcmp.ge.f32.partialorder %v567, 0.0
    %vm702 = vcmp.ge.f32.partialorder %v570, 0.0
    %vm703 = vcmp.ge.f32.partialorder %v575, 0.0
    %vm704 = vcmp.ge.f32.partialorder %v578, 0.0
    %vm705 = vcmp.ge.f32.partialorder %v583, 0.0
    %vm706 = vcmp.ge.f32.partialorder %v586, 0.0
    %vm707 = vcmp.ge.f32.partialorder %v591, 0.0
    %vm708 = vcmp.ge.f32.partialorder %v594, 0.0
    %vm709 = vcmp.ge.f32.partialorder %v599, 0.0
    %vm710 = vcmp.ge.f32.partialorder %v602, 0.0
    %vm711 = vcmp.ge.f32.partialorder %v607, 0.0
    %vm712 = vcmp.ge.f32.partialorder %v610, 0.0
    %vm713 = vcmp.ge.f32.partialorder %v615, 0.0
    %vm714 = vcmp.ge.f32.partialorder %v618, 0.0
    %vm715 = vcmp.ge.f32.partialorder %v623, 0.0
    %vm716 = vcmp.ge.f32.partialorder %v626, 0.0
    %vm717 = vcmp.ge.f32.partialorder %v631, 0.0
    %vm718 = vcmp.ge.f32.partialorder %v634, 0.0
    %vm719 = vcmp.ge.f32.partialorder %v639, 0.0
    %vm720 = vcmp.ge.f32.partialorder %v642, 0.0
    %vm721 = vcmp.ge.f32.partialorder %v647, 0.0
    %vm722 = vcmp.ge.f32.partialorder %v650, 0.0
    %vm723 = vcmp.ge.f32.partialorder %v655, 0.0
    %vm724 = vcmp.ge.f32.partialorder %v658, 0.0
    %v725 = vmul.f32 %v407, 0.01
    %v726 = vmul.f32 %v410, 0.01
    %v727 = vmul.f32 %v415, 0.01
    %v728 = vmul.f32 %v418, 0.01
    %v729 = vmul.f32 %v423, 0.01
    %v730 = vmul.f32 %v426, 0.01
    %v731 = vmul.f32 %v431, 0.01
    %v732 = vmul.f32 %v434, 0.01
    %v733 = vmul.f32 %v439, 0.01
    %v734 = vmul.f32 %v442, 0.01
    %v735 = vmul.f32 %v447, 0.01
    %v736 = vmul.f32 %v450, 0.01
    %v737 = vmul.f32 %v455, 0.01
    %v738 = vmul.f32 %v458, 0.01
    %v739 = vmul.f32 %v463, 0.01
    %v740 = vmul.f32 %v466, 0.01
    %v741 = vmul.f32 %v471, 0.01
    %v742 = vmul.f32 %v474, 0.01
    %v743 = vmul.f32 %v479, 0.01
    %v744 = vmul.f32 %v482, 0.01
    %v745 = vmul.f32 %v487, 0.01
    %v746 = vmul.f32 %v490, 0.01
    %v747 = vmul.f32 %v495, 0.01
    %v748 = vmul.f32 %v498, 0.01
    %v749 = vmul.f32 %v503, 0.01
    %v750 = vmul.f32 %v506, 0.01
    %v751 = vmul.f32 %v511, 0.01
    %v752 = vmul.f32 %v514, 0.01
    %v753 = vmul.f32 %v519, 0.01
    %v754 = vmul.f32 %v522, 0.01
    %v755 = vmul.f32 %v527, 0.01
    %v756 = vmul.f32 %v530, 0.01
    %v757 = vmul.f32 %v535, 0.01
    %v758 = vmul.f32 %v538, 0.01
    %v759 = vmul.f32 %v543, 0.01
    %v760 = vmul.f32 %v546, 0.01
    %v761 = vmul.f32 %v551, 0.01
    %v762 = vmul.f32 %v554, 0.01
    %v763 = vmul.f32 %v559, 0.01
    %v764 = vmul.f32 %v562, 0.01
    %v765 = vmul.f32 %v567, 0.01
    %v766 = vmul.f32 %v570, 0.01
    %v767 = vmul.f32 %v575, 0.01
    %v768 = vmul.f32 %v578, 0.01
    %v769 = vmul.f32 %v583, 0.01
    %v770 = vmul.f32 %v586, 0.01
    %v771 = vmul.f32 %v591, 0.01
    %v772 = vmul.f32 %v594, 0.01
    %v773 = vmul.f32 %v599, 0.01
    %v774 = vmul.f32 %v602, 0.01
    %v775 = vmul.f32 %v607, 0.01
    %v776 = vmul.f32 %v610, 0.01
    %v777 = vmul.f32 %v615, 0.01
    %v778 = vmul.f32 %v618, 0.01
    %v779 = vmul.f32 %v623, 0.01
    %v780 = vmul.f32 %v626, 0.01
    %v781 = vmul.f32 %v631, 0.01
    %v782 = vmul.f32 %v634, 0.01
    %v783 = vmul.f32 %v639, 0.01
    %v784 = vmul.f32 %v642, 0.01
    %v785 = vmul.f32 %v647, 0.01
    %v786 = vmul.f32 %v650, 0.01
    %v787 = vmul.f32 %v655, 0.01
    %v788 = vmul.f32 %v658, 0.01
    %v789 = vsel %vm661, %v407, %v725
    %v790 = vsel %vm662, %v410, %v726
    %v791 = vsel %vm663, %v415, %v727
    %v792 = vsel %vm664, %v418, %v728
    %v793 = vsel %vm665, %v423, %v729
    %v794 = vsel %vm666, %v426, %v730
    %v795 = vsel %vm667, %v431, %v731
    %v796 = vsel %vm668, %v434, %v732
    %v797 = vsel %vm669, %v439, %v733
    %v798 = vsel %vm670, %v442, %v734
    %v799 = vsel %vm671, %v447, %v735
    %v800 = vsel %vm672, %v450, %v736
    %v801 = vsel %vm673, %v455, %v737
    %v802 = vsel %vm674, %v458, %v738
    %v803 = vsel %vm675, %v463, %v739
    %v804 = vsel %vm676, %v466, %v740
    %v805 = vsel %vm677, %v471, %v741
    %v806 = vsel %vm678, %v474, %v742
    %v807 = vsel %vm679, %v479, %v743
    %v808 = vsel %vm680, %v482, %v744
    %v809 = vsel %vm681, %v487, %v745
    %v810 = vsel %vm682, %v490, %v746
    %v811 = vsel %vm683, %v495, %v747
    %v812 = vsel %vm684, %v498, %v748
    %v813 = vsel %vm685, %v503, %v749
    %v814 = vsel %vm686, %v506, %v750
    %v815 = vsel %vm687, %v511, %v751
    %v816 = vsel %vm688, %v514, %v752
    %v817 = vsel %vm689, %v519, %v753
    %v818 = vsel %vm690, %v522, %v754
    %v819 = vsel %vm691, %v527, %v755
    %v820 = vsel %vm692, %v530, %v756
    %v821 = vsel %vm693, %v535, %v757
    %v822 = vsel %vm694, %v538, %v758
    %v823 = vsel %vm695, %v543, %v759
    %v824 = vsel %vm696, %v546, %v760
    %v825 = vsel %vm697, %v551, %v761
    %v826 = vsel %vm698, %v554, %v762
    %v827 = vsel %vm699, %v559, %v763
    %v828 = vsel %vm700, %v562, %v764
    %v829 = vsel %vm701, %v567, %v765
    %v830 = vsel %vm702, %v570, %v766
    %v831 = vsel %vm703, %v575, %v767
    %v832 = vsel %vm704, %v578, %v768
    %v833 = vsel %vm705, %v583, %v769
    %v834 = vsel %vm706, %v586, %v770
    %v835 = vsel %vm707, %v591, %v771
    %v836 = vsel %vm708, %v594, %v772
    %v837 = vsel %vm709, %v599, %v773
    %v838 = vsel %vm710, %v602, %v774
    %v839 = vsel %vm711, %v607, %v775
    %v840 = vsel %vm712, %v610, %v776
    %v841 = vsel %vm713, %v615, %v777
    %v842 = vsel %vm714, %v618, %v778
    %v843 = vsel %vm715, %v623, %v779
    %v844 = vsel %vm716, %v626, %v780
    %v845 = vsel %vm717, %v631, %v781
    %v846 = vsel %vm718, %v634, %v782
    %v847 = vsel %vm719, %v639, %v783
    %v848 = vsel %vm720, %v642, %v784
    %v849 = vsel %vm721, %v647, %v785
    %v850 = vsel %vm722, %v650, %v786
    %v851 = vsel %vm723, %v655, %v787
    %v852 = vsel %vm724, %v658, %v788
    %v853 = vpack.c.bf16 %v790, %v789
    %v854 = vpack.c.bf16 %v792, %v791
    %v855 = vpack.c.bf16 %v794, %v793
    %v856 = vpack.c.bf16 %v796, %v795
    %v857 = vpack.c.bf16 %v798, %v797
    %v858 = vpack.c.bf16 %v800, %v799
    %v859 = vpack.c.bf16 %v802, %v801
    %v860 = vpack.c.bf16 %v804, %v803
    %v861 = vpack.c.bf16 %v806, %v805
    %v862 = vpack.c.bf16 %v808, %v807
    %v863 = vpack.c.bf16 %v810, %v809
    %v864 = vpack.c.bf16 %v812, %v811
    %v865 = vpack.c.bf16 %v814, %v813
    %v866 = vpack.c.bf16 %v816, %v815
    %v867 = vpack.c.bf16 %v818, %v817
    %v868 = vpack.c.bf16 %v820, %v819
    %v869 = vld [vmem:[%s11] sm:$0xff]
    %v870 = vld [vmem:[%s11 + $0x8] sm:$0xff]
    %v871 = vld [vmem:[%s11 + $0x10] sm:$0xff]
    %v872 = vld [vmem:[%s11 + $0x18] sm:$0xff]
    %v873 = vld [vmem:[%s11 + $0x20] sm:$0xff]
    %v874 = vld [vmem:[%s11 + $0x28] sm:$0xff]
    %v875 = vld [vmem:[%s11 + $0x30] sm:$0xff]
    %v876 = vld [vmem:[%s11 + $0x38] sm:$0xff]
    %v885 = vunpack.c.l.b16 %v869
    %v886 = vunpack.c.h.b16 %v869
    %v887 = vunpack.c.l.b16 %v870
    %v888 = vunpack.c.h.b16 %v870
    %v889 = vunpack.c.l.b16 %v871
    %v890 = vunpack.c.h.b16 %v871
    %v891 = vunpack.c.l.b16 %v872
    %v892 = vunpack.c.h.b16 %v872
    %v893 = vunpack.c.l.b16 %v873
    %v894 = vunpack.c.h.b16 %v873
    %v895 = vunpack.c.l.b16 %v874
    %v896 = vunpack.c.h.b16 %v874
    %v897 = vunpack.c.l.b16 %v875
    %v898 = vunpack.c.h.b16 %v875
    %v899 = vunpack.c.l.b16 %v876
    %v900 = vunpack.c.h.b16 %v876
    %v901 = vpack.c.b16 %v887, %v885
    %v902 = vpack.c.b16 %v888, %v886
    %v903 = vpack.c.b16 %v891, %v889
    %v904 = vpack.c.b16 %v892, %v890
    %v905 = vpack.c.b16 %v895, %v893
    %v906 = vpack.c.b16 %v896, %v894
    %v907 = vpack.c.b16 %v899, %v897
    %v908 = vpack.c.b16 %v900, %v898
    %917 = vmatprep.subr.bf16.mxu0 0
    %918 = vmatpush1.bf16.msra.mxu0 %v853
    %919 = vmatprep.subr.bf16.mxu0 0
    %920 = vmatpush1.bf16.msra.mxu0 %v854
    %921 = vmatprep.subr.bf16.mxu0 0
    %922 = vmatpush1.bf16.msra.mxu0 %v855
    %923 = vmatprep.subr.bf16.mxu0 0
    %924 = vmatpush1.bf16.msra.mxu0 %v856
    %925 = vmatprep.subr.bf16.mxu0 0
    %926 = vmatpush1.bf16.msra.mxu0 %v857
    %927 = vmatprep.subr.bf16.mxu0 0
    %928 = vmatpush1.bf16.msra.mxu0 %v858
    %929 = vmatprep.subr.bf16.mxu0 0
    %930 = vmatpush1.bf16.msra.mxu0 %v859
    %931 = vmatprep.subr.bf16.mxu0 0
    %932 = vmatpush1.bf16.msra.mxu0 %v860
    %933 = vmatprep.subr.bf16.mxu0 0
    %934 = vmatpush1.bf16.msra.mxu0 %v861
    %935 = vmatprep.subr.bf16.mxu0 0
    %936 = vmatpush1.bf16.msra.mxu0 %v862
    %937 = vmatprep.subr.bf16.mxu0 0
    %938 = vmatpush1.bf16.msra.mxu0 %v863
    %939 = vmatprep.subr.bf16.mxu0 0
    %940 = vmatpush1.bf16.msra.mxu0 %v864
    %941 = vmatprep.subr.bf16.mxu0 0
    %942 = vmatpush1.bf16.msra.mxu0 %v865
    %943 = vmatprep.subr.bf16.mxu0 0
    %944 = vmatpush1.bf16.msra.mxu0 %v866
    %945 = vmatprep.subr.bf16.mxu0 0
    %946 = vmatpush1.bf16.msra.mxu0 %v867
    %947 = vmatprep.subr.bf16.mxu0 0
    %948 = vmatpush1.bf16.msra.mxu0 %v868
    %949 = vmatprep.mubr.bf16.mxu0 %v902
    %950 = vmatmul.mubr.bf16.gmra.mrb[0].mxu0 %v901
    %v951 = vpop.f32.mrb[0].mxu0
    %v952 = vadd.f32 0.0, %v951
    %v953 = vpop.f32.mrb[0].mxu0
    %v954 = vpop.f32.mrb[0].mxu0
    %v955 = vadd.f32 0.0, %v954
    %v956 = vpop.f32.mrb[0].mxu0
    %957 = vmatprep.mubr.bf16.mxu0 %v904
    %958 = vmatmul.mubr.bf16.gmra.mrb[0].mxu0 %v903
    %v959 = vpop.f32.mrb[0].mxu0
    %v960 = vadd.f32 0.0, %v959
    %v961 = vpop.f32.mrb[0].mxu0
    %v962 = vpop.f32.mrb[0].mxu0
    %v963 = vadd.f32 0.0, %v962
    %v964 = vpop.f32.mrb[0].mxu0
    %965 = vmatprep.mubr.bf16.mxu0 %v906
    %966 = vmatmul.mubr.bf16.gmra.mrb[0].mxu0 %v905
    %v967 = vpop.f32.mrb[0].mxu0
    %v968 = vadd.f32 0.0, %v967
    %v969 = vpop.f32.mrb[0].mxu0
    %v970 = vpop.f32.mrb[0].mxu0
    %v971 = vadd.f32 0.0, %v970
    %v972 = vpop.f32.mrb[0].mxu0
    %973 = vmatprep.mubr.bf16.mxu0 %v908
    %974 = vmatmul.mubr.bf16.gmra.mrb[0].mxu0 %v907
    %v975 = vpop.f32.mrb[0].mxu0
    %v976 = vadd.f32 0.0, %v975
    %v977 = vpop.f32.mrb[0].mxu0
    %v978 = vpop.f32.mrb[0].mxu0
    %v979 = vadd.f32 0.0, %v978
    %v980 = vpop.f32.mrb[0].mxu0
    %981 = vdwg.mxu0
    %s982 = scalar_lea.vmem %s11, 64
    %v983 = vld [vmem:[%s982] sm:$0xff]
    %v984 = vld [vmem:[%s982 + $0x8] sm:$0xff]
    %v985 = vld [vmem:[%s982 + $0x10] sm:$0xff]
    %v986 = vld [vmem:[%s982 + $0x18] sm:$0xff]
    %v987 = vld [vmem:[%s982 + $0x20] sm:$0xff]
    %v988 = vld [vmem:[%s982 + $0x28] sm:$0xff]
    %v989 = vld [vmem:[%s982 + $0x30] sm:$0xff]
    %v990 = vld [vmem:[%s982 + $0x38] sm:$0xff]
    %v999 = vunpack.c.l.b16 %v983
    %v1000 = vunpack.c.h.b16 %v983
    %v1001 = vunpack.c.l.b16 %v984
    %v1002 = vunpack.c.h.b16 %v984
    %v1003 = vunpack.c.l.b16 %v985
    %v1004 = vunpack.c.h.b16 %v985
    %v1005 = vunpack.c.l.b16 %v986
    %v1006 = vunpack.c.h.b16 %v986
    %v1007 = vunpack.c.l.b16 %v987
    %v1008 = vunpack.c.h.b16 %v987
    %v1009 = vunpack.c.l.b16 %v988
    %v1010 = vunpack.c.h.b16 %v988
    %v1011 = vunpack.c.l.b16 %v989
    %v1012 = vunpack.c.h.b16 %v989
    %v1013 = vunpack.c.l.b16 %v990
    %v1014 = vunpack.c.h.b16 %v990
    %v1015 = vpack.c.b16 %v1001, %v999
    %v1016 = vpack.c.b16 %v1002, %v1000
    %v1017 = vpack.c.b16 %v1005, %v1003
    %v1018 = vpack.c.b16 %v1006, %v1004
    %v1019 = vpack.c.b16 %v1009, %v1007
    %v1020 = vpack.c.b16 %v1010, %v1008
    %v1021 = vpack.c.b16 %v1013, %v1011
    %v1022 = vpack.c.b16 %v1014, %v1012
    %1031 = vmatprep.subr.bf16.mxu0 0
    %1032 = vmatpush1.bf16.msra.mxu0 %v853
    %1033 = vmatprep.subr.bf16.mxu0 0
    %1034 = vmatpush1.bf16.msra.mxu0 %v854
    %1035 = vmatprep.subr.bf16.mxu0 0
    %1036 = vmatpush1.bf16.msra.mxu0 %v855
    %1037 = vmatprep.subr.bf16.mxu0 0
    %1038 = vmatpush1.bf16.msra.mxu0 %v856
    %1039 = vmatprep.subr.bf16.mxu0 0
    %1040 = vmatpush1.bf16.msra.mxu0 %v857
    %1041 = vmatprep.subr.bf16.mxu0 0
    %1042 = vmatpush1.bf16.msra.mxu0 %v858
    %1043 = vmatprep.subr.bf16.mxu0 0
    %1044 = vmatpush1.bf16.msra.mxu0 %v859
    %1045 = vmatprep.subr.bf16.mxu0 0
    %1046 = vmatpush1.bf16.msra.mxu0 %v860
    %1047 = vmatprep.subr.bf16.mxu0 0
    %1048 = vmatpush1.bf16.msra.mxu0 %v861
    %1049 = vmatprep.subr.bf16.mxu0 0
    %1050 = vmatpush1.bf16.msra.mxu0 %v862
    %1051 = vmatprep.subr.bf16.mxu0 0
    %1052 = vmatpush1.bf16.msra.mxu0 %v863
    %1053 = vmatprep.subr.bf16.mxu0 0
    %1054 = vmatpush1.bf16.msra.mxu0 %v864
    %1055 = vmatprep.subr.bf16.mxu0 0
    %1056 = vmatpush1.bf16.msra.mxu0 %v865
    %1057 = vmatprep.subr.bf16.mxu0 0
    %1058 = vmatpush1.bf16.msra.mxu0 %v866
    %1059 = vmatprep.subr.bf16.mxu0 0
    %1060 = vmatpush1.bf16.msra.mxu0 %v867
    %1061 = vmatprep.subr.bf16.mxu0 0
    %1062 = vmatpush1.bf16.msra.mxu0 %v868
    %1063 = vmatprep.mubr.bf16.mxu0 %v1016
    %1064 = vmatmul.mubr.bf16.gmra.mrb[0].mxu0 %v1015
    %v1065 = vpop.f32.mrb[0].mxu0
    %v1066 = vadd.f32 0.0, %v1065
    %v1067 = vpop.f32.mrb[0].mxu0
    %v1068 = vpop.f32.mrb[0].mxu0
    %v1069 = vadd.f32 0.0, %v1068
    %v1070 = vpop.f32.mrb[0].mxu0
    %1071 = vmatprep.mubr.bf16.mxu0 %v1018
    %1072 = vmatmul.mubr.bf16.gmra.mrb[0].mxu0 %v1017
    %v1073 = vpop.f32.mrb[0].mxu0
    %v1074 = vadd.f32 0.0, %v1073
    %v1075 = vpop.f32.mrb[0].mxu0
    %v1076 = vpop.f32.mrb[0].mxu0
    %v1077 = vadd.f32 0.0, %v1076
    %v1078 = vpop.f32.mrb[0].mxu0
    %1079 = vmatprep.mubr.bf16.mxu0 %v1020
    %1080 = vmatmul.mubr.bf16.gmra.mrb[0].mxu0 %v1019
    %v1081 = vpop.f32.mrb[0].mxu0
    %v1082 = vadd.f32 0.0, %v1081
    %v1083 = vpop.f32.mrb[0].mxu0
    %v1084 = vpop.f32.mrb[0].mxu0
    %v1085 = vadd.f32 0.0, %v1084
    %v1086 = vpop.f32.mrb[0].mxu0
    %1087 = vmatprep.mubr.bf16.mxu0 %v1022
    %1088 = vmatmul.mubr.bf16.gmra.mrb[0].mxu0 %v1021
    %v1089 = vpop.f32.mrb[0].mxu0
    %v1090 = vadd.f32 0.0, %v1089
    %v1091 = vpop.f32.mrb[0].mxu0
    %v1092 = vpop.f32.mrb[0].mxu0
    %v1093 = vadd.f32 0.0, %v1092
    %v1094 = vpop.f32.mrb[0].mxu0
    %1095 = vdwg.mxu0
    %s1096 = scalar_lea.vmem %s11, 128
    %v1097 = vld [vmem:[%s1096] sm:$0xff]
    %v1098 = vld [vmem:[%s1096 + $0x8] sm:$0xff]
    %v1099 = vld [vmem:[%s1096 + $0x10] sm:$0xff]
    %v1100 = vld [vmem:[%s1096 + $0x18] sm:$0xff]
    %v1101 = vld [vmem:[%s1096 + $0x20] sm:$0xff]
    %v1102 = vld [vmem:[%s1096 + $0x28] sm:$0xff]
    %v1103 = vld [vmem:[%s1096 + $0x30] sm:$0xff]
    %v1104 = vld [vmem:[%s1096 + $0x38] sm:$0xff]
    %v1113 = vunpack.c.l.b16 %v1097
    %v1114 = vunpack.c.h.b16 %v1097
    %v1115 = vunpack.c.l.b16 %v1098
    %v1116 = vunpack.c.h.b16 %v1098
    %v1117 = vunpack.c.l.b16 %v1099
    %v1118 = vunpack.c.h.b16 %v1099
    %v1119 = vunpack.c.l.b16 %v1100
    %v1120 = vunpack.c.h.b16 %v1100
    %v1121 = vunpack.c.l.b16 %v1101
    %v1122 = vunpack.c.h.b16 %v1101
    %v1123 = vunpack.c.l.b16 %v1102
    %v1124 = vunpack.c.h.b16 %v1102
    %v1125 = vunpack.c.l.b16 %v1103
    %v1126 = vunpack.c.h.b16 %v1103
    %v1127 = vunpack.c.l.b16 %v1104
    %v1128 = vunpack.c.h.b16 %v1104
    %v1129 = vpack.c.b16 %v1115, %v1113
    %v1130 = vpack.c.b16 %v1116, %v1114
    %v1131 = vpack.c.b16 %v1119, %v1117
    %v1132 = vpack.c.b16 %v1120, %v1118
    %v1133 = vpack.c.b16 %v1123, %v1121
    %v1134 = vpack.c.b16 %v1124, %v1122
    %v1135 = vpack.c.b16 %v1127, %v1125
    %v1136 = vpack.c.b16 %v1128, %v1126
    %1145 = vmatprep.subr.bf16.mxu0 0
    %1146 = vmatpush1.bf16.msra.mxu0 %v853
    %1147 = vmatprep.subr.bf16.mxu0 0
    %1148 = vmatpush1.bf16.msra.mxu0 %v854
    %1149 = vmatprep.subr.bf16.mxu0 0
    %1150 = vmatpush1.bf16.msra.mxu0 %v855
    %1151 = vmatprep.subr.bf16.mxu0 0
    %1152 = vmatpush1.bf16.msra.mxu0 %v856
    %1153 = vmatprep.subr.bf16.mxu0 0
    %1154 = vmatpush1.bf16.msra.mxu0 %v857
    %1155 = vmatprep.subr.bf16.mxu0 0
    %1156 = vmatpush1.bf16.msra.mxu0 %v858
    %1157 = vmatprep.subr.bf16.mxu0 0
    %1158 = vmatpush1.bf16.msra.mxu0 %v859
    %1159 = vmatprep.subr.bf16.mxu0 0
    %1160 = vmatpush1.bf16.msra.mxu0 %v860
    %1161 = vmatprep.subr.bf16.mxu0 0
    %1162 = vmatpush1.bf16.msra.mxu0 %v861
    %1163 = vmatprep.subr.bf16.mxu0 0
    %1164 = vmatpush1.bf16.msra.mxu0 %v862
    %1165 = vmatprep.subr.bf16.mxu0 0
    %1166 = vmatpush1.bf16.msra.mxu0 %v863
    %1167 = vmatprep.subr.bf16.mxu0 0
    %1168 = vmatpush1.bf16.msra.mxu0 %v864
    %1169 = vmatprep.subr.bf16.mxu0 0
    %1170 = vmatpush1.bf16.msra.mxu0 %v865
    %1171 = vmatprep.subr.bf16.mxu0 0
    %1172 = vmatpush1.bf16.msra.mxu0 %v866
    %1173 = vmatprep.subr.bf16.mxu0 0
    %1174 = vmatpush1.bf16.msra.mxu0 %v867
    %1175 = vmatprep.subr.bf16.mxu0 0
    %1176 = vmatpush1.bf16.msra.mxu0 %v868
    %1177 = vmatprep.mubr.bf16.mxu0 %v1130
    %1178 = vmatmul.mubr.bf16.gmra.mrb[0].mxu0 %v1129
    %v1179 = vpop.f32.mrb[0].mxu0
    %v1180 = vadd.f32 0.0, %v1179
    %v1181 = vpop.f32.mrb[0].mxu0
    %v1182 = vpop.f32.mrb[0].mxu0
    %v1183 = vadd.f32 0.0, %v1182
    %v1184 = vpop.f32.mrb[0].mxu0
    %1185 = vmatprep.mubr.bf16.mxu0 %v1132
    %1186 = vmatmul.mubr.bf16.gmra.mrb[0].mxu0 %v1131
    %v1187 = vpop.f32.mrb[0].mxu0
    %v1188 = vadd.f32 0.0, %v1187
    %v1189 = vpop.f32.mrb[0].mxu0
    %v1190 = vpop.f32.mrb[0].mxu0
    %v1191 = vadd.f32 0.0, %v1190
    %v1192 = vpop.f32.mrb[0].mxu0
    %1193 = vmatprep.mubr.bf16.mxu0 %v1134
    %1194 = vmatmul.mubr.bf16.gmra.mrb[0].mxu0 %v1133
    %v1195 = vpop.f32.mrb[0].mxu0
    %v1196 = vadd.f32 0.0, %v1195
    %v1197 = vpop.f32.mrb[0].mxu0
    %v1198 = vpop.f32.mrb[0].mxu0
    %v1199 = vadd.f32 0.0, %v1198
    %v1200 = vpop.f32.mrb[0].mxu0
    %1201 = vmatprep.mubr.bf16.mxu0 %v1136
    %1202 = vmatmul.mubr.bf16.gmra.mrb[0].mxu0 %v1135
    %v1203 = vpop.f32.mrb[0].mxu0
    %v1204 = vadd.f32 0.0, %v1203
    %v1205 = vpop.f32.mrb[0].mxu0
    %v1206 = vpop.f32.mrb[0].mxu0
    %v1207 = vadd.f32 0.0, %v1206
    %v1208 = vpop.f32.mrb[0].mxu0
    %1209 = vdwg.mxu0
    %s1210 = scalar_lea.vmem %s11, 192
    %v1211 = vld [vmem:[%s1210] sm:$0xff]
    %v1212 = vld [vmem:[%s1210 + $0x8] sm:$0xff]
    %v1213 = vld [vmem:[%s1210 + $0x10] sm:$0xff]
    %v1214 = vld [vmem:[%s1210 + $0x18] sm:$0xff]
    %v1215 = vld [vmem:[%s1210 + $0x20] sm:$0xff]
    %v1216 = vld [vmem:[%s1210 + $0x28] sm:$0xff]
    %v1217 = vld [vmem:[%s1210 + $0x30] sm:$0xff]
    %v1218 = vld [vmem:[%s1210 + $0x38] sm:$0xff]
    %v1227 = vunpack.c.l.b16 %v1211
    %v1228 = vunpack.c.h.b16 %v1211
    %v1229 = vunpack.c.l.b16 %v1212
    %v1230 = vunpack.c.h.b16 %v1212
    %v1231 = vunpack.c.l.b16 %v1213
    %v1232 = vunpack.c.h.b16 %v1213
    %v1233 = vunpack.c.l.b16 %v1214
    %v1234 = vunpack.c.h.b16 %v1214
    %v1235 = vunpack.c.l.b16 %v1215
    %v1236 = vunpack.c.h.b16 %v1215
    %v1237 = vunpack.c.l.b16 %v1216
    %v1238 = vunpack.c.h.b16 %v1216
    %v1239 = vunpack.c.l.b16 %v1217
    %v1240 = vunpack.c.h.b16 %v1217
    %v1241 = vunpack.c.l.b16 %v1218
    %v1242 = vunpack.c.h.b16 %v1218
    %v1243 = vpack.c.b16 %v1229, %v1227
    %v1244 = vpack.c.b16 %v1230, %v1228
    %v1245 = vpack.c.b16 %v1233, %v1231
    %v1246 = vpack.c.b16 %v1234, %v1232
    %v1247 = vpack.c.b16 %v1237, %v1235
    %v1248 = vpack.c.b16 %v1238, %v1236
    %v1249 = vpack.c.b16 %v1241, %v1239
    %v1250 = vpack.c.b16 %v1242, %v1240
    %1259 = vmatprep.subr.bf16.mxu0 0
    %1260 = vmatpush1.bf16.msra.mxu0 %v853
    %1261 = vmatprep.subr.bf16.mxu0 0
    %1262 = vmatpush1.bf16.msra.mxu0 %v854
    %1263 = vmatprep.subr.bf16.mxu0 0
    %1264 = vmatpush1.bf16.msra.mxu0 %v855
    %1265 = vmatprep.subr.bf16.mxu0 0
    %1266 = vmatpush1.bf16.msra.mxu0 %v856
    %1267 = vmatprep.subr.bf16.mxu0 0
    %1268 = vmatpush1.bf16.msra.mxu0 %v857
    %1269 = vmatprep.subr.bf16.mxu0 0
    %1270 = vmatpush1.bf16.msra.mxu0 %v858
    %1271 = vmatprep.subr.bf16.mxu0 0
    %1272 = vmatpush1.bf16.msra.mxu0 %v859
    %1273 = vmatprep.subr.bf16.mxu0 0
    %1274 = vmatpush1.bf16.msra.mxu0 %v860
    %1275 = vmatprep.subr.bf16.mxu0 0
    %1276 = vmatpush1.bf16.msra.mxu0 %v861
    %1277 = vmatprep.subr.bf16.mxu0 0
    %1278 = vmatpush1.bf16.msra.mxu0 %v862
    %1279 = vmatprep.subr.bf16.mxu0 0
    %1280 = vmatpush1.bf16.msra.mxu0 %v863
    %1281 = vmatprep.subr.bf16.mxu0 0
    %1282 = vmatpush1.bf16.msra.mxu0 %v864
    %1283 = vmatprep.subr.bf16.mxu0 0
    %1284 = vmatpush1.bf16.msra.mxu0 %v865
    %1285 = vmatprep.subr.bf16.mxu0 0
    %1286 = vmatpush1.bf16.msra.mxu0 %v866
    %1287 = vmatprep.subr.bf16.mxu0 0
    %1288 = vmatpush1.bf16.msra.mxu0 %v867
    %1289 = vmatprep.subr.bf16.mxu0 0
    %1290 = vmatpush1.bf16.msra.mxu0 %v868
    %1291 = vmatprep.mubr.bf16.mxu0 %v1244
    %1292 = vmatmul.mubr.bf16.gmra.mrb[0].mxu0 %v1243
    %v1293 = vpop.f32.mrb[0].mxu0
    %v1294 = vadd.f32 0.0, %v1293
    %v1295 = vpop.f32.mrb[0].mxu0
    %v1296 = vpop.f32.mrb[0].mxu0
    %v1297 = vadd.f32 0.0, %v1296
    %v1298 = vpop.f32.mrb[0].mxu0
    %1299 = vmatprep.mubr.bf16.mxu0 %v1246
    %1300 = vmatmul.mubr.bf16.gmra.mrb[0].mxu0 %v1245
    %v1301 = vpop.f32.mrb[0].mxu0
    %v1302 = vadd.f32 0.0, %v1301
    %v1303 = vpop.f32.mrb[0].mxu0
    %v1304 = vpop.f32.mrb[0].mxu0
    %v1305 = vadd.f32 0.0, %v1304
    %v1306 = vpop.f32.mrb[0].mxu0
    %1307 = vmatprep.mubr.bf16.mxu0 %v1248
    %1308 = vmatmul.mubr.bf16.gmra.mrb[0].mxu0 %v1247
    %v1309 = vpop.f32.mrb[0].mxu0
    %v1310 = vadd.f32 0.0, %v1309
    %v1311 = vpop.f32.mrb[0].mxu0
    %v1312 = vpop.f32.mrb[0].mxu0
    %v1313 = vadd.f32 0.0, %v1312
    %v1314 = vpop.f32.mrb[0].mxu0
    %1315 = vmatprep.mubr.bf16.mxu0 %v1250
    %1316 = vmatmul.mubr.bf16.gmra.mrb[0].mxu0 %v1249
    %v1317 = vpop.f32.mrb[0].mxu0
    %v1318 = vadd.f32 0.0, %v1317
    %v1319 = vpop.f32.mrb[0].mxu0
    %v1320 = vpop.f32.mrb[0].mxu0
    %v1321 = vadd.f32 0.0, %v1320
    %v1322 = vpop.f32.mrb[0].mxu0
    %1323 = vdwg.mxu0
    %s1324 = scalar_lea.vmem %s11, 256
    %v1325 = vld [vmem:[%s1324] sm:$0xff]
    %v1326 = vld [vmem:[%s1324 + $0x8] sm:$0xff]
    %v1327 = vld [vmem:[%s1324 + $0x10] sm:$0xff]
    %v1328 = vld [vmem:[%s1324 + $0x18] sm:$0xff]
    %v1329 = vld [vmem:[%s1324 + $0x20] sm:$0xff]
    %v1330 = vld [vmem:[%s1324 + $0x28] sm:$0xff]
    %v1331 = vld [vmem:[%s1324 + $0x30] sm:$0xff]
    %v1332 = vld [vmem:[%s1324 + $0x38] sm:$0xff]
    %v1341 = vunpack.c.l.b16 %v1325
    %v1342 = vunpack.c.h.b16 %v1325
    %v1343 = vunpack.c.l.b16 %v1326
    %v1344 = vunpack.c.h.b16 %v1326
    %v1345 = vunpack.c.l.b16 %v1327
    %v1346 = vunpack.c.h.b16 %v1327
    %v1347 = vunpack.c.l.b16 %v1328
    %v1348 = vunpack.c.h.b16 %v1328
    %v1349 = vunpack.c.l.b16 %v1329
    %v1350 = vunpack.c.h.b16 %v1329
    %v1351 = vunpack.c.l.b16 %v1330
    %v1352 = vunpack.c.h.b16 %v1330
    %v1353 = vunpack.c.l.b16 %v1331
    %v1354 = vunpack.c.h.b16 %v1331
    %v1355 = vunpack.c.l.b16 %v1332
    %v1356 = vunpack.c.h.b16 %v1332
    %v1357 = vpack.c.b16 %v1343, %v1341
    %v1358 = vpack.c.b16 %v1344, %v1342
    %v1359 = vpack.c.b16 %v1347, %v1345
    %v1360 = vpack.c.b16 %v1348, %v1346
    %v1361 = vpack.c.b16 %v1351, %v1349
    %v1362 = vpack.c.b16 %v1352, %v1350
    %v1363 = vpack.c.b16 %v1355, %v1353
    %v1364 = vpack.c.b16 %v1356, %v1354
    %1373 = vmatprep.subr.bf16.mxu0 0
    %1374 = vmatpush1.bf16.msra.mxu0 %v853
    %1375 = vmatprep.subr.bf16.mxu0 0
    %1376 = vmatpush1.bf16.msra.mxu0 %v854
    %1377 = vmatprep.subr.bf16.mxu0 0
    %1378 = vmatpush1.bf16.msra.mxu0 %v855
    %1379 = vmatprep.subr.bf16.mxu0 0
    %1380 = vmatpush1.bf16.msra.mxu0 %v856
    %1381 = vmatprep.subr.bf16.mxu0 0
    %1382 = vmatpush1.bf16.msra.mxu0 %v857
    %1383 = vmatprep.subr.bf16.mxu0 0
    %1384 = vmatpush1.bf16.msra.mxu0 %v858
    %1385 = vmatprep.subr.bf16.mxu0 0
    %1386 = vmatpush1.bf16.msra.mxu0 %v859
    %1387 = vmatprep.subr.bf16.mxu0 0
    %1388 = vmatpush1.bf16.msra.mxu0 %v860
    %1389 = vmatprep.subr.bf16.mxu0 0
    %1390 = vmatpush1.bf16.msra.mxu0 %v861
    %1391 = vmatprep.subr.bf16.mxu0 0
    %1392 = vmatpush1.bf16.msra.mxu0 %v862
    %1393 = vmatprep.subr.bf16.mxu0 0
    %1394 = vmatpush1.bf16.msra.mxu0 %v863
    %1395 = vmatprep.subr.bf16.mxu0 0
    %1396 = vmatpush1.bf16.msra.mxu0 %v864
    %1397 = vmatprep.subr.bf16.mxu0 0
    %1398 = vmatpush1.bf16.msra.mxu0 %v865
    %1399 = vmatprep.subr.bf16.mxu0 0
    %1400 = vmatpush1.bf16.msra.mxu0 %v866
    %1401 = vmatprep.subr.bf16.mxu0 0
    %1402 = vmatpush1.bf16.msra.mxu0 %v867
    %1403 = vmatprep.subr.bf16.mxu0 0
    %1404 = vmatpush1.bf16.msra.mxu0 %v868
    %1405 = vmatprep.mubr.bf16.mxu0 %v1358
    %1406 = vmatmul.mubr.bf16.gmra.mrb[0].mxu0 %v1357
    %v1407 = vpop.f32.mrb[0].mxu0
    %v1408 = vadd.f32 0.0, %v1407
    %v1409 = vpop.f32.mrb[0].mxu0
    %v1410 = vpop.f32.mrb[0].mxu0
    %v1411 = vadd.f32 0.0, %v1410
    %v1412 = vpop.f32.mrb[0].mxu0
    %1413 = vmatprep.mubr.bf16.mxu0 %v1360
    %1414 = vmatmul.mubr.bf16.gmra.mrb[0].mxu0 %v1359
    %v1415 = vpop.f32.mrb[0].mxu0
    %v1416 = vadd.f32 0.0, %v1415
    %v1417 = vpop.f32.mrb[0].mxu0
    %v1418 = vpop.f32.mrb[0].mxu0
    %v1419 = vadd.f32 0.0, %v1418
    %v1420 = vpop.f32.mrb[0].mxu0
    %1421 = vmatprep.mubr.bf16.mxu0 %v1362
    %1422 = vmatmul.mubr.bf16.gmra.mrb[0].mxu0 %v1361
    %v1423 = vpop.f32.mrb[0].mxu0
    %v1424 = vadd.f32 0.0, %v1423
    %v1425 = vpop.f32.mrb[0].mxu0
    %v1426 = vpop.f32.mrb[0].mxu0
    %v1427 = vadd.f32 0.0, %v1426
    %v1428 = vpop.f32.mrb[0].mxu0
    %1429 = vmatprep.mubr.bf16.mxu0 %v1364
    %1430 = vmatmul.mubr.bf16.gmra.mrb[0].mxu0 %v1363
    %v1431 = vpop.f32.mrb[0].mxu0
    %v1432 = vadd.f32 0.0, %v1431
    %v1433 = vpop.f32.mrb[0].mxu0
    %v1434 = vpop.f32.mrb[0].mxu0
    %v1435 = vadd.f32 0.0, %v1434
    %v1436 = vpop.f32.mrb[0].mxu0
    %1437 = vdwg.mxu0
    %s1438 = scalar_lea.vmem %s11, 320
    %v1439 = vld [vmem:[%s1438] sm:$0xff]
    %v1440 = vld [vmem:[%s1438 + $0x8] sm:$0xff]
    %v1441 = vld [vmem:[%s1438 + $0x10] sm:$0xff]
    %v1442 = vld [vmem:[%s1438 + $0x18] sm:$0xff]
    %v1443 = vld [vmem:[%s1438 + $0x20] sm:$0xff]
    %v1444 = vld [vmem:[%s1438 + $0x28] sm:$0xff]
    %v1445 = vld [vmem:[%s1438 + $0x30] sm:$0xff]
    %v1446 = vld [vmem:[%s1438 + $0x38] sm:$0xff]
    %v1455 = vunpack.c.l.b16 %v1439
    %v1456 = vunpack.c.h.b16 %v1439
    %v1457 = vunpack.c.l.b16 %v1440
    %v1458 = vunpack.c.h.b16 %v1440
    %v1459 = vunpack.c.l.b16 %v1441
    %v1460 = vunpack.c.h.b16 %v1441
    %v1461 = vunpack.c.l.b16 %v1442
    %v1462 = vunpack.c.h.b16 %v1442
    %v1463 = vunpack.c.l.b16 %v1443
    %v1464 = vunpack.c.h.b16 %v1443
    %v1465 = vunpack.c.l.b16 %v1444
    %v1466 = vunpack.c.h.b16 %v1444
    %v1467 = vunpack.c.l.b16 %v1445
    %v1468 = vunpack.c.h.b16 %v1445
    %v1469 = vunpack.c.l.b16 %v1446
    %v1470 = vunpack.c.h.b16 %v1446
    %v1471 = vpack.c.b16 %v1457, %v1455
    %v1472 = vpack.c.b16 %v1458, %v1456
    %v1473 = vpack.c.b16 %v1461, %v1459
    %v1474 = vpack.c.b16 %v1462, %v1460
    %v1475 = vpack.c.b16 %v1465, %v1463
    %v1476 = vpack.c.b16 %v1466, %v1464
    %v1477 = vpack.c.b16 %v1469, %v1467
    %v1478 = vpack.c.b16 %v1470, %v1468
    %1487 = vmatprep.subr.bf16.mxu0 0
    %1488 = vmatpush1.bf16.msra.mxu0 %v853
    %1489 = vmatprep.subr.bf16.mxu0 0
    %1490 = vmatpush1.bf16.msra.mxu0 %v854
    %1491 = vmatprep.subr.bf16.mxu0 0
    %1492 = vmatpush1.bf16.msra.mxu0 %v855
    %1493 = vmatprep.subr.bf16.mxu0 0
    %1494 = vmatpush1.bf16.msra.mxu0 %v856
    %1495 = vmatprep.subr.bf16.mxu0 0
    %1496 = vmatpush1.bf16.msra.mxu0 %v857
    %1497 = vmatprep.subr.bf16.mxu0 0
    %1498 = vmatpush1.bf16.msra.mxu0 %v858
    %1499 = vmatprep.subr.bf16.mxu0 0
    %1500 = vmatpush1.bf16.msra.mxu0 %v859
    %1501 = vmatprep.subr.bf16.mxu0 0
    %1502 = vmatpush1.bf16.msra.mxu0 %v860
    %1503 = vmatprep.subr.bf16.mxu0 0
    %1504 = vmatpush1.bf16.msra.mxu0 %v861
    %1505 = vmatprep.subr.bf16.mxu0 0
    %1506 = vmatpush1.bf16.msra.mxu0 %v862
    %1507 = vmatprep.subr.bf16.mxu0 0
    %1508 = vmatpush1.bf16.msra.mxu0 %v863
    %1509 = vmatprep.subr.bf16.mxu0 0
    %1510 = vmatpush1.bf16.msra.mxu0 %v864
    %1511 = vmatprep.subr.bf16.mxu0 0
    %1512 = vmatpush1.bf16.msra.mxu0 %v865
    %1513 = vmatprep.subr.bf16.mxu0 0
    %1514 = vmatpush1.bf16.msra.mxu0 %v866
    %1515 = vmatprep.subr.bf16.mxu0 0
    %1516 = vmatpush1.bf16.msra.mxu0 %v867
    %1517 = vmatprep.subr.bf16.mxu0 0
    %1518 = vmatpush1.bf16.msra.mxu0 %v868
    %1519 = vmatprep.mubr.bf16.mxu0 %v1472
    %1520 = vmatmul.mubr.bf16.gmra.mrb[0].mxu0 %v1471
    %v1521 = vpop.f32.mrb[0].mxu0
    %v1522 = vadd.f32 0.0, %v1521
    %v1523 = vpop.f32.mrb[0].mxu0
    %v1524 = vpop.f32.mrb[0].mxu0
    %v1525 = vadd.f32 0.0, %v1524
    %v1526 = vpop.f32.mrb[0].mxu0
    %1527 = vmatprep.mubr.bf16.mxu0 %v1474
    %1528 = vmatmul.mubr.bf16.gmra.mrb[0].mxu0 %v1473
    %v1529 = vpop.f32.mrb[0].mxu0
    %v1530 = vadd.f32 0.0, %v1529
    %v1531 = vpop.f32.mrb[0].mxu0
    %v1532 = vpop.f32.mrb[0].mxu0
    %v1533 = vadd.f32 0.0, %v1532
    %v1534 = vpop.f32.mrb[0].mxu0
    %1535 = vmatprep.mubr.bf16.mxu0 %v1476
    %1536 = vmatmul.mubr.bf16.gmra.mrb[0].mxu0 %v1475
    %v1537 = vpop.f32.mrb[0].mxu0
    %v1538 = vadd.f32 0.0, %v1537
    %v1539 = vpop.f32.mrb[0].mxu0
    %v1540 = vpop.f32.mrb[0].mxu0
    %v1541 = vadd.f32 0.0, %v1540
    %v1542 = vpop.f32.mrb[0].mxu0
    %1543 = vmatprep.mubr.bf16.mxu0 %v1478
    %1544 = vmatmul.mubr.bf16.gmra.mrb[0].mxu0 %v1477
    %v1545 = vpop.f32.mrb[0].mxu0
    %v1546 = vadd.f32 0.0, %v1545
    %v1547 = vpop.f32.mrb[0].mxu0
    %v1548 = vpop.f32.mrb[0].mxu0
    %v1549 = vadd.f32 0.0, %v1548
    %v1550 = vpop.f32.mrb[0].mxu0
    %1551 = vdwg.mxu0
    %s1552 = scalar_lea.vmem %s11, 384
    %v1553 = vld [vmem:[%s1552] sm:$0xff]
    %v1554 = vld [vmem:[%s1552 + $0x8] sm:$0xff]
    %v1555 = vld [vmem:[%s1552 + $0x10] sm:$0xff]
    %v1556 = vld [vmem:[%s1552 + $0x18] sm:$0xff]
    %v1557 = vld [vmem:[%s1552 + $0x20] sm:$0xff]
    %v1558 = vld [vmem:[%s1552 + $0x28] sm:$0xff]
    %v1559 = vld [vmem:[%s1552 + $0x30] sm:$0xff]
    %v1560 = vld [vmem:[%s1552 + $0x38] sm:$0xff]
    %v1569 = vunpack.c.l.b16 %v1553
    %v1570 = vunpack.c.h.b16 %v1553
    %v1571 = vunpack.c.l.b16 %v1554
    %v1572 = vunpack.c.h.b16 %v1554
    %v1573 = vunpack.c.l.b16 %v1555
    %v1574 = vunpack.c.h.b16 %v1555
    %v1575 = vunpack.c.l.b16 %v1556
    %v1576 = vunpack.c.h.b16 %v1556
    %v1577 = vunpack.c.l.b16 %v1557
    %v1578 = vunpack.c.h.b16 %v1557
    %v1579 = vunpack.c.l.b16 %v1558
    %v1580 = vunpack.c.h.b16 %v1558
    %v1581 = vunpack.c.l.b16 %v1559
    %v1582 = vunpack.c.h.b16 %v1559
    %v1583 = vunpack.c.l.b16 %v1560
    %v1584 = vunpack.c.h.b16 %v1560
    %v1585 = vpack.c.b16 %v1571, %v1569
    %v1586 = vpack.c.b16 %v1572, %v1570
    %v1587 = vpack.c.b16 %v1575, %v1573
    %v1588 = vpack.c.b16 %v1576, %v1574
    %v1589 = vpack.c.b16 %v1579, %v1577
    %v1590 = vpack.c.b16 %v1580, %v1578
    %v1591 = vpack.c.b16 %v1583, %v1581
    %v1592 = vpack.c.b16 %v1584, %v1582
    %1601 = vmatprep.subr.bf16.mxu0 0
    %1602 = vmatpush1.bf16.msra.mxu0 %v853
    %1603 = vmatprep.subr.bf16.mxu0 0
    %1604 = vmatpush1.bf16.msra.mxu0 %v854
    %1605 = vmatprep.subr.bf16.mxu0 0
    %1606 = vmatpush1.bf16.msra.mxu0 %v855
    %1607 = vmatprep.subr.bf16.mxu0 0
    %1608 = vmatpush1.bf16.msra.mxu0 %v856
    %1609 = vmatprep.subr.bf16.mxu0 0
    %1610 = vmatpush1.bf16.msra.mxu0 %v857
    %1611 = vmatprep.subr.bf16.mxu0 0
    %1612 = vmatpush1.bf16.msra.mxu0 %v858
    %1613 = vmatprep.subr.bf16.mxu0 0
    %1614 = vmatpush1.bf16.msra.mxu0 %v859
    %1615 = vmatprep.subr.bf16.mxu0 0
    %1616 = vmatpush1.bf16.msra.mxu0 %v860
    %1617 = vmatprep.subr.bf16.mxu0 0
    %1618 = vmatpush1.bf16.msra.mxu0 %v861
    %1619 = vmatprep.subr.bf16.mxu0 0
    %1620 = vmatpush1.bf16.msra.mxu0 %v862
    %1621 = vmatprep.subr.bf16.mxu0 0
    %1622 = vmatpush1.bf16.msra.mxu0 %v863
    %1623 = vmatprep.subr.bf16.mxu0 0
    %1624 = vmatpush1.bf16.msra.mxu0 %v864
    %1625 = vmatprep.subr.bf16.mxu0 0
    %1626 = vmatpush1.bf16.msra.mxu0 %v865
    %1627 = vmatprep.subr.bf16.mxu0 0
    %1628 = vmatpush1.bf16.msra.mxu0 %v866
    %1629 = vmatprep.subr.bf16.mxu0 0
    %1630 = vmatpush1.bf16.msra.mxu0 %v867
    %1631 = vmatprep.subr.bf16.mxu0 0
    %1632 = vmatpush1.bf16.msra.mxu0 %v868
    %1633 = vmatprep.mubr.bf16.mxu0 %v1586
    %1634 = vmatmul.mubr.bf16.gmra.mrb[0].mxu0 %v1585
    %v1635 = vpop.f32.mrb[0].mxu0
    %v1636 = vadd.f32 0.0, %v1635
    %v1637 = vpop.f32.mrb[0].mxu0
    %v1638 = vpop.f32.mrb[0].mxu0
    %v1639 = vadd.f32 0.0, %v1638
    %v1640 = vpop.f32.mrb[0].mxu0
    %1641 = vmatprep.mubr.bf16.mxu0 %v1588
    %1642 = vmatmul.mubr.bf16.gmra.mrb[0].mxu0 %v1587
    %v1643 = vpop.f32.mrb[0].mxu0
    %v1644 = vadd.f32 0.0, %v1643
    %v1645 = vpop.f32.mrb[0].mxu0
    %v1646 = vpop.f32.mrb[0].mxu0
    %v1647 = vadd.f32 0.0, %v1646
    %v1648 = vpop.f32.mrb[0].mxu0
    %1649 = vmatprep.mubr.bf16.mxu0 %v1590
    %1650 = vmatmul.mubr.bf16.gmra.mrb[0].mxu0 %v1589
    %v1651 = vpop.f32.mrb[0].mxu0
    %v1652 = vadd.f32 0.0, %v1651
    %v1653 = vpop.f32.mrb[0].mxu0
    %v1654 = vpop.f32.mrb[0].mxu0
    %v1655 = vadd.f32 0.0, %v1654
    %v1656 = vpop.f32.mrb[0].mxu0
    %1657 = vmatprep.mubr.bf16.mxu0 %v1592
    %1658 = vmatmul.mubr.bf16.gmra.mrb[0].mxu0 %v1591
    %v1659 = vpop.f32.mrb[0].mxu0
    %v1660 = vadd.f32 0.0, %v1659
    %v1661 = vpop.f32.mrb[0].mxu0
    %v1662 = vpop.f32.mrb[0].mxu0
    %v1663 = vadd.f32 0.0, %v1662
    %v1664 = vpop.f32.mrb[0].mxu0
    %1665 = vdwg.mxu0
    %s1666 = scalar_lea.vmem %s11, 448
    %v1667 = vld [vmem:[%s1666] sm:$0xff]
    %v1668 = vld [vmem:[%s1666 + $0x8] sm:$0xff]
    %v1669 = vld [vmem:[%s1666 + $0x10] sm:$0xff]
    %v1670 = vld [vmem:[%s1666 + $0x18] sm:$0xff]
    %v1671 = vld [vmem:[%s1666 + $0x20] sm:$0xff]
    %v1672 = vld [vmem:[%s1666 + $0x28] sm:$0xff]
    %v1673 = vld [vmem:[%s1666 + $0x30] sm:$0xff]
    %v1674 = vld [vmem:[%s1666 + $0x38] sm:$0xff]
    %v1683 = vunpack.c.l.b16 %v1667
    %v1684 = vunpack.c.h.b16 %v1667
    %v1685 = vunpack.c.l.b16 %v1668
    %v1686 = vunpack.c.h.b16 %v1668
    %v1687 = vunpack.c.l.b16 %v1669
    %v1688 = vunpack.c.h.b16 %v1669
    %v1689 = vunpack.c.l.b16 %v1670
    %v1690 = vunpack.c.h.b16 %v1670
    %v1691 = vunpack.c.l.b16 %v1671
    %v1692 = vunpack.c.h.b16 %v1671
    %v1693 = vunpack.c.l.b16 %v1672
    %v1694 = vunpack.c.h.b16 %v1672
    %v1695 = vunpack.c.l.b16 %v1673
    %v1696 = vunpack.c.h.b16 %v1673
    %v1697 = vunpack.c.l.b16 %v1674
    %v1698 = vunpack.c.h.b16 %v1674
    %v1699 = vpack.c.b16 %v1685, %v1683
    %v1700 = vpack.c.b16 %v1686, %v1684
    %v1701 = vpack.c.b16 %v1689, %v1687
    %v1702 = vpack.c.b16 %v1690, %v1688
    %v1703 = vpack.c.b16 %v1693, %v1691
    %v1704 = vpack.c.b16 %v1694, %v1692
    %v1705 = vpack.c.b16 %v1697, %v1695
    %v1706 = vpack.c.b16 %v1698, %v1696
    %1715 = vmatprep.subr.bf16.mxu0 0
    %1716 = vmatpush1.bf16.msra.mxu0 %v853
    %1717 = vmatprep.subr.bf16.mxu0 0
    %1718 = vmatpush1.bf16.msra.mxu0 %v854
    %1719 = vmatprep.subr.bf16.mxu0 0
    %1720 = vmatpush1.bf16.msra.mxu0 %v855
    %1721 = vmatprep.subr.bf16.mxu0 0
    %1722 = vmatpush1.bf16.msra.mxu0 %v856
    %1723 = vmatprep.subr.bf16.mxu0 0
    %1724 = vmatpush1.bf16.msra.mxu0 %v857
    %1725 = vmatprep.subr.bf16.mxu0 0
    %1726 = vmatpush1.bf16.msra.mxu0 %v858
    %1727 = vmatprep.subr.bf16.mxu0 0
    %1728 = vmatpush1.bf16.msra.mxu0 %v859
    %1729 = vmatprep.subr.bf16.mxu0 0
    %1730 = vmatpush1.bf16.msra.mxu0 %v860
    %1731 = vmatprep.subr.bf16.mxu0 0
    %1732 = vmatpush1.bf16.msra.mxu0 %v861
    %1733 = vmatprep.subr.bf16.mxu0 0
    %1734 = vmatpush1.bf16.msra.mxu0 %v862
    %1735 = vmatprep.subr.bf16.mxu0 0
    %1736 = vmatpush1.bf16.msra.mxu0 %v863
    %1737 = vmatprep.subr.bf16.mxu0 0
    %1738 = vmatpush1.bf16.msra.mxu0 %v864
    %1739 = vmatprep.subr.bf16.mxu0 0
    %1740 = vmatpush1.bf16.msra.mxu0 %v865
    %1741 = vmatprep.subr.bf16.mxu0 0
    %1742 = vmatpush1.bf16.msra.mxu0 %v866
    %1743 = vmatprep.subr.bf16.mxu0 0
    %1744 = vmatpush1.bf16.msra.mxu0 %v867
    %1745 = vmatprep.subr.bf16.mxu0 0
    %1746 = vmatpush1.bf16.msra.mxu0 %v868
    %1747 = vmatprep.mubr.bf16.mxu0 %v1700
    %1748 = vmatmul.mubr.bf16.gmra.mrb[0].mxu0 %v1699
    %v1749 = vpop.f32.mrb[0].mxu0
    %v1750 = vadd.f32 0.0, %v1749
    %v1751 = vpop.f32.mrb[0].mxu0
    %v1752 = vpop.f32.mrb[0].mxu0
    %v1753 = vadd.f32 0.0, %v1752
    %v1754 = vpop.f32.mrb[0].mxu0
    %1755 = vmatprep.mubr.bf16.mxu0 %v1702
    %1756 = vmatmul.mubr.bf16.gmra.mrb[0].mxu0 %v1701
    %v1757 = vpop.f32.mrb[0].mxu0
    %v1758 = vadd.f32 0.0, %v1757
    %v1759 = vpop.f32.mrb[0].mxu0
    %v1760 = vpop.f32.mrb[0].mxu0
    %v1761 = vadd.f32 0.0, %v1760
    %v1762 = vpop.f32.mrb[0].mxu0
    %1763 = vmatprep.mubr.bf16.mxu0 %v1704
    %1764 = vmatmul.mubr.bf16.gmra.mrb[0].mxu0 %v1703
    %v1765 = vpop.f32.mrb[0].mxu0
    %v1766 = vadd.f32 0.0, %v1765
    %v1767 = vpop.f32.mrb[0].mxu0
    %v1768 = vpop.f32.mrb[0].mxu0
    %v1769 = vadd.f32 0.0, %v1768
    %v1770 = vpop.f32.mrb[0].mxu0
    %1771 = vmatprep.mubr.bf16.mxu0 %v1706
    %1772 = vmatmul.mubr.bf16.gmra.mrb[0].mxu0 %v1705
    %v1773 = vpop.f32.mrb[0].mxu0
    %v1774 = vadd.f32 0.0, %v1773
    %v1775 = vpop.f32.mrb[0].mxu0
    %v1776 = vpop.f32.mrb[0].mxu0
    %v1777 = vadd.f32 0.0, %v1776
    %v1778 = vpop.f32.mrb[0].mxu0
    %1779 = vdwg.mxu0
    %s1780 = scalar_lea.vmem %s11, 512
    %v1781 = vld [vmem:[%s1780] sm:$0xff]
    %v1782 = vld [vmem:[%s1780 + $0x8] sm:$0xff]
    %v1783 = vld [vmem:[%s1780 + $0x10] sm:$0xff]
    %v1784 = vld [vmem:[%s1780 + $0x18] sm:$0xff]
    %v1785 = vld [vmem:[%s1780 + $0x20] sm:$0xff]
    %v1786 = vld [vmem:[%s1780 + $0x28] sm:$0xff]
    %v1787 = vld [vmem:[%s1780 + $0x30] sm:$0xff]
    %v1788 = vld [vmem:[%s1780 + $0x38] sm:$0xff]
    %v1797 = vunpack.c.l.b16 %v1781
    %v1798 = vunpack.c.h.b16 %v1781
    %v1799 = vunpack.c.l.b16 %v1782
    %v1800 = vunpack.c.h.b16 %v1782
    %v1801 = vunpack.c.l.b16 %v1783
    %v1802 = vunpack.c.h.b16 %v1783
    %v1803 = vunpack.c.l.b16 %v1784
    %v1804 = vunpack.c.h.b16 %v1784
    %v1805 = vunpack.c.l.b16 %v1785
    %v1806 = vunpack.c.h.b16 %v1785
    %v1807 = vunpack.c.l.b16 %v1786
    %v1808 = vunpack.c.h.b16 %v1786
    %v1809 = vunpack.c.l.b16 %v1787
    %v1810 = vunpack.c.h.b16 %v1787
    %v1811 = vunpack.c.l.b16 %v1788
    %v1812 = vunpack.c.h.b16 %v1788
    %v1813 = vpack.c.b16 %v1799, %v1797
    %v1814 = vpack.c.b16 %v1800, %v1798
    %v1815 = vpack.c.b16 %v1803, %v1801
    %v1816 = vpack.c.b16 %v1804, %v1802
    %v1817 = vpack.c.b16 %v1807, %v1805
    %v1818 = vpack.c.b16 %v1808, %v1806
    %v1819 = vpack.c.b16 %v1811, %v1809
    %v1820 = vpack.c.b16 %v1812, %v1810
    %1829 = vmatprep.subr.bf16.mxu0 0
    %1830 = vmatpush1.bf16.msra.mxu0 %v853
    %1831 = vmatprep.subr.bf16.mxu0 0
    %1832 = vmatpush1.bf16.msra.mxu0 %v854
    %1833 = vmatprep.subr.bf16.mxu0 0
    %1834 = vmatpush1.bf16.msra.mxu0 %v855
    %1835 = vmatprep.subr.bf16.mxu0 0
    %1836 = vmatpush1.bf16.msra.mxu0 %v856
    %1837 = vmatprep.subr.bf16.mxu0 0
    %1838 = vmatpush1.bf16.msra.mxu0 %v857
    %1839 = vmatprep.subr.bf16.mxu0 0
    %1840 = vmatpush1.bf16.msra.mxu0 %v858
    %1841 = vmatprep.subr.bf16.mxu0 0
    %1842 = vmatpush1.bf16.msra.mxu0 %v859
    %1843 = vmatprep.subr.bf16.mxu0 0
    %1844 = vmatpush1.bf16.msra.mxu0 %v860
    %1845 = vmatprep.subr.bf16.mxu0 0
    %1846 = vmatpush1.bf16.msra.mxu0 %v861
    %1847 = vmatprep.subr.bf16.mxu0 0
    %1848 = vmatpush1.bf16.msra.mxu0 %v862
    %1849 = vmatprep.subr.bf16.mxu0 0
    %1850 = vmatpush1.bf16.msra.mxu0 %v863
    %1851 = vmatprep.subr.bf16.mxu0 0
    %1852 = vmatpush1.bf16.msra.mxu0 %v864
    %1853 = vmatprep.subr.bf16.mxu0 0
    %1854 = vmatpush1.bf16.msra.mxu0 %v865
    %1855 = vmatprep.subr.bf16.mxu0 0
    %1856 = vmatpush1.bf16.msra.mxu0 %v866
    %1857 = vmatprep.subr.bf16.mxu0 0
    %1858 = vmatpush1.bf16.msra.mxu0 %v867
    %1859 = vmatprep.subr.bf16.mxu0 0
    %1860 = vmatpush1.bf16.msra.mxu0 %v868
    %1861 = vmatprep.mubr.bf16.mxu0 %v1814
    %1862 = vmatmul.mubr.bf16.gmra.mrb[0].mxu0 %v1813
    %v1863 = vpop.f32.mrb[0].mxu0
    %v1864 = vadd.f32 0.0, %v1863
    %v1865 = vpop.f32.mrb[0].mxu0
    %v1866 = vpop.f32.mrb[0].mxu0
    %v1867 = vadd.f32 0.0, %v1866
    %v1868 = vpop.f32.mrb[0].mxu0
    %1869 = vmatprep.mubr.bf16.mxu0 %v1816
    %1870 = vmatmul.mubr.bf16.gmra.mrb[0].mxu0 %v1815
    %v1871 = vpop.f32.mrb[0].mxu0
    %v1872 = vadd.f32 0.0, %v1871
    %v1873 = vpop.f32.mrb[0].mxu0
    %v1874 = vpop.f32.mrb[0].mxu0
    %v1875 = vadd.f32 0.0, %v1874
    %v1876 = vpop.f32.mrb[0].mxu0
    %1877 = vmatprep.mubr.bf16.mxu0 %v1818
    %1878 = vmatmul.mubr.bf16.gmra.mrb[0].mxu0 %v1817
    %v1879 = vpop.f32.mrb[0].mxu0
    %v1880 = vadd.f32 0.0, %v1879
    %v1881 = vpop.f32.mrb[0].mxu0
    %v1882 = vpop.f32.mrb[0].mxu0
    %v1883 = vadd.f32 0.0, %v1882
    %v1884 = vpop.f32.mrb[0].mxu0
    %1885 = vmatprep.mubr.bf16.mxu0 %v1820
    %1886 = vmatmul.mubr.bf16.gmra.mrb[0].mxu0 %v1819
    %v1887 = vpop.f32.mrb[0].mxu0
    %v1888 = vadd.f32 0.0, %v1887
    %v1889 = vpop.f32.mrb[0].mxu0
    %v1890 = vpop.f32.mrb[0].mxu0
    %v1891 = vadd.f32 0.0, %v1890
    %v1892 = vpop.f32.mrb[0].mxu0
    %1893 = vdwg.mxu0
    %1902 = vrot.lane.b32.xlu0 %v1066, 16
    %v1903 = vpop.permute.xlu0 %1902
    %1904 = vrot.lane.b32.xlu0 %v1069, 16
    %v1905 = vpop.permute.xlu0 %1904
    %1906 = vrot.lane.b32.xlu0 %v1074, 16
    %v1907 = vpop.permute.xlu0 %1906
    %1908 = vrot.lane.b32.xlu0 %v1077, 16
    %v1909 = vpop.permute.xlu0 %1908
    %1910 = vrot.lane.b32.xlu0 %v1082, 16
    %v1911 = vpop.permute.xlu0 %1910
    %1912 = vrot.lane.b32.xlu0 %v1085, 16
    %v1913 = vpop.permute.xlu0 %1912
    %1914 = vrot.lane.b32.xlu0 %v1090, 16
    %v1915 = vpop.permute.xlu0 %1914
    %1916 = vrot.lane.b32.xlu0 %v1093, 16
    %v1917 = vpop.permute.xlu0 %1916
    %1934 = vrot.lane.b32.xlu0 %v1180, 32
    %v1935 = vpop.permute.xlu0 %1934
    %1936 = vrot.lane.b32.xlu0 %v1183, 32
    %v1937 = vpop.permute.xlu0 %1936
    %1938 = vrot.lane.b32.xlu0 %v1188, 32
    %v1939 = vpop.permute.xlu0 %1938
    %1940 = vrot.lane.b32.xlu0 %v1191, 32
    %v1941 = vpop.permute.xlu0 %1940
    %1942 = vrot.lane.b32.xlu0 %v1196, 32
    %v1943 = vpop.permute.xlu0 %1942
    %1944 = vrot.lane.b32.xlu0 %v1199, 32
    %v1945 = vpop.permute.xlu0 %1944
    %1946 = vrot.lane.b32.xlu0 %v1204, 32
    %v1947 = vpop.permute.xlu0 %1946
    %1948 = vrot.lane.b32.xlu0 %v1207, 32
    %v1949 = vpop.permute.xlu0 %1948
    %1966 = vrot.lane.b32.xlu0 %v1294, 48
    %v1967 = vpop.permute.xlu0 %1966
    %1968 = vrot.lane.b32.xlu0 %v1297, 48
    %v1969 = vpop.permute.xlu0 %1968
    %1970 = vrot.lane.b32.xlu0 %v1302, 48
    %v1971 = vpop.permute.xlu0 %1970
    %1972 = vrot.lane.b32.xlu0 %v1305, 48
    %v1973 = vpop.permute.xlu0 %1972
    %1974 = vrot.lane.b32.xlu0 %v1310, 48
    %v1975 = vpop.permute.xlu0 %1974
    %1976 = vrot.lane.b32.xlu0 %v1313, 48
    %v1977 = vpop.permute.xlu0 %1976
    %1978 = vrot.lane.b32.xlu0 %v1318, 48
    %v1979 = vpop.permute.xlu0 %1978
    %1980 = vrot.lane.b32.xlu0 %v1321, 48
    %v1981 = vpop.permute.xlu0 %1980
    %1998 = vrot.lane.b32.xlu0 %v1408, 64
    %v1999 = vpop.permute.xlu0 %1998
    %2000 = vrot.lane.b32.xlu0 %v1411, 64
    %v2001 = vpop.permute.xlu0 %2000
    %2002 = vrot.lane.b32.xlu0 %v1416, 64
    %v2003 = vpop.permute.xlu0 %2002
    %2004 = vrot.lane.b32.xlu0 %v1419, 64
    %v2005 = vpop.permute.xlu0 %2004
    %2006 = vrot.lane.b32.xlu0 %v1424, 64
    %v2007 = vpop.permute.xlu0 %2006
    %2008 = vrot.lane.b32.xlu0 %v1427, 64
    %v2009 = vpop.permute.xlu0 %2008
    %2010 = vrot.lane.b32.xlu0 %v1432, 64
    %v2011 = vpop.permute.xlu0 %2010
    %2012 = vrot.lane.b32.xlu0 %v1435, 64
    %v2013 = vpop.permute.xlu0 %2012
    %2030 = vrot.lane.b32.xlu0 %v1522, 80
    %v2031 = vpop.permute.xlu0 %2030
    %2032 = vrot.lane.b32.xlu0 %v1525, 80
    %v2033 = vpop.permute.xlu0 %2032
    %2034 = vrot.lane.b32.xlu0 %v1530, 80
    %v2035 = vpop.permute.xlu0 %2034
    %2036 = vrot.lane.b32.xlu0 %v1533, 80
    %v2037 = vpop.permute.xlu0 %2036
    %2038 = vrot.lane.b32.xlu0 %v1538, 80
    %v2039 = vpop.permute.xlu0 %2038
    %2040 = vrot.lane.b32.xlu0 %v1541, 80
    %v2041 = vpop.permute.xlu0 %2040
    %2042 = vrot.lane.b32.xlu0 %v1546, 80
    %v2043 = vpop.permute.xlu0 %2042
    %2044 = vrot.lane.b32.xlu0 %v1549, 80
    %v2045 = vpop.permute.xlu0 %2044
    %2062 = vrot.lane.b32.xlu0 %v1636, 96
    %v2063 = vpop.permute.xlu0 %2062
    %2064 = vrot.lane.b32.xlu0 %v1639, 96
    %v2065 = vpop.permute.xlu0 %2064
    %2066 = vrot.lane.b32.xlu0 %v1644, 96
    %v2067 = vpop.permute.xlu0 %2066
    %2068 = vrot.lane.b32.xlu0 %v1647, 96
    %v2069 = vpop.permute.xlu0 %2068
    %2070 = vrot.lane.b32.xlu0 %v1652, 96
    %v2071 = vpop.permute.xlu0 %2070
    %2072 = vrot.lane.b32.xlu0 %v1655, 96
    %v2073 = vpop.permute.xlu0 %2072
    %2074 = vrot.lane.b32.xlu0 %v1660, 96
    %v2075 = vpop.permute.xlu0 %2074
    %2076 = vrot.lane.b32.xlu0 %v1663, 96
    %v2077 = vpop.permute.xlu0 %2076
    %2094 = vrot.lane.b32.xlu0 %v1750, 112
    %v2095 = vpop.permute.xlu0 %2094
    %2096 = vrot.lane.b32.xlu0 %v1753, 112
    %v2097 = vpop.permute.xlu0 %2096
    %2098 = vrot.lane.b32.xlu0 %v1758, 112
    %v2099 = vpop.permute.xlu0 %2098
    %2100 = vrot.lane.b32.xlu0 %v1761, 112
    %v2101 = vpop.permute.xlu0 %2100
    %2102 = vrot.lane.b32.xlu0 %v1766, 112
    %v2103 = vpop.permute.xlu0 %2102
    %2104 = vrot.lane.b32.xlu0 %v1769, 112
    %v2105 = vpop.permute.xlu0 %2104
    %2106 = vrot.lane.b32.xlu0 %v1774, 112
    %v2107 = vpop.permute.xlu0 %2106
    %2108 = vrot.lane.b32.xlu0 %v1777, 112
    %v2109 = vpop.permute.xlu0 %2108
    %vm2118 = vcmask 130048
    %v2119 = vsel %vm2118, %v952, %v1903
    %v2120 = vsel %vm2118, %v955, %v1905
    %v2121 = vsel %vm2118, %v960, %v1907
    %v2122 = vsel %vm2118, %v963, %v1909
    %v2123 = vsel %vm2118, %v968, %v1911
    %v2124 = vsel %vm2118, %v971, %v1913
    %v2125 = vsel %vm2118, %v976, %v1915
    %v2126 = vsel %vm2118, %v979, %v1917
    %vm2127 = vcmask 261120
    %v2128 = vsel %vm2127, %v2119, %v1935
    %v2129 = vsel %vm2127, %v2120, %v1937
    %v2130 = vsel %vm2127, %v2121, %v1939
    %v2131 = vsel %vm2127, %v2122, %v1941
    %v2132 = vsel %vm2127, %v2123, %v1943
    %v2133 = vsel %vm2127, %v2124, %v1945
    %v2134 = vsel %vm2127, %v2125, %v1947
    %v2135 = vsel %vm2127, %v2126, %v1949
    %vm2136 = vcmask 392192
    %v2137 = vsel %vm2136, %v2128, %v1967
    %v2138 = vsel %vm2136, %v2129, %v1969
    %v2139 = vsel %vm2136, %v2130, %v1971
    %v2140 = vsel %vm2136, %v2131, %v1973
    %v2141 = vsel %vm2136, %v2132, %v1975
    %v2142 = vsel %vm2136, %v2133, %v1977
    %v2143 = vsel %vm2136, %v2134, %v1979
    %v2144 = vsel %vm2136, %v2135, %v1981
    %vm2145 = vcmask 523264
    %v2146 = vsel %vm2145, %v2137, %v1999
    %v2147 = vsel %vm2145, %v2138, %v2001
    %v2148 = vsel %vm2145, %v2139, %v2003
    %v2149 = vsel %vm2145, %v2140, %v2005
    %v2150 = vsel %vm2145, %v2141, %v2007
    %v2151 = vsel %vm2145, %v2142, %v2009
    %v2152 = vsel %vm2145, %v2143, %v2011
    %v2153 = vsel %vm2145, %v2144, %v2013
    %vm2154 = vcmask 654336
    %v2155 = vsel %vm2154, %v2146, %v2031
    %v2156 = vsel %vm2154, %v2147, %v2033
    %v2157 = vsel %vm2154, %v2148, %v2035
    %v2158 = vsel %vm2154, %v2149, %v2037
    %v2159 = vsel %vm2154, %v2150, %v2039
    %v2160 = vsel %vm2154, %v2151, %v2041
    %v2161 = vsel %vm2154, %v2152, %v2043
    %v2162 = vsel %vm2154, %v2153, %v2045
    %vm2163 = vcmask 785408
    %v2164 = vsel %vm2163, %v2155, %v2063
    %v2165 = vsel %vm2163, %v2156, %v2065
    %v2166 = vsel %vm2163, %v2157, %v2067
    %v2167 = vsel %vm2163, %v2158, %v2069
    %v2168 = vsel %vm2163, %v2159, %v2071
    %v2169 = vsel %vm2163, %v2160, %v2073
    %v2170 = vsel %vm2163, %v2161, %v2075
    %v2171 = vsel %vm2163, %v2162, %v2077
    %vm2172 = vcmask 916480
    %v2173 = vsel %vm2172, %v2164, %v2095
    %v2174 = vsel %vm2172, %v2165, %v2097
    %v2175 = vsel %vm2172, %v2166, %v2099
    %v2176 = vsel %vm2172, %v2167, %v2101
    %v2177 = vsel %vm2172, %v2168, %v2103
    %v2178 = vsel %vm2172, %v2169, %v2105
    %v2179 = vsel %vm2172, %v2170, %v2107
    %v2180 = vsel %vm2172, %v2171, %v2109
    %v2181 = vpack.c.bf16 %v2174, %v2173
    %v2182 = vpack.c.bf16 %v1867, %v1864
    %v2183 = vpack.c.bf16 %v2176, %v2175
    %v2184 = vpack.c.bf16 %v1875, %v1872
    %v2185 = vpack.c.bf16 %v2178, %v2177
    %v2186 = vpack.c.bf16 %v1883, %v1880
    %v2187 = vpack.c.bf16 %v2180, %v2179
    %v2188 = vpack.c.bf16 %v1891, %v1888
    %v2189 = vld [vmem:[%s13] sm:$0xf]
    %v2190 = vld [vmem:[%s13 + $0x4] sm:$0xf]
    %v2191 = vld [vmem:[%s13 + $0x8] sm:$0xf]
    %v2192 = vld [vmem:[%s13 + $0xc] sm:$0xf]
    %v2193 = vld [vmem:[%s13 + $0x10] sm:$0xf]
    %v2194 = vld [vmem:[%s13 + $0x14] sm:$0xf]
    %v2195 = vld [vmem:[%s13 + $0x18] sm:$0xf]
    %v2196 = vld [vmem:[%s13 + $0x1c] sm:$0xf]
    %v2197 = vld [vmem:[%s13 + $0x20] sm:$0xf]
    %v2198 = vld [vmem:[%s13 + $0x24] sm:$0xf]
    %v2199 = vld [vmem:[%s13 + $0x28] sm:$0xf]
    %v2200 = vld [vmem:[%s13 + $0x2c] sm:$0xf]
    %v2201 = vld [vmem:[%s13 + $0x30] sm:$0xf]
    %v2202 = vld [vmem:[%s13 + $0x34] sm:$0xf]
    %v2203 = vld [vmem:[%s13 + $0x38] sm:$0xf]
    %v2204 = vld [vmem:[%s13 + $0x3c] sm:$0xf]
    %v2205 = vld [vmem:[%s13 + $0x40] sm:$0xf]
    %v2206 = vld [vmem:[%s13 + $0x44] sm:$0xf]
    %v2207 = vld [vmem:[%s15] sm:$0x1]
    %v2209 = vlaneseq
    %v2210 = vshrl.u32 %v2209, 7
    %v2211 = vsub.s32 0, %v2210
    %v2212 = vrot.slane %v2207, %v2211
    %v2232 = vunpack.c.l.b16 %v2189
    %v2233 = vunpack.c.l.b16 %v2190
    %v2234 = vunpack.c.l.b16 %v2191
    %v2235 = vunpack.c.l.b16 %v2192
    %v2236 = vunpack.c.l.b16 %v2193
    %v2237 = vunpack.c.l.b16 %v2194
    %v2238 = vunpack.c.l.b16 %v2195
    %v2239 = vunpack.c.l.b16 %v2196
    %v2240 = vunpack.c.l.b16 %v2197
    %v2241 = vunpack.c.l.b16 %v2198
    %v2242 = vunpack.c.l.b16 %v2199
    %v2243 = vunpack.c.l.b16 %v2200
    %v2244 = vunpack.c.l.b16 %v2201
    %v2245 = vunpack.c.l.b16 %v2202
    %v2246 = vunpack.c.l.b16 %v2203
    %v2247 = vunpack.c.l.b16 %v2204
    %v2248 = vunpack.c.l.b16 %v2205
    %v2249 = vunpack.c.l.b16 %v2206
    %v2250 = vpack.c.b16 %v2233, %v2232
    %v2251 = vpack.c.b16 %v2235, %v2234
    %v2252 = vpack.c.b16 %v2237, %v2236
    %v2253 = vpack.c.b16 %v2239, %v2238
    %v2254 = vpack.c.b16 %v2241, %v2240
    %v2255 = vpack.c.b16 %v2243, %v2242
    %v2256 = vpack.c.b16 %v2245, %v2244
    %v2257 = vpack.c.b16 %v2247, %v2246
    %v2258 = vpack.c.b16 %v2249, %v2248
    %v2269 = vsel %vm2118, %v2182, 0
    %v2272 = vsel %vm2118, %v2184, 0
    %v2275 = vsel %vm2118, %v2186, 0
    %v2278 = vsel %vm2118, %v2188, 0
    %2280 = vmatprep.subr.bf16.mxu0 0
    %2281 = vmatpush1.bf16.msra.mxu0 %v2250
    %2282 = vmatprep.subr.bf16.mxu0 0
    %2283 = vmatpush1.bf16.msra.mxu0 %v2251
    %2284 = vmatprep.subr.bf16.mxu0 0
    %2285 = vmatpush1.bf16.msra.mxu0 %v2252
    %2286 = vmatprep.subr.bf16.mxu0 0
    %2287 = vmatpush1.bf16.msra.mxu0 %v2253
    %2288 = vmatprep.subr.bf16.mxu0 0
    %2289 = vmatpush1.bf16.msra.mxu0 %v2254
    %2290 = vmatprep.subr.bf16.mxu0 0
    %2291 = vmatpush1.bf16.msra.mxu0 %v2255
    %2292 = vmatprep.subr.bf16.mxu0 0
    %2293 = vmatpush1.bf16.msra.mxu0 %v2256
    %2294 = vmatprep.subr.bf16.mxu0 0
    %2295 = vmatpush1.bf16.msra.mxu0 %v2257
    %2296 = vmatprep.subr.bf16.mxu0 0
    %2297 = vmatpush1.bf16.msra.mxu0 %v2258
    %2298 = vmatprep.subr.bf16.mxu0 0
    %2299 = vmatpush1.bf16.msra.mxu0 0
    %2300 = vmatprep.subr.bf16.mxu0 0
    %2301 = vmatpush1.bf16.msra.mxu0 0
    %2302 = vmatprep.subr.bf16.mxu0 0
    %2303 = vmatpush1.bf16.msra.mxu0 0
    %2304 = vmatprep.subr.bf16.mxu0 0
    %2305 = vmatpush1.bf16.msra.mxu0 0
    %2306 = vmatprep.subr.bf16.mxu0 0
    %2307 = vmatpush1.bf16.msra.mxu0 0
    %2308 = vmatprep.subr.bf16.mxu0 0
    %2309 = vmatpush1.bf16.msra.mxu0 0
    %2310 = vmatprep.subr.bf16.mxu0 0
    %2311 = vmatpush1.bf16.msra.mxu0 0
    %2312 = vmatprep.mubr.bf16.mxu0 %v2269
    %2313 = vmatmul.mubr.bf16.gmra.mrb[0].mxu0 %v2181
    %v2314 = vpop.f32.mrb[0].mxu0
    %v2315 = vadd.f32 %v2212, %v2314
    %v2316 = vpop.f32.mrb[0].mxu0
    %v2317 = vpop.f32.mrb[0].mxu0
    %v2318 = vadd.f32 %v2212, %v2317
    %v2319 = vpop.f32.mrb[0].mxu0
    %2320 = vmatprep.mubr.bf16.mxu0 %v2272
    %2321 = vmatmul.mubr.bf16.gmra.mrb[0].mxu0 %v2183
    %v2322 = vpop.f32.mrb[0].mxu0
    %v2323 = vadd.f32 %v2212, %v2322
    %v2324 = vpop.f32.mrb[0].mxu0
    %v2325 = vpop.f32.mrb[0].mxu0
    %v2326 = vadd.f32 %v2212, %v2325
    %v2327 = vpop.f32.mrb[0].mxu0
    %2328 = vmatprep.mubr.bf16.mxu0 %v2275
    %2329 = vmatmul.mubr.bf16.gmra.mrb[0].mxu0 %v2185
    %v2330 = vpop.f32.mrb[0].mxu0
    %v2331 = vadd.f32 %v2212, %v2330
    %v2332 = vpop.f32.mrb[0].mxu0
    %v2333 = vpop.f32.mrb[0].mxu0
    %v2334 = vadd.f32 %v2212, %v2333
    %v2335 = vpop.f32.mrb[0].mxu0
    %2336 = vmatprep.mubr.bf16.mxu0 %v2278
    %2337 = vmatmul.mubr.bf16.gmra.mrb[0].mxu0 %v2187
    %v2338 = vpop.f32.mrb[0].mxu0
    %v2339 = vadd.f32 %v2212, %v2338
    %v2340 = vpop.f32.mrb[0].mxu0
    %v2341 = vpop.f32.mrb[0].mxu0
    %v2342 = vadd.f32 %v2212, %v2341
    %v2343 = vpop.f32.mrb[0].mxu0
    %2344 = vdwg.mxu0
    %vm2345 = vcmp.ge.f32.partialorder %v2315, 0.0
    %vm2346 = vcmp.ge.f32.partialorder %v2318, 0.0
    %vm2347 = vcmp.ge.f32.partialorder %v2323, 0.0
    %vm2348 = vcmp.ge.f32.partialorder %v2326, 0.0
    %vm2349 = vcmp.ge.f32.partialorder %v2331, 0.0
    %vm2350 = vcmp.ge.f32.partialorder %v2334, 0.0
    %vm2351 = vcmp.ge.f32.partialorder %v2339, 0.0
    %vm2352 = vcmp.ge.f32.partialorder %v2342, 0.0
    %v2353 = vmul.f32 %v2315, 0.01
    %v2354 = vmul.f32 %v2318, 0.01
    %v2355 = vmul.f32 %v2323, 0.01
    %v2356 = vmul.f32 %v2326, 0.01
    %v2357 = vmul.f32 %v2331, 0.01
    %v2358 = vmul.f32 %v2334, 0.01
    %v2359 = vmul.f32 %v2339, 0.01
    %v2360 = vmul.f32 %v2342, 0.01
    %v2361 = vsel %vm2345, %v2315, %v2353
    %v2362 = vsel %vm2346, %v2318, %v2354
    %v2363 = vsel %vm2347, %v2323, %v2355
    %v2364 = vsel %vm2348, %v2326, %v2356
    %v2365 = vsel %vm2349, %v2331, %v2357
    %v2366 = vsel %vm2350, %v2334, %v2358
    %v2367 = vsel %vm2351, %v2339, %v2359
    %v2368 = vsel %vm2352, %v2342, %v2360
    %v2369 = vpack.c.bf16 %v2362, %v2361
    %v2370 = vpack.c.bf16 %v2364, %v2363
    %v2371 = vpack.c.bf16 %v2366, %v2365
    %v2372 = vpack.c.bf16 %v2368, %v2367
    %v2373 = vld [vmem:[%s17] sm:$0xf]
    %v2374 = vld [vmem:[%s17 + $0x4] sm:$0xf]
    %v2377 = vunpack.c.l.b16 %v2373
    %v2378 = vunpack.c.l.b16 %v2374
    %v2379 = vpack.c.b16 %v2378, %v2377
    %v2381 = vsel %vm2145, %v2379, 0
    %2383 = vmatprep.subr.bf16.mxu0 0
    %2384 = vmatpush1.bf16.msra.mxu0 %v2369
    %2385 = vmatprep.subr.bf16.mxu0 0
    %2386 = vmatpush1.bf16.msra.mxu0 %v2370
    %2387 = vmatprep.subr.bf16.mxu0 0
    %2388 = vmatpush1.bf16.msra.mxu0 %v2371
    %2389 = vmatprep.subr.bf16.mxu0 0
    %2390 = vmatpush1.bf16.msra.mxu0 %v2372
    %2391 = vmatprep.subr.bf16.mxu0 0
    %2392 = vmatpush1.bf16.msra.mxu0 0
    %2393 = vmatprep.subr.bf16.mxu0 0
    %2394 = vmatpush1.bf16.msra.mxu0 0
    %2395 = vmatprep.subr.bf16.mxu0 0
    %2396 = vmatpush1.bf16.msra.mxu0 0
    %2397 = vmatprep.subr.bf16.mxu0 0
    %2398 = vmatpush1.bf16.msra.mxu0 0
    %2399 = vmatprep.subr.bf16.mxu0 0
    %2400 = vmatpush1.bf16.msra.mxu0 0
    %2401 = vmatprep.subr.bf16.mxu0 0
    %2402 = vmatpush1.bf16.msra.mxu0 0
    %2403 = vmatprep.subr.bf16.mxu0 0
    %2404 = vmatpush1.bf16.msra.mxu0 0
    %2405 = vmatprep.subr.bf16.mxu0 0
    %2406 = vmatpush1.bf16.msra.mxu0 0
    %2407 = vmatprep.subr.bf16.mxu0 0
    %2408 = vmatpush1.bf16.msra.mxu0 0
    %2409 = vmatprep.subr.bf16.mxu0 0
    %2410 = vmatpush1.bf16.msra.mxu0 0
    %2411 = vmatprep.subr.bf16.mxu0 0
    %2412 = vmatpush1.bf16.msra.mxu0 0
    %2413 = vmatprep.subr.bf16.mxu0 0
    %2414 = vmatpush1.bf16.msra.mxu0 0
    %2415 = vmatprep.mubr.bf16.mxu0 0
    %2416 = vmatmul.mubr.bf16.gmra.mrb[0].mxu0 %v2381
    %v2417 = vpop.f32.mrb[0].mxu0
    %v2418 = vadd.f32 0.0, %v2417
    %v2419 = vpop.f32.mrb[0].mxu0
    %v2420 = vpop.f32.mrb[0].mxu0
    %v2421 = vadd.f32 0.0, %v2420
    %v2422 = vpop.f32.mrb[0].mxu0
    %2423 = vdwg.mxu0
    %s2424 = scalar_lea.vmem %s17, 8
    %v2425 = vld [vmem:[%s2424] sm:$0xf]
    %v2426 = vld [vmem:[%s2424 + $0x4] sm:$0xf]
    %v2429 = vunpack.c.l.b16 %v2425
    %v2430 = vunpack.c.l.b16 %v2426
    %v2431 = vpack.c.b16 %v2430, %v2429
    %v2433 = vsel %vm2145, %v2431, 0
    %2435 = vmatprep.subr.bf16.mxu0 0
    %2436 = vmatpush1.bf16.msra.mxu0 %v2369
    %2437 = vmatprep.subr.bf16.mxu0 0
    %2438 = vmatpush1.bf16.msra.mxu0 %v2370
    %2439 = vmatprep.subr.bf16.mxu0 0
    %2440 = vmatpush1.bf16.msra.mxu0 %v2371
    %2441 = vmatprep.subr.bf16.mxu0 0
    %2442 = vmatpush1.bf16.msra.mxu0 %v2372
    %2443 = vmatprep.subr.bf16.mxu0 0
    %2444 = vmatpush1.bf16.msra.mxu0 0
    %2445 = vmatprep.subr.bf16.mxu0 0
    %2446 = vmatpush1.bf16.msra.mxu0 0
    %2447 = vmatprep.subr.bf16.mxu0 0
    %2448 = vmatpush1.bf16.msra.mxu0 0
    %2449 = vmatprep.subr.bf16.mxu0 0
    %2450 = vmatpush1.bf16.msra.mxu0 0
    %2451 = vmatprep.subr.bf16.mxu0 0
    %2452 = vmatpush1.bf16.msra.mxu0 0
    %2453 = vmatprep.subr.bf16.mxu0 0
    %2454 = vmatpush1.bf16.msra.mxu0 0
    %2455 = vmatprep.subr.bf16.mxu0 0
    %2456 = vmatpush1.bf16.msra.mxu0 0
    %2457 = vmatprep.subr.bf16.mxu0 0
    %2458 = vmatpush1.bf16.msra.mxu0 0
    %2459 = vmatprep.subr.bf16.mxu0 0
    %2460 = vmatpush1.bf16.msra.mxu0 0
    %2461 = vmatprep.subr.bf16.mxu0 0
    %2462 = vmatpush1.bf16.msra.mxu0 0
    %2463 = vmatprep.subr.bf16.mxu0 0
    %2464 = vmatpush1.bf16.msra.mxu0 0
    %2465 = vmatprep.subr.bf16.mxu0 0
    %2466 = vmatpush1.bf16.msra.mxu0 0
    %2467 = vmatprep.mubr.bf16.mxu0 0
    %2468 = vmatmul.mubr.bf16.gmra.mrb[0].mxu0 %v2433
    %v2469 = vpop.f32.mrb[0].mxu0
    %v2470 = vadd.f32 0.0, %v2469
    %v2471 = vpop.f32.mrb[0].mxu0
    %v2472 = vpop.f32.mrb[0].mxu0
    %v2473 = vadd.f32 0.0, %v2472
    %v2474 = vpop.f32.mrb[0].mxu0
    %2475 = vdwg.mxu0
    %s2476 = scalar_lea.vmem %s17, 16
    %v2477 = vld [vmem:[%s2476] sm:$0xf]
    %v2478 = vld [vmem:[%s2476 + $0x4] sm:$0xf]
    %v2481 = vunpack.c.l.b16 %v2477
    %v2482 = vunpack.c.l.b16 %v2478
    %v2483 = vpack.c.b16 %v2482, %v2481
    %v2485 = vsel %vm2145, %v2483, 0
    %2487 = vmatprep.subr.bf16.mxu0 0
    %2488 = vmatpush1.bf16.msra.mxu0 %v2369
    %2489 = vmatprep.subr.bf16.mxu0 0
    %2490 = vmatpush1.bf16.msra.mxu0 %v2370
    %2491 = vmatprep.subr.bf16.mxu0 0
    %2492 = vmatpush1.bf16.msra.mxu0 %v2371
    %2493 = vmatprep.subr.bf16.mxu0 0
    %2494 = vmatpush1.bf16.msra.mxu0 %v2372
    %2495 = vmatprep.subr.bf16.mxu0 0
    %2496 = vmatpush1.bf16.msra.mxu0 0
    %2497 = vmatprep.subr.bf16.mxu0 0
    %2498 = vmatpush1.bf16.msra.mxu0 0
    %2499 = vmatprep.subr.bf16.mxu0 0
    %2500 = vmatpush1.bf16.msra.mxu0 0
    %2501 = vmatprep.subr.bf16.mxu0 0
    %2502 = vmatpush1.bf16.msra.mxu0 0
    %2503 = vmatprep.subr.bf16.mxu0 0
    %2504 = vmatpush1.bf16.msra.mxu0 0
    %2505 = vmatprep.subr.bf16.mxu0 0
    %2506 = vmatpush1.bf16.msra.mxu0 0
    %2507 = vmatprep.subr.bf16.mxu0 0
    %2508 = vmatpush1.bf16.msra.mxu0 0
    %2509 = vmatprep.subr.bf16.mxu0 0
    %2510 = vmatpush1.bf16.msra.mxu0 0
    %2511 = vmatprep.subr.bf16.mxu0 0
    %2512 = vmatpush1.bf16.msra.mxu0 0
    %2513 = vmatprep.subr.bf16.mxu0 0
    %2514 = vmatpush1.bf16.msra.mxu0 0
    %2515 = vmatprep.subr.bf16.mxu0 0
    %2516 = vmatpush1.bf16.msra.mxu0 0
    %2517 = vmatprep.subr.bf16.mxu0 0
    %2518 = vmatpush1.bf16.msra.mxu0 0
    %2519 = vmatprep.mubr.bf16.mxu0 0
    %2520 = vmatmul.mubr.bf16.gmra.mrb[0].mxu0 %v2485
    %v2521 = vpop.f32.mrb[0].mxu0
    %v2522 = vadd.f32 0.0, %v2521
    %v2523 = vpop.f32.mrb[0].mxu0
    %v2524 = vpop.f32.mrb[0].mxu0
    %v2525 = vadd.f32 0.0, %v2524
    %v2526 = vpop.f32.mrb[0].mxu0
    %2527 = vdwg.mxu0
    %s2528 = scalar_lea.vmem %s17, 24
    %v2529 = vld [vmem:[%s2528] sm:$0xf]
    %v2530 = vld [vmem:[%s2528 + $0x4] sm:$0xf]
    %v2533 = vunpack.c.l.b16 %v2529
    %v2534 = vunpack.c.l.b16 %v2530
    %v2535 = vpack.c.b16 %v2534, %v2533
    %v2537 = vsel %vm2145, %v2535, 0
    %2539 = vmatprep.subr.bf16.mxu0 0
    %2540 = vmatpush1.bf16.msra.mxu0 %v2369
    %2541 = vmatprep.subr.bf16.mxu0 0
    %2542 = vmatpush1.bf16.msra.mxu0 %v2370
    %2543 = vmatprep.subr.bf16.mxu0 0
    %2544 = vmatpush1.bf16.msra.mxu0 %v2371
    %2545 = vmatprep.subr.bf16.mxu0 0
    %2546 = vmatpush1.bf16.msra.mxu0 %v2372
    %2547 = vmatprep.subr.bf16.mxu0 0
    %2548 = vmatpush1.bf16.msra.mxu0 0
    %2549 = vmatprep.subr.bf16.mxu0 0
    %2550 = vmatpush1.bf16.msra.mxu0 0
    %2551 = vmatprep.subr.bf16.mxu0 0
    %2552 = vmatpush1.bf16.msra.mxu0 0
    %2553 = vmatprep.subr.bf16.mxu0 0
    %2554 = vmatpush1.bf16.msra.mxu0 0
    %2555 = vmatprep.subr.bf16.mxu0 0
    %2556 = vmatpush1.bf16.msra.mxu0 0
    %2557 = vmatprep.subr.bf16.mxu0 0
    %2558 = vmatpush1.bf16.msra.mxu0 0
    %2559 = vmatprep.subr.bf16.mxu0 0
    %2560 = vmatpush1.bf16.msra.mxu0 0
    %2561 = vmatprep.subr.bf16.mxu0 0
    %2562 = vmatpush1.bf16.msra.mxu0 0
    %2563 = vmatprep.subr.bf16.mxu0 0
    %2564 = vmatpush1.bf16.msra.mxu0 0
    %2565 = vmatprep.subr.bf16.mxu0 0
    %2566 = vmatpush1.bf16.msra.mxu0 0
    %2567 = vmatprep.subr.bf16.mxu0 0
    %2568 = vmatpush1.bf16.msra.mxu0 0
    %2569 = vmatprep.subr.bf16.mxu0 0
    %2570 = vmatpush1.bf16.msra.mxu0 0
    %2571 = vmatprep.mubr.bf16.mxu0 0
    %2572 = vmatmul.mubr.bf16.gmra.mrb[0].mxu0 %v2537
    %v2573 = vpop.f32.mrb[0].mxu0
    %v2574 = vadd.f32 0.0, %v2573
    %v2575 = vpop.f32.mrb[0].mxu0
    %v2576 = vpop.f32.mrb[0].mxu0
    %v2577 = vadd.f32 0.0, %v2576
    %v2578 = vpop.f32.mrb[0].mxu0
    %2579 = vdwg.mxu0
    %s2580 = scalar_lea.vmem %s17, 32
    %v2581 = vld [vmem:[%s2580] sm:$0xf]
    %v2582 = vld [vmem:[%s2580 + $0x4] sm:$0xf]
    %v2585 = vunpack.c.l.b16 %v2581
    %v2586 = vunpack.c.l.b16 %v2582
    %v2587 = vpack.c.b16 %v2586, %v2585
    %v2589 = vsel %vm2145, %v2587, 0
    %2591 = vmatprep.subr.bf16.mxu0 0
    %2592 = vmatpush1.bf16.msra.mxu0 %v2369
    %2593 = vmatprep.subr.bf16.mxu0 0
    %2594 = vmatpush1.bf16.msra.mxu0 %v2370
    %2595 = vmatprep.subr.bf16.mxu0 0
    %2596 = vmatpush1.bf16.msra.mxu0 %v2371
    %2597 = vmatprep.subr.bf16.mxu0 0
    %2598 = vmatpush1.bf16.msra.mxu0 %v2372
    %2599 = vmatprep.subr.bf16.mxu0 0
    %2600 = vmatpush1.bf16.msra.mxu0 0
    %2601 = vmatprep.subr.bf16.mxu0 0
    %2602 = vmatpush1.bf16.msra.mxu0 0
    %2603 = vmatprep.subr.bf16.mxu0 0
    %2604 = vmatpush1.bf16.msra.mxu0 0
    %2605 = vmatprep.subr.bf16.mxu0 0
    %2606 = vmatpush1.bf16.msra.mxu0 0
    %2607 = vmatprep.subr.bf16.mxu0 0
    %2608 = vmatpush1.bf16.msra.mxu0 0
    %2609 = vmatprep.subr.bf16.mxu0 0
    %2610 = vmatpush1.bf16.msra.mxu0 0
    %2611 = vmatprep.subr.bf16.mxu0 0
    %2612 = vmatpush1.bf16.msra.mxu0 0
    %2613 = vmatprep.subr.bf16.mxu0 0
    %2614 = vmatpush1.bf16.msra.mxu0 0
    %2615 = vmatprep.subr.bf16.mxu0 0
    %2616 = vmatpush1.bf16.msra.mxu0 0
    %2617 = vmatprep.subr.bf16.mxu0 0
    %2618 = vmatpush1.bf16.msra.mxu0 0
    %2619 = vmatprep.subr.bf16.mxu0 0
    %2620 = vmatpush1.bf16.msra.mxu0 0
    %2621 = vmatprep.subr.bf16.mxu0 0
    %2622 = vmatpush1.bf16.msra.mxu0 0
    %2623 = vmatprep.mubr.bf16.mxu0 0
    %2624 = vmatmul.mubr.bf16.gmra.mrb[0].mxu0 %v2589
    %v2625 = vpop.f32.mrb[0].mxu0
    %v2626 = vadd.f32 0.0, %v2625
    %v2627 = vpop.f32.mrb[0].mxu0
    %v2628 = vpop.f32.mrb[0].mxu0
    %v2629 = vadd.f32 0.0, %v2628
    %v2630 = vpop.f32.mrb[0].mxu0
    %2631 = vdwg.mxu0
    %s2632 = scalar_lea.vmem %s17, 40
    %v2633 = vld [vmem:[%s2632] sm:$0xf]
    %v2634 = vld [vmem:[%s2632 + $0x4] sm:$0xf]
    %v2637 = vunpack.c.l.b16 %v2633
    %v2638 = vunpack.c.l.b16 %v2634
    %v2639 = vpack.c.b16 %v2638, %v2637
    %v2641 = vsel %vm2145, %v2639, 0
    %2643 = vmatprep.subr.bf16.mxu0 0
    %2644 = vmatpush1.bf16.msra.mxu0 %v2369
    %2645 = vmatprep.subr.bf16.mxu0 0
    %2646 = vmatpush1.bf16.msra.mxu0 %v2370
    %2647 = vmatprep.subr.bf16.mxu0 0
    %2648 = vmatpush1.bf16.msra.mxu0 %v2371
    %2649 = vmatprep.subr.bf16.mxu0 0
    %2650 = vmatpush1.bf16.msra.mxu0 %v2372
    %2651 = vmatprep.subr.bf16.mxu0 0
    %2652 = vmatpush1.bf16.msra.mxu0 0
    %2653 = vmatprep.subr.bf16.mxu0 0
    %2654 = vmatpush1.bf16.msra.mxu0 0
    %2655 = vmatprep.subr.bf16.mxu0 0
    %2656 = vmatpush1.bf16.msra.mxu0 0
    %2657 = vmatprep.subr.bf16.mxu0 0
    %2658 = vmatpush1.bf16.msra.mxu0 0
    %2659 = vmatprep.subr.bf16.mxu0 0
    %2660 = vmatpush1.bf16.msra.mxu0 0
    %2661 = vmatprep.subr.bf16.mxu0 0
    %2662 = vmatpush1.bf16.msra.mxu0 0
    %2663 = vmatprep.subr.bf16.mxu0 0
    %2664 = vmatpush1.bf16.msra.mxu0 0
    %2665 = vmatprep.subr.bf16.mxu0 0
    %2666 = vmatpush1.bf16.msra.mxu0 0
    %2667 = vmatprep.subr.bf16.mxu0 0
    %2668 = vmatpush1.bf16.msra.mxu0 0
    %2669 = vmatprep.subr.bf16.mxu0 0
    %2670 = vmatpush1.bf16.msra.mxu0 0
    %2671 = vmatprep.subr.bf16.mxu0 0
    %2672 = vmatpush1.bf16.msra.mxu0 0
    %2673 = vmatprep.subr.bf16.mxu0 0
    %2674 = vmatpush1.bf16.msra.mxu0 0
    %2675 = vmatprep.mubr.bf16.mxu0 0
    %2676 = vmatmul.mubr.bf16.gmra.mrb[0].mxu0 %v2641
    %v2677 = vpop.f32.mrb[0].mxu0
    %v2678 = vadd.f32 0.0, %v2677
    %v2679 = vpop.f32.mrb[0].mxu0
    %v2680 = vpop.f32.mrb[0].mxu0
    %v2681 = vadd.f32 0.0, %v2680
    %v2682 = vpop.f32.mrb[0].mxu0
    %2683 = vdwg.mxu0
    %s2684 = scalar_lea.vmem %s17, 48
    %v2685 = vld [vmem:[%s2684] sm:$0xf]
    %v2686 = vld [vmem:[%s2684 + $0x4] sm:$0xf]
    %v2689 = vunpack.c.l.b16 %v2685
    %v2690 = vunpack.c.l.b16 %v2686
    %v2691 = vpack.c.b16 %v2690, %v2689
    %v2693 = vsel %vm2145, %v2691, 0
    %2695 = vmatprep.subr.bf16.mxu0 0
    %2696 = vmatpush1.bf16.msra.mxu0 %v2369
    %2697 = vmatprep.subr.bf16.mxu0 0
    %2698 = vmatpush1.bf16.msra.mxu0 %v2370
    %2699 = vmatprep.subr.bf16.mxu0 0
    %2700 = vmatpush1.bf16.msra.mxu0 %v2371
    %2701 = vmatprep.subr.bf16.mxu0 0
    %2702 = vmatpush1.bf16.msra.mxu0 %v2372
    %2703 = vmatprep.subr.bf16.mxu0 0
    %2704 = vmatpush1.bf16.msra.mxu0 0
    %2705 = vmatprep.subr.bf16.mxu0 0
    %2706 = vmatpush1.bf16.msra.mxu0 0
    %2707 = vmatprep.subr.bf16.mxu0 0
    %2708 = vmatpush1.bf16.msra.mxu0 0
    %2709 = vmatprep.subr.bf16.mxu0 0
    %2710 = vmatpush1.bf16.msra.mxu0 0
    %2711 = vmatprep.subr.bf16.mxu0 0
    %2712 = vmatpush1.bf16.msra.mxu0 0
    %2713 = vmatprep.subr.bf16.mxu0 0
    %2714 = vmatpush1.bf16.msra.mxu0 0
    %2715 = vmatprep.subr.bf16.mxu0 0
    %2716 = vmatpush1.bf16.msra.mxu0 0
    %2717 = vmatprep.subr.bf16.mxu0 0
    %2718 = vmatpush1.bf16.msra.mxu0 0
    %2719 = vmatprep.subr.bf16.mxu0 0
    %2720 = vmatpush1.bf16.msra.mxu0 0
    %2721 = vmatprep.subr.bf16.mxu0 0
    %2722 = vmatpush1.bf16.msra.mxu0 0
    %2723 = vmatprep.subr.bf16.mxu0 0
    %2724 = vmatpush1.bf16.msra.mxu0 0
    %2725 = vmatprep.subr.bf16.mxu0 0
    %2726 = vmatpush1.bf16.msra.mxu0 0
    %2727 = vmatprep.mubr.bf16.mxu0 0
    %2728 = vmatmul.mubr.bf16.gmra.mrb[0].mxu0 %v2693
    %v2729 = vpop.f32.mrb[0].mxu0
    %v2730 = vadd.f32 0.0, %v2729
    %v2731 = vpop.f32.mrb[0].mxu0
    %v2732 = vpop.f32.mrb[0].mxu0
    %v2733 = vadd.f32 0.0, %v2732
    %v2734 = vpop.f32.mrb[0].mxu0
    %2735 = vdwg.mxu0
    %s2736 = scalar_lea.vmem %s17, 56
    %v2737 = vld [vmem:[%s2736] sm:$0xf]
    %v2738 = vld [vmem:[%s2736 + $0x4] sm:$0xf]
    %v2741 = vunpack.c.l.b16 %v2737
    %v2742 = vunpack.c.l.b16 %v2738
    %v2743 = vpack.c.b16 %v2742, %v2741
    %v2745 = vsel %vm2145, %v2743, 0
    %2747 = vmatprep.subr.bf16.mxu0 0
    %2748 = vmatpush1.bf16.msra.mxu0 %v2369
    %2749 = vmatprep.subr.bf16.mxu0 0
    %2750 = vmatpush1.bf16.msra.mxu0 %v2370
    %2751 = vmatprep.subr.bf16.mxu0 0
    %2752 = vmatpush1.bf16.msra.mxu0 %v2371
    %2753 = vmatprep.subr.bf16.mxu0 0
    %2754 = vmatpush1.bf16.msra.mxu0 %v2372
    %2755 = vmatprep.subr.bf16.mxu0 0
    %2756 = vmatpush1.bf16.msra.mxu0 0
    %2757 = vmatprep.subr.bf16.mxu0 0
    %2758 = vmatpush1.bf16.msra.mxu0 0
    %2759 = vmatprep.subr.bf16.mxu0 0
    %2760 = vmatpush1.bf16.msra.mxu0 0
    %2761 = vmatprep.subr.bf16.mxu0 0
    %2762 = vmatpush1.bf16.msra.mxu0 0
    %2763 = vmatprep.subr.bf16.mxu0 0
    %2764 = vmatpush1.bf16.msra.mxu0 0
    %2765 = vmatprep.subr.bf16.mxu0 0
    %2766 = vmatpush1.bf16.msra.mxu0 0
    %2767 = vmatprep.subr.bf16.mxu0 0
    %2768 = vmatpush1.bf16.msra.mxu0 0
    %2769 = vmatprep.subr.bf16.mxu0 0
    %2770 = vmatpush1.bf16.msra.mxu0 0
    %2771 = vmatprep.subr.bf16.mxu0 0
    %2772 = vmatpush1.bf16.msra.mxu0 0
    %2773 = vmatprep.subr.bf16.mxu0 0
    %2774 = vmatpush1.bf16.msra.mxu0 0
    %2775 = vmatprep.subr.bf16.mxu0 0
    %2776 = vmatpush1.bf16.msra.mxu0 0
    %2777 = vmatprep.subr.bf16.mxu0 0
    %2778 = vmatpush1.bf16.msra.mxu0 0
    %2779 = vmatprep.mubr.bf16.mxu0 0
    %2780 = vmatmul.mubr.bf16.gmra.mrb[0].mxu0 %v2745
    %v2781 = vpop.f32.mrb[0].mxu0
    %v2782 = vadd.f32 0.0, %v2781
    %v2783 = vpop.f32.mrb[0].mxu0
    %v2784 = vpop.f32.mrb[0].mxu0
    %v2785 = vadd.f32 0.0, %v2784
    %v2786 = vpop.f32.mrb[0].mxu0
    %2787 = vdwg.mxu0
    %s2788 = scalar_lea.vmem %s17, 64
    %v2789 = vld [vmem:[%s2788] sm:$0xf]
    %v2790 = vld [vmem:[%s2788 + $0x4] sm:$0xf]
    %v2793 = vunpack.c.l.b16 %v2789
    %v2794 = vunpack.c.l.b16 %v2790
    %v2795 = vpack.c.b16 %v2794, %v2793
    %v2797 = vsel %vm2145, %v2795, 0
    %2799 = vmatprep.subr.bf16.mxu0 0
    %2800 = vmatpush1.bf16.msra.mxu0 %v2369
    %2801 = vmatprep.subr.bf16.mxu0 0
    %2802 = vmatpush1.bf16.msra.mxu0 %v2370
    %2803 = vmatprep.subr.bf16.mxu0 0
    %2804 = vmatpush1.bf16.msra.mxu0 %v2371
    %2805 = vmatprep.subr.bf16.mxu0 0
    %2806 = vmatpush1.bf16.msra.mxu0 %v2372
    %2807 = vmatprep.subr.bf16.mxu0 0
    %2808 = vmatpush1.bf16.msra.mxu0 0
    %2809 = vmatprep.subr.bf16.mxu0 0
    %2810 = vmatpush1.bf16.msra.mxu0 0
    %2811 = vmatprep.subr.bf16.mxu0 0
    %2812 = vmatpush1.bf16.msra.mxu0 0
    %2813 = vmatprep.subr.bf16.mxu0 0
    %2814 = vmatpush1.bf16.msra.mxu0 0
    %2815 = vmatprep.subr.bf16.mxu0 0
    %2816 = vmatpush1.bf16.msra.mxu0 0
    %2817 = vmatprep.subr.bf16.mxu0 0
    %2818 = vmatpush1.bf16.msra.mxu0 0
    %2819 = vmatprep.subr.bf16.mxu0 0
    %2820 = vmatpush1.bf16.msra.mxu0 0
    %2821 = vmatprep.subr.bf16.mxu0 0
    %2822 = vmatpush1.bf16.msra.mxu0 0
    %2823 = vmatprep.subr.bf16.mxu0 0
    %2824 = vmatpush1.bf16.msra.mxu0 0
    %2825 = vmatprep.subr.bf16.mxu0 0
    %2826 = vmatpush1.bf16.msra.mxu0 0
    %2827 = vmatprep.subr.bf16.mxu0 0
    %2828 = vmatpush1.bf16.msra.mxu0 0
    %2829 = vmatprep.subr.bf16.mxu0 0
    %2830 = vmatpush1.bf16.msra.mxu0 0
    %2831 = vmatprep.mubr.bf16.mxu0 0
    %2832 = vmatmul.mubr.bf16.gmra.mrb[0].mxu0 %v2797
    %v2833 = vpop.f32.mrb[0].mxu0
    %v2834 = vadd.f32 0.0, %v2833
    %v2835 = vpop.f32.mrb[0].mxu0
    %v2836 = vpop.f32.mrb[0].mxu0
    %v2837 = vadd.f32 0.0, %v2836
    %v2838 = vpop.f32.mrb[0].mxu0
    %2839 = vdwg.mxu0
    %2842 = vrot.lane.b32.xlu0 %v2470, 32
    %v2843 = vpop.permute.xlu0 %2842
    %2844 = vrot.lane.b32.xlu0 %v2473, 32
    %v2845 = vpop.permute.xlu0 %2844
    %2850 = vrot.lane.b32.xlu0 %v2522, 64
    %v2851 = vpop.permute.xlu0 %2850
    %2852 = vrot.lane.b32.xlu0 %v2525, 64
    %v2853 = vpop.permute.xlu0 %2852
    %2858 = vrot.lane.b32.xlu0 %v2574, 96
    %v2859 = vpop.permute.xlu0 %2858
    %2860 = vrot.lane.b32.xlu0 %v2577, 96
    %v2861 = vpop.permute.xlu0 %2860
    %2866 = vrot.lane.b32.xlu0 %v2678, 32
    %v2867 = vpop.permute.xlu0 %2866
    %2868 = vrot.lane.b32.xlu0 %v2681, 32
    %v2869 = vpop.permute.xlu0 %2868
    %2874 = vrot.lane.b32.xlu0 %v2730, 64
    %v2875 = vpop.permute.xlu0 %2874
    %2876 = vrot.lane.b32.xlu0 %v2733, 64
    %v2877 = vpop.permute.xlu0 %2876
    %2882 = vrot.lane.b32.xlu0 %v2782, 96
    %v2883 = vpop.permute.xlu0 %2882
    %2884 = vrot.lane.b32.xlu0 %v2785, 96
    %v2885 = vpop.permute.xlu0 %2884
    %v2888 = vsel %vm2127, %v2418, %v2843
    %v2889 = vsel %vm2127, %v2421, %v2845
    %v2890 = vsel %vm2145, %v2888, %v2851
    %v2891 = vsel %vm2145, %v2889, %v2853
    %v2892 = vsel %vm2163, %v2890, %v2859
    %v2893 = vsel %vm2163, %v2891, %v2861
    %v2894 = vsel %vm2127, %v2626, %v2867
    %v2895 = vsel %vm2127, %v2629, %v2869
    %v2896 = vsel %vm2145, %v2894, %v2875
    %v2897 = vsel %vm2145, %v2895, %v2877
    %v2898 = vsel %vm2163, %v2896, %v2883
    %v2899 = vsel %vm2163, %v2897, %v2885
    %v2900 = vpack.c.bf16 %v2893, %v2892
    %v2901 = vpack.c.bf16 %v2899, %v2898
    %v2902 = vpack.c.bf16 %v2837, %v2834
    %v2903 = vld [vmem:[%s19] sm:$0xf]
    %v2904 = vld [vmem:[%s19 + $0x4] sm:$0xf]
    %v2905 = vld [vmem:[%s19 + $0x8] sm:$0xf]
    %v2906 = vld [vmem:[%s19 + $0xc] sm:$0xf]
    %v2907 = vld [vmem:[%s19 + $0x10] sm:$0xf]
    %v2908 = vld [vmem:[%s19 + $0x14] sm:$0xf]
    %v2909 = vld [vmem:[%s19 + $0x18] sm:$0xf]
    %v2910 = vld [vmem:[%s19 + $0x1c] sm:$0xf]
    %v2911 = vld [vmem:[%s19 + $0x20] sm:$0xf]
    %v2912 = vld [vmem:[%s19 + $0x24] sm:$0xf]
    %v2913 = vld [vmem:[%s19 + $0x28] sm:$0xf]
    %v2914 = vld [vmem:[%s19 + $0x2c] sm:$0xf]
    %v2915 = vld [vmem:[%s19 + $0x30] sm:$0xf]
    %v2916 = vld [vmem:[%s19 + $0x34] sm:$0xf]
    %v2917 = vld [vmem:[%s19 + $0x38] sm:$0xf]
    %v2918 = vld [vmem:[%s19 + $0x3c] sm:$0xf]
    %v2919 = vld [vmem:[%s19 + $0x40] sm:$0xf]
    %v2920 = vld [vmem:[%s19 + $0x44] sm:$0xf]
    %v2921 = vld [vmem:[%s19 + $0x48] sm:$0xf]
    %v2922 = vld [vmem:[%s19 + $0x4c] sm:$0xf]
    %v2923 = vld [vmem:[%s19 + $0x50] sm:$0xf]
    %v2924 = vld [vmem:[%s19 + $0x54] sm:$0xf]
    %v2925 = vld [vmem:[%s19 + $0x58] sm:$0xf]
    %v2926 = vld [vmem:[%s19 + $0x5c] sm:$0xf]
    %v2927 = vld [vmem:[%s19 + $0x60] sm:$0xf]
    %v2928 = vld [vmem:[%s19 + $0x64] sm:$0xf]
    %v2929 = vld [vmem:[%s19 + $0x68] sm:$0xf]
    %v2930 = vld [vmem:[%s19 + $0x6c] sm:$0xf]
    %v2931 = vld [vmem:[%s19 + $0x70] sm:$0xf]
    %v2932 = vld [vmem:[%s19 + $0x74] sm:$0xf]
    %v2933 = vld [vmem:[%s19 + $0x78] sm:$0xf]
    %v2934 = vld [vmem:[%s19 + $0x7c] sm:$0xf]
    %v2935 = vld [vmem:[%s19 + $0x80] sm:$0xf]
    %v2936 = vld [vmem:[%s19 + $0x84] sm:$0xf]
    %v2937 = vld [vmem:[%s19 + $0x88] sm:$0xf]
    %v2938 = vld [vmem:[%s19 + $0x8c] sm:$0xf]
    %v2939 = vld [vmem:[%s21] sm:$0x1]
    %v2941 = vlaneseq
    %v2942 = vshrl.u32 %v2941, 7
    %v2943 = vsub.s32 0, %v2942
    %v2944 = vrot.slane %v2939, %v2943
    %v2982 = vunpack.c.l.b16 %v2903
    %v2983 = vunpack.c.l.b16 %v2904
    %v2984 = vunpack.c.l.b16 %v2905
    %v2985 = vunpack.c.l.b16 %v2906
    %v2986 = vunpack.c.l.b16 %v2907
    %v2987 = vunpack.c.l.b16 %v2908
    %v2988 = vunpack.c.l.b16 %v2909
    %v2989 = vunpack.c.l.b16 %v2910
    %v2990 = vunpack.c.l.b16 %v2911
    %v2991 = vunpack.c.l.b16 %v2912
    %v2992 = vunpack.c.l.b16 %v2913
    %v2993 = vunpack.c.l.b16 %v2914
    %v2994 = vunpack.c.l.b16 %v2915
    %v2995 = vunpack.c.l.b16 %v2916
    %v2996 = vunpack.c.l.b16 %v2917
    %v2997 = vunpack.c.l.b16 %v2918
    %v2998 = vunpack.c.l.b16 %v2919
    %v2999 = vunpack.c.l.b16 %v2920
    %v3000 = vunpack.c.l.b16 %v2921
    %v3001 = vunpack.c.l.b16 %v2922
    %v3002 = vunpack.c.l.b16 %v2923
    %v3003 = vunpack.c.l.b16 %v2924
    %v3004 = vunpack.c.l.b16 %v2925
    %v3005 = vunpack.c.l.b16 %v2926
    %v3006 = vunpack.c.l.b16 %v2927
    %v3007 = vunpack.c.l.b16 %v2928
    %v3008 = vunpack.c.l.b16 %v2929
    %v3009 = vunpack.c.l.b16 %v2930
    %v3010 = vunpack.c.l.b16 %v2931
    %v3011 = vunpack.c.l.b16 %v2932
    %v3012 = vunpack.c.l.b16 %v2933
    %v3013 = vunpack.c.l.b16 %v2934
    %v3014 = vunpack.c.l.b16 %v2935
    %v3015 = vunpack.c.l.b16 %v2936
    %v3016 = vunpack.c.l.b16 %v2937
    %v3017 = vunpack.c.l.b16 %v2938
    %v3018 = vpack.c.b16 %v2983, %v2982
    %v3019 = vpack.c.b16 %v2985, %v2984
    %v3020 = vpack.c.b16 %v2987, %v2986
    %v3021 = vpack.c.b16 %v2989, %v2988
    %v3022 = vpack.c.b16 %v2991, %v2990
    %v3023 = vpack.c.b16 %v2993, %v2992
    %v3024 = vpack.c.b16 %v2995, %v2994
    %v3025 = vpack.c.b16 %v2997, %v2996
    %v3026 = vpack.c.b16 %v2999, %v2998
    %v3027 = vpack.c.b16 %v3001, %v3000
    %v3028 = vpack.c.b16 %v3003, %v3002
    %v3029 = vpack.c.b16 %v3005, %v3004
    %v3030 = vpack.c.b16 %v3007, %v3006
    %v3031 = vpack.c.b16 %v3009, %v3008
    %v3032 = vpack.c.b16 %v3011, %v3010
    %v3033 = vpack.c.b16 %v3013, %v3012
    %v3034 = vpack.c.b16 %v3015, %v3014
    %v3035 = vpack.c.b16 %v3017, %v3016
    %v3055 = vsel %vm2127, %v2902, 0
    %3057 = vmatprep.subr.bf16.mxu0 0
    %3058 = vmatpush1.bf16.msra.mxu0 %v3018
    %3059 = vmatprep.subr.bf16.mxu0 0
    %3060 = vmatpush1.bf16.msra.mxu0 %v3019
    %3061 = vmatprep.subr.bf16.mxu0 0
    %3062 = vmatpush1.bf16.msra.mxu0 %v3020
    %3063 = vmatprep.subr.bf16.mxu0 0
    %3064 = vmatpush1.bf16.msra.mxu0 %v3021
    %3065 = vmatprep.subr.bf16.mxu0 0
    %3066 = vmatpush1.bf16.msra.mxu0 %v3022
    %3067 = vmatprep.subr.bf16.mxu0 0
    %3068 = vmatpush1.bf16.msra.mxu0 %v3023
    %3069 = vmatprep.subr.bf16.mxu0 0
    %3070 = vmatpush1.bf16.msra.mxu0 %v3024
    %3071 = vmatprep.subr.bf16.mxu0 0
    %3072 = vmatpush1.bf16.msra.mxu0 %v3025
    %3073 = vmatprep.subr.bf16.mxu0 0
    %3074 = vmatpush1.bf16.msra.mxu0 %v3026
    %3075 = vmatprep.subr.bf16.mxu0 0
    %3076 = vmatpush1.bf16.msra.mxu0 %v3027
    %3077 = vmatprep.subr.bf16.mxu0 0
    %3078 = vmatpush1.bf16.msra.mxu0 %v3028
    %3079 = vmatprep.subr.bf16.mxu0 0
    %3080 = vmatpush1.bf16.msra.mxu0 %v3029
    %3081 = vmatprep.subr.bf16.mxu0 0
    %3082 = vmatpush1.bf16.msra.mxu0 %v3030
    %3083 = vmatprep.subr.bf16.mxu0 0
    %3084 = vmatpush1.bf16.msra.mxu0 %v3031
    %3085 = vmatprep.subr.bf16.mxu0 0
    %3086 = vmatpush1.bf16.msra.mxu0 %v3032
    %3087 = vmatprep.subr.bf16.mxu0 0
    %3088 = vmatpush1.bf16.msra.mxu0 %v3033
    %3089 = vmatprep.mubr.bf16.mxu0 %v2901
    %3090 = vmatmul.mubr.bf16.gmra.mrb[0].mxu0 %v2900
    %v3091 = vpop.f32.mrb[0].mxu0
    %v3092 = vadd.f32 %v2944, %v3091
    %v3093 = vpop.f32.mrb[0].mxu0
    %v3094 = vpop.f32.mrb[0].mxu0
    %v3095 = vadd.f32 %v2944, %v3094
    %v3096 = vpop.f32.mrb[0].mxu0
    %3097 = vdwg.mxu0
    %3098 = vmatprep.subr.bf16.mxu0 0
    %3099 = vmatpush1.bf16.msra.mxu0 %v3034
    %3100 = vmatprep.subr.bf16.mxu0 0
    %3101 = vmatpush1.bf16.msra.mxu0 %v3035
    %3102 = vmatprep.subr.bf16.mxu0 0
    %3103 = vmatpush1.bf16.msra.mxu0 0
    %3104 = vmatprep.subr.bf16.mxu0 0
    %3105 = vmatpush1.bf16.msra.mxu0 0
    %3106 = vmatprep.subr.bf16.mxu0 0
    %3107 = vmatpush1.bf16.msra.mxu0 0
    %3108 = vmatprep.subr.bf16.mxu0 0
    %3109 = vmatpush1.bf16.msra.mxu0 0
    %3110 = vmatprep.subr.bf16.mxu0 0
    %3111 = vmatpush1.bf16.msra.mxu0 0
    %3112 = vmatprep.subr.bf16.mxu0 0
    %3113 = vmatpush1.bf16.msra.mxu0 0
    %3114 = vmatprep.subr.bf16.mxu0 0
    %3115 = vmatpush1.bf16.msra.mxu0 0
    %3116 = vmatprep.subr.bf16.mxu0 0
    %3117 = vmatpush1.bf16.msra.mxu0 0
    %3118 = vmatprep.subr.bf16.mxu0 0
    %3119 = vmatpush1.bf16.msra.mxu0 0
    %3120 = vmatprep.subr.bf16.mxu0 0
    %3121 = vmatpush1.bf16.msra.mxu0 0
    %3122 = vmatprep.subr.bf16.mxu0 0
    %3123 = vmatpush1.bf16.msra.mxu0 0
    %3124 = vmatprep.subr.bf16.mxu0 0
    %3125 = vmatpush1.bf16.msra.mxu0 0
    %3126 = vmatprep.subr.bf16.mxu0 0
    %3127 = vmatpush1.bf16.msra.mxu0 0
    %3128 = vmatprep.subr.bf16.mxu0 0
    %3129 = vmatpush1.bf16.msra.mxu0 0
    %3130 = vmatprep.mubr.bf16.mxu0 0
    %3131 = vmatmul.mubr.bf16.gmra.mrb[0].mxu0 %v3055
    %v3132 = vpop.f32.mrb[0].mxu0
    %v3133 = vadd.f32 %v3092, %v3132
    %v3134 = vpop.f32.mrb[0].mxu0
    %v3135 = vpop.f32.mrb[0].mxu0
    %v3136 = vadd.f32 %v3095, %v3135
    %v3137 = vpop.f32.mrb[0].mxu0
    %3138 = vdwg.mxu0
    %vm3139 = vcmp.ge.f32.partialorder %v3133, 0.0
    %vm3140 = vcmp.ge.f32.partialorder %v3136, 0.0
    %v3141 = vmul.f32 %v3133, 0.01
    %v3142 = vmul.f32 %v3136, 0.01
    %v3143 = vsel %vm3139, %v3133, %v3141
    %v3144 = vsel %vm3140, %v3136, %v3142
    %v3145 = vpack.c.bf16 %v3144, %v3143
    %v3146 = vld [vmem:[%s23] sm:$0x3]
    %v3148 = vsel %vm2118, %v3146, 0
    %3150 = vmatprep.subr.bf16.mxu0 0
    %3151 = vmatpush1.bf16.msra.mxu0 %v3145
    %3152 = vmatprep.subr.bf16.mxu0 0
    %3153 = vmatpush1.bf16.msra.mxu0 0
    %3154 = vmatprep.subr.bf16.mxu0 0
    %3155 = vmatpush1.bf16.msra.mxu0 0
    %3156 = vmatprep.subr.bf16.mxu0 0
    %3157 = vmatpush1.bf16.msra.mxu0 0
    %3158 = vmatprep.subr.bf16.mxu0 0
    %3159 = vmatpush1.bf16.msra.mxu0 0
    %3160 = vmatprep.subr.bf16.mxu0 0
    %3161 = vmatpush1.bf16.msra.mxu0 0
    %3162 = vmatprep.subr.bf16.mxu0 0
    %3163 = vmatpush1.bf16.msra.mxu0 0
    %3164 = vmatprep.subr.bf16.mxu0 0
    %3165 = vmatpush1.bf16.msra.mxu0 0
    %3166 = vmatprep.subr.bf16.mxu0 0
    %3167 = vmatpush1.bf16.msra.mxu0 0
    %3168 = vmatprep.subr.bf16.mxu0 0
    %3169 = vmatpush1.bf16.msra.mxu0 0
    %3170 = vmatprep.subr.bf16.mxu0 0
    %3171 = vmatpush1.bf16.msra.mxu0 0
    %3172 = vmatprep.subr.bf16.mxu0 0
    %3173 = vmatpush1.bf16.msra.mxu0 0
    %3174 = vmatprep.subr.bf16.mxu0 0
    %3175 = vmatpush1.bf16.msra.mxu0 0
    %3176 = vmatprep.subr.bf16.mxu0 0
    %3177 = vmatpush1.bf16.msra.mxu0 0
    %3178 = vmatprep.subr.bf16.mxu0 0
    %3179 = vmatpush1.bf16.msra.mxu0 0
    %3180 = vmatprep.subr.bf16.mxu0 0
    %3181 = vmatpush1.bf16.msra.mxu0 0
    %3182 = vmatprep.mubr.bf16.mxu0 0
    %3183 = vmatmul.mubr.bf16.gmra.mrb[0].mxu0 %v3148
    %v3184 = vpop.f32.mrb[0].mxu0
    %v3185 = vadd.f32 0.0, %v3184
    %v3186 = vpop.f32.mrb[0].mxu0
    %v3187 = vpop.f32.mrb[0].mxu0
    %v3188 = vpop.f32.mrb[0].mxu0
    %3189 = vdwg.mxu0
    %s3190 = scalar_lea.vmem %s23, 2
    %v3191 = vld [vmem:[%s3190] sm:$0x3]
    %v3193 = vsel %vm2118, %v3191, 0
    %3195 = vmatprep.subr.bf16.mxu0 0
    %3196 = vmatpush1.bf16.msra.mxu0 %v3145
    %3197 = vmatprep.subr.bf16.mxu0 0
    %3198 = vmatpush1.bf16.msra.mxu0 0
    %3199 = vmatprep.subr.bf16.mxu0 0
    %3200 = vmatpush1.bf16.msra.mxu0 0
    %3201 = vmatprep.subr.bf16.mxu0 0
    %3202 = vmatpush1.bf16.msra.mxu0 0
    %3203 = vmatprep.subr.bf16.mxu0 0
    %3204 = vmatpush1.bf16.msra.mxu0 0
    %3205 = vmatprep.subr.bf16.mxu0 0
    %3206 = vmatpush1.bf16.msra.mxu0 0
    %3207 = vmatprep.subr.bf16.mxu0 0
    %3208 = vmatpush1.bf16.msra.mxu0 0
    %3209 = vmatprep.subr.bf16.mxu0 0
    %3210 = vmatpush1.bf16.msra.mxu0 0
    %3211 = vmatprep.subr.bf16.mxu0 0
    %3212 = vmatpush1.bf16.msra.mxu0 0
    %3213 = vmatprep.subr.bf16.mxu0 0
    %3214 = vmatpush1.bf16.msra.mxu0 0
    %3215 = vmatprep.subr.bf16.mxu0 0
    %3216 = vmatpush1.bf16.msra.mxu0 0
    %3217 = vmatprep.subr.bf16.mxu0 0
    %3218 = vmatpush1.bf16.msra.mxu0 0
    %3219 = vmatprep.subr.bf16.mxu0 0
    %3220 = vmatpush1.bf16.msra.mxu0 0
    %3221 = vmatprep.subr.bf16.mxu0 0
    %3222 = vmatpush1.bf16.msra.mxu0 0
    %3223 = vmatprep.subr.bf16.mxu0 0
    %3224 = vmatpush1.bf16.msra.mxu0 0
    %3225 = vmatprep.subr.bf16.mxu0 0
    %3226 = vmatpush1.bf16.msra.mxu0 0
    %3227 = vmatprep.mubr.bf16.mxu0 0
    %3228 = vmatmul.mubr.bf16.gmra.mrb[0].mxu0 %v3193
    %v3229 = vpop.f32.mrb[0].mxu0
    %v3230 = vadd.f32 0.0, %v3229
    %v3231 = vpop.f32.mrb[0].mxu0
    %v3232 = vpop.f32.mrb[0].mxu0
    %v3233 = vpop.f32.mrb[0].mxu0
    %3234 = vdwg.mxu0
    %s3235 = scalar_lea.vmem %s23, 4
    %v3236 = vld [vmem:[%s3235] sm:$0x3]
    %v3238 = vsel %vm2118, %v3236, 0
    %3240 = vmatprep.subr.bf16.mxu0 0
    %3241 = vmatpush1.bf16.msra.mxu0 %v3145
    %3242 = vmatprep.subr.bf16.mxu0 0
    %3243 = vmatpush1.bf16.msra.mxu0 0
    %3244 = vmatprep.subr.bf16.mxu0 0
    %3245 = vmatpush1.bf16.msra.mxu0 0
    %3246 = vmatprep.subr.bf16.mxu0 0
    %3247 = vmatpush1.bf16.msra.mxu0 0
    %3248 = vmatprep.subr.bf16.mxu0 0
    %3249 = vmatpush1.bf16.msra.mxu0 0
    %3250 = vmatprep.subr.bf16.mxu0 0
    %3251 = vmatpush1.bf16.msra.mxu0 0
    %3252 = vmatprep.subr.bf16.mxu0 0
    %3253 = vmatpush1.bf16.msra.mxu0 0
    %3254 = vmatprep.subr.bf16.mxu0 0
    %3255 = vmatpush1.bf16.msra.mxu0 0
    %3256 = vmatprep.subr.bf16.mxu0 0
    %3257 = vmatpush1.bf16.msra.mxu0 0
    %3258 = vmatprep.subr.bf16.mxu0 0
    %3259 = vmatpush1.bf16.msra.mxu0 0
    %3260 = vmatprep.subr.bf16.mxu0 0
    %3261 = vmatpush1.bf16.msra.mxu0 0
    %3262 = vmatprep.subr.bf16.mxu0 0
    %3263 = vmatpush1.bf16.msra.mxu0 0
    %3264 = vmatprep.subr.bf16.mxu0 0
    %3265 = vmatpush1.bf16.msra.mxu0 0
    %3266 = vmatprep.subr.bf16.mxu0 0
    %3267 = vmatpush1.bf16.msra.mxu0 0
    %3268 = vmatprep.subr.bf16.mxu0 0
    %3269 = vmatpush1.bf16.msra.mxu0 0
    %3270 = vmatprep.subr.bf16.mxu0 0
    %3271 = vmatpush1.bf16.msra.mxu0 0
    %3272 = vmatprep.mubr.bf16.mxu0 0
    %3273 = vmatmul.mubr.bf16.gmra.mrb[0].mxu0 %v3238
    %v3274 = vpop.f32.mrb[0].mxu0
    %v3275 = vadd.f32 0.0, %v3274
    %v3276 = vpop.f32.mrb[0].mxu0
    %v3277 = vpop.f32.mrb[0].mxu0
    %v3278 = vpop.f32.mrb[0].mxu0
    %3279 = vdwg.mxu0
    %s3280 = scalar_lea.vmem %s23, 6
    %v3281 = vld [vmem:[%s3280] sm:$0x3]
    %v3283 = vsel %vm2118, %v3281, 0
    %3285 = vmatprep.subr.bf16.mxu0 0
    %3286 = vmatpush1.bf16.msra.mxu0 %v3145
    %3287 = vmatprep.subr.bf16.mxu0 0
    %3288 = vmatpush1.bf16.msra.mxu0 0
    %3289 = vmatprep.subr.bf16.mxu0 0
    %3290 = vmatpush1.bf16.msra.mxu0 0
    %3291 = vmatprep.subr.bf16.mxu0 0
    %3292 = vmatpush1.bf16.msra.mxu0 0
    %3293 = vmatprep.subr.bf16.mxu0 0
    %3294 = vmatpush1.bf16.msra.mxu0 0
    %3295 = vmatprep.subr.bf16.mxu0 0
    %3296 = vmatpush1.bf16.msra.mxu0 0
    %3297 = vmatprep.subr.bf16.mxu0 0
    %3298 = vmatpush1.bf16.msra.mxu0 0
    %3299 = vmatprep.subr.bf16.mxu0 0
    %3300 = vmatpush1.bf16.msra.mxu0 0
    %3301 = vmatprep.subr.bf16.mxu0 0
    %3302 = vmatpush1.bf16.msra.mxu0 0
    %3303 = vmatprep.subr.bf16.mxu0 0
    %3304 = vmatpush1.bf16.msra.mxu0 0
    %3305 = vmatprep.subr.bf16.mxu0 0
    %3306 = vmatpush1.bf16.msra.mxu0 0
    %3307 = vmatprep.subr.bf16.mxu0 0
    %3308 = vmatpush1.bf16.msra.mxu0 0
    %3309 = vmatprep.subr.bf16.mxu0 0
    %3310 = vmatpush1.bf16.msra.mxu0 0
    %3311 = vmatprep.subr.bf16.mxu0 0
    %3312 = vmatpush1.bf16.msra.mxu0 0
    %3313 = vmatprep.subr.bf16.mxu0 0
    %3314 = vmatpush1.bf16.msra.mxu0 0
    %3315 = vmatprep.subr.bf16.mxu0 0
    %3316 = vmatpush1.bf16.msra.mxu0 0
    %3317 = vmatprep.mubr.bf16.mxu0 0
    %3318 = vmatmul.mubr.bf16.gmra.mrb[0].mxu0 %v3283
    %v3319 = vpop.f32.mrb[0].mxu0
    %v3320 = vadd.f32 0.0, %v3319
    %v3321 = vpop.f32.mrb[0].mxu0
    %v3322 = vpop.f32.mrb[0].mxu0
    %v3323 = vpop.f32.mrb[0].mxu0
    %3324 = vdwg.mxu0
    %s3325 = scalar_lea.vmem %s23, 8
    %v3326 = vld [vmem:[%s3325] sm:$0x3]
    %v3328 = vsel %vm2118, %v3326, 0
    %3330 = vmatprep.subr.bf16.mxu0 0
    %3331 = vmatpush1.bf16.msra.mxu0 %v3145
    %3332 = vmatprep.subr.bf16.mxu0 0
    %3333 = vmatpush1.bf16.msra.mxu0 0
    %3334 = vmatprep.subr.bf16.mxu0 0
    %3335 = vmatpush1.bf16.msra.mxu0 0
    %3336 = vmatprep.subr.bf16.mxu0 0
    %3337 = vmatpush1.bf16.msra.mxu0 0
    %3338 = vmatprep.subr.bf16.mxu0 0
    %3339 = vmatpush1.bf16.msra.mxu0 0
    %3340 = vmatprep.subr.bf16.mxu0 0
    %3341 = vmatpush1.bf16.msra.mxu0 0
    %3342 = vmatprep.subr.bf16.mxu0 0
    %3343 = vmatpush1.bf16.msra.mxu0 0
    %3344 = vmatprep.subr.bf16.mxu0 0
    %3345 = vmatpush1.bf16.msra.mxu0 0
    %3346 = vmatprep.subr.bf16.mxu0 0
    %3347 = vmatpush1.bf16.msra.mxu0 0
    %3348 = vmatprep.subr.bf16.mxu0 0
    %3349 = vmatpush1.bf16.msra.mxu0 0
    %3350 = vmatprep.subr.bf16.mxu0 0
    %3351 = vmatpush1.bf16.msra.mxu0 0
    %3352 = vmatprep.subr.bf16.mxu0 0
    %3353 = vmatpush1.bf16.msra.mxu0 0
    %3354 = vmatprep.subr.bf16.mxu0 0
    %3355 = vmatpush1.bf16.msra.mxu0 0
    %3356 = vmatprep.subr.bf16.mxu0 0
    %3357 = vmatpush1.bf16.msra.mxu0 0
    %3358 = vmatprep.subr.bf16.mxu0 0
    %3359 = vmatpush1.bf16.msra.mxu0 0
    %3360 = vmatprep.subr.bf16.mxu0 0
    %3361 = vmatpush1.bf16.msra.mxu0 0
    %3362 = vmatprep.mubr.bf16.mxu0 0
    %3363 = vmatmul.mubr.bf16.gmra.mrb[0].mxu0 %v3328
    %v3364 = vpop.f32.mrb[0].mxu0
    %v3365 = vadd.f32 0.0, %v3364
    %v3366 = vpop.f32.mrb[0].mxu0
    %v3367 = vpop.f32.mrb[0].mxu0
    %v3368 = vpop.f32.mrb[0].mxu0
    %3369 = vdwg.mxu0
    %s3370 = scalar_lea.vmem %s23, 10
    %v3371 = vld [vmem:[%s3370] sm:$0x3]
    %v3373 = vsel %vm2118, %v3371, 0
    %3375 = vmatprep.subr.bf16.mxu0 0
    %3376 = vmatpush1.bf16.msra.mxu0 %v3145
    %3377 = vmatprep.subr.bf16.mxu0 0
    %3378 = vmatpush1.bf16.msra.mxu0 0
    %3379 = vmatprep.subr.bf16.mxu0 0
    %3380 = vmatpush1.bf16.msra.mxu0 0
    %3381 = vmatprep.subr.bf16.mxu0 0
    %3382 = vmatpush1.bf16.msra.mxu0 0
    %3383 = vmatprep.subr.bf16.mxu0 0
    %3384 = vmatpush1.bf16.msra.mxu0 0
    %3385 = vmatprep.subr.bf16.mxu0 0
    %3386 = vmatpush1.bf16.msra.mxu0 0
    %3387 = vmatprep.subr.bf16.mxu0 0
    %3388 = vmatpush1.bf16.msra.mxu0 0
    %3389 = vmatprep.subr.bf16.mxu0 0
    %3390 = vmatpush1.bf16.msra.mxu0 0
    %3391 = vmatprep.subr.bf16.mxu0 0
    %3392 = vmatpush1.bf16.msra.mxu0 0
    %3393 = vmatprep.subr.bf16.mxu0 0
    %3394 = vmatpush1.bf16.msra.mxu0 0
    %3395 = vmatprep.subr.bf16.mxu0 0
    %3396 = vmatpush1.bf16.msra.mxu0 0
    %3397 = vmatprep.subr.bf16.mxu0 0
    %3398 = vmatpush1.bf16.msra.mxu0 0
    %3399 = vmatprep.subr.bf16.mxu0 0
    %3400 = vmatpush1.bf16.msra.mxu0 0
    %3401 = vmatprep.subr.bf16.mxu0 0
    %3402 = vmatpush1.bf16.msra.mxu0 0
    %3403 = vmatprep.subr.bf16.mxu0 0
    %3404 = vmatpush1.bf16.msra.mxu0 0
    %3405 = vmatprep.subr.bf16.mxu0 0
    %3406 = vmatpush1.bf16.msra.mxu0 0
    %3407 = vmatprep.mubr.bf16.mxu0 0
    %3408 = vmatmul.mubr.bf16.gmra.mrb[0].mxu0 %v3373
    %v3409 = vpop.f32.mrb[0].mxu0
    %v3410 = vadd.f32 0.0, %v3409
    %v3411 = vpop.f32.mrb[0].mxu0
    %v3412 = vpop.f32.mrb[0].mxu0
    %v3413 = vpop.f32.mrb[0].mxu0
    %3414 = vdwg.mxu0
    %s3415 = scalar_lea.vmem %s23, 12
    %v3416 = vld [vmem:[%s3415] sm:$0x3]
    %v3418 = vsel %vm2118, %v3416, 0
    %3420 = vmatprep.subr.bf16.mxu0 0
    %3421 = vmatpush1.bf16.msra.mxu0 %v3145
    %3422 = vmatprep.subr.bf16.mxu0 0
    %3423 = vmatpush1.bf16.msra.mxu0 0
    %3424 = vmatprep.subr.bf16.mxu0 0
    %3425 = vmatpush1.bf16.msra.mxu0 0
    %3426 = vmatprep.subr.bf16.mxu0 0
    %3427 = vmatpush1.bf16.msra.mxu0 0
    %3428 = vmatprep.subr.bf16.mxu0 0
    %3429 = vmatpush1.bf16.msra.mxu0 0
    %3430 = vmatprep.subr.bf16.mxu0 0
    %3431 = vmatpush1.bf16.msra.mxu0 0
    %3432 = vmatprep.subr.bf16.mxu0 0
    %3433 = vmatpush1.bf16.msra.mxu0 0
    %3434 = vmatprep.subr.bf16.mxu0 0
    %3435 = vmatpush1.bf16.msra.mxu0 0
    %3436 = vmatprep.subr.bf16.mxu0 0
    %3437 = vmatpush1.bf16.msra.mxu0 0
    %3438 = vmatprep.subr.bf16.mxu0 0
    %3439 = vmatpush1.bf16.msra.mxu0 0
    %3440 = vmatprep.subr.bf16.mxu0 0
    %3441 = vmatpush1.bf16.msra.mxu0 0
    %3442 = vmatprep.subr.bf16.mxu0 0
    %3443 = vmatpush1.bf16.msra.mxu0 0
    %3444 = vmatprep.subr.bf16.mxu0 0
    %3445 = vmatpush1.bf16.msra.mxu0 0
    %3446 = vmatprep.subr.bf16.mxu0 0
    %3447 = vmatpush1.bf16.msra.mxu0 0
    %3448 = vmatprep.subr.bf16.mxu0 0
    %3449 = vmatpush1.bf16.msra.mxu0 0
    %3450 = vmatprep.subr.bf16.mxu0 0
    %3451 = vmatpush1.bf16.msra.mxu0 0
    %3452 = vmatprep.mubr.bf16.mxu0 0
    %3453 = vmatmul.mubr.bf16.gmra.mrb[0].mxu0 %v3418
    %v3454 = vpop.f32.mrb[0].mxu0
    %v3455 = vadd.f32 0.0, %v3454
    %v3456 = vpop.f32.mrb[0].mxu0
    %v3457 = vpop.f32.mrb[0].mxu0
    %v3458 = vpop.f32.mrb[0].mxu0
    %3459 = vdwg.mxu0
    %s3460 = scalar_lea.vmem %s23, 14
    %v3461 = vld [vmem:[%s3460] sm:$0x3]
    %v3463 = vsel %vm2118, %v3461, 0
    %3465 = vmatprep.subr.bf16.mxu0 0
    %3466 = vmatpush1.bf16.msra.mxu0 %v3145
    %3467 = vmatprep.subr.bf16.mxu0 0
    %3468 = vmatpush1.bf16.msra.mxu0 0
    %3469 = vmatprep.subr.bf16.mxu0 0
    %3470 = vmatpush1.bf16.msra.mxu0 0
    %3471 = vmatprep.subr.bf16.mxu0 0
    %3472 = vmatpush1.bf16.msra.mxu0 0
    %3473 = vmatprep.subr.bf16.mxu0 0
    %3474 = vmatpush1.bf16.msra.mxu0 0
    %3475 = vmatprep.subr.bf16.mxu0 0
    %3476 = vmatpush1.bf16.msra.mxu0 0
    %3477 = vmatprep.subr.bf16.mxu0 0
    %3478 = vmatpush1.bf16.msra.mxu0 0
    %3479 = vmatprep.subr.bf16.mxu0 0
    %3480 = vmatpush1.bf16.msra.mxu0 0
    %3481 = vmatprep.subr.bf16.mxu0 0
    %3482 = vmatpush1.bf16.msra.mxu0 0
    %3483 = vmatprep.subr.bf16.mxu0 0
    %3484 = vmatpush1.bf16.msra.mxu0 0
    %3485 = vmatprep.subr.bf16.mxu0 0
    %3486 = vmatpush1.bf16.msra.mxu0 0
    %3487 = vmatprep.subr.bf16.mxu0 0
    %3488 = vmatpush1.bf16.msra.mxu0 0
    %3489 = vmatprep.subr.bf16.mxu0 0
    %3490 = vmatpush1.bf16.msra.mxu0 0
    %3491 = vmatprep.subr.bf16.mxu0 0
    %3492 = vmatpush1.bf16.msra.mxu0 0
    %3493 = vmatprep.subr.bf16.mxu0 0
    %3494 = vmatpush1.bf16.msra.mxu0 0
    %3495 = vmatprep.subr.bf16.mxu0 0
    %3496 = vmatpush1.bf16.msra.mxu0 0
    %3497 = vmatprep.mubr.bf16.mxu0 0
    %3498 = vmatmul.mubr.bf16.gmra.mrb[0].mxu0 %v3463
    %v3499 = vpop.f32.mrb[0].mxu0
    %v3500 = vadd.f32 0.0, %v3499
    %v3501 = vpop.f32.mrb[0].mxu0
    %v3502 = vpop.f32.mrb[0].mxu0
    %v3503 = vpop.f32.mrb[0].mxu0
    %3504 = vdwg.mxu0
    %s3505 = scalar_lea.vmem %s23, 16
    %v3506 = vld [vmem:[%s3505] sm:$0x3]
    %v3508 = vsel %vm2118, %v3506, 0
    %3510 = vmatprep.subr.bf16.mxu0 0
    %3511 = vmatpush1.bf16.msra.mxu0 %v3145
    %3512 = vmatprep.subr.bf16.mxu0 0
    %3513 = vmatpush1.bf16.msra.mxu0 0
    %3514 = vmatprep.subr.bf16.mxu0 0
    %3515 = vmatpush1.bf16.msra.mxu0 0
    %3516 = vmatprep.subr.bf16.mxu0 0
    %3517 = vmatpush1.bf16.msra.mxu0 0
    %3518 = vmatprep.subr.bf16.mxu0 0
    %3519 = vmatpush1.bf16.msra.mxu0 0
    %3520 = vmatprep.subr.bf16.mxu0 0
    %3521 = vmatpush1.bf16.msra.mxu0 0
    %3522 = vmatprep.subr.bf16.mxu0 0
    %3523 = vmatpush1.bf16.msra.mxu0 0
    %3524 = vmatprep.subr.bf16.mxu0 0
    %3525 = vmatpush1.bf16.msra.mxu0 0
    %3526 = vmatprep.subr.bf16.mxu0 0
    %3527 = vmatpush1.bf16.msra.mxu0 0
    %3528 = vmatprep.subr.bf16.mxu0 0
    %3529 = vmatpush1.bf16.msra.mxu0 0
    %3530 = vmatprep.subr.bf16.mxu0 0
    %3531 = vmatpush1.bf16.msra.mxu0 0
    %3532 = vmatprep.subr.bf16.mxu0 0
    %3533 = vmatpush1.bf16.msra.mxu0 0
    %3534 = vmatprep.subr.bf16.mxu0 0
    %3535 = vmatpush1.bf16.msra.mxu0 0
    %3536 = vmatprep.subr.bf16.mxu0 0
    %3537 = vmatpush1.bf16.msra.mxu0 0
    %3538 = vmatprep.subr.bf16.mxu0 0
    %3539 = vmatpush1.bf16.msra.mxu0 0
    %3540 = vmatprep.subr.bf16.mxu0 0
    %3541 = vmatpush1.bf16.msra.mxu0 0
    %3542 = vmatprep.mubr.bf16.mxu0 0
    %3543 = vmatmul.mubr.bf16.gmra.mrb[0].mxu0 %v3508
    %v3544 = vpop.f32.mrb[0].mxu0
    %v3545 = vadd.f32 0.0, %v3544
    %v3546 = vpop.f32.mrb[0].mxu0
    %v3547 = vpop.f32.mrb[0].mxu0
    %v3548 = vpop.f32.mrb[0].mxu0
    %3549 = vdwg.mxu0
    %3551 = vrot.lane.b32.xlu0 %v3230, 64
    %v3552 = vpop.permute.xlu0 %3551
    %3555 = vrot.lane.b32.xlu0 %v3320, 64
    %v3556 = vpop.permute.xlu0 %3555
    %3559 = vrot.lane.b32.xlu0 %v3410, 64
    %v3560 = vpop.permute.xlu0 %3559
    %3563 = vrot.lane.b32.xlu0 %v3500, 64
    %v3564 = vpop.permute.xlu0 %3563
    %v3566 = vsel %vm2145, %v3185, %v3552
    %v3567 = vsel %vm2145, %v3275, %v3556
    %v3568 = vsel %vm2145, %v3365, %v3560
    %v3569 = vsel %vm2145, %v3455, %v3564
    %v3570 = vpack.c.bf16 %v3566, %v3566
    %v3571 = vpack.c.bf16 %v3567, %v3567
    %v3572 = vpack.c.bf16 %v3568, %v3568
    %v3573 = vpack.c.bf16 %v3569, %v3569
    %v3574 = vpack.c.bf16 %v3545, %v3545
    %v3575 = vld [vmem:[%s25] sm:$0xf]
    %v3576 = vld [vmem:[%s25 + $0x4] sm:$0xf]
    %v3577 = vld [vmem:[%s25 + $0x8] sm:$0xf]
    %v3578 = vld [vmem:[%s25 + $0xc] sm:$0xf]
    %v3579 = vld [vmem:[%s25 + $0x10] sm:$0xf]
    %v3580 = vld [vmem:[%s25 + $0x14] sm:$0xf]
    %v3581 = vld [vmem:[%s25 + $0x18] sm:$0xf]
    %v3582 = vld [vmem:[%s25 + $0x1c] sm:$0xf]
    %v3583 = vld [vmem:[%s25 + $0x20] sm:$0xf]
    %v3584 = vld [vmem:[%s25 + $0x24] sm:$0xf]
    %v3585 = vld [vmem:[%s25 + $0x28] sm:$0xf]
    %v3586 = vld [vmem:[%s25 + $0x2c] sm:$0xf]
    %v3587 = vld [vmem:[%s25 + $0x30] sm:$0xf]
    %v3588 = vld [vmem:[%s25 + $0x34] sm:$0xf]
    %v3589 = vld [vmem:[%s25 + $0x38] sm:$0xf]
    %v3590 = vld [vmem:[%s25 + $0x3c] sm:$0xf]
    %v3591 = vld [vmem:[%s25 + $0x40] sm:$0xf]
    %v3592 = vld [vmem:[%s25 + $0x44] sm:$0xf]
    %v3593 = vld [vmem:[%s25 + $0x48] sm:$0xf]
    %v3594 = vld [vmem:[%s25 + $0x4c] sm:$0xf]
    %v3595 = vld [vmem:[%s25 + $0x50] sm:$0xf]
    %v3596 = vld [vmem:[%s25 + $0x54] sm:$0xf]
    %v3597 = vld [vmem:[%s25 + $0x58] sm:$0xf]
    %v3598 = vld [vmem:[%s25 + $0x5c] sm:$0xf]
    %v3599 = vld [vmem:[%s25 + $0x60] sm:$0xf]
    %v3600 = vld [vmem:[%s25 + $0x64] sm:$0xf]
    %v3601 = vld [vmem:[%s25 + $0x68] sm:$0xf]
    %v3602 = vld [vmem:[%s25 + $0x6c] sm:$0xf]
    %v3603 = vld [vmem:[%s25 + $0x70] sm:$0xf]
    %v3604 = vld [vmem:[%s25 + $0x74] sm:$0xf]
    %v3605 = vld [vmem:[%s25 + $0x78] sm:$0xf]
    %v3606 = vld [vmem:[%s25 + $0x7c] sm:$0xf]
    %v3607 = vld [vmem:[%s25 + $0x80] sm:$0xf]
    %v3608 = vld [vmem:[%s25 + $0x84] sm:$0xf]
    %v3609 = vld [vmem:[%s25 + $0x88] sm:$0xf]
    %v3610 = vld [vmem:[%s25 + $0x8c] sm:$0xf]
    %v3611 = vld [vmem:[%s25 + $0x90] sm:$0xf]
    %v3612 = vld [vmem:[%s25 + $0x94] sm:$0xf]
    %v3613 = vld [vmem:[%s25 + $0x98] sm:$0xf]
    %v3614 = vld [vmem:[%s25 + $0x9c] sm:$0xf]
    %v3615 = vld [vmem:[%s25 + $0xa0] sm:$0xf]
    %v3616 = vld [vmem:[%s25 + $0xa4] sm:$0xf]
    %v3617 = vld [vmem:[%s25 + $0xa8] sm:$0xf]
    %v3618 = vld [vmem:[%s25 + $0xac] sm:$0xf]
    %v3619 = vld [vmem:[%s25 + $0xb0] sm:$0xf]
    %v3620 = vld [vmem:[%s25 + $0xb4] sm:$0xf]
    %v3621 = vld [vmem:[%s25 + $0xb8] sm:$0xf]
    %v3622 = vld [vmem:[%s25 + $0xbc] sm:$0xf]
    %v3623 = vld [vmem:[%s25 + $0xc0] sm:$0xf]
    %v3624 = vld [vmem:[%s25 + $0xc4] sm:$0xf]
    %v3625 = vld [vmem:[%s25 + $0xc8] sm:$0xf]
    %v3626 = vld [vmem:[%s25 + $0xcc] sm:$0xf]
    %v3627 = vld [vmem:[%s25 + $0xd0] sm:$0xf]
    %v3628 = vld [vmem:[%s25 + $0xd4] sm:$0xf]
    %v3629 = vld [vmem:[%s25 + $0xd8] sm:$0xf]
    %v3630 = vld [vmem:[%s25 + $0xdc] sm:$0xf]
    %v3631 = vld [vmem:[%s25 + $0xe0] sm:$0xf]
    %v3632 = vld [vmem:[%s25 + $0xe4] sm:$0xf]
    %v3633 = vld [vmem:[%s25 + $0xe8] sm:$0xf]
    %v3634 = vld [vmem:[%s25 + $0xec] sm:$0xf]
    %v3635 = vld [vmem:[%s25 + $0xf0] sm:$0xf]
    %v3636 = vld [vmem:[%s25 + $0xf4] sm:$0xf]
    %v3637 = vld [vmem:[%s25 + $0xf8] sm:$0xf]
    %v3638 = vld [vmem:[%s25 + $0xfc] sm:$0xf]
    %v3639 = vld [vmem:[%s25 + $0x100] sm:$0xf]
    %v3640 = vld [vmem:[%s25 + $0x104] sm:$0xf]
    %v3641 = vld [vmem:[%s25 + $0x108] sm:$0xf]
    %v3642 = vld [vmem:[%s25 + $0x10c] sm:$0xf]
    %v3643 = vld [vmem:[%s25 + $0x110] sm:$0xf]
    %v3644 = vld [vmem:[%s25 + $0x114] sm:$0xf]
    %v3645 = vld [vmem:[%s25 + $0x118] sm:$0xf]
    %v3646 = vld [vmem:[%s25 + $0x11c] sm:$0xf]
    %v3647 = vld [vmem:[%s27] sm:$0x1]
    %v3649 = vlaneseq
    %v3650 = vshrl.u32 %v3649, 7
    %v3651 = vsub.s32 0, %v3650
    %v3652 = vrot.slane %v3647, %v3651
    %v3726 = vunpack.c.l.b16 %v3575
    %v3727 = vunpack.c.l.b16 %v3576
    %v3728 = vunpack.c.l.b16 %v3577
    %v3729 = vunpack.c.l.b16 %v3578
    %v3730 = vunpack.c.l.b16 %v3579
    %v3731 = vunpack.c.l.b16 %v3580
    %v3732 = vunpack.c.l.b16 %v3581
    %v3733 = vunpack.c.l.b16 %v3582
    %v3734 = vunpack.c.l.b16 %v3583
    %v3735 = vunpack.c.l.b16 %v3584
    %v3736 = vunpack.c.l.b16 %v3585
    %v3737 = vunpack.c.l.b16 %v3586
    %v3738 = vunpack.c.l.b16 %v3587
    %v3739 = vunpack.c.l.b16 %v3588
    %v3740 = vunpack.c.l.b16 %v3589
    %v3741 = vunpack.c.l.b16 %v3590
    %v3742 = vunpack.c.l.b16 %v3591
    %v3743 = vunpack.c.l.b16 %v3592
    %v3744 = vunpack.c.l.b16 %v3593
    %v3745 = vunpack.c.l.b16 %v3594
    %v3746 = vunpack.c.l.b16 %v3595
    %v3747 = vunpack.c.l.b16 %v3596
    %v3748 = vunpack.c.l.b16 %v3597
    %v3749 = vunpack.c.l.b16 %v3598
    %v3750 = vunpack.c.l.b16 %v3599
    %v3751 = vunpack.c.l.b16 %v3600
    %v3752 = vunpack.c.l.b16 %v3601
    %v3753 = vunpack.c.l.b16 %v3602
    %v3754 = vunpack.c.l.b16 %v3603
    %v3755 = vunpack.c.l.b16 %v3604
    %v3756 = vunpack.c.l.b16 %v3605
    %v3757 = vunpack.c.l.b16 %v3606
    %v3758 = vunpack.c.l.b16 %v3607
    %v3759 = vunpack.c.l.b16 %v3608
    %v3760 = vunpack.c.l.b16 %v3609
    %v3761 = vunpack.c.l.b16 %v3610
    %v3762 = vunpack.c.l.b16 %v3611
    %v3763 = vunpack.c.l.b16 %v3612
    %v3764 = vunpack.c.l.b16 %v3613
    %v3765 = vunpack.c.l.b16 %v3614
    %v3766 = vunpack.c.l.b16 %v3615
    %v3767 = vunpack.c.l.b16 %v3616
    %v3768 = vunpack.c.l.b16 %v3617
    %v3769 = vunpack.c.l.b16 %v3618
    %v3770 = vunpack.c.l.b16 %v3619
    %v3771 = vunpack.c.l.b16 %v3620
    %v3772 = vunpack.c.l.b16 %v3621
    %v3773 = vunpack.c.l.b16 %v3622
    %v3774 = vunpack.c.l.b16 %v3623
    %v3775 = vunpack.c.l.b16 %v3624
    %v3776 = vunpack.c.l.b16 %v3625
    %v3777 = vunpack.c.l.b16 %v3626
    %v3778 = vunpack.c.l.b16 %v3627
    %v3779 = vunpack.c.l.b16 %v3628
    %v3780 = vunpack.c.l.b16 %v3629
    %v3781 = vunpack.c.l.b16 %v3630
    %v3782 = vunpack.c.l.b16 %v3631
    %v3783 = vunpack.c.l.b16 %v3632
    %v3784 = vunpack.c.l.b16 %v3633
    %v3785 = vunpack.c.l.b16 %v3634
    %v3786 = vunpack.c.l.b16 %v3635
    %v3787 = vunpack.c.l.b16 %v3636
    %v3788 = vunpack.c.l.b16 %v3637
    %v3789 = vunpack.c.l.b16 %v3638
    %v3790 = vunpack.c.l.b16 %v3639
    %v3791 = vunpack.c.l.b16 %v3640
    %v3792 = vunpack.c.l.b16 %v3641
    %v3793 = vunpack.c.l.b16 %v3642
    %v3794 = vunpack.c.l.b16 %v3643
    %v3795 = vunpack.c.l.b16 %v3644
    %v3796 = vunpack.c.l.b16 %v3645
    %v3797 = vunpack.c.l.b16 %v3646
    %v3798 = vpack.c.b16 %v3727, %v3726
    %v3799 = vpack.c.b16 %v3729, %v3728
    %v3800 = vpack.c.b16 %v3731, %v3730
    %v3801 = vpack.c.b16 %v3733, %v3732
    %v3802 = vpack.c.b16 %v3735, %v3734
    %v3803 = vpack.c.b16 %v3737, %v3736
    %v3804 = vpack.c.b16 %v3739, %v3738
    %v3805 = vpack.c.b16 %v3741, %v3740
    %v3806 = vpack.c.b16 %v3743, %v3742
    %v3807 = vpack.c.b16 %v3745, %v3744
    %v3808 = vpack.c.b16 %v3747, %v3746
    %v3809 = vpack.c.b16 %v3749, %v3748
    %v3810 = vpack.c.b16 %v3751, %v3750
    %v3811 = vpack.c.b16 %v3753, %v3752
    %v3812 = vpack.c.b16 %v3755, %v3754
    %v3813 = vpack.c.b16 %v3757, %v3756
    %v3814 = vpack.c.b16 %v3759, %v3758
    %v3815 = vpack.c.b16 %v3761, %v3760
    %v3816 = vpack.c.b16 %v3763, %v3762
    %v3817 = vpack.c.b16 %v3765, %v3764
    %v3818 = vpack.c.b16 %v3767, %v3766
    %v3819 = vpack.c.b16 %v3769, %v3768
    %v3820 = vpack.c.b16 %v3771, %v3770
    %v3821 = vpack.c.b16 %v3773, %v3772
    %v3822 = vpack.c.b16 %v3775, %v3774
    %v3823 = vpack.c.b16 %v3777, %v3776
    %v3824 = vpack.c.b16 %v3779, %v3778
    %v3825 = vpack.c.b16 %v3781, %v3780
    %v3826 = vpack.c.b16 %v3783, %v3782
    %v3827 = vpack.c.b16 %v3785, %v3784
    %v3828 = vpack.c.b16 %v3787, %v3786
    %v3829 = vpack.c.b16 %v3789, %v3788
    %v3830 = vpack.c.b16 %v3791, %v3790
    %v3831 = vpack.c.b16 %v3793, %v3792
    %v3832 = vpack.c.b16 %v3795, %v3794
    %v3833 = vpack.c.b16 %v3797, %v3796
    %v3871 = vsel %vm2145, %v3574, 0
    %3873 = vmatprep.subr.bf16.mxu0 0
    %3874 = vmatpush1.bf16.msra.mxu0 %v3798
    %3875 = vmatprep.subr.bf16.mxu0 0
    %3876 = vmatpush1.bf16.msra.mxu0 %v3799
    %3877 = vmatprep.subr.bf16.mxu0 0
    %3878 = vmatpush1.bf16.msra.mxu0 %v3800
    %3879 = vmatprep.subr.bf16.mxu0 0
    %3880 = vmatpush1.bf16.msra.mxu0 %v3801
    %3881 = vmatprep.subr.bf16.mxu0 0
    %3882 = vmatpush1.bf16.msra.mxu0 %v3802
    %3883 = vmatprep.subr.bf16.mxu0 0
    %3884 = vmatpush1.bf16.msra.mxu0 %v3803
    %3885 = vmatprep.subr.bf16.mxu0 0
    %3886 = vmatpush1.bf16.msra.mxu0 %v3804
    %3887 = vmatprep.subr.bf16.mxu0 0
    %3888 = vmatpush1.bf16.msra.mxu0 %v3805
    %3889 = vmatprep.subr.bf16.mxu0 0
    %3890 = vmatpush1.bf16.msra.mxu0 %v3806
    %3891 = vmatprep.subr.bf16.mxu0 0
    %3892 = vmatpush1.bf16.msra.mxu0 %v3807
    %3893 = vmatprep.subr.bf16.mxu0 0
    %3894 = vmatpush1.bf16.msra.mxu0 %v3808
    %3895 = vmatprep.subr.bf16.mxu0 0
    %3896 = vmatpush1.bf16.msra.mxu0 %v3809
    %3897 = vmatprep.subr.bf16.mxu0 0
    %3898 = vmatpush1.bf16.msra.mxu0 %v3810
    %3899 = vmatprep.subr.bf16.mxu0 0
    %3900 = vmatpush1.bf16.msra.mxu0 %v3811
    %3901 = vmatprep.subr.bf16.mxu0 0
    %3902 = vmatpush1.bf16.msra.mxu0 %v3812
    %3903 = vmatprep.subr.bf16.mxu0 0
    %3904 = vmatpush1.bf16.msra.mxu0 %v3813
    %3905 = vmatprep.mubr.bf16.mxu0 %v3571
    %3906 = vmatmul.mubr.bf16.gmra.mrb[0].mxu0 %v3570
    %v3907 = vpop.f32.mrb[0].mxu0
    %v3908 = vadd.f32 %v3652, %v3907
    %v3909 = vpop.f32.mrb[0].mxu0
    %v3910 = vpop.f32.mrb[0].mxu0
    %v3911 = vpop.f32.mrb[0].mxu0
    %3912 = vdwg.mxu0
    %3913 = vmatprep.subr.bf16.mxu0 0
    %3914 = vmatpush1.bf16.msra.mxu0 %v3814
    %3915 = vmatprep.subr.bf16.mxu0 0
    %3916 = vmatpush1.bf16.msra.mxu0 %v3815
    %3917 = vmatprep.subr.bf16.mxu0 0
    %3918 = vmatpush1.bf16.msra.mxu0 %v3816
    %3919 = vmatprep.subr.bf16.mxu0 0
    %3920 = vmatpush1.bf16.msra.mxu0 %v3817
    %3921 = vmatprep.subr.bf16.mxu0 0
    %3922 = vmatpush1.bf16.msra.mxu0 %v3818
    %3923 = vmatprep.subr.bf16.mxu0 0
    %3924 = vmatpush1.bf16.msra.mxu0 %v3819
    %3925 = vmatprep.subr.bf16.mxu0 0
    %3926 = vmatpush1.bf16.msra.mxu0 %v3820
    %3927 = vmatprep.subr.bf16.mxu0 0
    %3928 = vmatpush1.bf16.msra.mxu0 %v3821
    %3929 = vmatprep.subr.bf16.mxu0 0
    %3930 = vmatpush1.bf16.msra.mxu0 %v3822
    %3931 = vmatprep.subr.bf16.mxu0 0
    %3932 = vmatpush1.bf16.msra.mxu0 %v3823
    %3933 = vmatprep.subr.bf16.mxu0 0
    %3934 = vmatpush1.bf16.msra.mxu0 %v3824
    %3935 = vmatprep.subr.bf16.mxu0 0
    %3936 = vmatpush1.bf16.msra.mxu0 %v3825
    %3937 = vmatprep.subr.bf16.mxu0 0
    %3938 = vmatpush1.bf16.msra.mxu0 %v3826
    %3939 = vmatprep.subr.bf16.mxu0 0
    %3940 = vmatpush1.bf16.msra.mxu0 %v3827
    %3941 = vmatprep.subr.bf16.mxu0 0
    %3942 = vmatpush1.bf16.msra.mxu0 %v3828
    %3943 = vmatprep.subr.bf16.mxu0 0
    %3944 = vmatpush1.bf16.msra.mxu0 %v3829
    %3945 = vmatprep.mubr.bf16.mxu0 %v3573
    %3946 = vmatmul.mubr.bf16.gmra.mrb[0].mxu0 %v3572
    %v3947 = vpop.f32.mrb[0].mxu0
    %v3948 = vadd.f32 %v3908, %v3947
    %v3949 = vpop.f32.mrb[0].mxu0
    %v3950 = vpop.f32.mrb[0].mxu0
    %v3951 = vpop.f32.mrb[0].mxu0
    %3952 = vdwg.mxu0
    %3953 = vmatprep.subr.bf16.mxu0 0
    %3954 = vmatpush1.bf16.msra.mxu0 %v3830
    %3955 = vmatprep.subr.bf16.mxu0 0
    %3956 = vmatpush1.bf16.msra.mxu0 %v3831
    %3957 = vmatprep.subr.bf16.mxu0 0
    %3958 = vmatpush1.bf16.msra.mxu0 %v3832
    %3959 = vmatprep.subr.bf16.mxu0 0
    %3960 = vmatpush1.bf16.msra.mxu0 %v3833
    %3961 = vmatprep.subr.bf16.mxu0 0
    %3962 = vmatpush1.bf16.msra.mxu0 0
    %3963 = vmatprep.subr.bf16.mxu0 0
    %3964 = vmatpush1.bf16.msra.mxu0 0
    %3965 = vmatprep.subr.bf16.mxu0 0
    %3966 = vmatpush1.bf16.msra.mxu0 0
    %3967 = vmatprep.subr.bf16.mxu0 0
    %3968 = vmatpush1.bf16.msra.mxu0 0
    %3969 = vmatprep.subr.bf16.mxu0 0
    %3970 = vmatpush1.bf16.msra.mxu0 0
    %3971 = vmatprep.subr.bf16.mxu0 0
    %3972 = vmatpush1.bf16.msra.mxu0 0
    %3973 = vmatprep.subr.bf16.mxu0 0
    %3974 = vmatpush1.bf16.msra.mxu0 0
    %3975 = vmatprep.subr.bf16.mxu0 0
    %3976 = vmatpush1.bf16.msra.mxu0 0
    %3977 = vmatprep.subr.bf16.mxu0 0
    %3978 = vmatpush1.bf16.msra.mxu0 0
    %3979 = vmatprep.subr.bf16.mxu0 0
    %3980 = vmatpush1.bf16.msra.mxu0 0
    %3981 = vmatprep.subr.bf16.mxu0 0
    %3982 = vmatpush1.bf16.msra.mxu0 0
    %3983 = vmatprep.subr.bf16.mxu0 0
    %3984 = vmatpush1.bf16.msra.mxu0 0
    %3985 = vmatprep.mubr.bf16.mxu0 0
    %3986 = vmatmul.mubr.bf16.gmra.mrb[0].mxu0 %v3871
    %v3987 = vpop.f32.mrb[0].mxu0
    %v3988 = vadd.f32 %v3948, %v3987
    %v3989 = vpop.f32.mrb[0].mxu0
    %v3990 = vpop.f32.mrb[0].mxu0
    %v3991 = vpop.f32.mrb[0].mxu0
    %3992 = vdwg.mxu0
    %vm3993 = vcmp.ge.f32.partialorder %v3988, 0.0
    %v3994 = vmul.f32 %v3988, 0.01
    %v3995 = vsel %vm3993, %v3988, %v3994
    %v3997 = vrot.slane %v3995, 1
    %v3999 = vrot.slane %v3995, 2
    %v4001 = vrot.slane %v3995, 3
    %v4003 = vpack.c.bf16 %v822, %v821
    %v4004 = vpack.c.bf16 %v824, %v823
    %v4005 = vpack.c.bf16 %v826, %v825
    %v4006 = vpack.c.bf16 %v828, %v827
    %v4007 = vpack.c.bf16 %v830, %v829
    %v4008 = vpack.c.bf16 %v832, %v831
    %v4009 = vpack.c.bf16 %v834, %v833
    %v4010 = vpack.c.bf16 %v836, %v835
    %v4011 = vpack.c.bf16 %v838, %v837
    %v4012 = vpack.c.bf16 %v840, %v839
    %v4013 = vpack.c.bf16 %v842, %v841
    %v4014 = vpack.c.bf16 %v844, %v843
    %v4015 = vpack.c.bf16 %v846, %v845
    %v4016 = vpack.c.bf16 %v848, %v847
    %v4017 = vpack.c.bf16 %v850, %v849
    %v4018 = vpack.c.bf16 %v852, %v851
    %4019 = vmatprep.subr.bf16.mxu0 0
    %4020 = vmatpush1.bf16.msra.mxu0 %v4003
    %4021 = vmatprep.subr.bf16.mxu0 0
    %4022 = vmatpush1.bf16.msra.mxu0 %v4004
    %4023 = vmatprep.subr.bf16.mxu0 0
    %4024 = vmatpush1.bf16.msra.mxu0 %v4005
    %4025 = vmatprep.subr.bf16.mxu0 0
    %4026 = vmatpush1.bf16.msra.mxu0 %v4006
    %4027 = vmatprep.subr.bf16.mxu0 0
    %4028 = vmatpush1.bf16.msra.mxu0 %v4007
    %4029 = vmatprep.subr.bf16.mxu0 0
    %4030 = vmatpush1.bf16.msra.mxu0 %v4008
    %4031 = vmatprep.subr.bf16.mxu0 0
    %4032 = vmatpush1.bf16.msra.mxu0 %v4009
    %4033 = vmatprep.subr.bf16.mxu0 0
    %4034 = vmatpush1.bf16.msra.mxu0 %v4010
    %4035 = vmatprep.subr.bf16.mxu0 0
    %4036 = vmatpush1.bf16.msra.mxu0 %v4011
    %4037 = vmatprep.subr.bf16.mxu0 0
    %4038 = vmatpush1.bf16.msra.mxu0 %v4012
    %4039 = vmatprep.subr.bf16.mxu0 0
    %4040 = vmatpush1.bf16.msra.mxu0 %v4013
    %4041 = vmatprep.subr.bf16.mxu0 0
    %4042 = vmatpush1.bf16.msra.mxu0 %v4014
    %4043 = vmatprep.subr.bf16.mxu0 0
    %4044 = vmatpush1.bf16.msra.mxu0 %v4015
    %4045 = vmatprep.subr.bf16.mxu0 0
    %4046 = vmatpush1.bf16.msra.mxu0 %v4016
    %4047 = vmatprep.subr.bf16.mxu0 0
    %4048 = vmatpush1.bf16.msra.mxu0 %v4017
    %4049 = vmatprep.subr.bf16.mxu0 0
    %4050 = vmatpush1.bf16.msra.mxu0 %v4018
    %4051 = vmatprep.mubr.bf16.mxu0 %v902
    %4052 = vmatmul.mubr.bf16.gmra.mrb[0].mxu0 %v901
    %v4053 = vpop.f32.mrb[0].mxu0
    %v4054 = vadd.f32 0.0, %v4053
    %v4055 = vpop.f32.mrb[0].mxu0
    %v4056 = vpop.f32.mrb[0].mxu0
    %v4057 = vadd.f32 0.0, %v4056
    %v4058 = vpop.f32.mrb[0].mxu0
    %4059 = vmatprep.mubr.bf16.mxu0 %v904
    %4060 = vmatmul.mubr.bf16.gmra.mrb[0].mxu0 %v903
    %v4061 = vpop.f32.mrb[0].mxu0
    %v4062 = vadd.f32 0.0, %v4061
    %v4063 = vpop.f32.mrb[0].mxu0
    %v4064 = vpop.f32.mrb[0].mxu0
    %v4065 = vadd.f32 0.0, %v4064
    %v4066 = vpop.f32.mrb[0].mxu0
    %4067 = vmatprep.mubr.bf16.mxu0 %v906
    %4068 = vmatmul.mubr.bf16.gmra.mrb[0].mxu0 %v905
    %v4069 = vpop.f32.mrb[0].mxu0
    %v4070 = vadd.f32 0.0, %v4069
    %v4071 = vpop.f32.mrb[0].mxu0
    %v4072 = vpop.f32.mrb[0].mxu0
    %v4073 = vadd.f32 0.0, %v4072
    %v4074 = vpop.f32.mrb[0].mxu0
    %4075 = vmatprep.mubr.bf16.mxu0 %v908
    %4076 = vmatmul.mubr.bf16.gmra.mrb[0].mxu0 %v907
    %v4077 = vpop.f32.mrb[0].mxu0
    %v4078 = vadd.f32 0.0, %v4077
    %v4079 = vpop.f32.mrb[0].mxu0
    %v4080 = vpop.f32.mrb[0].mxu0
    %v4081 = vadd.f32 0.0, %v4080
    %v4082 = vpop.f32.mrb[0].mxu0
    %4083 = vdwg.mxu0
    %4084 = vmatprep.subr.bf16.mxu0 0
    %4085 = vmatpush1.bf16.msra.mxu0 %v4003
    %4086 = vmatprep.subr.bf16.mxu0 0
    %4087 = vmatpush1.bf16.msra.mxu0 %v4004
    %4088 = vmatprep.subr.bf16.mxu0 0
    %4089 = vmatpush1.bf16.msra.mxu0 %v4005
    %4090 = vmatprep.subr.bf16.mxu0 0
    %4091 = vmatpush1.bf16.msra.mxu0 %v4006
    %4092 = vmatprep.subr.bf16.mxu0 0
    %4093 = vmatpush1.bf16.msra.mxu0 %v4007
    %4094 = vmatprep.subr.bf16.mxu0 0
    %4095 = vmatpush1.bf16.msra.mxu0 %v4008
    %4096 = vmatprep.subr.bf16.mxu0 0
    %4097 = vmatpush1.bf16.msra.mxu0 %v4009
    %4098 = vmatprep.subr.bf16.mxu0 0
    %4099 = vmatpush1.bf16.msra.mxu0 %v4010
    %4100 = vmatprep.subr.bf16.mxu0 0
    %4101 = vmatpush1.bf16.msra.mxu0 %v4011
    %4102 = vmatprep.subr.bf16.mxu0 0
    %4103 = vmatpush1.bf16.msra.mxu0 %v4012
    %4104 = vmatprep.subr.bf16.mxu0 0
    %4105 = vmatpush1.bf16.msra.mxu0 %v4013
    %4106 = vmatprep.subr.bf16.mxu0 0
    %4107 = vmatpush1.bf16.msra.mxu0 %v4014
    %4108 = vmatprep.subr.bf16.mxu0 0
    %4109 = vmatpush1.bf16.msra.mxu0 %v4015
    %4110 = vmatprep.subr.bf16.mxu0 0
    %4111 = vmatpush1.bf16.msra.mxu0 %v4016
    %4112 = vmatprep.subr.bf16.mxu0 0
    %4113 = vmatpush1.bf16.msra.mxu0 %v4017
    %4114 = vmatprep.subr.bf16.mxu0 0
    %4115 = vmatpush1.bf16.msra.mxu0 %v4018
    %4116 = vmatprep.mubr.bf16.mxu0 %v1016
    %4117 = vmatmul.mubr.bf16.gmra.mrb[0].mxu0 %v1015
    %v4118 = vpop.f32.mrb[0].mxu0
    %v4119 = vadd.f32 0.0, %v4118
    %v4120 = vpop.f32.mrb[0].mxu0
    %v4121 = vpop.f32.mrb[0].mxu0
    %v4122 = vadd.f32 0.0, %v4121
    %v4123 = vpop.f32.mrb[0].mxu0
    %4124 = vmatprep.mubr.bf16.mxu0 %v1018
    %4125 = vmatmul.mubr.bf16.gmra.mrb[0].mxu0 %v1017
    %v4126 = vpop.f32.mrb[0].mxu0
    %v4127 = vadd.f32 0.0, %v4126
    %v4128 = vpop.f32.mrb[0].mxu0
    %v4129 = vpop.f32.mrb[0].mxu0
    %v4130 = vadd.f32 0.0, %v4129
    %v4131 = vpop.f32.mrb[0].mxu0
    %4132 = vmatprep.mubr.bf16.mxu0 %v1020
    %4133 = vmatmul.mubr.bf16.gmra.mrb[0].mxu0 %v1019
    %v4134 = vpop.f32.mrb[0].mxu0
    %v4135 = vadd.f32 0.0, %v4134
    %v4136 = vpop.f32.mrb[0].mxu0
    %v4137 = vpop.f32.mrb[0].mxu0
    %v4138 = vadd.f32 0.0, %v4137
    %v4139 = vpop.f32.mrb[0].mxu0
    %4140 = vmatprep.mubr.bf16.mxu0 %v1022
    %4141 = vmatmul.mubr.bf16.gmra.mrb[0].mxu0 %v1021
    %v4142 = vpop.f32.mrb[0].mxu0
    %v4143 = vadd.f32 0.0, %v4142
    %v4144 = vpop.f32.mrb[0].mxu0
    %v4145 = vpop.f32.mrb[0].mxu0
    %v4146 = vadd.f32 0.0, %v4145
    %v4147 = vpop.f32.mrb[0].mxu0
    %4148 = vdwg.mxu0
    %4149 = vmatprep.subr.bf16.mxu0 0
    %4150 = vmatpush1.bf16.msra.mxu0 %v4003
    %4151 = vmatprep.subr.bf16.mxu0 0
    %4152 = vmatpush1.bf16.msra.mxu0 %v4004
    %4153 = vmatprep.subr.bf16.mxu0 0
    %4154 = vmatpush1.bf16.msra.mxu0 %v4005
    %4155 = vmatprep.subr.bf16.mxu0 0
    %4156 = vmatpush1.bf16.msra.mxu0 %v4006
    %4157 = vmatprep.subr.bf16.mxu0 0
    %4158 = vmatpush1.bf16.msra.mxu0 %v4007
    %4159 = vmatprep.subr.bf16.mxu0 0
    %4160 = vmatpush1.bf16.msra.mxu0 %v4008
    %4161 = vmatprep.subr.bf16.mxu0 0
    %4162 = vmatpush1.bf16.msra.mxu0 %v4009
    %4163 = vmatprep.subr.bf16.mxu0 0
    %4164 = vmatpush1.bf16.msra.mxu0 %v4010
    %4165 = vmatprep.subr.bf16.mxu0 0
    %4166 = vmatpush1.bf16.msra.mxu0 %v4011
    %4167 = vmatprep.subr.bf16.mxu0 0
    %4168 = vmatpush1.bf16.msra.mxu0 %v4012
    %4169 = vmatprep.subr.bf16.mxu0 0
    %4170 = vmatpush1.bf16.msra.mxu0 %v4013
    %4171 = vmatprep.subr.bf16.mxu0 0
    %4172 = vmatpush1.bf16.msra.mxu0 %v4014
    %4173 = vmatprep.subr.bf16.mxu0 0
    %4174 = vmatpush1.bf16.msra.mxu0 %v4015
    %4175 = vmatprep.subr.bf16.mxu0 0
    %4176 = vmatpush1.bf16.msra.mxu0 %v4016
    %4177 = vmatprep.subr.bf16.mxu0 0
    %4178 = vmatpush1.bf16.msra.mxu0 %v4017
    %4179 = vmatprep.subr.bf16.mxu0 0
    %4180 = vmatpush1.bf16.msra.mxu0 %v4018
    %4181 = vmatprep.mubr.bf16.mxu0 %v1130
    %4182 = vmatmul.mubr.bf16.gmra.mrb[0].mxu0 %v1129
    %v4183 = vpop.f32.mrb[0].mxu0
    %v4184 = vadd.f32 0.0, %v4183
    %v4185 = vpop.f32.mrb[0].mxu0
    %v4186 = vpop.f32.mrb[0].mxu0
    %v4187 = vadd.f32 0.0, %v4186
    %v4188 = vpop.f32.mrb[0].mxu0
    %4189 = vmatprep.mubr.bf16.mxu0 %v1132
    %4190 = vmatmul.mubr.bf16.gmra.mrb[0].mxu0 %v1131
    %v4191 = vpop.f32.mrb[0].mxu0
    %v4192 = vadd.f32 0.0, %v4191
    %v4193 = vpop.f32.mrb[0].mxu0
    %v4194 = vpop.f32.mrb[0].mxu0
    %v4195 = vadd.f32 0.0, %v4194
    %v4196 = vpop.f32.mrb[0].mxu0
    %4197 = vmatprep.mubr.bf16.mxu0 %v1134
    %4198 = vmatmul.mubr.bf16.gmra.mrb[0].mxu0 %v1133
    %v4199 = vpop.f32.mrb[0].mxu0
    %v4200 = vadd.f32 0.0, %v4199
    %v4201 = vpop.f32.mrb[0].mxu0
    %v4202 = vpop.f32.mrb[0].mxu0
    %v4203 = vadd.f32 0.0, %v4202
    %v4204 = vpop.f32.mrb[0].mxu0
    %4205 = vmatprep.mubr.bf16.mxu0 %v1136
    %4206 = vmatmul.mubr.bf16.gmra.mrb[0].mxu0 %v1135
    %v4207 = vpop.f32.mrb[0].mxu0
    %v4208 = vadd.f32 0.0, %v4207
    %v4209 = vpop.f32.mrb[0].mxu0
    %v4210 = vpop.f32.mrb[0].mxu0
    %v4211 = vadd.f32 0.0, %v4210
    %v4212 = vpop.f32.mrb[0].mxu0
    %4213 = vdwg.mxu0
    %4214 = vmatprep.subr.bf16.mxu0 0
    %4215 = vmatpush1.bf16.msra.mxu0 %v4003
    %4216 = vmatprep.subr.bf16.mxu0 0
    %4217 = vmatpush1.bf16.msra.mxu0 %v4004
    %4218 = vmatprep.subr.bf16.mxu0 0
    %4219 = vmatpush1.bf16.msra.mxu0 %v4005
    %4220 = vmatprep.subr.bf16.mxu0 0
    %4221 = vmatpush1.bf16.msra.mxu0 %v4006
    %4222 = vmatprep.subr.bf16.mxu0 0
    %4223 = vmatpush1.bf16.msra.mxu0 %v4007
    %4224 = vmatprep.subr.bf16.mxu0 0
    %4225 = vmatpush1.bf16.msra.mxu0 %v4008
    %4226 = vmatprep.subr.bf16.mxu0 0
    %4227 = vmatpush1.bf16.msra.mxu0 %v4009
    %4228 = vmatprep.subr.bf16.mxu0 0
    %4229 = vmatpush1.bf16.msra.mxu0 %v4010
    %4230 = vmatprep.subr.bf16.mxu0 0
    %4231 = vmatpush1.bf16.msra.mxu0 %v4011
    %4232 = vmatprep.subr.bf16.mxu0 0
    %4233 = vmatpush1.bf16.msra.mxu0 %v4012
    %4234 = vmatprep.subr.bf16.mxu0 0
    %4235 = vmatpush1.bf16.msra.mxu0 %v4013
    %4236 = vmatprep.subr.bf16.mxu0 0
    %4237 = vmatpush1.bf16.msra.mxu0 %v4014
    %4238 = vmatprep.subr.bf16.mxu0 0
    %4239 = vmatpush1.bf16.msra.mxu0 %v4015
    %4240 = vmatprep.subr.bf16.mxu0 0
    %4241 = vmatpush1.bf16.msra.mxu0 %v4016
    %4242 = vmatprep.subr.bf16.mxu0 0
    %4243 = vmatpush1.bf16.msra.mxu0 %v4017
    %4244 = vmatprep.subr.bf16.mxu0 0
    %4245 = vmatpush1.bf16.msra.mxu0 %v4018
    %4246 = vmatprep.mubr.bf16.mxu0 %v1244
    %4247 = vmatmul.mubr.bf16.gmra.mrb[0].mxu0 %v1243
    %v4248 = vpop.f32.mrb[0].mxu0
    %v4249 = vadd.f32 0.0, %v4248
    %v4250 = vpop.f32.mrb[0].mxu0
    %v4251 = vpop.f32.mrb[0].mxu0
    %v4252 = vadd.f32 0.0, %v4251
    %v4253 = vpop.f32.mrb[0].mxu0
    %4254 = vmatprep.mubr.bf16.mxu0 %v1246
    %4255 = vmatmul.mubr.bf16.gmra.mrb[0].mxu0 %v1245
    %v4256 = vpop.f32.mrb[0].mxu0
    %v4257 = vadd.f32 0.0, %v4256
    %v4258 = vpop.f32.mrb[0].mxu0
    %v4259 = vpop.f32.mrb[0].mxu0
    %v4260 = vadd.f32 0.0, %v4259
    %v4261 = vpop.f32.mrb[0].mxu0
    %4262 = vmatprep.mubr.bf16.mxu0 %v1248
    %4263 = vmatmul.mubr.bf16.gmra.mrb[0].mxu0 %v1247
    %v4264 = vpop.f32.mrb[0].mxu0
    %v4265 = vadd.f32 0.0, %v4264
    %v4266 = vpop.f32.mrb[0].mxu0
    %v4267 = vpop.f32.mrb[0].mxu0
    %v4268 = vadd.f32 0.0, %v4267
    %v4269 = vpop.f32.mrb[0].mxu0
    %4270 = vmatprep.mubr.bf16.mxu0 %v1250
    %4271 = vmatmul.mubr.bf16.gmra.mrb[0].mxu0 %v1249
    %v4272 = vpop.f32.mrb[0].mxu0
    %v4273 = vadd.f32 0.0, %v4272
    %v4274 = vpop.f32.mrb[0].mxu0
    %v4275 = vpop.f32.mrb[0].mxu0
    %v4276 = vadd.f32 0.0, %v4275
    %v4277 = vpop.f32.mrb[0].mxu0
    %4278 = vdwg.mxu0
    %4279 = vmatprep.subr.bf16.mxu0 0
    %4280 = vmatpush1.bf16.msra.mxu0 %v4003
    %4281 = vmatprep.subr.bf16.mxu0 0
    %4282 = vmatpush1.bf16.msra.mxu0 %v4004
    %4283 = vmatprep.subr.bf16.mxu0 0
    %4284 = vmatpush1.bf16.msra.mxu0 %v4005
    %4285 = vmatprep.subr.bf16.mxu0 0
    %4286 = vmatpush1.bf16.msra.mxu0 %v4006
    %4287 = vmatprep.subr.bf16.mxu0 0
    %4288 = vmatpush1.bf16.msra.mxu0 %v4007
    %4289 = vmatprep.subr.bf16.mxu0 0
    %4290 = vmatpush1.bf16.msra.mxu0 %v4008
    %4291 = vmatprep.subr.bf16.mxu0 0
    %4292 = vmatpush1.bf16.msra.mxu0 %v4009
    %4293 = vmatprep.subr.bf16.mxu0 0
    %4294 = vmatpush1.bf16.msra.mxu0 %v4010
    %4295 = vmatprep.subr.bf16.mxu0 0
    %4296 = vmatpush1.bf16.msra.mxu0 %v4011
    %4297 = vmatprep.subr.bf16.mxu0 0
    %4298 = vmatpush1.bf16.msra.mxu0 %v4012
    %4299 = vmatprep.subr.bf16.mxu0 0
    %4300 = vmatpush1.bf16.msra.mxu0 %v4013
    %4301 = vmatprep.subr.bf16.mxu0 0
    %4302 = vmatpush1.bf16.msra.mxu0 %v4014
    %4303 = vmatprep.subr.bf16.mxu0 0
    %4304 = vmatpush1.bf16.msra.mxu0 %v4015
    %4305 = vmatprep.subr.bf16.mxu0 0
    %4306 = vmatpush1.bf16.msra.mxu0 %v4016
    %4307 = vmatprep.subr.bf16.mxu0 0
    %4308 = vmatpush1.bf16.msra.mxu0 %v4017
    %4309 = vmatprep.subr.bf16.mxu0 0
    %4310 = vmatpush1.bf16.msra.mxu0 %v4018
    %4311 = vmatprep.mubr.bf16.mxu0 %v1358
    %4312 = vmatmul.mubr.bf16.gmra.mrb[0].mxu0 %v1357
    %v4313 = vpop.f32.mrb[0].mxu0
    %v4314 = vadd.f32 0.0, %v4313
    %v4315 = vpop.f32.mrb[0].mxu0
    %v4316 = vpop.f32.mrb[0].mxu0
    %v4317 = vadd.f32 0.0, %v4316
    %v4318 = vpop.f32.mrb[0].mxu0
    %4319 = vmatprep.mubr.bf16.mxu0 %v1360
    %4320 = vmatmul.mubr.bf16.gmra.mrb[0].mxu0 %v1359
    %v4321 = vpop.f32.mrb[0].mxu0
    %v4322 = vadd.f32 0.0, %v4321
    %v4323 = vpop.f32.mrb[0].mxu0
    %v4324 = vpop.f32.mrb[0].mxu0
    %v4325 = vadd.f32 0.0, %v4324
    %v4326 = vpop.f32.mrb[0].mxu0
    %4327 = vmatprep.mubr.bf16.mxu0 %v1362
    %4328 = vmatmul.mubr.bf16.gmra.mrb[0].mxu0 %v1361
    %v4329 = vpop.f32.mrb[0].mxu0
    %v4330 = vadd.f32 0.0, %v4329
    %v4331 = vpop.f32.mrb[0].mxu0
    %v4332 = vpop.f32.mrb[0].mxu0
    %v4333 = vadd.f32 0.0, %v4332
    %v4334 = vpop.f32.mrb[0].mxu0
    %4335 = vmatprep.mubr.bf16.mxu0 %v1364
    %4336 = vmatmul.mubr.bf16.gmra.mrb[0].mxu0 %v1363
    %v4337 = vpop.f32.mrb[0].mxu0
    %v4338 = vadd.f32 0.0, %v4337
    %v4339 = vpop.f32.mrb[0].mxu0
    %v4340 = vpop.f32.mrb[0].mxu0
    %v4341 = vadd.f32 0.0, %v4340
    %v4342 = vpop.f32.mrb[0].mxu0
    %4343 = vdwg.mxu0
    %4344 = vmatprep.subr.bf16.mxu0 0
    %4345 = vmatpush1.bf16.msra.mxu0 %v4003
    %4346 = vmatprep.subr.bf16.mxu0 0
    %4347 = vmatpush1.bf16.msra.mxu0 %v4004
    %4348 = vmatprep.subr.bf16.mxu0 0
    %4349 = vmatpush1.bf16.msra.mxu0 %v4005
    %4350 = vmatprep.subr.bf16.mxu0 0
    %4351 = vmatpush1.bf16.msra.mxu0 %v4006
    %4352 = vmatprep.subr.bf16.mxu0 0
    %4353 = vmatpush1.bf16.msra.mxu0 %v4007
    %4354 = vmatprep.subr.bf16.mxu0 0
    %4355 = vmatpush1.bf16.msra.mxu0 %v4008
    %4356 = vmatprep.subr.bf16.mxu0 0
    %4357 = vmatpush1.bf16.msra.mxu0 %v4009
    %4358 = vmatprep.subr.bf16.mxu0 0
    %4359 = vmatpush1.bf16.msra.mxu0 %v4010
    %4360 = vmatprep.subr.bf16.mxu0 0
    %4361 = vmatpush1.bf16.msra.mxu0 %v4011
    %4362 = vmatprep.subr.bf16.mxu0 0
    %4363 = vmatpush1.bf16.msra.mxu0 %v4012
    %4364 = vmatprep.subr.bf16.mxu0 0
    %4365 = vmatpush1.bf16.msra.mxu0 %v4013
    %4366 = vmatprep.subr.bf16.mxu0 0
    %4367 = vmatpush1.bf16.msra.mxu0 %v4014
    %4368 = vmatprep.subr.bf16.mxu0 0
    %4369 = vmatpush1.bf16.msra.mxu0 %v4015
    %4370 = vmatprep.subr.bf16.mxu0 0
    %4371 = vmatpush1.bf16.msra.mxu0 %v4016
    %4372 = vmatprep.subr.bf16.mxu0 0
    %4373 = vmatpush1.bf16.msra.mxu0 %v4017
    %4374 = vmatprep.subr.bf16.mxu0 0
    %4375 = vmatpush1.bf16.msra.mxu0 %v4018
    %4376 = vmatprep.mubr.bf16.mxu0 %v1472
    %4377 = vmatmul.mubr.bf16.gmra.mrb[0].mxu0 %v1471
    %v4378 = vpop.f32.mrb[0].mxu0
    %v4379 = vadd.f32 0.0, %v4378
    %v4380 = vpop.f32.mrb[0].mxu0
    %v4381 = vpop.f32.mrb[0].mxu0
    %v4382 = vadd.f32 0.0, %v4381
    %v4383 = vpop.f32.mrb[0].mxu0
    %4384 = vmatprep.mubr.bf16.mxu0 %v1474
    %4385 = vmatmul.mubr.bf16.gmra.mrb[0].mxu0 %v1473
    %v4386 = vpop.f32.mrb[0].mxu0
    %v4387 = vadd.f32 0.0, %v4386
    %v4388 = vpop.f32.mrb[0].mxu0
    %v4389 = vpop.f32.mrb[0].mxu0
    %v4390 = vadd.f32 0.0, %v4389
    %v4391 = vpop.f32.mrb[0].mxu0
    %4392 = vmatprep.mubr.bf16.mxu0 %v1476
    %4393 = vmatmul.mubr.bf16.gmra.mrb[0].mxu0 %v1475
    %v4394 = vpop.f32.mrb[0].mxu0
    %v4395 = vadd.f32 0.0, %v4394
    %v4396 = vpop.f32.mrb[0].mxu0
    %v4397 = vpop.f32.mrb[0].mxu0
    %v4398 = vadd.f32 0.0, %v4397
    %v4399 = vpop.f32.mrb[0].mxu0
    %4400 = vmatprep.mubr.bf16.mxu0 %v1478
    %4401 = vmatmul.mubr.bf16.gmra.mrb[0].mxu0 %v1477
    %v4402 = vpop.f32.mrb[0].mxu0
    %v4403 = vadd.f32 0.0, %v4402
    %v4404 = vpop.f32.mrb[0].mxu0
    %v4405 = vpop.f32.mrb[0].mxu0
    %v4406 = vadd.f32 0.0, %v4405
    %v4407 = vpop.f32.mrb[0].mxu0
    %4408 = vdwg.mxu0
    %4409 = vmatprep.subr.bf16.mxu0 0
    %4410 = vmatpush1.bf16.msra.mxu0 %v4003
    %4411 = vmatprep.subr.bf16.mxu0 0
    %4412 = vmatpush1.bf16.msra.mxu0 %v4004
    %4413 = vmatprep.subr.bf16.mxu0 0
    %4414 = vmatpush1.bf16.msra.mxu0 %v4005
    %4415 = vmatprep.subr.bf16.mxu0 0
    %4416 = vmatpush1.bf16.msra.mxu0 %v4006
    %4417 = vmatprep.subr.bf16.mxu0 0
    %4418 = vmatpush1.bf16.msra.mxu0 %v4007
    %4419 = vmatprep.subr.bf16.mxu0 0
    %4420 = vmatpush1.bf16.msra.mxu0 %v4008
    %4421 = vmatprep.subr.bf16.mxu0 0
    %4422 = vmatpush1.bf16.msra.mxu0 %v4009
    %4423 = vmatprep.subr.bf16.mxu0 0
    %4424 = vmatpush1.bf16.msra.mxu0 %v4010
    %4425 = vmatprep.subr.bf16.mxu0 0
    %4426 = vmatpush1.bf16.msra.mxu0 %v4011
    %4427 = vmatprep.subr.bf16.mxu0 0
    %4428 = vmatpush1.bf16.msra.mxu0 %v4012
    %4429 = vmatprep.subr.bf16.mxu0 0
    %4430 = vmatpush1.bf16.msra.mxu0 %v4013
    %4431 = vmatprep.subr.bf16.mxu0 0
    %4432 = vmatpush1.bf16.msra.mxu0 %v4014
    %4433 = vmatprep.subr.bf16.mxu0 0
    %4434 = vmatpush1.bf16.msra.mxu0 %v4015
    %4435 = vmatprep.subr.bf16.mxu0 0
    %4436 = vmatpush1.bf16.msra.mxu0 %v4016
    %4437 = vmatprep.subr.bf16.mxu0 0
    %4438 = vmatpush1.bf16.msra.mxu0 %v4017
    %4439 = vmatprep.subr.bf16.mxu0 0
    %4440 = vmatpush1.bf16.msra.mxu0 %v4018
    %4441 = vmatprep.mubr.bf16.mxu0 %v1586
    %4442 = vmatmul.mubr.bf16.gmra.mrb[0].mxu0 %v1585
    %v4443 = vpop.f32.mrb[0].mxu0
    %v4444 = vadd.f32 0.0, %v4443
    %v4445 = vpop.f32.mrb[0].mxu0
    %v4446 = vpop.f32.mrb[0].mxu0
    %v4447 = vadd.f32 0.0, %v4446
    %v4448 = vpop.f32.mrb[0].mxu0
    %4449 = vmatprep.mubr.bf16.mxu0 %v1588
    %4450 = vmatmul.mubr.bf16.gmra.mrb[0].mxu0 %v1587
    %v4451 = vpop.f32.mrb[0].mxu0
    %v4452 = vadd.f32 0.0, %v4451
    %v4453 = vpop.f32.mrb[0].mxu0
    %v4454 = vpop.f32.mrb[0].mxu0
    %v4455 = vadd.f32 0.0, %v4454
    %v4456 = vpop.f32.mrb[0].mxu0
    %4457 = vmatprep.mubr.bf16.mxu0 %v1590
    %4458 = vmatmul.mubr.bf16.gmra.mrb[0].mxu0 %v1589
    %v4459 = vpop.f32.mrb[0].mxu0
    %v4460 = vadd.f32 0.0, %v4459
    %v4461 = vpop.f32.mrb[0].mxu0
    %v4462 = vpop.f32.mrb[0].mxu0
    %v4463 = vadd.f32 0.0, %v4462
    %v4464 = vpop.f32.mrb[0].mxu0
    %4465 = vmatprep.mubr.bf16.mxu0 %v1592
    %4466 = vmatmul.mubr.bf16.gmra.mrb[0].mxu0 %v1591
    %v4467 = vpop.f32.mrb[0].mxu0
    %v4468 = vadd.f32 0.0, %v4467
    %v4469 = vpop.f32.mrb[0].mxu0
    %v4470 = vpop.f32.mrb[0].mxu0
    %v4471 = vadd.f32 0.0, %v4470
    %v4472 = vpop.f32.mrb[0].mxu0
    %4473 = vdwg.mxu0
    %4474 = vmatprep.subr.bf16.mxu0 0
    %4475 = vmatpush1.bf16.msra.mxu0 %v4003
    %4476 = vmatprep.subr.bf16.mxu0 0
    %4477 = vmatpush1.bf16.msra.mxu0 %v4004
    %4478 = vmatprep.subr.bf16.mxu0 0
    %4479 = vmatpush1.bf16.msra.mxu0 %v4005
    %4480 = vmatprep.subr.bf16.mxu0 0
    %4481 = vmatpush1.bf16.msra.mxu0 %v4006
    %4482 = vmatprep.subr.bf16.mxu0 0
    %4483 = vmatpush1.bf16.msra.mxu0 %v4007
    %4484 = vmatprep.subr.bf16.mxu0 0
    %4485 = vmatpush1.bf16.msra.mxu0 %v4008
    %4486 = vmatprep.subr.bf16.mxu0 0
    %4487 = vmatpush1.bf16.msra.mxu0 %v4009
    %4488 = vmatprep.subr.bf16.mxu0 0
    %4489 = vmatpush1.bf16.msra.mxu0 %v4010
    %4490 = vmatprep.subr.bf16.mxu0 0
    %4491 = vmatpush1.bf16.msra.mxu0 %v4011
    %4492 = vmatprep.subr.bf16.mxu0 0
    %4493 = vmatpush1.bf16.msra.mxu0 %v4012
    %4494 = vmatprep.subr.bf16.mxu0 0
    %4495 = vmatpush1.bf16.msra.mxu0 %v4013
    %4496 = vmatprep.subr.bf16.mxu0 0
    %4497 = vmatpush1.bf16.msra.mxu0 %v4014
    %4498 = vmatprep.subr.bf16.mxu0 0
    %4499 = vmatpush1.bf16.msra.mxu0 %v4015
    %4500 = vmatprep.subr.bf16.mxu0 0
    %4501 = vmatpush1.bf16.msra.mxu0 %v4016
    %4502 = vmatprep.subr.bf16.mxu0 0
    %4503 = vmatpush1.bf16.msra.mxu0 %v4017
    %4504 = vmatprep.subr.bf16.mxu0 0
    %4505 = vmatpush1.bf16.msra.mxu0 %v4018
    %4506 = vmatprep.mubr.bf16.mxu0 %v1700
    %4507 = vmatmul.mubr.bf16.gmra.mrb[0].mxu0 %v1699
    %v4508 = vpop.f32.mrb[0].mxu0
    %v4509 = vadd.f32 0.0, %v4508
    %v4510 = vpop.f32.mrb[0].mxu0
    %v4511 = vpop.f32.mrb[0].mxu0
    %v4512 = vadd.f32 0.0, %v4511
    %v4513 = vpop.f32.mrb[0].mxu0
    %4514 = vmatprep.mubr.bf16.mxu0 %v1702
    %4515 = vmatmul.mubr.bf16.gmra.mrb[0].mxu0 %v1701
    %v4516 = vpop.f32.mrb[0].mxu0
    %v4517 = vadd.f32 0.0, %v4516
    %v4518 = vpop.f32.mrb[0].mxu0
    %v4519 = vpop.f32.mrb[0].mxu0
    %v4520 = vadd.f32 0.0, %v4519
    %v4521 = vpop.f32.mrb[0].mxu0
    %4522 = vmatprep.mubr.bf16.mxu0 %v1704
    %4523 = vmatmul.mubr.bf16.gmra.mrb[0].mxu0 %v1703
    %v4524 = vpop.f32.mrb[0].mxu0
    %v4525 = vadd.f32 0.0, %v4524
    %v4526 = vpop.f32.mrb[0].mxu0
    %v4527 = vpop.f32.mrb[0].mxu0
    %v4528 = vadd.f32 0.0, %v4527
    %v4529 = vpop.f32.mrb[0].mxu0
    %4530 = vmatprep.mubr.bf16.mxu0 %v1706
    %4531 = vmatmul.mubr.bf16.gmra.mrb[0].mxu0 %v1705
    %v4532 = vpop.f32.mrb[0].mxu0
    %v4533 = vadd.f32 0.0, %v4532
    %v4534 = vpop.f32.mrb[0].mxu0
    %v4535 = vpop.f32.mrb[0].mxu0
    %v4536 = vadd.f32 0.0, %v4535
    %v4537 = vpop.f32.mrb[0].mxu0
    %4538 = vdwg.mxu0
    %4539 = vmatprep.subr.bf16.mxu0 0
    %4540 = vmatpush1.bf16.msra.mxu0 %v4003
    %4541 = vmatprep.subr.bf16.mxu0 0
    %4542 = vmatpush1.bf16.msra.mxu0 %v4004
    %4543 = vmatprep.subr.bf16.mxu0 0
    %4544 = vmatpush1.bf16.msra.mxu0 %v4005
    %4545 = vmatprep.subr.bf16.mxu0 0
    %4546 = vmatpush1.bf16.msra.mxu0 %v4006
    %4547 = vmatprep.subr.bf16.mxu0 0
    %4548 = vmatpush1.bf16.msra.mxu0 %v4007
    %4549 = vmatprep.subr.bf16.mxu0 0
    %4550 = vmatpush1.bf16.msra.mxu0 %v4008
    %4551 = vmatprep.subr.bf16.mxu0 0
    %4552 = vmatpush1.bf16.msra.mxu0 %v4009
    %4553 = vmatprep.subr.bf16.mxu0 0
    %4554 = vmatpush1.bf16.msra.mxu0 %v4010
    %4555 = vmatprep.subr.bf16.mxu0 0
    %4556 = vmatpush1.bf16.msra.mxu0 %v4011
    %4557 = vmatprep.subr.bf16.mxu0 0
    %4558 = vmatpush1.bf16.msra.mxu0 %v4012
    %4559 = vmatprep.subr.bf16.mxu0 0
    %4560 = vmatpush1.bf16.msra.mxu0 %v4013
    %4561 = vmatprep.subr.bf16.mxu0 0
    %4562 = vmatpush1.bf16.msra.mxu0 %v4014
    %4563 = vmatprep.subr.bf16.mxu0 0
    %4564 = vmatpush1.bf16.msra.mxu0 %v4015
    %4565 = vmatprep.subr.bf16.mxu0 0
    %4566 = vmatpush1.bf16.msra.mxu0 %v4016
    %4567 = vmatprep.subr.bf16.mxu0 0
    %4568 = vmatpush1.bf16.msra.mxu0 %v4017
    %4569 = vmatprep.subr.bf16.mxu0 0
    %4570 = vmatpush1.bf16.msra.mxu0 %v4018
    %4571 = vmatprep.mubr.bf16.mxu0 %v1814
    %4572 = vmatmul.mubr.bf16.gmra.mrb[0].mxu0 %v1813
    %v4573 = vpop.f32.mrb[0].mxu0
    %v4574 = vadd.f32 0.0, %v4573
    %v4575 = vpop.f32.mrb[0].mxu0
    %v4576 = vpop.f32.mrb[0].mxu0
    %v4577 = vadd.f32 0.0, %v4576
    %v4578 = vpop.f32.mrb[0].mxu0
    %4579 = vmatprep.mubr.bf16.mxu0 %v1816
    %4580 = vmatmul.mubr.bf16.gmra.mrb[0].mxu0 %v1815
    %v4581 = vpop.f32.mrb[0].mxu0
    %v4582 = vadd.f32 0.0, %v4581
    %v4583 = vpop.f32.mrb[0].mxu0
    %v4584 = vpop.f32.mrb[0].mxu0
    %v4585 = vadd.f32 0.0, %v4584
    %v4586 = vpop.f32.mrb[0].mxu0
    %4587 = vmatprep.mubr.bf16.mxu0 %v1818
    %4588 = vmatmul.mubr.bf16.gmra.mrb[0].mxu0 %v1817
    %v4589 = vpop.f32.mrb[0].mxu0
    %v4590 = vadd.f32 0.0, %v4589
    %v4591 = vpop.f32.mrb[0].mxu0
    %v4592 = vpop.f32.mrb[0].mxu0
    %v4593 = vadd.f32 0.0, %v4592
    %v4594 = vpop.f32.mrb[0].mxu0
    %4595 = vmatprep.mubr.bf16.mxu0 %v1820
    %4596 = vmatmul.mubr.bf16.gmra.mrb[0].mxu0 %v1819
    %v4597 = vpop.f32.mrb[0].mxu0
    %v4598 = vadd.f32 0.0, %v4597
    %v4599 = vpop.f32.mrb[0].mxu0
    %v4600 = vpop.f32.mrb[0].mxu0
    %v4601 = vadd.f32 0.0, %v4600
    %v4602 = vpop.f32.mrb[0].mxu0
    %4603 = vdwg.mxu0
    %4612 = vrot.lane.b32.xlu0 %v4119, 16
    %v4613 = vpop.permute.xlu0 %4612
    %4614 = vrot.lane.b32.xlu0 %v4122, 16
    %v4615 = vpop.permute.xlu0 %4614
    %4616 = vrot.lane.b32.xlu0 %v4127, 16
    %v4617 = vpop.permute.xlu0 %4616
    %4618 = vrot.lane.b32.xlu0 %v4130, 16
    %v4619 = vpop.permute.xlu0 %4618
    %4620 = vrot.lane.b32.xlu0 %v4135, 16
    %v4621 = vpop.permute.xlu0 %4620
    %4622 = vrot.lane.b32.xlu0 %v4138, 16
    %v4623 = vpop.permute.xlu0 %4622
    %4624 = vrot.lane.b32.xlu0 %v4143, 16
    %v4625 = vpop.permute.xlu0 %4624
    %4626 = vrot.lane.b32.xlu0 %v4146, 16
    %v4627 = vpop.permute.xlu0 %4626
    %4644 = vrot.lane.b32.xlu0 %v4184, 32
    %v4645 = vpop.permute.xlu0 %4644
    %4646 = vrot.lane.b32.xlu0 %v4187, 32
    %v4647 = vpop.permute.xlu0 %4646
    %4648 = vrot.lane.b32.xlu0 %v4192, 32
    %v4649 = vpop.permute.xlu0 %4648
    %4650 = vrot.lane.b32.xlu0 %v4195, 32
    %v4651 = vpop.permute.xlu0 %4650
    %4652 = vrot.lane.b32.xlu0 %v4200, 32
    %v4653 = vpop.permute.xlu0 %4652
    %4654 = vrot.lane.b32.xlu0 %v4203, 32
    %v4655 = vpop.permute.xlu0 %4654
    %4656 = vrot.lane.b32.xlu0 %v4208, 32
    %v4657 = vpop.permute.xlu0 %4656
    %4658 = vrot.lane.b32.xlu0 %v4211, 32
    %v4659 = vpop.permute.xlu0 %4658
    %4676 = vrot.lane.b32.xlu0 %v4249, 48
    %v4677 = vpop.permute.xlu0 %4676
    %4678 = vrot.lane.b32.xlu0 %v4252, 48
    %v4679 = vpop.permute.xlu0 %4678
    %4680 = vrot.lane.b32.xlu0 %v4257, 48
    %v4681 = vpop.permute.xlu0 %4680
    %4682 = vrot.lane.b32.xlu0 %v4260, 48
    %v4683 = vpop.permute.xlu0 %4682
    %4684 = vrot.lane.b32.xlu0 %v4265, 48
    %v4685 = vpop.permute.xlu0 %4684
    %4686 = vrot.lane.b32.xlu0 %v4268, 48
    %v4687 = vpop.permute.xlu0 %4686
    %4688 = vrot.lane.b32.xlu0 %v4273, 48
    %v4689 = vpop.permute.xlu0 %4688
    %4690 = vrot.lane.b32.xlu0 %v4276, 48
    %v4691 = vpop.permute.xlu0 %4690
    %4708 = vrot.lane.b32.xlu0 %v4314, 64
    %v4709 = vpop.permute.xlu0 %4708
    %4710 = vrot.lane.b32.xlu0 %v4317, 64
    %v4711 = vpop.permute.xlu0 %4710
    %4712 = vrot.lane.b32.xlu0 %v4322, 64
    %v4713 = vpop.permute.xlu0 %4712
    %4714 = vrot.lane.b32.xlu0 %v4325, 64
    %v4715 = vpop.permute.xlu0 %4714
    %4716 = vrot.lane.b32.xlu0 %v4330, 64
    %v4717 = vpop.permute.xlu0 %4716
    %4718 = vrot.lane.b32.xlu0 %v4333, 64
    %v4719 = vpop.permute.xlu0 %4718
    %4720 = vrot.lane.b32.xlu0 %v4338, 64
    %v4721 = vpop.permute.xlu0 %4720
    %4722 = vrot.lane.b32.xlu0 %v4341, 64
    %v4723 = vpop.permute.xlu0 %4722
    %4740 = vrot.lane.b32.xlu0 %v4379, 80
    %v4741 = vpop.permute.xlu0 %4740
    %4742 = vrot.lane.b32.xlu0 %v4382, 80
    %v4743 = vpop.permute.xlu0 %4742
    %4744 = vrot.lane.b32.xlu0 %v4387, 80
    %v4745 = vpop.permute.xlu0 %4744
    %4746 = vrot.lane.b32.xlu0 %v4390, 80
    %v4747 = vpop.permute.xlu0 %4746
    %4748 = vrot.lane.b32.xlu0 %v4395, 80
    %v4749 = vpop.permute.xlu0 %4748
    %4750 = vrot.lane.b32.xlu0 %v4398, 80
    %v4751 = vpop.permute.xlu0 %4750
    %4752 = vrot.lane.b32.xlu0 %v4403, 80
    %v4753 = vpop.permute.xlu0 %4752
    %4754 = vrot.lane.b32.xlu0 %v4406, 80
    %v4755 = vpop.permute.xlu0 %4754
    %4772 = vrot.lane.b32.xlu0 %v4444, 96
    %v4773 = vpop.permute.xlu0 %4772
    %4774 = vrot.lane.b32.xlu0 %v4447, 96
    %v4775 = vpop.permute.xlu0 %4774
    %4776 = vrot.lane.b32.xlu0 %v4452, 96
    %v4777 = vpop.permute.xlu0 %4776
    %4778 = vrot.lane.b32.xlu0 %v4455, 96
    %v4779 = vpop.permute.xlu0 %4778
    %4780 = vrot.lane.b32.xlu0 %v4460, 96
    %v4781 = vpop.permute.xlu0 %4780
    %4782 = vrot.lane.b32.xlu0 %v4463, 96
    %v4783 = vpop.permute.xlu0 %4782
    %4784 = vrot.lane.b32.xlu0 %v4468, 96
    %v4785 = vpop.permute.xlu0 %4784
    %4786 = vrot.lane.b32.xlu0 %v4471, 96
    %v4787 = vpop.permute.xlu0 %4786
    %4804 = vrot.lane.b32.xlu0 %v4509, 112
    %v4805 = vpop.permute.xlu0 %4804
    %4806 = vrot.lane.b32.xlu0 %v4512, 112
    %v4807 = vpop.permute.xlu0 %4806
    %4808 = vrot.lane.b32.xlu0 %v4517, 112
    %v4809 = vpop.permute.xlu0 %4808
    %4810 = vrot.lane.b32.xlu0 %v4520, 112
    %v4811 = vpop.permute.xlu0 %4810
    %4812 = vrot.lane.b32.xlu0 %v4525, 112
    %v4813 = vpop.permute.xlu0 %4812
    %4814 = vrot.lane.b32.xlu0 %v4528, 112
    %v4815 = vpop.permute.xlu0 %4814
    %4816 = vrot.lane.b32.xlu0 %v4533, 112
    %v4817 = vpop.permute.xlu0 %4816
    %4818 = vrot.lane.b32.xlu0 %v4536, 112
    %v4819 = vpop.permute.xlu0 %4818
    %v4828 = vsel %vm2118, %v4054, %v4613
    %v4829 = vsel %vm2118, %v4057, %v4615
    %v4830 = vsel %vm2118, %v4062, %v4617
    %v4831 = vsel %vm2118, %v4065, %v4619
    %v4832 = vsel %vm2118, %v4070, %v4621
    %v4833 = vsel %vm2118, %v4073, %v4623
    %v4834 = vsel %vm2118, %v4078, %v4625
    %v4835 = vsel %vm2118, %v4081, %v4627
    %v4836 = vsel %vm2127, %v4828, %v4645
    %v4837 = vsel %vm2127, %v4829, %v4647
    %v4838 = vsel %vm2127, %v4830, %v4649
    %v4839 = vsel %vm2127, %v4831, %v4651
    %v4840 = vsel %vm2127, %v4832, %v4653
    %v4841 = vsel %vm2127, %v4833, %v4655
    %v4842 = vsel %vm2127, %v4834, %v4657
    %v4843 = vsel %vm2127, %v4835, %v4659
    %v4844 = vsel %vm2136, %v4836, %v4677
    %v4845 = vsel %vm2136, %v4837, %v4679
    %v4846 = vsel %vm2136, %v4838, %v4681
    %v4847 = vsel %vm2136, %v4839, %v4683
    %v4848 = vsel %vm2136, %v4840, %v4685
    %v4849 = vsel %vm2136, %v4841, %v4687
    %v4850 = vsel %vm2136, %v4842, %v4689
    %v4851 = vsel %vm2136, %v4843, %v4691
    %v4852 = vsel %vm2145, %v4844, %v4709
    %v4853 = vsel %vm2145, %v4845, %v4711
    %v4854 = vsel %vm2145, %v4846, %v4713
    %v4855 = vsel %vm2145, %v4847, %v4715
    %v4856 = vsel %vm2145, %v4848, %v4717
    %v4857 = vsel %vm2145, %v4849, %v4719
    %v4858 = vsel %vm2145, %v4850, %v4721
    %v4859 = vsel %vm2145, %v4851, %v4723
    %v4860 = vsel %vm2154, %v4852, %v4741
    %v4861 = vsel %vm2154, %v4853, %v4743
    %v4862 = vsel %vm2154, %v4854, %v4745
    %v4863 = vsel %vm2154, %v4855, %v4747
    %v4864 = vsel %vm2154, %v4856, %v4749
    %v4865 = vsel %vm2154, %v4857, %v4751
    %v4866 = vsel %vm2154, %v4858, %v4753
    %v4867 = vsel %vm2154, %v4859, %v4755
    %v4868 = vsel %vm2163, %v4860, %v4773
    %v4869 = vsel %vm2163, %v4861, %v4775
    %v4870 = vsel %vm2163, %v4862, %v4777
    %v4871 = vsel %vm2163, %v4863, %v4779
    %v4872 = vsel %vm2163, %v4864, %v4781
    %v4873 = vsel %vm2163, %v4865, %v4783
    %v4874 = vsel %vm2163, %v4866, %v4785
    %v4875 = vsel %vm2163, %v4867, %v4787
    %v4876 = vsel %vm2172, %v4868, %v4805
    %v4877 = vsel %vm2172, %v4869, %v4807
    %v4878 = vsel %vm2172, %v4870, %v4809
    %v4879 = vsel %vm2172, %v4871, %v4811
    %v4880 = vsel %vm2172, %v4872, %v4813
    %v4881 = vsel %vm2172, %v4873, %v4815
    %v4882 = vsel %vm2172, %v4874, %v4817
    %v4883 = vsel %vm2172, %v4875, %v4819
    %v4884 = vpack.c.bf16 %v4877, %v4876
    %v4885 = vpack.c.bf16 %v4577, %v4574
    %v4886 = vpack.c.bf16 %v4879, %v4878
    %v4887 = vpack.c.bf16 %v4585, %v4582
    %v4888 = vpack.c.bf16 %v4881, %v4880
    %v4889 = vpack.c.bf16 %v4593, %v4590
    %v4890 = vpack.c.bf16 %v4883, %v4882
    %v4891 = vpack.c.bf16 %v4601, %v4598
    %v4893 = vsel %vm2118, %v4885, 0
    %v4896 = vsel %vm2118, %v4887, 0
    %v4899 = vsel %vm2118, %v4889, 0
    %v4902 = vsel %vm2118, %v4891, 0
    %4904 = vmatprep.subr.bf16.mxu0 0
    %4905 = vmatpush1.bf16.msra.mxu0 %v2250
    %4906 = vmatprep.subr.bf16.mxu0 0
    %4907 = vmatpush1.bf16.msra.mxu0 %v2251
    %4908 = vmatprep.subr.bf16.mxu0 0
    %4909 = vmatpush1.bf16.msra.mxu0 %v2252
    %4910 = vmatprep.subr.bf16.mxu0 0
    %4911 = vmatpush1.bf16.msra.mxu0 %v2253
    %4912 = vmatprep.subr.bf16.mxu0 0
    %4913 = vmatpush1.bf16.msra.mxu0 %v2254
    %4914 = vmatprep.subr.bf16.mxu0 0
    %4915 = vmatpush1.bf16.msra.mxu0 %v2255
    %4916 = vmatprep.subr.bf16.mxu0 0
    %4917 = vmatpush1.bf16.msra.mxu0 %v2256
    %4918 = vmatprep.subr.bf16.mxu0 0
    %4919 = vmatpush1.bf16.msra.mxu0 %v2257
    %4920 = vmatprep.subr.bf16.mxu0 0
    %4921 = vmatpush1.bf16.msra.mxu0 %v2258
    %4922 = vmatprep.subr.bf16.mxu0 0
    %4923 = vmatpush1.bf16.msra.mxu0 0
    %4924 = vmatprep.subr.bf16.mxu0 0
    %4925 = vmatpush1.bf16.msra.mxu0 0
    %4926 = vmatprep.subr.bf16.mxu0 0
    %4927 = vmatpush1.bf16.msra.mxu0 0
    %4928 = vmatprep.subr.bf16.mxu0 0
    %4929 = vmatpush1.bf16.msra.mxu0 0
    %4930 = vmatprep.subr.bf16.mxu0 0
    %4931 = vmatpush1.bf16.msra.mxu0 0
    %4932 = vmatprep.subr.bf16.mxu0 0
    %4933 = vmatpush1.bf16.msra.mxu0 0
    %4934 = vmatprep.subr.bf16.mxu0 0
    %4935 = vmatpush1.bf16.msra.mxu0 0
    %4936 = vmatprep.mubr.bf16.mxu0 %v4893
    %4937 = vmatmul.mubr.bf16.gmra.mrb[0].mxu0 %v4884
    %v4938 = vpop.f32.mrb[0].mxu0
    %v4939 = vadd.f32 %v2212, %v4938
    %v4940 = vpop.f32.mrb[0].mxu0
    %v4941 = vpop.f32.mrb[0].mxu0
    %v4942 = vadd.f32 %v2212, %v4941
    %v4943 = vpop.f32.mrb[0].mxu0
    %4944 = vmatprep.mubr.bf16.mxu0 %v4896
    %4945 = vmatmul.mubr.bf16.gmra.mrb[0].mxu0 %v4886
    %v4946 = vpop.f32.mrb[0].mxu0
    %v4947 = vadd.f32 %v2212, %v4946
    %v4948 = vpop.f32.mrb[0].mxu0
    %v4949 = vpop.f32.mrb[0].mxu0
    %v4950 = vadd.f32 %v2212, %v4949
    %v4951 = vpop.f32.mrb[0].mxu0
    %4952 = vmatprep.mubr.bf16.mxu0 %v4899
    %4953 = vmatmul.mubr.bf16.gmra.mrb[0].mxu0 %v4888
    %v4954 = vpop.f32.mrb[0].mxu0
    %v4955 = vadd.f32 %v2212, %v4954
    %v4956 = vpop.f32.mrb[0].mxu0
    %v4957 = vpop.f32.mrb[0].mxu0
    %v4958 = vadd.f32 %v2212, %v4957
    %v4959 = vpop.f32.mrb[0].mxu0
    %4960 = vmatprep.mubr.bf16.mxu0 %v4902
    %4961 = vmatmul.mubr.bf16.gmra.mrb[0].mxu0 %v4890
    %v4962 = vpop.f32.mrb[0].mxu0
    %v4963 = vadd.f32 %v2212, %v4962
    %v4964 = vpop.f32.mrb[0].mxu0
    %v4965 = vpop.f32.mrb[0].mxu0
    %v4966 = vadd.f32 %v2212, %v4965
    %v4967 = vpop.f32.mrb[0].mxu0
    %4968 = vdwg.mxu0
    %vm4969 = vcmp.ge.f32.partialorder %v4939, 0.0
    %vm4970 = vcmp.ge.f32.partialorder %v4942, 0.0
    %vm4971 = vcmp.ge.f32.partialorder %v4947, 0.0
    %vm4972 = vcmp.ge.f32.partialorder %v4950, 0.0
    %vm4973 = vcmp.ge.f32.partialorder %v4955, 0.0
    %vm4974 = vcmp.ge.f32.partialorder %v4958, 0.0
    %vm4975 = vcmp.ge.f32.partialorder %v4963, 0.0
    %vm4976 = vcmp.ge.f32.partialorder %v4966, 0.0
    %v4977 = vmul.f32 %v4939, 0.01
    %v4978 = vmul.f32 %v4942, 0.01
    %v4979 = vmul.f32 %v4947, 0.01
    %v4980 = vmul.f32 %v4950, 0.01
    %v4981 = vmul.f32 %v4955, 0.01
    %v4982 = vmul.f32 %v4958, 0.01
    %v4983 = vmul.f32 %v4963, 0.01
    %v4984 = vmul.f32 %v4966, 0.01
    %v4985 = vsel %vm4969, %v4939, %v4977
    %v4986 = vsel %vm4970, %v4942, %v4978
    %v4987 = vsel %vm4971, %v4947, %v4979
    %v4988 = vsel %vm4972, %v4950, %v4980
    %v4989 = vsel %vm4973, %v4955, %v4981
    %v4990 = vsel %vm4974, %v4958, %v4982
    %v4991 = vsel %vm4975, %v4963, %v4983
    %v4992 = vsel %vm4976, %v4966, %v4984
    %v4993 = vpack.c.bf16 %v4986, %v4985
    %v4994 = vpack.c.bf16 %v4988, %v4987
    %v4995 = vpack.c.bf16 %v4990, %v4989
    %v4996 = vpack.c.bf16 %v4992, %v4991
    %4997 = vmatprep.subr.bf16.mxu0 0
    %4998 = vmatpush1.bf16.msra.mxu0 %v4993
    %4999 = vmatprep.subr.bf16.mxu0 0
    %5000 = vmatpush1.bf16.msra.mxu0 %v4994
    %5001 = vmatprep.subr.bf16.mxu0 0
    %5002 = vmatpush1.bf16.msra.mxu0 %v4995
    %5003 = vmatprep.subr.bf16.mxu0 0
    %5004 = vmatpush1.bf16.msra.mxu0 %v4996
    %5005 = vmatprep.subr.bf16.mxu0 0
    %5006 = vmatpush1.bf16.msra.mxu0 0
    %5007 = vmatprep.subr.bf16.mxu0 0
    %5008 = vmatpush1.bf16.msra.mxu0 0
    %5009 = vmatprep.subr.bf16.mxu0 0
    %5010 = vmatpush1.bf16.msra.mxu0 0
    %5011 = vmatprep.subr.bf16.mxu0 0
    %5012 = vmatpush1.bf16.msra.mxu0 0
    %5013 = vmatprep.subr.bf16.mxu0 0
    %5014 = vmatpush1.bf16.msra.mxu0 0
    %5015 = vmatprep.subr.bf16.mxu0 0
    %5016 = vmatpush1.bf16.msra.mxu0 0
    %5017 = vmatprep.subr.bf16.mxu0 0
    %5018 = vmatpush1.bf16.msra.mxu0 0
    %5019 = vmatprep.subr.bf16.mxu0 0
    %5020 = vmatpush1.bf16.msra.mxu0 0
    %5021 = vmatprep.subr.bf16.mxu0 0
    %5022 = vmatpush1.bf16.msra.mxu0 0
    %5023 = vmatprep.subr.bf16.mxu0 0
    %5024 = vmatpush1.bf16.msra.mxu0 0
    %5025 = vmatprep.subr.bf16.mxu0 0
    %5026 = vmatpush1.bf16.msra.mxu0 0
    %5027 = vmatprep.subr.bf16.mxu0 0
    %5028 = vmatpush1.bf16.msra.mxu0 0
    %5029 = vmatprep.mubr.bf16.mxu0 0
    %5030 = vmatmul.mubr.bf16.gmra.mrb[0].mxu0 %v2381
    %v5031 = vpop.f32.mrb[0].mxu0
    %v5032 = vadd.f32 0.0, %v5031
    %v5033 = vpop.f32.mrb[0].mxu0
    %v5034 = vpop.f32.mrb[0].mxu0
    %v5035 = vadd.f32 0.0, %v5034
    %v5036 = vpop.f32.mrb[0].mxu0
    %5037 = vdwg.mxu0
    %5038 = vmatprep.subr.bf16.mxu0 0
    %5039 = vmatpush1.bf16.msra.mxu0 %v4993
    %5040 = vmatprep.subr.bf16.mxu0 0
    %5041 = vmatpush1.bf16.msra.mxu0 %v4994
    %5042 = vmatprep.subr.bf16.mxu0 0
    %5043 = vmatpush1.bf16.msra.mxu0 %v4995
    %5044 = vmatprep.subr.bf16.mxu0 0
    %5045 = vmatpush1.bf16.msra.mxu0 %v4996
    %5046 = vmatprep.subr.bf16.mxu0 0
    %5047 = vmatpush1.bf16.msra.mxu0 0
    %5048 = vmatprep.subr.bf16.mxu0 0
    %5049 = vmatpush1.bf16.msra.mxu0 0
    %5050 = vmatprep.subr.bf16.mxu0 0
    %5051 = vmatpush1.bf16.msra.mxu0 0
    %5052 = vmatprep.subr.bf16.mxu0 0
    %5053 = vmatpush1.bf16.msra.mxu0 0
    %5054 = vmatprep.subr.bf16.mxu0 0
    %5055 = vmatpush1.bf16.msra.mxu0 0
    %5056 = vmatprep.subr.bf16.mxu0 0
    %5057 = vmatpush1.bf16.msra.mxu0 0
    %5058 = vmatprep.subr.bf16.mxu0 0
    %5059 = vmatpush1.bf16.msra.mxu0 0
    %5060 = vmatprep.subr.bf16.mxu0 0
    %5061 = vmatpush1.bf16.msra.mxu0 0
    %5062 = vmatprep.subr.bf16.mxu0 0
    %5063 = vmatpush1.bf16.msra.mxu0 0
    %5064 = vmatprep.subr.bf16.mxu0 0
    %5065 = vmatpush1.bf16.msra.mxu0 0
    %5066 = vmatprep.subr.bf16.mxu0 0
    %5067 = vmatpush1.bf16.msra.mxu0 0
    %5068 = vmatprep.subr.bf16.mxu0 0
    %5069 = vmatpush1.bf16.msra.mxu0 0
    %5070 = vmatprep.mubr.bf16.mxu0 0
    %5071 = vmatmul.mubr.bf16.gmra.mrb[0].mxu0 %v2433
    %v5072 = vpop.f32.mrb[0].mxu0
    %v5073 = vadd.f32 0.0, %v5072
    %v5074 = vpop.f32.mrb[0].mxu0
    %v5075 = vpop.f32.mrb[0].mxu0
    %v5076 = vadd.f32 0.0, %v5075
    %v5077 = vpop.f32.mrb[0].mxu0
    %5078 = vdwg.mxu0
    %5079 = vmatprep.subr.bf16.mxu0 0
    %5080 = vmatpush1.bf16.msra.mxu0 %v4993
    %5081 = vmatprep.subr.bf16.mxu0 0
    %5082 = vmatpush1.bf16.msra.mxu0 %v4994
    %5083 = vmatprep.subr.bf16.mxu0 0
    %5084 = vmatpush1.bf16.msra.mxu0 %v4995
    %5085 = vmatprep.subr.bf16.mxu0 0
    %5086 = vmatpush1.bf16.msra.mxu0 %v4996
    %5087 = vmatprep.subr.bf16.mxu0 0
    %5088 = vmatpush1.bf16.msra.mxu0 0
    %5089 = vmatprep.subr.bf16.mxu0 0
    %5090 = vmatpush1.bf16.msra.mxu0 0
    %5091 = vmatprep.subr.bf16.mxu0 0
    %5092 = vmatpush1.bf16.msra.mxu0 0
    %5093 = vmatprep.subr.bf16.mxu0 0
    %5094 = vmatpush1.bf16.msra.mxu0 0
    %5095 = vmatprep.subr.bf16.mxu0 0
    %5096 = vmatpush1.bf16.msra.mxu0 0
    %5097 = vmatprep.subr.bf16.mxu0 0
    %5098 = vmatpush1.bf16.msra.mxu0 0
    %5099 = vmatprep.subr.bf16.mxu0 0
    %5100 = vmatpush1.bf16.msra.mxu0 0
    %5101 = vmatprep.subr.bf16.mxu0 0
    %5102 = vmatpush1.bf16.msra.mxu0 0
    %5103 = vmatprep.subr.bf16.mxu0 0
    %5104 = vmatpush1.bf16.msra.mxu0 0
    %5105 = vmatprep.subr.bf16.mxu0 0
    %5106 = vmatpush1.bf16.msra.mxu0 0
    %5107 = vmatprep.subr.bf16.mxu0 0
    %5108 = vmatpush1.bf16.msra.mxu0 0
    %5109 = vmatprep.subr.bf16.mxu0 0
    %5110 = vmatpush1.bf16.msra.mxu0 0
    %5111 = vmatprep.mubr.bf16.mxu0 0
    %5112 = vmatmul.mubr.bf16.gmra.mrb[0].mxu0 %v2485
    %v5113 = vpop.f32.mrb[0].mxu0
    %v5114 = vadd.f32 0.0, %v5113
    %v5115 = vpop.f32.mrb[0].mxu0
    %v5116 = vpop.f32.mrb[0].mxu0
    %v5117 = vadd.f32 0.0, %v5116
    %v5118 = vpop.f32.mrb[0].mxu0
    %5119 = vdwg.mxu0
    %5120 = vmatprep.subr.bf16.mxu0 0
    %5121 = vmatpush1.bf16.msra.mxu0 %v4993
    %5122 = vmatprep.subr.bf16.mxu0 0
    %5123 = vmatpush1.bf16.msra.mxu0 %v4994
    %5124 = vmatprep.subr.bf16.mxu0 0
    %5125 = vmatpush1.bf16.msra.mxu0 %v4995
    %5126 = vmatprep.subr.bf16.mxu0 0
    %5127 = vmatpush1.bf16.msra.mxu0 %v4996
    %5128 = vmatprep.subr.bf16.mxu0 0
    %5129 = vmatpush1.bf16.msra.mxu0 0
    %5130 = vmatprep.subr.bf16.mxu0 0
    %5131 = vmatpush1.bf16.msra.mxu0 0
    %5132 = vmatprep.subr.bf16.mxu0 0
    %5133 = vmatpush1.bf16.msra.mxu0 0
    %5134 = vmatprep.subr.bf16.mxu0 0
    %5135 = vmatpush1.bf16.msra.mxu0 0
    %5136 = vmatprep.subr.bf16.mxu0 0
    %5137 = vmatpush1.bf16.msra.mxu0 0
    %5138 = vmatprep.subr.bf16.mxu0 0
    %5139 = vmatpush1.bf16.msra.mxu0 0
    %5140 = vmatprep.subr.bf16.mxu0 0
    %5141 = vmatpush1.bf16.msra.mxu0 0
    %5142 = vmatprep.subr.bf16.mxu0 0
    %5143 = vmatpush1.bf16.msra.mxu0 0
    %5144 = vmatprep.subr.bf16.mxu0 0
    %5145 = vmatpush1.bf16.msra.mxu0 0
    %5146 = vmatprep.subr.bf16.mxu0 0
    %5147 = vmatpush1.bf16.msra.mxu0 0
    %5148 = vmatprep.subr.bf16.mxu0 0
    %5149 = vmatpush1.bf16.msra.mxu0 0
    %5150 = vmatprep.subr.bf16.mxu0 0
    %5151 = vmatpush1.bf16.msra.mxu0 0
    %5152 = vmatprep.mubr.bf16.mxu0 0
    %5153 = vmatmul.mubr.bf16.gmra.mrb[0].mxu0 %v2537
    %v5154 = vpop.f32.mrb[0].mxu0
    %v5155 = vadd.f32 0.0, %v5154
    %v5156 = vpop.f32.mrb[0].mxu0
    %v5157 = vpop.f32.mrb[0].mxu0
    %v5158 = vadd.f32 0.0, %v5157
    %v5159 = vpop.f32.mrb[0].mxu0
    %5160 = vdwg.mxu0
    %5161 = vmatprep.subr.bf16.mxu0 0
    %5162 = vmatpush1.bf16.msra.mxu0 %v4993
    %5163 = vmatprep.subr.bf16.mxu0 0
    %5164 = vmatpush1.bf16.msra.mxu0 %v4994
    %5165 = vmatprep.subr.bf16.mxu0 0
    %5166 = vmatpush1.bf16.msra.mxu0 %v4995
    %5167 = vmatprep.subr.bf16.mxu0 0
    %5168 = vmatpush1.bf16.msra.mxu0 %v4996
    %5169 = vmatprep.subr.bf16.mxu0 0
    %5170 = vmatpush1.bf16.msra.mxu0 0
    %5171 = vmatprep.subr.bf16.mxu0 0
    %5172 = vmatpush1.bf16.msra.mxu0 0
    %5173 = vmatprep.subr.bf16.mxu0 0
    %5174 = vmatpush1.bf16.msra.mxu0 0
    %5175 = vmatprep.subr.bf16.mxu0 0
    %5176 = vmatpush1.bf16.msra.mxu0 0
    %5177 = vmatprep.subr.bf16.mxu0 0
    %5178 = vmatpush1.bf16.msra.mxu0 0
    %5179 = vmatprep.subr.bf16.mxu0 0
    %5180 = vmatpush1.bf16.msra.mxu0 0
    %5181 = vmatprep.subr.bf16.mxu0 0
    %5182 = vmatpush1.bf16.msra.mxu0 0
    %5183 = vmatprep.subr.bf16.mxu0 0
    %5184 = vmatpush1.bf16.msra.mxu0 0
    %5185 = vmatprep.subr.bf16.mxu0 0
    %5186 = vmatpush1.bf16.msra.mxu0 0
    %5187 = vmatprep.subr.bf16.mxu0 0
    %5188 = vmatpush1.bf16.msra.mxu0 0
    %5189 = vmatprep.subr.bf16.mxu0 0
    %5190 = vmatpush1.bf16.msra.mxu0 0
    %5191 = vmatprep.subr.bf16.mxu0 0
    %5192 = vmatpush1.bf16.msra.mxu0 0
    %5193 = vmatprep.mubr.bf16.mxu0 0
    %5194 = vmatmul.mubr.bf16.gmra.mrb[0].mxu0 %v2589
    %v5195 = vpop.f32.mrb[0].mxu0
    %v5196 = vadd.f32 0.0, %v5195
    %v5197 = vpop.f32.mrb[0].mxu0
    %v5198 = vpop.f32.mrb[0].mxu0
    %v5199 = vadd.f32 0.0, %v5198
    %v5200 = vpop.f32.mrb[0].mxu0
    %5201 = vdwg.mxu0
    %5202 = vmatprep.subr.bf16.mxu0 0
    %5203 = vmatpush1.bf16.msra.mxu0 %v4993
    %5204 = vmatprep.subr.bf16.mxu0 0
    %5205 = vmatpush1.bf16.msra.mxu0 %v4994
    %5206 = vmatprep.subr.bf16.mxu0 0
    %5207 = vmatpush1.bf16.msra.mxu0 %v4995
    %5208 = vmatprep.subr.bf16.mxu0 0
    %5209 = vmatpush1.bf16.msra.mxu0 %v4996
    %5210 = vmatprep.subr.bf16.mxu0 0
    %5211 = vmatpush1.bf16.msra.mxu0 0
    %5212 = vmatprep.subr.bf16.mxu0 0
    %5213 = vmatpush1.bf16.msra.mxu0 0
    %5214 = vmatprep.subr.bf16.mxu0 0
    %5215 = vmatpush1.bf16.msra.mxu0 0
    %5216 = vmatprep.subr.bf16.mxu0 0
    %5217 = vmatpush1.bf16.msra.mxu0 0
    %5218 = vmatprep.subr.bf16.mxu0 0
    %5219 = vmatpush1.bf16.msra.mxu0 0
    %5220 = vmatprep.subr.bf16.mxu0 0
    %5221 = vmatpush1.bf16.msra.mxu0 0
    %5222 = vmatprep.subr.bf16.mxu0 0
    %5223 = vmatpush1.bf16.msra.mxu0 0
    %5224 = vmatprep.subr.bf16.mxu0 0
    %5225 = vmatpush1.bf16.msra.mxu0 0
    %5226 = vmatprep.subr.bf16.mxu0 0
    %5227 = vmatpush1.bf16.msra.mxu0 0
    %5228 = vmatprep.subr.bf16.mxu0 0
    %5229 = vmatpush1.bf16.msra.mxu0 0
    %5230 = vmatprep.subr.bf16.mxu0 0
    %5231 = vmatpush1.bf16.msra.mxu0 0
    %5232 = vmatprep.subr.bf16.mxu0 0
    %5233 = vmatpush1.bf16.msra.mxu0 0
    %5234 = vmatprep.mubr.bf16.mxu0 0
    %5235 = vmatmul.mubr.bf16.gmra.mrb[0].mxu0 %v2641
    %v5236 = vpop.f32.mrb[0].mxu0
    %v5237 = vadd.f32 0.0, %v5236
    %v5238 = vpop.f32.mrb[0].mxu0
    %v5239 = vpop.f32.mrb[0].mxu0
    %v5240 = vadd.f32 0.0, %v5239
    %v5241 = vpop.f32.mrb[0].mxu0
    %5242 = vdwg.mxu0
    %5243 = vmatprep.subr.bf16.mxu0 0
    %5244 = vmatpush1.bf16.msra.mxu0 %v4993
    %5245 = vmatprep.subr.bf16.mxu0 0
    %5246 = vmatpush1.bf16.msra.mxu0 %v4994
    %5247 = vmatprep.subr.bf16.mxu0 0
    %5248 = vmatpush1.bf16.msra.mxu0 %v4995
    %5249 = vmatprep.subr.bf16.mxu0 0
    %5250 = vmatpush1.bf16.msra.mxu0 %v4996
    %5251 = vmatprep.subr.bf16.mxu0 0
    %5252 = vmatpush1.bf16.msra.mxu0 0
    %5253 = vmatprep.subr.bf16.mxu0 0
    %5254 = vmatpush1.bf16.msra.mxu0 0
    %5255 = vmatprep.subr.bf16.mxu0 0
    %5256 = vmatpush1.bf16.msra.mxu0 0
    %5257 = vmatprep.subr.bf16.mxu0 0
    %5258 = vmatpush1.bf16.msra.mxu0 0
    %5259 = vmatprep.subr.bf16.mxu0 0
    %5260 = vmatpush1.bf16.msra.mxu0 0
    %5261 = vmatprep.subr.bf16.mxu0 0
    %5262 = vmatpush1.bf16.msra.mxu0 0
    %5263 = vmatprep.subr.bf16.mxu0 0
    %5264 = vmatpush1.bf16.msra.mxu0 0
    %5265 = vmatprep.subr.bf16.mxu0 0
    %5266 = vmatpush1.bf16.msra.mxu0 0
    %5267 = vmatprep.subr.bf16.mxu0 0
    %5268 = vmatpush1.bf16.msra.mxu0 0
    %5269 = vmatprep.subr.bf16.mxu0 0
    %5270 = vmatpush1.bf16.msra.mxu0 0
    %5271 = vmatprep.subr.bf16.mxu0 0
    %5272 = vmatpush1.bf16.msra.mxu0 0
    %5273 = vmatprep.subr.bf16.mxu0 0
    %5274 = vmatpush1.bf16.msra.mxu0 0
    %5275 = vmatprep.mubr.bf16.mxu0 0
    %5276 = vmatmul.mubr.bf16.gmra.mrb[0].mxu0 %v2693
    %v5277 = vpop.f32.mrb[0].mxu0
    %v5278 = vadd.f32 0.0, %v5277
    %v5279 = vpop.f32.mrb[0].mxu0
    %v5280 = vpop.f32.mrb[0].mxu0
    %v5281 = vadd.f32 0.0, %v5280
    %v5282 = vpop.f32.mrb[0].mxu0
    %5283 = vdwg.mxu0
    %5284 = vmatprep.subr.bf16.mxu0 0
    %5285 = vmatpush1.bf16.msra.mxu0 %v4993
    %5286 = vmatprep.subr.bf16.mxu0 0
    %5287 = vmatpush1.bf16.msra.mxu0 %v4994
    %5288 = vmatprep.subr.bf16.mxu0 0
    %5289 = vmatpush1.bf16.msra.mxu0 %v4995
    %5290 = vmatprep.subr.bf16.mxu0 0
    %5291 = vmatpush1.bf16.msra.mxu0 %v4996
    %5292 = vmatprep.subr.bf16.mxu0 0
    %5293 = vmatpush1.bf16.msra.mxu0 0
    %5294 = vmatprep.subr.bf16.mxu0 0
    %5295 = vmatpush1.bf16.msra.mxu0 0
    %5296 = vmatprep.subr.bf16.mxu0 0
    %5297 = vmatpush1.bf16.msra.mxu0 0
    %5298 = vmatprep.subr.bf16.mxu0 0
    %5299 = vmatpush1.bf16.msra.mxu0 0
    %5300 = vmatprep.subr.bf16.mxu0 0
    %5301 = vmatpush1.bf16.msra.mxu0 0
    %5302 = vmatprep.subr.bf16.mxu0 0
    %5303 = vmatpush1.bf16.msra.mxu0 0
    %5304 = vmatprep.subr.bf16.mxu0 0
    %5305 = vmatpush1.bf16.msra.mxu0 0
    %5306 = vmatprep.subr.bf16.mxu0 0
    %5307 = vmatpush1.bf16.msra.mxu0 0
    %5308 = vmatprep.subr.bf16.mxu0 0
    %5309 = vmatpush1.bf16.msra.mxu0 0
    %5310 = vmatprep.subr.bf16.mxu0 0
    %5311 = vmatpush1.bf16.msra.mxu0 0
    %5312 = vmatprep.subr.bf16.mxu0 0
    %5313 = vmatpush1.bf16.msra.mxu0 0
    %5314 = vmatprep.subr.bf16.mxu0 0
    %5315 = vmatpush1.bf16.msra.mxu0 0
    %5316 = vmatprep.mubr.bf16.mxu0 0
    %5317 = vmatmul.mubr.bf16.gmra.mrb[0].mxu0 %v2745
    %v5318 = vpop.f32.mrb[0].mxu0
    %v5319 = vadd.f32 0.0, %v5318
    %v5320 = vpop.f32.mrb[0].mxu0
    %v5321 = vpop.f32.mrb[0].mxu0
    %v5322 = vadd.f32 0.0, %v5321
    %v5323 = vpop.f32.mrb[0].mxu0
    %5324 = vdwg.mxu0
    %5325 = vmatprep.subr.bf16.mxu0 0
    %5326 = vmatpush1.bf16.msra.mxu0 %v4993
    %5327 = vmatprep.subr.bf16.mxu0 0
    %5328 = vmatpush1.bf16.msra.mxu0 %v4994
    %5329 = vmatprep.subr.bf16.mxu0 0
    %5330 = vmatpush1.bf16.msra.mxu0 %v4995
    %5331 = vmatprep.subr.bf16.mxu0 0
    %5332 = vmatpush1.bf16.msra.mxu0 %v4996
    %5333 = vmatprep.subr.bf16.mxu0 0
    %5334 = vmatpush1.bf16.msra.mxu0 0
    %5335 = vmatprep.subr.bf16.mxu0 0
    %5336 = vmatpush1.bf16.msra.mxu0 0
    %5337 = vmatprep.subr.bf16.mxu0 0
    %5338 = vmatpush1.bf16.msra.mxu0 0
    %5339 = vmatprep.subr.bf16.mxu0 0
    %5340 = vmatpush1.bf16.msra.mxu0 0
    %5341 = vmatprep.subr.bf16.mxu0 0
    %5342 = vmatpush1.bf16.msra.mxu0 0
    %5343 = vmatprep.subr.bf16.mxu0 0
    %5344 = vmatpush1.bf16.msra.mxu0 0
    %5345 = vmatprep.subr.bf16.mxu0 0
    %5346 = vmatpush1.bf16.msra.mxu0 0
    %5347 = vmatprep.subr.bf16.mxu0 0
    %5348 = vmatpush1.bf16.msra.mxu0 0
    %5349 = vmatprep.subr.bf16.mxu0 0
    %5350 = vmatpush1.bf16.msra.mxu0 0
    %5351 = vmatprep.subr.bf16.mxu0 0
    %5352 = vmatpush1.bf16.msra.mxu0 0
    %5353 = vmatprep.subr.bf16.mxu0 0
    %5354 = vmatpush1.bf16.msra.mxu0 0
    %5355 = vmatprep.subr.bf16.mxu0 0
    %5356 = vmatpush1.bf16.msra.mxu0 0
    %5357 = vmatprep.mubr.bf16.mxu0 0
    %5358 = vmatmul.mubr.bf16.gmra.mrb[0].mxu0 %v2797
    %v5359 = vpop.f32.mrb[0].mxu0
    %v5360 = vadd.f32 0.0, %v5359
    %v5361 = vpop.f32.mrb[0].mxu0
    %v5362 = vpop.f32.mrb[0].mxu0
    %v5363 = vadd.f32 0.0, %v5362
    %v5364 = vpop.f32.mrb[0].mxu0
    %5365 = vdwg.mxu0
    %5368 = vrot.lane.b32.xlu0 %v5073, 32
    %v5369 = vpop.permute.xlu0 %5368
    %5370 = vrot.lane.b32.xlu0 %v5076, 32
    %v5371 = vpop.permute.xlu0 %5370
    %5376 = vrot.lane.b32.xlu0 %v5114, 64
    %v5377 = vpop.permute.xlu0 %5376
    %5378 = vrot.lane.b32.xlu0 %v5117, 64
    %v5379 = vpop.permute.xlu0 %5378
    %5384 = vrot.lane.b32.xlu0 %v5155, 96
    %v5385 = vpop.permute.xlu0 %5384
    %5386 = vrot.lane.b32.xlu0 %v5158, 96
    %v5387 = vpop.permute.xlu0 %5386
    %5392 = vrot.lane.b32.xlu0 %v5237, 32
    %v5393 = vpop.permute.xlu0 %5392
    %5394 = vrot.lane.b32.xlu0 %v5240, 32
    %v5395 = vpop.permute.xlu0 %5394
    %5400 = vrot.lane.b32.xlu0 %v5278, 64
    %v5401 = vpop.permute.xlu0 %5400
    %5402 = vrot.lane.b32.xlu0 %v5281, 64
    %v5403 = vpop.permute.xlu0 %5402
    %5408 = vrot.lane.b32.xlu0 %v5319, 96
    %v5409 = vpop.permute.xlu0 %5408
    %5410 = vrot.lane.b32.xlu0 %v5322, 96
    %v5411 = vpop.permute.xlu0 %5410
    %v5414 = vsel %vm2127, %v5032, %v5369
    %v5415 = vsel %vm2127, %v5035, %v5371
    %v5416 = vsel %vm2145, %v5414, %v5377
    %v5417 = vsel %vm2145, %v5415, %v5379
    %v5418 = vsel %vm2163, %v5416, %v5385
    %v5419 = vsel %vm2163, %v5417, %v5387
    %v5420 = vsel %vm2127, %v5196, %v5393
    %v5421 = vsel %vm2127, %v5199, %v5395
    %v5422 = vsel %vm2145, %v5420, %v5401
    %v5423 = vsel %vm2145, %v5421, %v5403
    %v5424 = vsel %vm2163, %v5422, %v5409
    %v5425 = vsel %vm2163, %v5423, %v5411
    %v5426 = vpack.c.bf16 %v5419, %v5418
    %v5427 = vpack.c.bf16 %v5425, %v5424
    %v5428 = vpack.c.bf16 %v5363, %v5360
    %v5430 = vsel %vm2127, %v5428, 0
    %5432 = vmatprep.subr.bf16.mxu0 0
    %5433 = vmatpush1.bf16.msra.mxu0 %v3018
    %5434 = vmatprep.subr.bf16.mxu0 0
    %5435 = vmatpush1.bf16.msra.mxu0 %v3019
    %5436 = vmatprep.subr.bf16.mxu0 0
    %5437 = vmatpush1.bf16.msra.mxu0 %v3020
    %5438 = vmatprep.subr.bf16.mxu0 0
    %5439 = vmatpush1.bf16.msra.mxu0 %v3021
    %5440 = vmatprep.subr.bf16.mxu0 0
    %5441 = vmatpush1.bf16.msra.mxu0 %v3022
    %5442 = vmatprep.subr.bf16.mxu0 0
    %5443 = vmatpush1.bf16.msra.mxu0 %v3023
    %5444 = vmatprep.subr.bf16.mxu0 0
    %5445 = vmatpush1.bf16.msra.mxu0 %v3024
    %5446 = vmatprep.subr.bf16.mxu0 0
    %5447 = vmatpush1.bf16.msra.mxu0 %v3025
    %5448 = vmatprep.subr.bf16.mxu0 0
    %5449 = vmatpush1.bf16.msra.mxu0 %v3026
    %5450 = vmatprep.subr.bf16.mxu0 0
    %5451 = vmatpush1.bf16.msra.mxu0 %v3027
    %5452 = vmatprep.subr.bf16.mxu0 0
    %5453 = vmatpush1.bf16.msra.mxu0 %v3028
    %5454 = vmatprep.subr.bf16.mxu0 0
    %5455 = vmatpush1.bf16.msra.mxu0 %v3029
    %5456 = vmatprep.subr.bf16.mxu0 0
    %5457 = vmatpush1.bf16.msra.mxu0 %v3030
    %5458 = vmatprep.subr.bf16.mxu0 0
    %5459 = vmatpush1.bf16.msra.mxu0 %v3031
    %5460 = vmatprep.subr.bf16.mxu0 0
    %5461 = vmatpush1.bf16.msra.mxu0 %v3032
    %5462 = vmatprep.subr.bf16.mxu0 0
    %5463 = vmatpush1.bf16.msra.mxu0 %v3033
    %5464 = vmatprep.mubr.bf16.mxu0 %v5427
    %5465 = vmatmul.mubr.bf16.gmra.mrb[0].mxu0 %v5426
    %v5466 = vpop.f32.mrb[0].mxu0
    %v5467 = vadd.f32 %v2944, %v5466
    %v5468 = vpop.f32.mrb[0].mxu0
    %v5469 = vpop.f32.mrb[0].mxu0
    %v5470 = vadd.f32 %v2944, %v5469
    %v5471 = vpop.f32.mrb[0].mxu0
    %5472 = vdwg.mxu0
    %5473 = vmatprep.subr.bf16.mxu0 0
    %5474 = vmatpush1.bf16.msra.mxu0 %v3034
    %5475 = vmatprep.subr.bf16.mxu0 0
    %5476 = vmatpush1.bf16.msra.mxu0 %v3035
    %5477 = vmatprep.subr.bf16.mxu0 0
    %5478 = vmatpush1.bf16.msra.mxu0 0
    %5479 = vmatprep.subr.bf16.mxu0 0
    %5480 = vmatpush1.bf16.msra.mxu0 0
    %5481 = vmatprep.subr.bf16.mxu0 0
    %5482 = vmatpush1.bf16.msra.mxu0 0
    %5483 = vmatprep.subr.bf16.mxu0 0
    %5484 = vmatpush1.bf16.msra.mxu0 0
    %5485 = vmatprep.subr.bf16.mxu0 0
    %5486 = vmatpush1.bf16.msra.mxu0 0
    %5487 = vmatprep.subr.bf16.mxu0 0
    %5488 = vmatpush1.bf16.msra.mxu0 0
    %5489 = vmatprep.subr.bf16.mxu0 0
    %5490 = vmatpush1.bf16.msra.mxu0 0
    %5491 = vmatprep.subr.bf16.mxu0 0
    %5492 = vmatpush1.bf16.msra.mxu0 0
    %5493 = vmatprep.subr.bf16.mxu0 0
    %5494 = vmatpush1.bf16.msra.mxu0 0
    %5495 = vmatprep.subr.bf16.mxu0 0
    %5496 = vmatpush1.bf16.msra.mxu0 0
    %5497 = vmatprep.subr.bf16.mxu0 0
    %5498 = vmatpush1.bf16.msra.mxu0 0
    %5499 = vmatprep.subr.bf16.mxu0 0
    %5500 = vmatpush1.bf16.msra.mxu0 0
    %5501 = vmatprep.subr.bf16.mxu0 0
    %5502 = vmatpush1.bf16.msra.mxu0 0
    %5503 = vmatprep.subr.bf16.mxu0 0
    %5504 = vmatpush1.bf16.msra.mxu0 0
    %5505 = vmatprep.mubr.bf16.mxu0 0
    %5506 = vmatmul.mubr.bf16.gmra.mrb[0].mxu0 %v5430
    %v5507 = vpop.f32.mrb[0].mxu0
    %v5508 = vadd.f32 %v5467, %v5507
    %v5509 = vpop.f32.mrb[0].mxu0
    %v5510 = vpop.f32.mrb[0].mxu0
    %v5511 = vadd.f32 %v5470, %v5510
    %v5512 = vpop.f32.mrb[0].mxu0
    %5513 = vdwg.mxu0
    %vm5514 = vcmp.ge.f32.partialorder %v5508, 0.0
    %vm5515 = vcmp.ge.f32.partialorder %v5511, 0.0
    %v5516 = vmul.f32 %v5508, 0.01
    %v5517 = vmul.f32 %v5511, 0.01
    %v5518 = vsel %vm5514, %v5508, %v5516
    %v5519 = vsel %vm5515, %v5511, %v5517
    %v5520 = vpack.c.bf16 %v5519, %v5518
    %5521 = vmatprep.subr.bf16.mxu0 0
    %5522 = vmatpush1.bf16.msra.mxu0 %v5520
    %5523 = vmatprep.subr.bf16.mxu0 0
    %5524 = vmatpush1.bf16.msra.mxu0 0
    %5525 = vmatprep.subr.bf16.mxu0 0
    %5526 = vmatpush1.bf16.msra.mxu0 0
    %5527 = vmatprep.subr.bf16.mxu0 0
    %5528 = vmatpush1.bf16.msra.mxu0 0
    %5529 = vmatprep.subr.bf16.mxu0 0
    %5530 = vmatpush1.bf16.msra.mxu0 0
    %5531 = vmatprep.subr.bf16.mxu0 0
    %5532 = vmatpush1.bf16.msra.mxu0 0
    %5533 = vmatprep.subr.bf16.mxu0 0
    %5534 = vmatpush1.bf16.msra.mxu0 0
    %5535 = vmatprep.subr.bf16.mxu0 0
    %5536 = vmatpush1.bf16.msra.mxu0 0
    %5537 = vmatprep.subr.bf16.mxu0 0
    %5538 = vmatpush1.bf16.msra.mxu0 0
    %5539 = vmatprep.subr.bf16.mxu0 0
    %5540 = vmatpush1.bf16.msra.mxu0 0
    %5541 = vmatprep.subr.bf16.mxu0 0
    %5542 = vmatpush1.bf16.msra.mxu0 0
    %5543 = vmatprep.subr.bf16.mxu0 0
    %5544 = vmatpush1.bf16.msra.mxu0 0
    %5545 = vmatprep.subr.bf16.mxu0 0
    %5546 = vmatpush1.bf16.msra.mxu0 0
    %5547 = vmatprep.subr.bf16.mxu0 0
    %5548 = vmatpush1.bf16.msra.mxu0 0
    %5549 = vmatprep.subr.bf16.mxu0 0
    %5550 = vmatpush1.bf16.msra.mxu0 0
    %5551 = vmatprep.subr.bf16.mxu0 0
    %5552 = vmatpush1.bf16.msra.mxu0 0
    %5553 = vmatprep.mubr.bf16.mxu0 0
    %5554 = vmatmul.mubr.bf16.gmra.mrb[0].mxu0 %v3148
    %v5555 = vpop.f32.mrb[0].mxu0
    %v5556 = vadd.f32 0.0, %v5555
    %v5557 = vpop.f32.mrb[0].mxu0
    %v5558 = vpop.f32.mrb[0].mxu0
    %v5559 = vpop.f32.mrb[0].mxu0
    %5560 = vdwg.mxu0
    %5561 = vmatprep.subr.bf16.mxu0 0
    %5562 = vmatpush1.bf16.msra.mxu0 %v5520
    %5563 = vmatprep.subr.bf16.mxu0 0
    %5564 = vmatpush1.bf16.msra.mxu0 0
    %5565 = vmatprep.subr.bf16.mxu0 0
    %5566 = vmatpush1.bf16.msra.mxu0 0
    %5567 = vmatprep.subr.bf16.mxu0 0
    %5568 = vmatpush1.bf16.msra.mxu0 0
    %5569 = vmatprep.subr.bf16.mxu0 0
    %5570 = vmatpush1.bf16.msra.mxu0 0
    %5571 = vmatprep.subr.bf16.mxu0 0
    %5572 = vmatpush1.bf16.msra.mxu0 0
    %5573 = vmatprep.subr.bf16.mxu0 0
    %5574 = vmatpush1.bf16.msra.mxu0 0
    %5575 = vmatprep.subr.bf16.mxu0 0
    %5576 = vmatpush1.bf16.msra.mxu0 0
    %5577 = vmatprep.subr.bf16.mxu0 0
    %5578 = vmatpush1.bf16.msra.mxu0 0
    %5579 = vmatprep.subr.bf16.mxu0 0
    %5580 = vmatpush1.bf16.msra.mxu0 0
    %5581 = vmatprep.subr.bf16.mxu0 0
    %5582 = vmatpush1.bf16.msra.mxu0 0
    %5583 = vmatprep.subr.bf16.mxu0 0
    %5584 = vmatpush1.bf16.msra.mxu0 0
    %5585 = vmatprep.subr.bf16.mxu0 0
    %5586 = vmatpush1.bf16.msra.mxu0 0
    %5587 = vmatprep.subr.bf16.mxu0 0
    %5588 = vmatpush1.bf16.msra.mxu0 0
    %5589 = vmatprep.subr.bf16.mxu0 0
    %5590 = vmatpush1.bf16.msra.mxu0 0
    %5591 = vmatprep.subr.bf16.mxu0 0
    %5592 = vmatpush1.bf16.msra.mxu0 0
    %5593 = vmatprep.mubr.bf16.mxu0 0
    %5594 = vmatmul.mubr.bf16.gmra.mrb[0].mxu0 %v3193
    %v5595 = vpop.f32.mrb[0].mxu0
    %v5596 = vadd.f32 0.0, %v5595
    %v5597 = vpop.f32.mrb[0].mxu0
    %v5598 = vpop.f32.mrb[0].mxu0
    %v5599 = vpop.f32.mrb[0].mxu0
    %5600 = vdwg.mxu0
    %5601 = vmatprep.subr.bf16.mxu0 0
    %5602 = vmatpush1.bf16.msra.mxu0 %v5520
    %5603 = vmatprep.subr.bf16.mxu0 0
    %5604 = vmatpush1.bf16.msra.mxu0 0
    %5605 = vmatprep.subr.bf16.mxu0 0
    %5606 = vmatpush1.bf16.msra.mxu0 0
    %5607 = vmatprep.subr.bf16.mxu0 0
    %5608 = vmatpush1.bf16.msra.mxu0 0
    %5609 = vmatprep.subr.bf16.mxu0 0
    %5610 = vmatpush1.bf16.msra.mxu0 0
    %5611 = vmatprep.subr.bf16.mxu0 0
    %5612 = vmatpush1.bf16.msra.mxu0 0
    %5613 = vmatprep.subr.bf16.mxu0 0
    %5614 = vmatpush1.bf16.msra.mxu0 0
    %5615 = vmatprep.subr.bf16.mxu0 0
    %5616 = vmatpush1.bf16.msra.mxu0 0
    %5617 = vmatprep.subr.bf16.mxu0 0
    %5618 = vmatpush1.bf16.msra.mxu0 0
    %5619 = vmatprep.subr.bf16.mxu0 0
    %5620 = vmatpush1.bf16.msra.mxu0 0
    %5621 = vmatprep.subr.bf16.mxu0 0
    %5622 = vmatpush1.bf16.msra.mxu0 0
    %5623 = vmatprep.subr.bf16.mxu0 0
    %5624 = vmatpush1.bf16.msra.mxu0 0
    %5625 = vmatprep.subr.bf16.mxu0 0
    %5626 = vmatpush1.bf16.msra.mxu0 0
    %5627 = vmatprep.subr.bf16.mxu0 0
    %5628 = vmatpush1.bf16.msra.mxu0 0
    %5629 = vmatprep.subr.bf16.mxu0 0
    %5630 = vmatpush1.bf16.msra.mxu0 0
    %5631 = vmatprep.subr.bf16.mxu0 0
    %5632 = vmatpush1.bf16.msra.mxu0 0
    %5633 = vmatprep.mubr.bf16.mxu0 0
    %5634 = vmatmul.mubr.bf16.gmra.mrb[0].mxu0 %v3238
    %v5635 = vpop.f32.mrb[0].mxu0
    %v5636 = vadd.f32 0.0, %v5635
    %v5637 = vpop.f32.mrb[0].mxu0
    %v5638 = vpop.f32.mrb[0].mxu0
    %v5639 = vpop.f32.mrb[0].mxu0
    %5640 = vdwg.mxu0
    %5641 = vmatprep.subr.bf16.mxu0 0
    %5642 = vmatpush1.bf16.msra.mxu0 %v5520
    %5643 = vmatprep.subr.bf16.mxu0 0
    %5644 = vmatpush1.bf16.msra.mxu0 0
    %5645 = vmatprep.subr.bf16.mxu0 0
    %5646 = vmatpush1.bf16.msra.mxu0 0
    %5647 = vmatprep.subr.bf16.mxu0 0
    %5648 = vmatpush1.bf16.msra.mxu0 0
    %5649 = vmatprep.subr.bf16.mxu0 0
    %5650 = vmatpush1.bf16.msra.mxu0 0
    %5651 = vmatprep.subr.bf16.mxu0 0
    %5652 = vmatpush1.bf16.msra.mxu0 0
    %5653 = vmatprep.subr.bf16.mxu0 0
    %5654 = vmatpush1.bf16.msra.mxu0 0
    %5655 = vmatprep.subr.bf16.mxu0 0
    %5656 = vmatpush1.bf16.msra.mxu0 0
    %5657 = vmatprep.subr.bf16.mxu0 0
    %5658 = vmatpush1.bf16.msra.mxu0 0
    %5659 = vmatprep.subr.bf16.mxu0 0
    %5660 = vmatpush1.bf16.msra.mxu0 0
    %5661 = vmatprep.subr.bf16.mxu0 0
    %5662 = vmatpush1.bf16.msra.mxu0 0
    %5663 = vmatprep.subr.bf16.mxu0 0
    %5664 = vmatpush1.bf16.msra.mxu0 0
    %5665 = vmatprep.subr.bf16.mxu0 0
    %5666 = vmatpush1.bf16.msra.mxu0 0
    %5667 = vmatprep.subr.bf16.mxu0 0
    %5668 = vmatpush1.bf16.msra.mxu0 0
    %5669 = vmatprep.subr.bf16.mxu0 0
    %5670 = vmatpush1.bf16.msra.mxu0 0
    %5671 = vmatprep.subr.bf16.mxu0 0
    %5672 = vmatpush1.bf16.msra.mxu0 0
    %5673 = vmatprep.mubr.bf16.mxu0 0
    %5674 = vmatmul.mubr.bf16.gmra.mrb[0].mxu0 %v3283
    %v5675 = vpop.f32.mrb[0].mxu0
    %v5676 = vadd.f32 0.0, %v5675
    %v5677 = vpop.f32.mrb[0].mxu0
    %v5678 = vpop.f32.mrb[0].mxu0
    %v5679 = vpop.f32.mrb[0].mxu0
    %5680 = vdwg.mxu0
    %5681 = vmatprep.subr.bf16.mxu0 0
    %5682 = vmatpush1.bf16.msra.mxu0 %v5520
    %5683 = vmatprep.subr.bf16.mxu0 0
    %5684 = vmatpush1.bf16.msra.mxu0 0
    %5685 = vmatprep.subr.bf16.mxu0 0
    %5686 = vmatpush1.bf16.msra.mxu0 0
    %5687 = vmatprep.subr.bf16.mxu0 0
    %5688 = vmatpush1.bf16.msra.mxu0 0
    %5689 = vmatprep.subr.bf16.mxu0 0
    %5690 = vmatpush1.bf16.msra.mxu0 0
    %5691 = vmatprep.subr.bf16.mxu0 0
    %5692 = vmatpush1.bf16.msra.mxu0 0
    %5693 = vmatprep.subr.bf16.mxu0 0
    %5694 = vmatpush1.bf16.msra.mxu0 0
    %5695 = vmatprep.subr.bf16.mxu0 0
    %5696 = vmatpush1.bf16.msra.mxu0 0
    %5697 = vmatprep.subr.bf16.mxu0 0
    %5698 = vmatpush1.bf16.msra.mxu0 0
    %5699 = vmatprep.subr.bf16.mxu0 0
    %5700 = vmatpush1.bf16.msra.mxu0 0
    %5701 = vmatprep.subr.bf16.mxu0 0
    %5702 = vmatpush1.bf16.msra.mxu0 0
    %5703 = vmatprep.subr.bf16.mxu0 0
    %5704 = vmatpush1.bf16.msra.mxu0 0
    %5705 = vmatprep.subr.bf16.mxu0 0
    %5706 = vmatpush1.bf16.msra.mxu0 0
    %5707 = vmatprep.subr.bf16.mxu0 0
    %5708 = vmatpush1.bf16.msra.mxu0 0
    %5709 = vmatprep.subr.bf16.mxu0 0
    %5710 = vmatpush1.bf16.msra.mxu0 0
    %5711 = vmatprep.subr.bf16.mxu0 0
    %5712 = vmatpush1.bf16.msra.mxu0 0
    %5713 = vmatprep.mubr.bf16.mxu0 0
    %5714 = vmatmul.mubr.bf16.gmra.mrb[0].mxu0 %v3328
    %v5715 = vpop.f32.mrb[0].mxu0
    %v5716 = vadd.f32 0.0, %v5715
    %v5717 = vpop.f32.mrb[0].mxu0
    %v5718 = vpop.f32.mrb[0].mxu0
    %v5719 = vpop.f32.mrb[0].mxu0
    %5720 = vdwg.mxu0
    %5721 = vmatprep.subr.bf16.mxu0 0
    %5722 = vmatpush1.bf16.msra.mxu0 %v5520
    %5723 = vmatprep.subr.bf16.mxu0 0
    %5724 = vmatpush1.bf16.msra.mxu0 0
    %5725 = vmatprep.subr.bf16.mxu0 0
    %5726 = vmatpush1.bf16.msra.mxu0 0
    %5727 = vmatprep.subr.bf16.mxu0 0
    %5728 = vmatpush1.bf16.msra.mxu0 0
    %5729 = vmatprep.subr.bf16.mxu0 0
    %5730 = vmatpush1.bf16.msra.mxu0 0
    %5731 = vmatprep.subr.bf16.mxu0 0
    %5732 = vmatpush1.bf16.msra.mxu0 0
    %5733 = vmatprep.subr.bf16.mxu0 0
    %5734 = vmatpush1.bf16.msra.mxu0 0
    %5735 = vmatprep.subr.bf16.mxu0 0
    %5736 = vmatpush1.bf16.msra.mxu0 0
    %5737 = vmatprep.subr.bf16.mxu0 0
    %5738 = vmatpush1.bf16.msra.mxu0 0
    %5739 = vmatprep.subr.bf16.mxu0 0
    %5740 = vmatpush1.bf16.msra.mxu0 0
    %5741 = vmatprep.subr.bf16.mxu0 0
    %5742 = vmatpush1.bf16.msra.mxu0 0
    %5743 = vmatprep.subr.bf16.mxu0 0
    %5744 = vmatpush1.bf16.msra.mxu0 0
    %5745 = vmatprep.subr.bf16.mxu0 0
    %5746 = vmatpush1.bf16.msra.mxu0 0
    %5747 = vmatprep.subr.bf16.mxu0 0
    %5748 = vmatpush1.bf16.msra.mxu0 0
    %5749 = vmatprep.subr.bf16.mxu0 0
    %5750 = vmatpush1.bf16.msra.mxu0 0
    %5751 = vmatprep.subr.bf16.mxu0 0
    %5752 = vmatpush1.bf16.msra.mxu0 0
    %5753 = vmatprep.mubr.bf16.mxu0 0
    %5754 = vmatmul.mubr.bf16.gmra.mrb[0].mxu0 %v3373
    %v5755 = vpop.f32.mrb[0].mxu0
    %v5756 = vadd.f32 0.0, %v5755
    %v5757 = vpop.f32.mrb[0].mxu0
    %v5758 = vpop.f32.mrb[0].mxu0
    %v5759 = vpop.f32.mrb[0].mxu0
    %5760 = vdwg.mxu0
    %5761 = vmatprep.subr.bf16.mxu0 0
    %5762 = vmatpush1.bf16.msra.mxu0 %v5520
    %5763 = vmatprep.subr.bf16.mxu0 0
    %5764 = vmatpush1.bf16.msra.mxu0 0
    %5765 = vmatprep.subr.bf16.mxu0 0
    %5766 = vmatpush1.bf16.msra.mxu0 0
    %5767 = vmatprep.subr.bf16.mxu0 0
    %5768 = vmatpush1.bf16.msra.mxu0 0
    %5769 = vmatprep.subr.bf16.mxu0 0
    %5770 = vmatpush1.bf16.msra.mxu0 0
    %5771 = vmatprep.subr.bf16.mxu0 0
    %5772 = vmatpush1.bf16.msra.mxu0 0
    %5773 = vmatprep.subr.bf16.mxu0 0
    %5774 = vmatpush1.bf16.msra.mxu0 0
    %5775 = vmatprep.subr.bf16.mxu0 0
    %5776 = vmatpush1.bf16.msra.mxu0 0
    %5777 = vmatprep.subr.bf16.mxu0 0
    %5778 = vmatpush1.bf16.msra.mxu0 0
    %5779 = vmatprep.subr.bf16.mxu0 0
    %5780 = vmatpush1.bf16.msra.mxu0 0
    %5781 = vmatprep.subr.bf16.mxu0 0
    %5782 = vmatpush1.bf16.msra.mxu0 0
    %5783 = vmatprep.subr.bf16.mxu0 0
    %5784 = vmatpush1.bf16.msra.mxu0 0
    %5785 = vmatprep.subr.bf16.mxu0 0
    %5786 = vmatpush1.bf16.msra.mxu0 0
    %5787 = vmatprep.subr.bf16.mxu0 0
    %5788 = vmatpush1.bf16.msra.mxu0 0
    %5789 = vmatprep.subr.bf16.mxu0 0
    %5790 = vmatpush1.bf16.msra.mxu0 0
    %5791 = vmatprep.subr.bf16.mxu0 0
    %5792 = vmatpush1.bf16.msra.mxu0 0
    %5793 = vmatprep.mubr.bf16.mxu0 0
    %5794 = vmatmul.mubr.bf16.gmra.mrb[0].mxu0 %v3418
    %v5795 = vpop.f32.mrb[0].mxu0
    %v5796 = vadd.f32 0.0, %v5795
    %v5797 = vpop.f32.mrb[0].mxu0
    %v5798 = vpop.f32.mrb[0].mxu0
    %v5799 = vpop.f32.mrb[0].mxu0
    %5800 = vdwg.mxu0
    %5801 = vmatprep.subr.bf16.mxu0 0
    %5802 = vmatpush1.bf16.msra.mxu0 %v5520
    %5803 = vmatprep.subr.bf16.mxu0 0
    %5804 = vmatpush1.bf16.msra.mxu0 0
    %5805 = vmatprep.subr.bf16.mxu0 0
    %5806 = vmatpush1.bf16.msra.mxu0 0
    %5807 = vmatprep.subr.bf16.mxu0 0
    %5808 = vmatpush1.bf16.msra.mxu0 0
    %5809 = vmatprep.subr.bf16.mxu0 0
    %5810 = vmatpush1.bf16.msra.mxu0 0
    %5811 = vmatprep.subr.bf16.mxu0 0
    %5812 = vmatpush1.bf16.msra.mxu0 0
    %5813 = vmatprep.subr.bf16.mxu0 0
    %5814 = vmatpush1.bf16.msra.mxu0 0
    %5815 = vmatprep.subr.bf16.mxu0 0
    %5816 = vmatpush1.bf16.msra.mxu0 0
    %5817 = vmatprep.subr.bf16.mxu0 0
    %5818 = vmatpush1.bf16.msra.mxu0 0
    %5819 = vmatprep.subr.bf16.mxu0 0
    %5820 = vmatpush1.bf16.msra.mxu0 0
    %5821 = vmatprep.subr.bf16.mxu0 0
    %5822 = vmatpush1.bf16.msra.mxu0 0
    %5823 = vmatprep.subr.bf16.mxu0 0
    %5824 = vmatpush1.bf16.msra.mxu0 0
    %5825 = vmatprep.subr.bf16.mxu0 0
    %5826 = vmatpush1.bf16.msra.mxu0 0
    %5827 = vmatprep.subr.bf16.mxu0 0
    %5828 = vmatpush1.bf16.msra.mxu0 0
    %5829 = vmatprep.subr.bf16.mxu0 0
    %5830 = vmatpush1.bf16.msra.mxu0 0
    %5831 = vmatprep.subr.bf16.mxu0 0
    %5832 = vmatpush1.bf16.msra.mxu0 0
    %5833 = vmatprep.mubr.bf16.mxu0 0
    %5834 = vmatmul.mubr.bf16.gmra.mrb[0].mxu0 %v3463
    %v5835 = vpop.f32.mrb[0].mxu0
    %v5836 = vadd.f32 0.0, %v5835
    %v5837 = vpop.f32.mrb[0].mxu0
    %v5838 = vpop.f32.mrb[0].mxu0
    %v5839 = vpop.f32.mrb[0].mxu0
    %5840 = vdwg.mxu0
    %5841 = vmatprep.subr.bf16.mxu0 0
    %5842 = vmatpush1.bf16.msra.mxu0 %v5520
    %5843 = vmatprep.subr.bf16.mxu0 0
    %5844 = vmatpush1.bf16.msra.mxu0 0
    %5845 = vmatprep.subr.bf16.mxu0 0
    %5846 = vmatpush1.bf16.msra.mxu0 0
    %5847 = vmatprep.subr.bf16.mxu0 0
    %5848 = vmatpush1.bf16.msra.mxu0 0
    %5849 = vmatprep.subr.bf16.mxu0 0
    %5850 = vmatpush1.bf16.msra.mxu0 0
    %5851 = vmatprep.subr.bf16.mxu0 0
    %5852 = vmatpush1.bf16.msra.mxu0 0
    %5853 = vmatprep.subr.bf16.mxu0 0
    %5854 = vmatpush1.bf16.msra.mxu0 0
    %5855 = vmatprep.subr.bf16.mxu0 0
    %5856 = vmatpush1.bf16.msra.mxu0 0
    %5857 = vmatprep.subr.bf16.mxu0 0
    %5858 = vmatpush1.bf16.msra.mxu0 0
    %5859 = vmatprep.subr.bf16.mxu0 0
    %5860 = vmatpush1.bf16.msra.mxu0 0
    %5861 = vmatprep.subr.bf16.mxu0 0
    %5862 = vmatpush1.bf16.msra.mxu0 0
    %5863 = vmatprep.subr.bf16.mxu0 0
    %5864 = vmatpush1.bf16.msra.mxu0 0
    %5865 = vmatprep.subr.bf16.mxu0 0
    %5866 = vmatpush1.bf16.msra.mxu0 0
    %5867 = vmatprep.subr.bf16.mxu0 0
    %5868 = vmatpush1.bf16.msra.mxu0 0
    %5869 = vmatprep.subr.bf16.mxu0 0
    %5870 = vmatpush1.bf16.msra.mxu0 0
    %5871 = vmatprep.subr.bf16.mxu0 0
    %5872 = vmatpush1.bf16.msra.mxu0 0
    %5873 = vmatprep.mubr.bf16.mxu0 0
    %5874 = vmatmul.mubr.bf16.gmra.mrb[0].mxu0 %v3508
    %v5875 = vpop.f32.mrb[0].mxu0
    %v5876 = vadd.f32 0.0, %v5875
    %v5877 = vpop.f32.mrb[0].mxu0
    %v5878 = vpop.f32.mrb[0].mxu0
    %v5879 = vpop.f32.mrb[0].mxu0
    %5880 = vdwg.mxu0
    %5882 = vrot.lane.b32.xlu0 %v5596, 64
    %v5883 = vpop.permute.xlu0 %5882
    %5886 = vrot.lane.b32.xlu0 %v5676, 64
    %v5887 = vpop.permute.xlu0 %5886
    %5890 = vrot.lane.b32.xlu0 %v5756, 64
    %v5891 = vpop.permute.xlu0 %5890
    %5894 = vrot.lane.b32.xlu0 %v5836, 64
    %v5895 = vpop.permute.xlu0 %5894
    %v5897 = vsel %vm2145, %v5556, %v5883
    %v5898 = vsel %vm2145, %v5636, %v5887
    %v5899 = vsel %vm2145, %v5716, %v5891
    %v5900 = vsel %vm2145, %v5796, %v5895
    %v5901 = vpack.c.bf16 %v5897, %v5897
    %v5902 = vpack.c.bf16 %v5898, %v5898
    %v5903 = vpack.c.bf16 %v5899, %v5899
    %v5904 = vpack.c.bf16 %v5900, %v5900
    %v5905 = vpack.c.bf16 %v5876, %v5876
    %v5907 = vsel %vm2145, %v5905, 0
    %5909 = vmatprep.subr.bf16.mxu0 0
    %5910 = vmatpush1.bf16.msra.mxu0 %v3798
    %5911 = vmatprep.subr.bf16.mxu0 0
    %5912 = vmatpush1.bf16.msra.mxu0 %v3799
    %5913 = vmatprep.subr.bf16.mxu0 0
    %5914 = vmatpush1.bf16.msra.mxu0 %v3800
    %5915 = vmatprep.subr.bf16.mxu0 0
    %5916 = vmatpush1.bf16.msra.mxu0 %v3801
    %5917 = vmatprep.subr.bf16.mxu0 0
    %5918 = vmatpush1.bf16.msra.mxu0 %v3802
    %5919 = vmatprep.subr.bf16.mxu0 0
    %5920 = vmatpush1.bf16.msra.mxu0 %v3803
    %5921 = vmatprep.subr.bf16.mxu0 0
    %5922 = vmatpush1.bf16.msra.mxu0 %v3804
    %5923 = vmatprep.subr.bf16.mxu0 0
    %5924 = vmatpush1.bf16.msra.mxu0 %v3805
    %5925 = vmatprep.subr.bf16.mxu0 0
    %5926 = vmatpush1.bf16.msra.mxu0 %v3806
    %5927 = vmatprep.subr.bf16.mxu0 0
    %5928 = vmatpush1.bf16.msra.mxu0 %v3807
    %5929 = vmatprep.subr.bf16.mxu0 0
    %5930 = vmatpush1.bf16.msra.mxu0 %v3808
    %5931 = vmatprep.subr.bf16.mxu0 0
    %5932 = vmatpush1.bf16.msra.mxu0 %v3809
    %5933 = vmatprep.subr.bf16.mxu0 0
    %5934 = vmatpush1.bf16.msra.mxu0 %v3810
    %5935 = vmatprep.subr.bf16.mxu0 0
    %5936 = vmatpush1.bf16.msra.mxu0 %v3811
    %5937 = vmatprep.subr.bf16.mxu0 0
    %5938 = vmatpush1.bf16.msra.mxu0 %v3812
    %5939 = vmatprep.subr.bf16.mxu0 0
    %5940 = vmatpush1.bf16.msra.mxu0 %v3813
    %5941 = vmatprep.mubr.bf16.mxu0 %v5902
    %5942 = vmatmul.mubr.bf16.gmra.mrb[0].mxu0 %v5901
    %v5943 = vpop.f32.mrb[0].mxu0
    %v5944 = vadd.f32 %v3652, %v5943
    %v5945 = vpop.f32.mrb[0].mxu0
    %v5946 = vpop.f32.mrb[0].mxu0
    %v5947 = vpop.f32.mrb[0].mxu0
    %5948 = vdwg.mxu0
    %5949 = vmatprep.subr.bf16.mxu0 0
    %5950 = vmatpush1.bf16.msra.mxu0 %v3814
    %5951 = vmatprep.subr.bf16.mxu0 0
    %5952 = vmatpush1.bf16.msra.mxu0 %v3815
    %5953 = vmatprep.subr.bf16.mxu0 0
    %5954 = vmatpush1.bf16.msra.mxu0 %v3816
    %5955 = vmatprep.subr.bf16.mxu0 0
    %5956 = vmatpush1.bf16.msra.mxu0 %v3817
    %5957 = vmatprep.subr.bf16.mxu0 0
    %5958 = vmatpush1.bf16.msra.mxu0 %v3818
    %5959 = vmatprep.subr.bf16.mxu0 0
    %5960 = vmatpush1.bf16.msra.mxu0 %v3819
    %5961 = vmatprep.subr.bf16.mxu0 0
    %5962 = vmatpush1.bf16.msra.mxu0 %v3820
    %5963 = vmatprep.subr.bf16.mxu0 0
    %5964 = vmatpush1.bf16.msra.mxu0 %v3821
    %5965 = vmatprep.subr.bf16.mxu0 0
    %5966 = vmatpush1.bf16.msra.mxu0 %v3822
    %5967 = vmatprep.subr.bf16.mxu0 0
    %5968 = vmatpush1.bf16.msra.mxu0 %v3823
    %5969 = vmatprep.subr.bf16.mxu0 0
    %5970 = vmatpush1.bf16.msra.mxu0 %v3824
    %5971 = vmatprep.subr.bf16.mxu0 0
    %5972 = vmatpush1.bf16.msra.mxu0 %v3825
    %5973 = vmatprep.subr.bf16.mxu0 0
    %5974 = vmatpush1.bf16.msra.mxu0 %v3826
    %5975 = vmatprep.subr.bf16.mxu0 0
    %5976 = vmatpush1.bf16.msra.mxu0 %v3827
    %5977 = vmatprep.subr.bf16.mxu0 0
    %5978 = vmatpush1.bf16.msra.mxu0 %v3828
    %5979 = vmatprep.subr.bf16.mxu0 0
    %5980 = vmatpush1.bf16.msra.mxu0 %v3829
    %5981 = vmatprep.mubr.bf16.mxu0 %v5904
    %5982 = vmatmul.mubr.bf16.gmra.mrb[0].mxu0 %v5903
    %v5983 = vpop.f32.mrb[0].mxu0
    %v5984 = vadd.f32 %v5944, %v5983
    %v5985 = vpop.f32.mrb[0].mxu0
    %v5986 = vpop.f32.mrb[0].mxu0
    %v5987 = vpop.f32.mrb[0].mxu0
    %5988 = vdwg.mxu0
    %5989 = vmatprep.subr.bf16.mxu0 0
    %5990 = vmatpush1.bf16.msra.mxu0 %v3830
    %5991 = vmatprep.subr.bf16.mxu0 0
    %5992 = vmatpush1.bf16.msra.mxu0 %v3831
    %5993 = vmatprep.subr.bf16.mxu0 0
    %5994 = vmatpush1.bf16.msra.mxu0 %v3832
    %5995 = vmatprep.subr.bf16.mxu0 0
    %5996 = vmatpush1.bf16.msra.mxu0 %v3833
    %5997 = vmatprep.subr.bf16.mxu0 0
    %5998 = vmatpush1.bf16.msra.mxu0 0
    %5999 = vmatprep.subr.bf16.mxu0 0
    %6000 = vmatpush1.bf16.msra.mxu0 0
    %6001 = vmatprep.subr.bf16.mxu0 0
    %6002 = vmatpush1.bf16.msra.mxu0 0
    %6003 = vmatprep.subr.bf16.mxu0 0
    %6004 = vmatpush1.bf16.msra.mxu0 0
    %6005 = vmatprep.subr.bf16.mxu0 0
    %6006 = vmatpush1.bf16.msra.mxu0 0
    %6007 = vmatprep.subr.bf16.mxu0 0
    %6008 = vmatpush1.bf16.msra.mxu0 0
    %6009 = vmatprep.subr.bf16.mxu0 0
    %6010 = vmatpush1.bf16.msra.mxu0 0
    %6011 = vmatprep.subr.bf16.mxu0 0
    %6012 = vmatpush1.bf16.msra.mxu0 0
    %6013 = vmatprep.subr.bf16.mxu0 0
    %6014 = vmatpush1.bf16.msra.mxu0 0
    %6015 = vmatprep.subr.bf16.mxu0 0
    %6016 = vmatpush1.bf16.msra.mxu0 0
    %6017 = vmatprep.subr.bf16.mxu0 0
    %6018 = vmatpush1.bf16.msra.mxu0 0
    %6019 = vmatprep.subr.bf16.mxu0 0
    %6020 = vmatpush1.bf16.msra.mxu0 0
    %6021 = vmatprep.mubr.bf16.mxu0 0
    %6022 = vmatmul.mubr.bf16.gmra.mrb[0].mxu0 %v5907
    %v6023 = vpop.f32.mrb[0].mxu0
    %v6024 = vadd.f32 %v5984, %v6023
    %v6025 = vpop.f32.mrb[0].mxu0
    %v6026 = vpop.f32.mrb[0].mxu0
    %v6027 = vpop.f32.mrb[0].mxu0
    %6028 = vdwg.mxu0
    %vm6029 = vcmp.ge.f32.partialorder %v6024, 0.0
    %v6030 = vmul.f32 %v6024, 0.01
    %v6031 = vsel %vm6029, %v6024, %v6030
    %v6033 = vrot.slane %v6031, 1
    %v6034 = vrot.slane %v6031, 2
    %v6035 = vrot.slane %v6031, 3
    %v6036 = vrot.slane %v6031, 7
    %v6037 = vrot.slane %v6033, 7
    %v6038 = vrot.slane %v6034, 7
    %v6039 = vrot.slane %v6035, 7
    %vm6044 = vcmask 1040384
    %v6045 = vsel %vm6044, %v3995, %v6036
    %v6046 = vsel %vm6044, %v3997, %v6037
    %v6047 = vsel %vm6044, %v3999, %v6038
    %v6048 = vsel %vm6044, %v4001, %v6039
    %v6049 = vpack.c.bf16 %v6045, %v6045
    %v6050 = vpack.c.bf16 %v6046, %v6046
    %v6051 = vpack.c.bf16 %v6047, %v6047
    %v6052 = vpack.c.bf16 %v6048, %v6048
    %v6053 = vld [vmem:[%s29] sm:$0xff]
    %v6054 = vld [vmem:[%s29 + $0x8] sm:$0xff]
    %v6055 = vld [vmem:[%s29 + $0x10] sm:$0xff]
    %v6056 = vld [vmem:[%s29 + $0x18] sm:$0xff]
    %v6057 = vld [vmem:[%s29 + $0x20] sm:$0xff]
    %v6058 = vld [vmem:[%s29 + $0x28] sm:$0xff]
    %v6059 = vld [vmem:[%s29 + $0x30] sm:$0xff]
    %v6060 = vld [vmem:[%s29 + $0x38] sm:$0xff]
    %v6061 = vld [vmem:[%s29 + $0x40] sm:$0xff]
    %v6062 = vld [vmem:[%s29 + $0x48] sm:$0xff]
    %v6063 = vld [vmem:[%s29 + $0x50] sm:$0xff]
    %v6064 = vld [vmem:[%s29 + $0x58] sm:$0xff]
    %v6065 = vld [vmem:[%s29 + $0x60] sm:$0xff]
    %v6066 = vld [vmem:[%s29 + $0x68] sm:$0xff]
    %v6067 = vld [vmem:[%s29 + $0x70] sm:$0xff]
    %v6068 = vld [vmem:[%s29 + $0x78] sm:$0xff]
    %v6069 = vld [vmem:[%s29 + $0x80] sm:$0xff]
    %v6070 = vld [vmem:[%s29 + $0x88] sm:$0xff]
    %v6071 = vld [vmem:[%s29 + $0x90] sm:$0xff]
    %v6072 = vld [vmem:[%s29 + $0x98] sm:$0xff]
    %v6073 = vld [vmem:[%s29 + $0xa0] sm:$0xff]
    %v6074 = vld [vmem:[%s29 + $0xa8] sm:$0xff]
    %v6075 = vld [vmem:[%s29 + $0xb0] sm:$0xff]
    %v6076 = vld [vmem:[%s29 + $0xb8] sm:$0xff]
    %v6077 = vld [vmem:[%s29 + $0xc0] sm:$0xff]
    %v6078 = vld [vmem:[%s29 + $0xc8] sm:$0xff]
    %v6079 = vld [vmem:[%s29 + $0xd0] sm:$0xff]
    %v6080 = vld [vmem:[%s29 + $0xd8] sm:$0xff]
    %v6081 = vld [vmem:[%s29 + $0xe0] sm:$0xff]
    %v6082 = vld [vmem:[%s29 + $0xe8] sm:$0xff]
    %v6083 = vld [vmem:[%s29 + $0xf0] sm:$0xff]
    %v6084 = vld [vmem:[%s29 + $0xf8] sm:$0xff]
    %v6085 = vld [vmem:[%s29 + $0x100] sm:$0xff]
    %v6086 = vld [vmem:[%s29 + $0x108] sm:$0xff]
    %v6087 = vld [vmem:[%s29 + $0x110] sm:$0xff]
    %v6088 = vld [vmem:[%s29 + $0x118] sm:$0xff]
    %v6089 = vld [vmem:[%s29 + $0x120] sm:$0xff]
    %v6090 = vld [vmem:[%s29 + $0x128] sm:$0xff]
    %v6091 = vld [vmem:[%s29 + $0x130] sm:$0xff]
    %v6092 = vld [vmem:[%s29 + $0x138] sm:$0xff]
    %v6093 = vld [vmem:[%s29 + $0x140] sm:$0xff]
    %v6094 = vld [vmem:[%s29 + $0x148] sm:$0xff]
    %v6095 = vld [vmem:[%s29 + $0x150] sm:$0xff]
    %v6096 = vld [vmem:[%s29 + $0x158] sm:$0xff]
    %v6097 = vld [vmem:[%s29 + $0x160] sm:$0xff]
    %v6098 = vld [vmem:[%s29 + $0x168] sm:$0xff]
    %v6099 = vld [vmem:[%s29 + $0x170] sm:$0xff]
    %v6100 = vld [vmem:[%s29 + $0x178] sm:$0xff]
    %v6101 = vld [vmem:[%s29 + $0x180] sm:$0xff]
    %v6102 = vld [vmem:[%s29 + $0x188] sm:$0xff]
    %v6103 = vld [vmem:[%s29 + $0x190] sm:$0xff]
    %v6104 = vld [vmem:[%s29 + $0x198] sm:$0xff]
    %v6105 = vld [vmem:[%s29 + $0x1a0] sm:$0xff]
    %v6106 = vld [vmem:[%s29 + $0x1a8] sm:$0xff]
    %v6107 = vld [vmem:[%s29 + $0x1b0] sm:$0xff]
    %v6108 = vld [vmem:[%s29 + $0x1b8] sm:$0xff]
    %v6109 = vld [vmem:[%s29 + $0x1c0] sm:$0xff]
    %v6110 = vld [vmem:[%s29 + $0x1c8] sm:$0xff]
    %v6111 = vld [vmem:[%s29 + $0x1d0] sm:$0xff]
    %v6112 = vld [vmem:[%s29 + $0x1d8] sm:$0xff]
    %v6113 = vld [vmem:[%s29 + $0x1e0] sm:$0xff]
    %v6114 = vld [vmem:[%s29 + $0x1e8] sm:$0xff]
    %v6115 = vld [vmem:[%s29 + $0x1f0] sm:$0xff]
    %v6116 = vld [vmem:[%s29 + $0x1f8] sm:$0xff]
    %v6117 = vld [vmem:[%s29 + $0x200] sm:$0xff]
    %v6118 = vld [vmem:[%s29 + $0x208] sm:$0xff]
    %v6119 = vld [vmem:[%s29 + $0x210] sm:$0xff]
    %v6120 = vld [vmem:[%s29 + $0x218] sm:$0xff]
    %v6121 = vld [vmem:[%s29 + $0x220] sm:$0xff]
    %v6122 = vld [vmem:[%s29 + $0x228] sm:$0xff]
    %v6123 = vld [vmem:[%s29 + $0x230] sm:$0xff]
    %v6124 = vld [vmem:[%s29 + $0x238] sm:$0xff]
    %v6125 = vld [vmem:[%s29 + $0x240] sm:$0xff]
    %v6126 = vld [vmem:[%s29 + $0x248] sm:$0xff]
    %v6127 = vld [vmem:[%s29 + $0x250] sm:$0xff]
    %v6128 = vld [vmem:[%s29 + $0x258] sm:$0xff]
    %v6129 = vld [vmem:[%s29 + $0x260] sm:$0xff]
    %v6130 = vld [vmem:[%s29 + $0x268] sm:$0xff]
    %v6131 = vld [vmem:[%s29 + $0x270] sm:$0xff]
    %v6132 = vld [vmem:[%s29 + $0x278] sm:$0xff]
    %v6133 = vld [vmem:[%s29 + $0x280] sm:$0xff]
    %v6134 = vld [vmem:[%s29 + $0x288] sm:$0xff]
    %v6135 = vld [vmem:[%s29 + $0x290] sm:$0xff]
    %v6136 = vld [vmem:[%s29 + $0x298] sm:$0xff]
    %v6137 = vld [vmem:[%s29 + $0x2a0] sm:$0xff]
    %v6138 = vld [vmem:[%s29 + $0x2a8] sm:$0xff]
    %v6139 = vld [vmem:[%s29 + $0x2b0] sm:$0xff]
    %v6140 = vld [vmem:[%s29 + $0x2b8] sm:$0xff]
    %v6141 = vld [vmem:[%s29 + $0x2c0] sm:$0xff]
    %v6142 = vld [vmem:[%s29 + $0x2c8] sm:$0xff]
    %v6143 = vld [vmem:[%s29 + $0x2d0] sm:$0xff]
    %v6144 = vld [vmem:[%s29 + $0x2d8] sm:$0xff]
    %v6145 = vld [vmem:[%s29 + $0x2e0] sm:$0xff]
    %v6146 = vld [vmem:[%s29 + $0x2e8] sm:$0xff]
    %v6147 = vld [vmem:[%s29 + $0x2f0] sm:$0xff]
    %v6148 = vld [vmem:[%s29 + $0x2f8] sm:$0xff]
    %v6149 = vld [vmem:[%s29 + $0x300] sm:$0xff]
    %v6150 = vld [vmem:[%s29 + $0x308] sm:$0xff]
    %v6151 = vld [vmem:[%s29 + $0x310] sm:$0xff]
    %v6152 = vld [vmem:[%s29 + $0x318] sm:$0xff]
    %v6153 = vld [vmem:[%s29 + $0x320] sm:$0xff]
    %v6154 = vld [vmem:[%s29 + $0x328] sm:$0xff]
    %v6155 = vld [vmem:[%s29 + $0x330] sm:$0xff]
    %v6156 = vld [vmem:[%s29 + $0x338] sm:$0xff]
    %v6157 = vld [vmem:[%s29 + $0x340] sm:$0xff]
    %v6158 = vld [vmem:[%s29 + $0x348] sm:$0xff]
    %v6159 = vld [vmem:[%s29 + $0x350] sm:$0xff]
    %v6160 = vld [vmem:[%s29 + $0x358] sm:$0xff]
    %v6161 = vld [vmem:[%s29 + $0x360] sm:$0xff]
    %v6162 = vld [vmem:[%s29 + $0x368] sm:$0xff]
    %v6163 = vld [vmem:[%s29 + $0x370] sm:$0xff]
    %v6164 = vld [vmem:[%s29 + $0x378] sm:$0xff]
    %v6165 = vld [vmem:[%s29 + $0x380] sm:$0xff]
    %v6166 = vld [vmem:[%s29 + $0x388] sm:$0xff]
    %v6167 = vld [vmem:[%s29 + $0x390] sm:$0xff]
    %v6168 = vld [vmem:[%s29 + $0x398] sm:$0xff]
    %v6169 = vld [vmem:[%s29 + $0x3a0] sm:$0xff]
    %v6170 = vld [vmem:[%s29 + $0x3a8] sm:$0xff]
    %v6171 = vld [vmem:[%s29 + $0x3b0] sm:$0xff]
    %v6172 = vld [vmem:[%s29 + $0x3b8] sm:$0xff]
    %v6173 = vld [vmem:[%s29 + $0x3c0] sm:$0xff]
    %v6174 = vld [vmem:[%s29 + $0x3c8] sm:$0xff]
    %v6175 = vld [vmem:[%s29 + $0x3d0] sm:$0xff]
    %v6176 = vld [vmem:[%s29 + $0x3d8] sm:$0xff]
    %v6177 = vld [vmem:[%s29 + $0x3e0] sm:$0xff]
    %v6178 = vld [vmem:[%s29 + $0x3e8] sm:$0xff]
    %v6179 = vld [vmem:[%s29 + $0x3f0] sm:$0xff]
    %v6180 = vld [vmem:[%s29 + $0x3f8] sm:$0xff]
    %v6181 = vld [vmem:[%s31] sm:$0xf]
    %v6183 = vlaneseq
    %v6184 = vshrl.u32 %v6183, 7
    %v6185 = vsub.s32 0, %v6184
    %v6186 = vrot.slane %v6181, %v6185
    %v6187 = vlaneseq
    %v6188 = vshrl.u32 %v6187, 7
    %v6189 = vsub.s32 1, %v6188
    %v6190 = vrot.slane %v6181, %v6189
    %v6191 = vlaneseq
    %v6192 = vshrl.u32 %v6191, 7
    %v6193 = vsub.s32 2, %v6192
    %v6194 = vrot.slane %v6181, %v6193
    %v6195 = vlaneseq
    %v6196 = vshrl.u32 %v6195, 7
    %v6197 = vsub.s32 3, %v6196
    %v6198 = vrot.slane %v6181, %v6197
    %v6331 = vunpack.c.l.b16 %v6053
    %v6332 = vunpack.c.h.b16 %v6053
    %v6333 = vunpack.c.l.b16 %v6054
    %v6334 = vunpack.c.h.b16 %v6054
    %v6335 = vunpack.c.l.b16 %v6055
    %v6336 = vunpack.c.h.b16 %v6055
    %v6337 = vunpack.c.l.b16 %v6056
    %v6338 = vunpack.c.h.b16 %v6056
    %v6339 = vunpack.c.l.b16 %v6057
    %v6340 = vunpack.c.h.b16 %v6057
    %v6341 = vunpack.c.l.b16 %v6058
    %v6342 = vunpack.c.h.b16 %v6058
    %v6343 = vunpack.c.l.b16 %v6059
    %v6344 = vunpack.c.h.b16 %v6059
    %v6345 = vunpack.c.l.b16 %v6060
    %v6346 = vunpack.c.h.b16 %v6060
    %v6347 = vunpack.c.l.b16 %v6061
    %v6348 = vunpack.c.h.b16 %v6061
    %v6349 = vunpack.c.l.b16 %v6062
    %v6350 = vunpack.c.h.b16 %v6062
    %v6351 = vunpack.c.l.b16 %v6063
    %v6352 = vunpack.c.h.b16 %v6063
    %v6353 = vunpack.c.l.b16 %v6064
    %v6354 = vunpack.c.h.b16 %v6064
    %v6355 = vunpack.c.l.b16 %v6065
    %v6356 = vunpack.c.h.b16 %v6065
    %v6357 = vunpack.c.l.b16 %v6066
    %v6358 = vunpack.c.h.b16 %v6066
    %v6359 = vunpack.c.l.b16 %v6067
    %v6360 = vunpack.c.h.b16 %v6067
    %v6361 = vunpack.c.l.b16 %v6068
    %v6362 = vunpack.c.h.b16 %v6068
    %v6363 = vunpack.c.l.b16 %v6069
    %v6364 = vunpack.c.h.b16 %v6069
    %v6365 = vunpack.c.l.b16 %v6070
    %v6366 = vunpack.c.h.b16 %v6070
    %v6367 = vunpack.c.l.b16 %v6071
    %v6368 = vunpack.c.h.b16 %v6071
    %v6369 = vunpack.c.l.b16 %v6072
    %v6370 = vunpack.c.h.b16 %v6072
    %v6371 = vunpack.c.l.b16 %v6073
    %v6372 = vunpack.c.h.b16 %v6073
    %v6373 = vunpack.c.l.b16 %v6074
    %v6374 = vunpack.c.h.b16 %v6074
    %v6375 = vunpack.c.l.b16 %v6075
    %v6376 = vunpack.c.h.b16 %v6075
    %v6377 = vunpack.c.l.b16 %v6076
    %v6378 = vunpack.c.h.b16 %v6076
    %v6379 = vunpack.c.l.b16 %v6077
    %v6380 = vunpack.c.h.b16 %v6077
    %v6381 = vunpack.c.l.b16 %v6078
    %v6382 = vunpack.c.h.b16 %v6078
    %v6383 = vunpack.c.l.b16 %v6079
    %v6384 = vunpack.c.h.b16 %v6079
    %v6385 = vunpack.c.l.b16 %v6080
    %v6386 = vunpack.c.h.b16 %v6080
    %v6387 = vunpack.c.l.b16 %v6081
    %v6388 = vunpack.c.h.b16 %v6081
    %v6389 = vunpack.c.l.b16 %v6082
    %v6390 = vunpack.c.h.b16 %v6082
    %v6391 = vunpack.c.l.b16 %v6083
    %v6392 = vunpack.c.h.b16 %v6083
    %v6393 = vunpack.c.l.b16 %v6084
    %v6394 = vunpack.c.h.b16 %v6084
    %v6395 = vunpack.c.l.b16 %v6085
    %v6396 = vunpack.c.h.b16 %v6085
    %v6397 = vunpack.c.l.b16 %v6086
    %v6398 = vunpack.c.h.b16 %v6086
    %v6399 = vunpack.c.l.b16 %v6087
    %v6400 = vunpack.c.h.b16 %v6087
    %v6401 = vunpack.c.l.b16 %v6088
    %v6402 = vunpack.c.h.b16 %v6088
    %v6403 = vunpack.c.l.b16 %v6089
    %v6404 = vunpack.c.h.b16 %v6089
    %v6405 = vunpack.c.l.b16 %v6090
    %v6406 = vunpack.c.h.b16 %v6090
    %v6407 = vunpack.c.l.b16 %v6091
    %v6408 = vunpack.c.h.b16 %v6091
    %v6409 = vunpack.c.l.b16 %v6092
    %v6410 = vunpack.c.h.b16 %v6092
    %v6411 = vunpack.c.l.b16 %v6093
    %v6412 = vunpack.c.h.b16 %v6093
    %v6413 = vunpack.c.l.b16 %v6094
    %v6414 = vunpack.c.h.b16 %v6094
    %v6415 = vunpack.c.l.b16 %v6095
    %v6416 = vunpack.c.h.b16 %v6095
    %v6417 = vunpack.c.l.b16 %v6096
    %v6418 = vunpack.c.h.b16 %v6096
    %v6419 = vunpack.c.l.b16 %v6097
    %v6420 = vunpack.c.h.b16 %v6097
    %v6421 = vunpack.c.l.b16 %v6098
    %v6422 = vunpack.c.h.b16 %v6098
    %v6423 = vunpack.c.l.b16 %v6099
    %v6424 = vunpack.c.h.b16 %v6099
    %v6425 = vunpack.c.l.b16 %v6100
    %v6426 = vunpack.c.h.b16 %v6100
    %v6427 = vunpack.c.l.b16 %v6101
    %v6428 = vunpack.c.h.b16 %v6101
    %v6429 = vunpack.c.l.b16 %v6102
    %v6430 = vunpack.c.h.b16 %v6102
    %v6431 = vunpack.c.l.b16 %v6103
    %v6432 = vunpack.c.h.b16 %v6103
    %v6433 = vunpack.c.l.b16 %v6104
    %v6434 = vunpack.c.h.b16 %v6104
    %v6435 = vunpack.c.l.b16 %v6105
    %v6436 = vunpack.c.h.b16 %v6105
    %v6437 = vunpack.c.l.b16 %v6106
    %v6438 = vunpack.c.h.b16 %v6106
    %v6439 = vunpack.c.l.b16 %v6107
    %v6440 = vunpack.c.h.b16 %v6107
    %v6441 = vunpack.c.l.b16 %v6108
    %v6442 = vunpack.c.h.b16 %v6108
    %v6443 = vunpack.c.l.b16 %v6109
    %v6444 = vunpack.c.h.b16 %v6109
    %v6445 = vunpack.c.l.b16 %v6110
    %v6446 = vunpack.c.h.b16 %v6110
    %v6447 = vunpack.c.l.b16 %v6111
    %v6448 = vunpack.c.h.b16 %v6111
    %v6449 = vunpack.c.l.b16 %v6112
    %v6450 = vunpack.c.h.b16 %v6112
    %v6451 = vunpack.c.l.b16 %v6113
    %v6452 = vunpack.c.h.b16 %v6113
    %v6453 = vunpack.c.l.b16 %v6114
    %v6454 = vunpack.c.h.b16 %v6114
    %v6455 = vunpack.c.l.b16 %v6115
    %v6456 = vunpack.c.h.b16 %v6115
    %v6457 = vunpack.c.l.b16 %v6116
    %v6458 = vunpack.c.h.b16 %v6116
    %v6459 = vunpack.c.l.b16 %v6117
    %v6460 = vunpack.c.h.b16 %v6117
    %v6461 = vunpack.c.l.b16 %v6118
    %v6462 = vunpack.c.h.b16 %v6118
    %v6463 = vunpack.c.l.b16 %v6119
    %v6464 = vunpack.c.h.b16 %v6119
    %v6465 = vunpack.c.l.b16 %v6120
    %v6466 = vunpack.c.h.b16 %v6120
    %v6467 = vunpack.c.l.b16 %v6121
    %v6468 = vunpack.c.h.b16 %v6121
    %v6469 = vunpack.c.l.b16 %v6122
    %v6470 = vunpack.c.h.b16 %v6122
    %v6471 = vunpack.c.l.b16 %v6123
    %v6472 = vunpack.c.h.b16 %v6123
    %v6473 = vunpack.c.l.b16 %v6124
    %v6474 = vunpack.c.h.b16 %v6124
    %v6475 = vunpack.c.l.b16 %v6125
    %v6476 = vunpack.c.h.b16 %v6125
    %v6477 = vunpack.c.l.b16 %v6126
    %v6478 = vunpack.c.h.b16 %v6126
    %v6479 = vunpack.c.l.b16 %v6127
    %v6480 = vunpack.c.h.b16 %v6127
    %v6481 = vunpack.c.l.b16 %v6128
    %v6482 = vunpack.c.h.b16 %v6128
    %v6483 = vunpack.c.l.b16 %v6129
    %v6484 = vunpack.c.h.b16 %v6129
    %v6485 = vunpack.c.l.b16 %v6130
    %v6486 = vunpack.c.h.b16 %v6130
    %v6487 = vunpack.c.l.b16 %v6131
    %v6488 = vunpack.c.h.b16 %v6131
    %v6489 = vunpack.c.l.b16 %v6132
    %v6490 = vunpack.c.h.b16 %v6132
    %v6491 = vunpack.c.l.b16 %v6133
    %v6492 = vunpack.c.h.b16 %v6133
    %v6493 = vunpack.c.l.b16 %v6134
    %v6494 = vunpack.c.h.b16 %v6134
    %v6495 = vunpack.c.l.b16 %v6135
    %v6496 = vunpack.c.h.b16 %v6135
    %v6497 = vunpack.c.l.b16 %v6136
    %v6498 = vunpack.c.h.b16 %v6136
    %v6499 = vunpack.c.l.b16 %v6137
    %v6500 = vunpack.c.h.b16 %v6137
    %v6501 = vunpack.c.l.b16 %v6138
    %v6502 = vunpack.c.h.b16 %v6138
    %v6503 = vunpack.c.l.b16 %v6139
    %v6504 = vunpack.c.h.b16 %v6139
    %v6505 = vunpack.c.l.b16 %v6140
    %v6506 = vunpack.c.h.b16 %v6140
    %v6507 = vunpack.c.l.b16 %v6141
    %v6508 = vunpack.c.h.b16 %v6141
    %v6509 = vunpack.c.l.b16 %v6142
    %v6510 = vunpack.c.h.b16 %v6142
    %v6511 = vunpack.c.l.b16 %v6143
    %v6512 = vunpack.c.h.b16 %v6143
    %v6513 = vunpack.c.l.b16 %v6144
    %v6514 = vunpack.c.h.b16 %v6144
    %v6515 = vunpack.c.l.b16 %v6145
    %v6516 = vunpack.c.h.b16 %v6145
    %v6517 = vunpack.c.l.b16 %v6146
    %v6518 = vunpack.c.h.b16 %v6146
    %v6519 = vunpack.c.l.b16 %v6147
    %v6520 = vunpack.c.h.b16 %v6147
    %v6521 = vunpack.c.l.b16 %v6148
    %v6522 = vunpack.c.h.b16 %v6148
    %v6523 = vunpack.c.l.b16 %v6149
    %v6524 = vunpack.c.h.b16 %v6149
    %v6525 = vunpack.c.l.b16 %v6150
    %v6526 = vunpack.c.h.b16 %v6150
    %v6527 = vunpack.c.l.b16 %v6151
    %v6528 = vunpack.c.h.b16 %v6151
    %v6529 = vunpack.c.l.b16 %v6152
    %v6530 = vunpack.c.h.b16 %v6152
    %v6531 = vunpack.c.l.b16 %v6153
    %v6532 = vunpack.c.h.b16 %v6153
    %v6533 = vunpack.c.l.b16 %v6154
    %v6534 = vunpack.c.h.b16 %v6154
    %v6535 = vunpack.c.l.b16 %v6155
    %v6536 = vunpack.c.h.b16 %v6155
    %v6537 = vunpack.c.l.b16 %v6156
    %v6538 = vunpack.c.h.b16 %v6156
    %v6539 = vunpack.c.l.b16 %v6157
    %v6540 = vunpack.c.h.b16 %v6157
    %v6541 = vunpack.c.l.b16 %v6158
    %v6542 = vunpack.c.h.b16 %v6158
    %v6543 = vunpack.c.l.b16 %v6159
    %v6544 = vunpack.c.h.b16 %v6159
    %v6545 = vunpack.c.l.b16 %v6160
    %v6546 = vunpack.c.h.b16 %v6160
    %v6547 = vunpack.c.l.b16 %v6161
    %v6548 = vunpack.c.h.b16 %v6161
    %v6549 = vunpack.c.l.b16 %v6162
    %v6550 = vunpack.c.h.b16 %v6162
    %v6551 = vunpack.c.l.b16 %v6163
    %v6552 = vunpack.c.h.b16 %v6163
    %v6553 = vunpack.c.l.b16 %v6164
    %v6554 = vunpack.c.h.b16 %v6164
    %v6555 = vunpack.c.l.b16 %v6165
    %v6556 = vunpack.c.h.b16 %v6165
    %v6557 = vunpack.c.l.b16 %v6166
    %v6558 = vunpack.c.h.b16 %v6166
    %v6559 = vunpack.c.l.b16 %v6167
    %v6560 = vunpack.c.h.b16 %v6167
    %v6561 = vunpack.c.l.b16 %v6168
    %v6562 = vunpack.c.h.b16 %v6168
    %v6563 = vunpack.c.l.b16 %v6169
    %v6564 = vunpack.c.h.b16 %v6169
    %v6565 = vunpack.c.l.b16 %v6170
    %v6566 = vunpack.c.h.b16 %v6170
    %v6567 = vunpack.c.l.b16 %v6171
    %v6568 = vunpack.c.h.b16 %v6171
    %v6569 = vunpack.c.l.b16 %v6172
    %v6570 = vunpack.c.h.b16 %v6172
    %v6571 = vunpack.c.l.b16 %v6173
    %v6572 = vunpack.c.h.b16 %v6173
    %v6573 = vunpack.c.l.b16 %v6174
    %v6574 = vunpack.c.h.b16 %v6174
    %v6575 = vunpack.c.l.b16 %v6175
    %v6576 = vunpack.c.h.b16 %v6175
    %v6577 = vunpack.c.l.b16 %v6176
    %v6578 = vunpack.c.h.b16 %v6176
    %v6579 = vunpack.c.l.b16 %v6177
    %v6580 = vunpack.c.h.b16 %v6177
    %v6581 = vunpack.c.l.b16 %v6178
    %v6582 = vunpack.c.h.b16 %v6178
    %v6583 = vunpack.c.l.b16 %v6179
    %v6584 = vunpack.c.h.b16 %v6179
    %v6585 = vunpack.c.l.b16 %v6180
    %v6586 = vunpack.c.h.b16 %v6180
    %v6587 = vpack.c.b16 %v6335, %v6331
    %v6588 = vpack.c.b16 %v6336, %v6332
    %v6589 = vpack.c.b16 %v6337, %v6333
    %v6590 = vpack.c.b16 %v6338, %v6334
    %v6591 = vpack.c.b16 %v6343, %v6339
    %v6592 = vpack.c.b16 %v6344, %v6340
    %v6593 = vpack.c.b16 %v6345, %v6341
    %v6594 = vpack.c.b16 %v6346, %v6342
    %v6595 = vpack.c.b16 %v6351, %v6347
    %v6596 = vpack.c.b16 %v6352, %v6348
    %v6597 = vpack.c.b16 %v6353, %v6349
    %v6598 = vpack.c.b16 %v6354, %v6350
    %v6599 = vpack.c.b16 %v6359, %v6355
    %v6600 = vpack.c.b16 %v6360, %v6356
    %v6601 = vpack.c.b16 %v6361, %v6357
    %v6602 = vpack.c.b16 %v6362, %v6358
    %v6603 = vpack.c.b16 %v6367, %v6363
    %v6604 = vpack.c.b16 %v6368, %v6364
    %v6605 = vpack.c.b16 %v6369, %v6365
    %v6606 = vpack.c.b16 %v6370, %v6366
    %v6607 = vpack.c.b16 %v6375, %v6371
    %v6608 = vpack.c.b16 %v6376, %v6372
    %v6609 = vpack.c.b16 %v6377, %v6373
    %v6610 = vpack.c.b16 %v6378, %v6374
    %v6611 = vpack.c.b16 %v6383, %v6379
    %v6612 = vpack.c.b16 %v6384, %v6380
    %v6613 = vpack.c.b16 %v6385, %v6381
    %v6614 = vpack.c.b16 %v6386, %v6382
    %v6615 = vpack.c.b16 %v6391, %v6387
    %v6616 = vpack.c.b16 %v6392, %v6388
    %v6617 = vpack.c.b16 %v6393, %v6389
    %v6618 = vpack.c.b16 %v6394, %v6390
    %v6619 = vpack.c.b16 %v6399, %v6395
    %v6620 = vpack.c.b16 %v6400, %v6396
    %v6621 = vpack.c.b16 %v6401, %v6397
    %v6622 = vpack.c.b16 %v6402, %v6398
    %v6623 = vpack.c.b16 %v6407, %v6403
    %v6624 = vpack.c.b16 %v6408, %v6404
    %v6625 = vpack.c.b16 %v6409, %v6405
    %v6626 = vpack.c.b16 %v6410, %v6406
    %v6627 = vpack.c.b16 %v6415, %v6411
    %v6628 = vpack.c.b16 %v6416, %v6412
    %v6629 = vpack.c.b16 %v6417, %v6413
    %v6630 = vpack.c.b16 %v6418, %v6414
    %v6631 = vpack.c.b16 %v6423, %v6419
    %v6632 = vpack.c.b16 %v6424, %v6420
    %v6633 = vpack.c.b16 %v6425, %v6421
    %v6634 = vpack.c.b16 %v6426, %v6422
    %v6635 = vpack.c.b16 %v6431, %v6427
    %v6636 = vpack.c.b16 %v6432, %v6428
    %v6637 = vpack.c.b16 %v6433, %v6429
    %v6638 = vpack.c.b16 %v6434, %v6430
    %v6639 = vpack.c.b16 %v6439, %v6435
    %v6640 = vpack.c.b16 %v6440, %v6436
    %v6641 = vpack.c.b16 %v6441, %v6437
    %v6642 = vpack.c.b16 %v6442, %v6438
    %v6643 = vpack.c.b16 %v6447, %v6443
    %v6644 = vpack.c.b16 %v6448, %v6444
    %v6645 = vpack.c.b16 %v6449, %v6445
    %v6646 = vpack.c.b16 %v6450, %v6446
    %v6647 = vpack.c.b16 %v6455, %v6451
    %v6648 = vpack.c.b16 %v6456, %v6452
    %v6649 = vpack.c.b16 %v6457, %v6453
    %v6650 = vpack.c.b16 %v6458, %v6454
    %v6651 = vpack.c.b16 %v6463, %v6459
    %v6652 = vpack.c.b16 %v6464, %v6460
    %v6653 = vpack.c.b16 %v6465, %v6461
    %v6654 = vpack.c.b16 %v6466, %v6462
    %v6655 = vpack.c.b16 %v6471, %v6467
    %v6656 = vpack.c.b16 %v6472, %v6468
    %v6657 = vpack.c.b16 %v6473, %v6469
    %v6658 = vpack.c.b16 %v6474, %v6470
    %v6659 = vpack.c.b16 %v6479, %v6475
    %v6660 = vpack.c.b16 %v6480, %v6476
    %v6661 = vpack.c.b16 %v6481, %v6477
    %v6662 = vpack.c.b16 %v6482, %v6478
    %v6663 = vpack.c.b16 %v6487, %v6483
    %v6664 = vpack.c.b16 %v6488, %v6484
    %v6665 = vpack.c.b16 %v6489, %v6485
    %v6666 = vpack.c.b16 %v6490, %v6486
    %v6667 = vpack.c.b16 %v6495, %v6491
    %v6668 = vpack.c.b16 %v6496, %v6492
    %v6669 = vpack.c.b16 %v6497, %v6493
    %v6670 = vpack.c.b16 %v6498, %v6494
    %v6671 = vpack.c.b16 %v6503, %v6499
    %v6672 = vpack.c.b16 %v6504, %v6500
    %v6673 = vpack.c.b16 %v6505, %v6501
    %v6674 = vpack.c.b16 %v6506, %v6502
    %v6675 = vpack.c.b16 %v6511, %v6507
    %v6676 = vpack.c.b16 %v6512, %v6508
    %v6677 = vpack.c.b16 %v6513, %v6509
    %v6678 = vpack.c.b16 %v6514, %v6510
    %v6679 = vpack.c.b16 %v6519, %v6515
    %v6680 = vpack.c.b16 %v6520, %v6516
    %v6681 = vpack.c.b16 %v6521, %v6517
    %v6682 = vpack.c.b16 %v6522, %v6518
    %v6683 = vpack.c.b16 %v6527, %v6523
    %v6684 = vpack.c.b16 %v6528, %v6524
    %v6685 = vpack.c.b16 %v6529, %v6525
    %v6686 = vpack.c.b16 %v6530, %v6526
    %v6687 = vpack.c.b16 %v6535, %v6531
    %v6688 = vpack.c.b16 %v6536, %v6532
    %v6689 = vpack.c.b16 %v6537, %v6533
    %v6690 = vpack.c.b16 %v6538, %v6534
    %v6691 = vpack.c.b16 %v6543, %v6539
    %v6692 = vpack.c.b16 %v6544, %v6540
    %v6693 = vpack.c.b16 %v6545, %v6541
    %v6694 = vpack.c.b16 %v6546, %v6542
    %v6695 = vpack.c.b16 %v6551, %v6547
    %v6696 = vpack.c.b16 %v6552, %v6548
    %v6697 = vpack.c.b16 %v6553, %v6549
    %v6698 = vpack.c.b16 %v6554, %v6550
    %v6699 = vpack.c.b16 %v6559, %v6555
    %v6700 = vpack.c.b16 %v6560, %v6556
    %v6701 = vpack.c.b16 %v6561, %v6557
    %v6702 = vpack.c.b16 %v6562, %v6558
    %v6703 = vpack.c.b16 %v6567, %v6563
    %v6704 = vpack.c.b16 %v6568, %v6564
    %v6705 = vpack.c.b16 %v6569, %v6565
    %v6706 = vpack.c.b16 %v6570, %v6566
    %v6707 = vpack.c.b16 %v6575, %v6571
    %v6708 = vpack.c.b16 %v6576, %v6572
    %v6709 = vpack.c.b16 %v6577, %v6573
    %v6710 = vpack.c.b16 %v6578, %v6574
    %v6711 = vpack.c.b16 %v6583, %v6579
    %v6712 = vpack.c.b16 %v6584, %v6580
    %v6713 = vpack.c.b16 %v6585, %v6581
    %v6714 = vpack.c.b16 %v6586, %v6582
    %6843 = vmatprep.subr.bf16.mxu0 %v6588
    %6844 = vmatpush1.bf16.msra.mxu0 %v6587
    %6845 = vmatprep.subr.bf16.mxu0 %v6592
    %6846 = vmatpush1.bf16.msra.mxu0 %v6591
    %6847 = vmatprep.subr.bf16.mxu0 %v6596
    %6848 = vmatpush1.bf16.msra.mxu0 %v6595
    %6849 = vmatprep.subr.bf16.mxu0 %v6600
    %6850 = vmatpush1.bf16.msra.mxu0 %v6599
    %6851 = vmatprep.subr.bf16.mxu0 %v6604
    %6852 = vmatpush1.bf16.msra.mxu0 %v6603
    %6853 = vmatprep.subr.bf16.mxu0 %v6608
    %6854 = vmatpush1.bf16.msra.mxu0 %v6607
    %6855 = vmatprep.subr.bf16.mxu0 %v6612
    %6856 = vmatpush1.bf16.msra.mxu0 %v6611
    %6857 = vmatprep.subr.bf16.mxu0 %v6616
    %6858 = vmatpush1.bf16.msra.mxu0 %v6615
    %6859 = vmatprep.subr.bf16.mxu0 %v6620
    %6860 = vmatpush1.bf16.msra.mxu0 %v6619
    %6861 = vmatprep.subr.bf16.mxu0 %v6624
    %6862 = vmatpush1.bf16.msra.mxu0 %v6623
    %6863 = vmatprep.subr.bf16.mxu0 %v6628
    %6864 = vmatpush1.bf16.msra.mxu0 %v6627
    %6865 = vmatprep.subr.bf16.mxu0 %v6632
    %6866 = vmatpush1.bf16.msra.mxu0 %v6631
    %6867 = vmatprep.subr.bf16.mxu0 %v6636
    %6868 = vmatpush1.bf16.msra.mxu0 %v6635
    %6869 = vmatprep.subr.bf16.mxu0 %v6640
    %6870 = vmatpush1.bf16.msra.mxu0 %v6639
    %6871 = vmatprep.subr.bf16.mxu0 %v6644
    %6872 = vmatpush1.bf16.msra.mxu0 %v6643
    %6873 = vmatprep.subr.bf16.mxu0 %v6648
    %6874 = vmatpush1.bf16.msra.mxu0 %v6647
    %6875 = vmatprep.mubr.bf16.mxu0 %v6050
    %6876 = vmatmul.mubr.bf16.gmra.mrb[0].mxu0 %v6049
    %v6877 = vpop.f32.mrb[0].mxu0
    %v6878 = vadd.f32 %v6186, %v6877
    %v6879 = vpop.f32.mrb[0].mxu0
    %v6880 = vadd.f32 %v6190, %v6879
    %v6881 = vpop.f32.mrb[0].mxu0
    %v6882 = vpop.f32.mrb[0].mxu0
    %6883 = vdwg.mxu0
    %6884 = vmatprep.subr.bf16.mxu0 %v6652
    %6885 = vmatpush1.bf16.msra.mxu0 %v6651
    %6886 = vmatprep.subr.bf16.mxu0 %v6656
    %6887 = vmatpush1.bf16.msra.mxu0 %v6655
    %6888 = vmatprep.subr.bf16.mxu0 %v6660
    %6889 = vmatpush1.bf16.msra.mxu0 %v6659
    %6890 = vmatprep.subr.bf16.mxu0 %v6664
    %6891 = vmatpush1.bf16.msra.mxu0 %v6663
    %6892 = vmatprep.subr.bf16.mxu0 %v6668
    %6893 = vmatpush1.bf16.msra.mxu0 %v6667
    %6894 = vmatprep.subr.bf16.mxu0 %v6672
    %6895 = vmatpush1.bf16.msra.mxu0 %v6671
    %6896 = vmatprep.subr.bf16.mxu0 %v6676
    %6897 = vmatpush1.bf16.msra.mxu0 %v6675
    %6898 = vmatprep.subr.bf16.mxu0 %v6680
    %6899 = vmatpush1.bf16.msra.mxu0 %v6679
    %6900 = vmatprep.subr.bf16.mxu0 %v6684
    %6901 = vmatpush1.bf16.msra.mxu0 %v6683
    %6902 = vmatprep.subr.bf16.mxu0 %v6688
    %6903 = vmatpush1.bf16.msra.mxu0 %v6687
    %6904 = vmatprep.subr.bf16.mxu0 %v6692
    %6905 = vmatpush1.bf16.msra.mxu0 %v6691
    %6906 = vmatprep.subr.bf16.mxu0 %v6696
    %6907 = vmatpush1.bf16.msra.mxu0 %v6695
    %6908 = vmatprep.subr.bf16.mxu0 %v6700
    %6909 = vmatpush1.bf16.msra.mxu0 %v6699
    %6910 = vmatprep.subr.bf16.mxu0 %v6704
    %6911 = vmatpush1.bf16.msra.mxu0 %v6703
    %6912 = vmatprep.subr.bf16.mxu0 %v6708
    %6913 = vmatpush1.bf16.msra.mxu0 %v6707
    %6914 = vmatprep.subr.bf16.mxu0 %v6712
    %6915 = vmatpush1.bf16.msra.mxu0 %v6711
    %6916 = vmatprep.mubr.bf16.mxu0 %v6052
    %6917 = vmatmul.mubr.bf16.gmra.mrb[0].mxu0 %v6051
    %v6918 = vpop.f32.mrb[0].mxu0
    %v6919 = vadd.f32 %v6878, %v6918
    %v6920 = vpop.f32.mrb[0].mxu0
    %v6921 = vadd.f32 %v6880, %v6920
    %v6922 = vpop.f32.mrb[0].mxu0
    %v6923 = vpop.f32.mrb[0].mxu0
    %6924 = vdwg.mxu0
    %6925 = vmatprep.subr.bf16.mxu0 %v6590
    %6926 = vmatpush1.bf16.msra.mxu0 %v6589
    %6927 = vmatprep.subr.bf16.mxu0 %v6594
    %6928 = vmatpush1.bf16.msra.mxu0 %v6593
    %6929 = vmatprep.subr.bf16.mxu0 %v6598
    %6930 = vmatpush1.bf16.msra.mxu0 %v6597
    %6931 = vmatprep.subr.bf16.mxu0 %v6602
    %6932 = vmatpush1.bf16.msra.mxu0 %v6601
    %6933 = vmatprep.subr.bf16.mxu0 %v6606
    %6934 = vmatpush1.bf16.msra.mxu0 %v6605
    %6935 = vmatprep.subr.bf16.mxu0 %v6610
    %6936 = vmatpush1.bf16.msra.mxu0 %v6609
    %6937 = vmatprep.subr.bf16.mxu0 %v6614
    %6938 = vmatpush1.bf16.msra.mxu0 %v6613
    %6939 = vmatprep.subr.bf16.mxu0 %v6618
    %6940 = vmatpush1.bf16.msra.mxu0 %v6617
    %6941 = vmatprep.subr.bf16.mxu0 %v6622
    %6942 = vmatpush1.bf16.msra.mxu0 %v6621
    %6943 = vmatprep.subr.bf16.mxu0 %v6626
    %6944 = vmatpush1.bf16.msra.mxu0 %v6625
    %6945 = vmatprep.subr.bf16.mxu0 %v6630
    %6946 = vmatpush1.bf16.msra.mxu0 %v6629
    %6947 = vmatprep.subr.bf16.mxu0 %v6634
    %6948 = vmatpush1.bf16.msra.mxu0 %v6633
    %6949 = vmatprep.subr.bf16.mxu0 %v6638
    %6950 = vmatpush1.bf16.msra.mxu0 %v6637
    %6951 = vmatprep.subr.bf16.mxu0 %v6642
    %6952 = vmatpush1.bf16.msra.mxu0 %v6641
    %6953 = vmatprep.subr.bf16.mxu0 %v6646
    %6954 = vmatpush1.bf16.msra.mxu0 %v6645
    %6955 = vmatprep.subr.bf16.mxu0 %v6650
    %6956 = vmatpush1.bf16.msra.mxu0 %v6649
    %6957 = vmatprep.mubr.bf16.mxu0 %v6050
    %6958 = vmatmul.mubr.bf16.gmra.mrb[0].mxu0 %v6049
    %v6959 = vpop.f32.mrb[0].mxu0
    %v6960 = vadd.f32 %v6194, %v6959
    %v6961 = vpop.f32.mrb[0].mxu0
    %v6962 = vadd.f32 %v6198, %v6961
    %v6963 = vpop.f32.mrb[0].mxu0
    %v6964 = vpop.f32.mrb[0].mxu0
    %6965 = vdwg.mxu0
    %6966 = vmatprep.subr.bf16.mxu0 %v6654
    %6967 = vmatpush1.bf16.msra.mxu0 %v6653
    %6968 = vmatprep.subr.bf16.mxu0 %v6658
    %6969 = vmatpush1.bf16.msra.mxu0 %v6657
    %6970 = vmatprep.subr.bf16.mxu0 %v6662
    %6971 = vmatpush1.bf16.msra.mxu0 %v6661
    %6972 = vmatprep.subr.bf16.mxu0 %v6666
    %6973 = vmatpush1.bf16.msra.mxu0 %v6665
    %6974 = vmatprep.subr.bf16.mxu0 %v6670
    %6975 = vmatpush1.bf16.msra.mxu0 %v6669
    %6976 = vmatprep.subr.bf16.mxu0 %v6674
    %6977 = vmatpush1.bf16.msra.mxu0 %v6673
    %6978 = vmatprep.subr.bf16.mxu0 %v6678
    %6979 = vmatpush1.bf16.msra.mxu0 %v6677
    %6980 = vmatprep.subr.bf16.mxu0 %v6682
    %6981 = vmatpush1.bf16.msra.mxu0 %v6681
    %6982 = vmatprep.subr.bf16.mxu0 %v6686
    %6983 = vmatpush1.bf16.msra.mxu0 %v6685
    %6984 = vmatprep.subr.bf16.mxu0 %v6690
    %6985 = vmatpush1.bf16.msra.mxu0 %v6689
    %6986 = vmatprep.subr.bf16.mxu0 %v6694
    %6987 = vmatpush1.bf16.msra.mxu0 %v6693
    %6988 = vmatprep.subr.bf16.mxu0 %v6698
    %6989 = vmatpush1.bf16.msra.mxu0 %v6697
    %6990 = vmatprep.subr.bf16.mxu0 %v6702
    %6991 = vmatpush1.bf16.msra.mxu0 %v6701
    %6992 = vmatprep.subr.bf16.mxu0 %v6706
    %6993 = vmatpush1.bf16.msra.mxu0 %v6705
    %6994 = vmatprep.subr.bf16.mxu0 %v6710
    %6995 = vmatpush1.bf16.msra.mxu0 %v6709
    %6996 = vmatprep.subr.bf16.mxu0 %v6714
    %6997 = vmatpush1.bf16.msra.mxu0 %v6713
    %6998 = vmatprep.mubr.bf16.mxu0 %v6052
    %6999 = vmatmul.mubr.bf16.gmra.mrb[0].mxu0 %v6051
    %v7000 = vpop.f32.mrb[0].mxu0
    %v7001 = vadd.f32 %v6960, %v7000
    %v7002 = vpop.f32.mrb[0].mxu0
    %v7003 = vadd.f32 %v6962, %v7002
    %v7004 = vpop.f32.mrb[0].mxu0
    %v7005 = vpop.f32.mrb[0].mxu0
    %7006 = vdwg.mxu0
    %v7007 = vmul.f32 %v6919, 0.5
    %v7008 = vmul.f32 %v6921, 0.5
    %v7009 = vmul.f32 %v7007, 1.442695
    %v7010 = vpow.pop %v7009
    %v7011 = vmul.f32 %v7008, 1.442695
    %v7012 = vpow.pop %v7011
    %v7013 = vld [vmem:[%s5] sm:$0xf]
    %v7016 = vcombine.low %v7010, %v7012
    %v7018 = vunpack.c.l.s4 1983009808
    %v7019 = vunpack.c.0.s8 %v7018
    %v7020 = vlaneseq
    %v7021 = vshrl.u32 %v7020, 7
    %v7022 = vsub.s32 %v7019, %v7021
    %v7023 = vrot.slane %v7016, %v7022
    %v7025 = vmul.f32 %v7013, %v7023
    %v7028 = vcombine.low %v6919, %v6921
    %v7030 = vunpack.c.l.s4 1983009808
    %v7031 = vunpack.c.0.s8 %v7030
    %v7032 = vlaneseq
    %v7033 = vshrl.u32 %v7032, 7
    %v7034 = vsub.s32 %v7031, %v7033
    %v7035 = vrot.slane %v7028, %v7034
    %v7037 = vadd.f32 %v7025, %v7035
    %v7038 = vadd.f32 %v7001, 1.0
    %v7039 = vadd.f32 %v7003, 1.0
    %v7040 = vmul.f32 %v6919, %v6919
    %v7041 = vmul.f32 %v6921, %v6921
    %v7042 = vsub.f32 %v7038, %v7040
    %v7043 = vsub.f32 %v7039, %v7041
    %v7044 = vmul.f32 %v7001, 1.442695
    %v7045 = vpow.pop %v7044
    %v7046 = vmul.f32 %v7003, 1.442695
    %v7047 = vpow.pop %v7046
    %v7048 = vsub.f32 %v7042, %v7045
    %v7049 = vsub.f32 %v7043, %v7047
    %vm7050 = vcmask 1041408
    %v7051 = vsel %vm7050, %v7048, 0.0
    %v7052 = vsel %vm7050, %v7049, 0.0
    %v7053 = vadd.f32 %v7051, %v7052
    %7054 = vadd.xlane.f32.xlu0 %v7053
    %v7055 = vpop.xlane.xlu0 %7054
    %v7056 = vmul.f32 %v7055, -0.5
    %v7057 = vsel %vm7050, %v7056, 0.0
    %v7058 = vrot.slane %v7057, 4
    %v7059 = vadd.f32 %v7057, %v7058
    %v7060 = vrot.slane %v7059, 2
    %v7061 = vadd.f32 %v7059, %v7060
    %v7062 = vrot.slane %v7061, 1
    %v7063 = vadd.f32 %v7061, %v7062
    %v7064 = vrcp.pop 2.0
    %v7065 = vmul.f32 %v7063, %v7064
    %v7066 = vmul.f32 %v7065, 0.5
    %vm7067 = vcmask 0
    %7068 = vst.msk [vmem:[#allocation4] sm:$0x1] %vm7067, %v7066
    %v7070 = vlaneseq
    %v7071 = vshrl.u32 %v7070, 7
    %v7072 = vsub.s32 0, %v7071
    %v7073 = vrot.slane %v7037, %v7072
    %v7074 = vlaneseq
    %v7075 = vshrl.u32 %v7074, 7
    %v7076 = vsub.s32 2, %v7075
    %v7077 = vrot.slane %v7037, %v7076
    %v7080 = vpack.c.bf16 %v7073, %v7073
    %v7081 = vpack.c.bf16 %v7077, %v7077
    %v7082 = vld [vmem:[%s33] sm:$0xff]
    %v7083 = vld [vmem:[%s33 + $0x8] sm:$0xff]
    %v7084 = vld [vmem:[%s33 + $0x10] sm:$0xff]
    %v7085 = vld [vmem:[%s33 + $0x18] sm:$0xff]
    %v7086 = vld [vmem:[%s33 + $0x20] sm:$0xff]
    %v7087 = vld [vmem:[%s33 + $0x28] sm:$0xff]
    %v7088 = vld [vmem:[%s33 + $0x30] sm:$0xff]
    %v7089 = vld [vmem:[%s33 + $0x38] sm:$0xff]
    %v7090 = vld [vmem:[%s33 + $0x40] sm:$0xff]
    %v7091 = vld [vmem:[%s33 + $0x48] sm:$0xff]
    %v7092 = vld [vmem:[%s33 + $0x50] sm:$0xff]
    %v7093 = vld [vmem:[%s33 + $0x58] sm:$0xff]
    %v7094 = vld [vmem:[%s33 + $0x60] sm:$0xff]
    %v7095 = vld [vmem:[%s33 + $0x68] sm:$0xff]
    %v7096 = vld [vmem:[%s33 + $0x70] sm:$0xff]
    %v7097 = vld [vmem:[%s33 + $0x78] sm:$0xff]
    %v7098 = vld [vmem:[%s33 + $0x80] sm:$0xff]
    %v7099 = vld [vmem:[%s33 + $0x88] sm:$0xff]
    %v7100 = vld [vmem:[%s33 + $0x90] sm:$0xff]
    %v7101 = vld [vmem:[%s33 + $0x98] sm:$0xff]
    %v7102 = vld [vmem:[%s33 + $0xa0] sm:$0xff]
    %v7103 = vld [vmem:[%s33 + $0xa8] sm:$0xff]
    %v7104 = vld [vmem:[%s33 + $0xb0] sm:$0xff]
    %v7105 = vld [vmem:[%s33 + $0xb8] sm:$0xff]
    %v7106 = vld [vmem:[%s33 + $0xc0] sm:$0xff]
    %v7107 = vld [vmem:[%s33 + $0xc8] sm:$0xff]
    %v7108 = vld [vmem:[%s33 + $0xd0] sm:$0xff]
    %v7109 = vld [vmem:[%s33 + $0xd8] sm:$0xff]
    %v7110 = vld [vmem:[%s33 + $0xe0] sm:$0xff]
    %v7111 = vld [vmem:[%s33 + $0xe8] sm:$0xff]
    %v7112 = vld [vmem:[%s33 + $0xf0] sm:$0xff]
    %v7113 = vld [vmem:[%s33 + $0xf8] sm:$0xff]
    %v7114 = vld [vmem:[%s35] sm:$0x3]
    %v7147 = vunpack.c.l.b16 %v7082
    %v7148 = vunpack.c.h.b16 %v7082
    %v7149 = vunpack.c.l.b16 %v7083
    %v7150 = vunpack.c.h.b16 %v7083
    %v7151 = vunpack.c.l.b16 %v7084
    %v7152 = vunpack.c.h.b16 %v7084
    %v7153 = vunpack.c.l.b16 %v7085
    %v7154 = vunpack.c.h.b16 %v7085
    %v7155 = vunpack.c.l.b16 %v7086
    %v7156 = vunpack.c.h.b16 %v7086
    %v7157 = vunpack.c.l.b16 %v7087
    %v7158 = vunpack.c.h.b16 %v7087
    %v7159 = vunpack.c.l.b16 %v7088
    %v7160 = vunpack.c.h.b16 %v7088
    %v7161 = vunpack.c.l.b16 %v7089
    %v7162 = vunpack.c.h.b16 %v7089
    %v7163 = vunpack.c.l.b16 %v7090
    %v7164 = vunpack.c.h.b16 %v7090
    %v7165 = vunpack.c.l.b16 %v7091
    %v7166 = vunpack.c.h.b16 %v7091
    %v7167 = vunpack.c.l.b16 %v7092
    %v7168 = vunpack.c.h.b16 %v7092
    %v7169 = vunpack.c.l.b16 %v7093
    %v7170 = vunpack.c.h.b16 %v7093
    %v7171 = vunpack.c.l.b16 %v7094
    %v7172 = vunpack.c.h.b16 %v7094
    %v7173 = vunpack.c.l.b16 %v7095
    %v7174 = vunpack.c.h.b16 %v7095
    %v7175 = vunpack.c.l.b16 %v7096
    %v7176 = vunpack.c.h.b16 %v7096
    %v7177 = vunpack.c.l.b16 %v7097
    %v7178 = vunpack.c.h.b16 %v7097
    %v7179 = vunpack.c.l.b16 %v7098
    %v7180 = vunpack.c.h.b16 %v7098
    %v7181 = vunpack.c.l.b16 %v7099
    %v7182 = vunpack.c.h.b16 %v7099
    %v7183 = vunpack.c.l.b16 %v7100
    %v7184 = vunpack.c.h.b16 %v7100
    %v7185 = vunpack.c.l.b16 %v7101
    %v7186 = vunpack.c.h.b16 %v7101
    %v7187 = vunpack.c.l.b16 %v7102
    %v7188 = vunpack.c.h.b16 %v7102
    %v7189 = vunpack.c.l.b16 %v7103
    %v7190 = vunpack.c.h.b16 %v7103
    %v7191 = vunpack.c.l.b16 %v7104
    %v7192 = vunpack.c.h.b16 %v7104
    %v7193 = vunpack.c.l.b16 %v7105
    %v7194 = vunpack.c.h.b16 %v7105
    %v7195 = vunpack.c.l.b16 %v7106
    %v7196 = vunpack.c.h.b16 %v7106
    %v7197 = vunpack.c.l.b16 %v7107
    %v7198 = vunpack.c.h.b16 %v7107
    %v7199 = vunpack.c.l.b16 %v7108
    %v7200 = vunpack.c.h.b16 %v7108
    %v7201 = vunpack.c.l.b16 %v7109
    %v7202 = vunpack.c.h.b16 %v7109
    %v7203 = vunpack.c.l.b16 %v7110
    %v7204 = vunpack.c.h.b16 %v7110
    %v7205 = vunpack.c.l.b16 %v7111
    %v7206 = vunpack.c.h.b16 %v7111
    %v7207 = vunpack.c.l.b16 %v7112
    %v7208 = vunpack.c.h.b16 %v7112
    %v7209 = vunpack.c.l.b16 %v7113
    %v7210 = vunpack.c.h.b16 %v7113
    %v7211 = vpack.c.b16 %v7149, %v7147
    %v7212 = vpack.c.b16 %v7150, %v7148
    %v7213 = vpack.c.b16 %v7153, %v7151
    %v7214 = vpack.c.b16 %v7154, %v7152
    %v7215 = vpack.c.b16 %v7157, %v7155
    %v7216 = vpack.c.b16 %v7158, %v7156
    %v7217 = vpack.c.b16 %v7161, %v7159
    %v7218 = vpack.c.b16 %v7162, %v7160
    %v7219 = vpack.c.b16 %v7165, %v7163
    %v7220 = vpack.c.b16 %v7166, %v7164
    %v7221 = vpack.c.b16 %v7169, %v7167
    %v7222 = vpack.c.b16 %v7170, %v7168
    %v7223 = vpack.c.b16 %v7173, %v7171
    %v7224 = vpack.c.b16 %v7174, %v7172
    %v7225 = vpack.c.b16 %v7177, %v7175
    %v7226 = vpack.c.b16 %v7178, %v7176
    %v7227 = vpack.c.b16 %v7181, %v7179
    %v7228 = vpack.c.b16 %v7182, %v7180
    %v7229 = vpack.c.b16 %v7185, %v7183
    %v7230 = vpack.c.b16 %v7186, %v7184
    %v7231 = vpack.c.b16 %v7189, %v7187
    %v7232 = vpack.c.b16 %v7190, %v7188
    %v7233 = vpack.c.b16 %v7193, %v7191
    %v7234 = vpack.c.b16 %v7194, %v7192
    %v7235 = vpack.c.b16 %v7197, %v7195
    %v7236 = vpack.c.b16 %v7198, %v7196
    %v7237 = vpack.c.b16 %v7201, %v7199
    %v7238 = vpack.c.b16 %v7202, %v7200
    %v7239 = vpack.c.b16 %v7205, %v7203
    %v7240 = vpack.c.b16 %v7206, %v7204
    %v7241 = vpack.c.b16 %v7209, %v7207
    %v7242 = vpack.c.b16 %v7210, %v7208
    %v7276 = vlaneseq
    %v7277 = vshrl.u32 %v7276, 7
    %v7278 = vsub.s32 0, %v7277
    %v7279 = vrot.slane %v7114, %v7278
    %v7280 = vlaneseq
    %v7281 = vshrl.u32 %v7280, 7
    %v7282 = vsub.s32 1, %v7281
    %v7283 = vrot.slane %v7114, %v7282
    %7286 = vmatprep.subr.bf16.mxu0 %v7212
    %7287 = vmatpush1.bf16.msra.mxu0 %v7211
    %7288 = vmatprep.subr.bf16.mxu0 %v7214
    %7289 = vmatpush1.bf16.msra.mxu0 %v7213
    %7290 = vmatprep.subr.bf16.mxu0 %v7216
    %7291 = vmatpush1.bf16.msra.mxu0 %v7215
    %7292 = vmatprep.subr.bf16.mxu0 %v7218
    %7293 = vmatpush1.bf16.msra.mxu0 %v7217
    %7294 = vmatprep.subr.bf16.mxu0 %v7220
    %7295 = vmatpush1.bf16.msra.mxu0 %v7219
    %7296 = vmatprep.subr.bf16.mxu0 %v7222
    %7297 = vmatpush1.bf16.msra.mxu0 %v7221
    %7298 = vmatprep.subr.bf16.mxu0 %v7224
    %7299 = vmatpush1.bf16.msra.mxu0 %v7223
    %7300 = vmatprep.subr.bf16.mxu0 %v7226
    %7301 = vmatpush1.bf16.msra.mxu0 %v7225
    %7302 = vmatprep.subr.bf16.mxu0 %v7228
    %7303 = vmatpush1.bf16.msra.mxu0 %v7227
    %7304 = vmatprep.subr.bf16.mxu0 %v7230
    %7305 = vmatpush1.bf16.msra.mxu0 %v7229
    %7306 = vmatprep.subr.bf16.mxu0 %v7232
    %7307 = vmatpush1.bf16.msra.mxu0 %v7231
    %7308 = vmatprep.subr.bf16.mxu0 %v7234
    %7309 = vmatpush1.bf16.msra.mxu0 %v7233
    %7310 = vmatprep.subr.bf16.mxu0 %v7236
    %7311 = vmatpush1.bf16.msra.mxu0 %v7235
    %7312 = vmatprep.subr.bf16.mxu0 %v7238
    %7313 = vmatpush1.bf16.msra.mxu0 %v7237
    %7314 = vmatprep.subr.bf16.mxu0 %v7240
    %7315 = vmatpush1.bf16.msra.mxu0 %v7239
    %7316 = vmatprep.subr.bf16.mxu0 %v7242
    %7317 = vmatpush1.bf16.msra.mxu0 %v7241
    %7318 = vmatprep.mubr.bf16.mxu0 %v7081
    %7319 = vmatmul.mubr.bf16.gmra.mrb[0].mxu0 %v7080
    %v7320 = vpop.f32.mrb[0].mxu0
    %v7321 = vadd.f32 %v7279, %v7320
    %v7322 = vpop.f32.mrb[0].mxu0
    %v7323 = vadd.f32 %v7283, %v7322
    %v7324 = vpop.f32.mrb[0].mxu0
    %v7325 = vpop.f32.mrb[0].mxu0
    %7326 = vdwg.mxu0
    %vm7327 = vcmp.ge.f32.partialorder %v7321, 0.0
    %vm7328 = vcmp.ge.f32.partialorder %v7323, 0.0
    %v7329 = vmul.f32 %v7321, 0.01
    %v7330 = vmul.f32 %v7323, 0.01
    %v7331 = vsel %vm7327, %v7321, %v7329
    %v7332 = vsel %vm7328, %v7323, %v7330
    %v7334 = vrot.slane %v7331, 7
    %7335 = vrot.lane.b32.xlu0 %v7334, 64
    %v7336 = vpop.permute.xlu0 %7335
    %v7339 = vrot.slane %v7332, 6
    %v7341 = vrot.slane %v7332, 5
    %7342 = vrot.lane.b32.xlu0 %v7341, 64
    %v7343 = vpop.permute.xlu0 %7342
    %v7345 = vsel %vm6044, %v7331, %v7336
    %v7346 = vsel %vm7050, %v7345, %v7339
    %vm7347 = vcmask 1042432
    %v7348 = vsel %vm7347, %v7346, %v7343
    %v7349 = vpack.c.bf16 %v7348, %v7348
    %v7350 = vld [vmem:[%s37] sm:$0xf]
    %v7351 = vld [vmem:[%s37 + $0x4] sm:$0xf]
    %v7352 = vld [vmem:[%s37 + $0x8] sm:$0xf]
    %v7353 = vld [vmem:[%s37 + $0xc] sm:$0xf]
    %v7354 = vld [vmem:[%s37 + $0x10] sm:$0xf]
    %v7355 = vld [vmem:[%s37 + $0x14] sm:$0xf]
    %v7356 = vld [vmem:[%s37 + $0x18] sm:$0xf]
    %v7357 = vld [vmem:[%s37 + $0x1c] sm:$0xf]
    %v7358 = vld [vmem:[%s39] sm:$0x1]
    %v7360 = vlaneseq
    %v7361 = vshrl.u32 %v7360, 7
    %v7362 = vsub.s32 0, %v7361
    %v7363 = vrot.slane %v7358, %v7362
    %v7373 = vunpack.c.l.b16 %v7350
    %v7374 = vunpack.c.l.b16 %v7351
    %v7375 = vunpack.c.l.b16 %v7352
    %v7376 = vunpack.c.l.b16 %v7353
    %v7377 = vunpack.c.l.b16 %v7354
    %v7378 = vunpack.c.l.b16 %v7355
    %v7379 = vunpack.c.l.b16 %v7356
    %v7380 = vunpack.c.l.b16 %v7357
    %v7381 = vpack.c.b16 %v7374, %v7373
    %v7382 = vpack.c.b16 %v7376, %v7375
    %v7383 = vpack.c.b16 %v7378, %v7377
    %v7384 = vpack.c.b16 %v7380, %v7379
    %v7390 = vsel %vm2145, %v7349, 0
    %7392 = vmatprep.subr.bf16.mxu0 0
    %7393 = vmatpush1.bf16.msra.mxu0 %v7381
    %7394 = vmatprep.subr.bf16.mxu0 0
    %7395 = vmatpush1.bf16.msra.mxu0 %v7382
    %7396 = vmatprep.subr.bf16.mxu0 0
    %7397 = vmatpush1.bf16.msra.mxu0 %v7383
    %7398 = vmatprep.subr.bf16.mxu0 0
    %7399 = vmatpush1.bf16.msra.mxu0 %v7384
    %7400 = vmatprep.subr.bf16.mxu0 0
    %7401 = vmatpush1.bf16.msra.mxu0 0
    %7402 = vmatprep.subr.bf16.mxu0 0
    %7403 = vmatpush1.bf16.msra.mxu0 0
    %7404 = vmatprep.subr.bf16.mxu0 0
    %7405 = vmatpush1.bf16.msra.mxu0 0
    %7406 = vmatprep.subr.bf16.mxu0 0
    %7407 = vmatpush1.bf16.msra.mxu0 0
    %7408 = vmatprep.subr.bf16.mxu0 0
    %7409 = vmatpush1.bf16.msra.mxu0 0
    %7410 = vmatprep.subr.bf16.mxu0 0
    %7411 = vmatpush1.bf16.msra.mxu0 0
    %7412 = vmatprep.subr.bf16.mxu0 0
    %7413 = vmatpush1.bf16.msra.mxu0 0
    %7414 = vmatprep.subr.bf16.mxu0 0
    %7415 = vmatpush1.bf16.msra.mxu0 0
    %7416 = vmatprep.subr.bf16.mxu0 0
    %7417 = vmatpush1.bf16.msra.mxu0 0
    %7418 = vmatprep.subr.bf16.mxu0 0
    %7419 = vmatpush1.bf16.msra.mxu0 0
    %7420 = vmatprep.subr.bf16.mxu0 0
    %7421 = vmatpush1.bf16.msra.mxu0 0
    %7422 = vmatprep.subr.bf16.mxu0 0
    %7423 = vmatpush1.bf16.msra.mxu0 0
    %7424 = vmatprep.mubr.bf16.mxu0 0
    %7425 = vmatmul.mubr.bf16.gmra.mrb[0].mxu0 %v7390
    %v7426 = vpop.f32.mrb[0].mxu0
    %v7427 = vadd.f32 %v7363, %v7426
    %v7428 = vpop.f32.mrb[0].mxu0
    %v7429 = vpop.f32.mrb[0].mxu0
    %v7430 = vpop.f32.mrb[0].mxu0
    %7431 = vdwg.mxu0
    %vm7432 = vcmp.ge.f32.partialorder %v7427, 0.0
    %v7433 = vmul.f32 %v7427, 0.01
    %v7434 = vsel %vm7432, %v7427, %v7433
    %v7436 = vrot.slane %v7434, 4
    %7437 = vrot.lane.b32.xlu0 %v7436, 96
    %v7438 = vpop.permute.xlu0 %7437
    %7440 = vrot.lane.b32.xlu0 %v7434, 64
    %v7441 = vpop.permute.xlu0 %7440
    %7443 = vrot.lane.b32.xlu0 %v7436, 32
    %v7444 = vpop.permute.xlu0 %7443
    %vm7446 = vcmask 1043456
    %v7447 = vsel %vm7446, %v7434, %v7438
    %v7448 = vsel %vm7446, %v7441, %v7444
    %v7449 = vpack.c.bf16 %v7448, %v7447
    %v7450 = vld [vmem:[%s41] sm:$0xf]
    %v7451 = vld [vmem:[%s41 + $0x4] sm:$0xf]
    %v7452 = vld [vmem:[%s41 + $0x8] sm:$0xf]
    %v7453 = vld [vmem:[%s41 + $0xc] sm:$0xf]
    %v7454 = vld [vmem:[%s43] sm:$0x1]
    %v7456 = vlaneseq
    %v7457 = vshrl.u32 %v7456, 7
    %v7458 = vsub.s32 0, %v7457
    %v7459 = vrot.slane %v7454, %v7458
    %v7465 = vunpack.c.l.b16 %v7450
    %v7466 = vunpack.c.l.b16 %v7451
    %v7467 = vunpack.c.l.b16 %v7452
    %v7468 = vunpack.c.l.b16 %v7453
    %v7469 = vpack.c.b16 %v7466, %v7465
    %v7470 = vpack.c.b16 %v7468, %v7467
    %v7474 = vsel %vm2127, %v7449, 0
    %7476 = vmatprep.subr.bf16.mxu0 0
    %7477 = vmatpush1.bf16.msra.mxu0 %v7469
    %7478 = vmatprep.subr.bf16.mxu0 0
    %7479 = vmatpush1.bf16.msra.mxu0 %v7470
    %7480 = vmatprep.subr.bf16.mxu0 0
    %7481 = vmatpush1.bf16.msra.mxu0 0
    %7482 = vmatprep.subr.bf16.mxu0 0
    %7483 = vmatpush1.bf16.msra.mxu0 0
    %7484 = vmatprep.subr.bf16.mxu0 0
    %7485 = vmatpush1.bf16.msra.mxu0 0
    %7486 = vmatprep.subr.bf16.mxu0 0
    %7487 = vmatpush1.bf16.msra.mxu0 0
    %7488 = vmatprep.subr.bf16.mxu0 0
    %7489 = vmatpush1.bf16.msra.mxu0 0
    %7490 = vmatprep.subr.bf16.mxu0 0
    %7491 = vmatpush1.bf16.msra.mxu0 0
    %7492 = vmatprep.subr.bf16.mxu0 0
    %7493 = vmatpush1.bf16.msra.mxu0 0
    %7494 = vmatprep.subr.bf16.mxu0 0
    %7495 = vmatpush1.bf16.msra.mxu0 0
    %7496 = vmatprep.subr.bf16.mxu0 0
    %7497 = vmatpush1.bf16.msra.mxu0 0
    %7498 = vmatprep.subr.bf16.mxu0 0
    %7499 = vmatpush1.bf16.msra.mxu0 0
    %7500 = vmatprep.subr.bf16.mxu0 0
    %7501 = vmatpush1.bf16.msra.mxu0 0
    %7502 = vmatprep.subr.bf16.mxu0 0
    %7503 = vmatpush1.bf16.msra.mxu0 0
    %7504 = vmatprep.subr.bf16.mxu0 0
    %7505 = vmatpush1.bf16.msra.mxu0 0
    %7506 = vmatprep.subr.bf16.mxu0 0
    %7507 = vmatpush1.bf16.msra.mxu0 0
    %7508 = vmatprep.mubr.bf16.mxu0 0
    %7509 = vmatmul.mubr.bf16.gmra.mrb[0].mxu0 %v7474
    %v7510 = vpop.f32.mrb[0].mxu0
    %v7511 = vadd.f32 %v7459, %v7510
    %v7512 = vpop.f32.mrb[0].mxu0
    %v7513 = vpop.f32.mrb[0].mxu0
    %v7514 = vadd.f32 %v7459, %v7513
    %v7515 = vpop.f32.mrb[0].mxu0
    %7516 = vdwg.mxu0
    %vm7517 = vcmp.ge.f32.partialorder %v7511, 0.0
    %vm7518 = vcmp.ge.f32.partialorder %v7514, 0.0
    %v7519 = vmul.f32 %v7511, 0.01
    %v7520 = vmul.f32 %v7514, 0.01
    %v7521 = vsel %vm7517, %v7511, %v7519
    %v7522 = vsel %vm7518, %v7514, %v7520
    %7525 = vrot.lane.b32.xlu0 %v7521, 112
    %v7526 = vpop.permute.xlu0 %7525
    %7527 = vrot.lane.b32.xlu0 %v7522, 112
    %v7528 = vpop.permute.xlu0 %7527
    %7531 = vrot.lane.b32.xlu0 %v7521, 96
    %v7532 = vpop.permute.xlu0 %7531
    %7533 = vrot.lane.b32.xlu0 %v7522, 96
    %v7534 = vpop.permute.xlu0 %7533
    %7537 = vrot.lane.b32.xlu0 %v7521, 80
    %v7538 = vpop.permute.xlu0 %7537
    %7539 = vrot.lane.b32.xlu0 %v7522, 80
    %v7540 = vpop.permute.xlu0 %7539
    %v7543 = vpack.c.bf16 %v7522, %v7521
    %v7544 = vpack.c.bf16 %v7528, %v7526
    %v7545 = vpack.c.bf16 %v7534, %v7532
    %v7546 = vpack.c.bf16 %v7540, %v7538
    %v7547 = vld [vmem:[%s45] sm:$0xf]
    %v7548 = vld [vmem:[%s45 + $0x4] sm:$0xf]
    %v7549 = vld [vmem:[%s47] sm:$0x1]
    %v7551 = vlaneseq
    %v7552 = vshrl.u32 %v7551, 7
    %v7553 = vsub.s32 0, %v7552
    %v7554 = vrot.slane %v7549, %v7553
    %v7558 = vunpack.c.l.b16 %v7547
    %v7559 = vunpack.c.l.b16 %v7548
    %v7560 = vpack.c.b16 %v7559, %v7558
    %v7563 = vsel %vm2118, %v7543, 0
    %v7566 = vsel %vm2118, %v7544, 0
    %v7569 = vsel %vm2118, %v7545, 0
    %v7572 = vsel %vm2118, %v7546, 0
    %7574 = vmatprep.subr.bf16.mxu0 0
    %7575 = vmatpush1.bf16.msra.mxu0 %v7560
    %7576 = vmatprep.subr.bf16.mxu0 0
    %7577 = vmatpush1.bf16.msra.mxu0 0
    %7578 = vmatprep.subr.bf16.mxu0 0
    %7579 = vmatpush1.bf16.msra.mxu0 0
    %7580 = vmatprep.subr.bf16.mxu0 0
    %7581 = vmatpush1.bf16.msra.mxu0 0
    %7582 = vmatprep.subr.bf16.mxu0 0
    %7583 = vmatpush1.bf16.msra.mxu0 0
    %7584 = vmatprep.subr.bf16.mxu0 0
    %7585 = vmatpush1.bf16.msra.mxu0 0
    %7586 = vmatprep.subr.bf16.mxu0 0
    %7587 = vmatpush1.bf16.msra.mxu0 0
    %7588 = vmatprep.subr.bf16.mxu0 0
    %7589 = vmatpush1.bf16.msra.mxu0 0
    %7590 = vmatprep.subr.bf16.mxu0 0
    %7591 = vmatpush1.bf16.msra.mxu0 0
    %7592 = vmatprep.subr.bf16.mxu0 0
    %7593 = vmatpush1.bf16.msra.mxu0 0
    %7594 = vmatprep.subr.bf16.mxu0 0
    %7595 = vmatpush1.bf16.msra.mxu0 0
    %7596 = vmatprep.subr.bf16.mxu0 0
    %7597 = vmatpush1.bf16.msra.mxu0 0
    %7598 = vmatprep.subr.bf16.mxu0 0
    %7599 = vmatpush1.bf16.msra.mxu0 0
    %7600 = vmatprep.subr.bf16.mxu0 0
    %7601 = vmatpush1.bf16.msra.mxu0 0
    %7602 = vmatprep.subr.bf16.mxu0 0
    %7603 = vmatpush1.bf16.msra.mxu0 0
    %7604 = vmatprep.subr.bf16.mxu0 0
    %7605 = vmatpush1.bf16.msra.mxu0 0
    %7606 = vmatprep.mubr.bf16.mxu0 0
    %7607 = vmatmul.mubr.bf16.gmra.mrb[0].mxu0 %v7563
    %v7608 = vpop.f32.mrb[0].mxu0
    %v7609 = vadd.f32 %v7554, %v7608
    %v7610 = vpop.f32.mrb[0].mxu0
    %v7611 = vpop.f32.mrb[0].mxu0
    %v7612 = vadd.f32 %v7554, %v7611
    %v7613 = vpop.f32.mrb[0].mxu0
    %7614 = vmatprep.mubr.bf16.mxu0 0
    %7615 = vmatmul.mubr.bf16.gmra.mrb[0].mxu0 %v7566
    %v7616 = vpop.f32.mrb[0].mxu0
    %v7617 = vadd.f32 %v7554, %v7616
    %v7618 = vpop.f32.mrb[0].mxu0
    %v7619 = vpop.f32.mrb[0].mxu0
    %v7620 = vadd.f32 %v7554, %v7619
    %v7621 = vpop.f32.mrb[0].mxu0
    %7622 = vmatprep.mubr.bf16.mxu0 0
    %7623 = vmatmul.mubr.bf16.gmra.mrb[0].mxu0 %v7569
    %v7624 = vpop.f32.mrb[0].mxu0
    %v7625 = vadd.f32 %v7554, %v7624
    %v7626 = vpop.f32.mrb[0].mxu0
    %v7627 = vpop.f32.mrb[0].mxu0
    %v7628 = vadd.f32 %v7554, %v7627
    %v7629 = vpop.f32.mrb[0].mxu0
    %7630 = vmatprep.mubr.bf16.mxu0 0
    %7631 = vmatmul.mubr.bf16.gmra.mrb[0].mxu0 %v7572
    %v7632 = vpop.f32.mrb[0].mxu0
    %v7633 = vadd.f32 %v7554, %v7632
    %v7634 = vpop.f32.mrb[0].mxu0
    %v7635 = vpop.f32.mrb[0].mxu0
    %v7636 = vadd.f32 %v7554, %v7635
    %v7637 = vpop.f32.mrb[0].mxu0
    %7638 = vdwg.mxu0
    %vm7639 = vcmp.ge.f32.partialorder %v7609, 0.0
    %vm7640 = vcmp.ge.f32.partialorder %v7612, 0.0
    %vm7641 = vcmp.ge.f32.partialorder %v7617, 0.0
    %vm7642 = vcmp.ge.f32.partialorder %v7620, 0.0
    %vm7643 = vcmp.ge.f32.partialorder %v7625, 0.0
    %vm7644 = vcmp.ge.f32.partialorder %v7628, 0.0
    %vm7645 = vcmp.ge.f32.partialorder %v7633, 0.0
    %vm7646 = vcmp.ge.f32.partialorder %v7636, 0.0
    %v7647 = vmul.f32 %v7609, 0.01
    %v7648 = vmul.f32 %v7612, 0.01
    %v7649 = vmul.f32 %v7617, 0.01
    %v7650 = vmul.f32 %v7620, 0.01
    %v7651 = vmul.f32 %v7625, 0.01
    %v7652 = vmul.f32 %v7628, 0.01
    %v7653 = vmul.f32 %v7633, 0.01
    %v7654 = vmul.f32 %v7636, 0.01
    %v7655 = vsel %vm7639, %v7609, %v7647
    %v7656 = vsel %vm7640, %v7612, %v7648
    %v7657 = vsel %vm7641, %v7617, %v7649
    %v7658 = vsel %vm7642, %v7620, %v7650
    %v7659 = vsel %vm7643, %v7625, %v7651
    %v7660 = vsel %vm7644, %v7628, %v7652
    %v7661 = vsel %vm7645, %v7633, %v7653
    %v7662 = vsel %vm7646, %v7636, %v7654
    %7671 = vrot.lane.b32.xlu0 %v7655, 125
    %v7672 = vpop.permute.xlu0 %7671
    %7673 = vrot.lane.b32.xlu0 %v7656, 125
    %v7674 = vpop.permute.xlu0 %7673
    %7675 = vrot.lane.b32.xlu0 %v7657, 125
    %v7676 = vpop.permute.xlu0 %7675
    %7677 = vrot.lane.b32.xlu0 %v7658, 125
    %v7678 = vpop.permute.xlu0 %7677
    %7679 = vrot.lane.b32.xlu0 %v7659, 125
    %v7680 = vpop.permute.xlu0 %7679
    %7681 = vrot.lane.b32.xlu0 %v7660, 125
    %v7682 = vpop.permute.xlu0 %7681
    %7683 = vrot.lane.b32.xlu0 %v7661, 125
    %v7684 = vpop.permute.xlu0 %7683
    %7685 = vrot.lane.b32.xlu0 %v7662, 125
    %v7686 = vpop.permute.xlu0 %7685
    %7695 = vrot.lane.b32.xlu0 %v7655, 122
    %v7696 = vpop.permute.xlu0 %7695
    %7697 = vrot.lane.b32.xlu0 %v7656, 122
    %v7698 = vpop.permute.xlu0 %7697
    %7699 = vrot.lane.b32.xlu0 %v7657, 122
    %v7700 = vpop.permute.xlu0 %7699
    %7701 = vrot.lane.b32.xlu0 %v7658, 122
    %v7702 = vpop.permute.xlu0 %7701
    %7703 = vrot.lane.b32.xlu0 %v7659, 122
    %v7704 = vpop.permute.xlu0 %7703
    %7705 = vrot.lane.b32.xlu0 %v7660, 122
    %v7706 = vpop.permute.xlu0 %7705
    %7707 = vrot.lane.b32.xlu0 %v7661, 122
    %v7708 = vpop.permute.xlu0 %7707
    %7709 = vrot.lane.b32.xlu0 %v7662, 122
    %v7710 = vpop.permute.xlu0 %7709
    %7719 = vrot.lane.b32.xlu0 %v7655, 119
    %v7720 = vpop.permute.xlu0 %7719
    %7721 = vrot.lane.b32.xlu0 %v7656, 119
    %v7722 = vpop.permute.xlu0 %7721
    %7723 = vrot.lane.b32.xlu0 %v7657, 119
    %v7724 = vpop.permute.xlu0 %7723
    %7725 = vrot.lane.b32.xlu0 %v7658, 119
    %v7726 = vpop.permute.xlu0 %7725
    %7727 = vrot.lane.b32.xlu0 %v7659, 119
    %v7728 = vpop.permute.xlu0 %7727
    %7729 = vrot.lane.b32.xlu0 %v7660, 119
    %v7730 = vpop.permute.xlu0 %7729
    %7731 = vrot.lane.b32.xlu0 %v7661, 119
    %v7732 = vpop.permute.xlu0 %7731
    %7733 = vrot.lane.b32.xlu0 %v7662, 119
    %v7734 = vpop.permute.xlu0 %7733
    %7743 = vxpose.xlu0.b32.start [1/16] %v7655, 128
    %7744 = vxpose.xlu0.b32.cont [2/16] %v7656, 128
    %7745 = vxpose.xlu0.b32.cont [3/16] %v7657, 128
    %7746 = vxpose.xlu0.b32.cont [4/16] %v7658, 128
    %7747 = vxpose.xlu0.b32.cont [5/16] %v7659, 128
    %7748 = vxpose.xlu0.b32.cont [6/16] %v7660, 128
    %7749 = vxpose.xlu0.b32.cont [7/16] %v7661, 128
    %7750 = vxpose.xlu0.b32.cont [8/16] %v7662, 128
    %7751 = vxpose.xlu0.b32.cont [9/16] %v7672, 128
    %7752 = vxpose.xlu0.b32.cont [10/16] %v7674, 128
    %7753 = vxpose.xlu0.b32.cont [11/16] %v7676, 128
    %7754 = vxpose.xlu0.b32.cont [12/16] %v7678, 128
    %7755 = vxpose.xlu0.b32.cont [13/16] %v7680, 128
    %7756 = vxpose.xlu0.b32.cont [14/16] %v7682, 128
    %7757 = vxpose.xlu0.b32.cont [15/16] %v7684, 128
    %7758 = vxpose.xlu0.b32.end [16/16] %v7686, 128
    %v7759 = vpop.trf.xlu0
    %v7760 = vpop.trf.xlu0
    %v7761 = vpop.trf.xlu0
    %v7762 = vpop.trf.xlu0
    %v7763 = vpop.trf.xlu0
    %v7764 = vpop.trf.xlu0
    %v7765 = vpop.trf.xlu0
    %v7766 = vpop.trf.xlu0
    %v7767 = vpop.trf.xlu0
    %v7768 = vpop.trf.xlu0
    %v7769 = vpop.trf.xlu0
    %v7770 = vpop.trf.xlu0
    %v7771 = vpop.trf.xlu0
    %v7772 = vpop.trf.xlu0
    %v7773 = vpop.trf.xlu0
    %v7774 = vpop.trf.xlu0
    %7775 = vxpose.xlu0.b32.start [1/16] %v7696, 128
    %7776 = vxpose.xlu0.b32.cont [2/16] %v7698, 128
    %7777 = vxpose.xlu0.b32.cont [3/16] %v7700, 128
    %7778 = vxpose.xlu0.b32.cont [4/16] %v7702, 128
    %7779 = vxpose.xlu0.b32.cont [5/16] %v7704, 128
    %7780 = vxpose.xlu0.b32.cont [6/16] %v7706, 128
    %7781 = vxpose.xlu0.b32.cont [7/16] %v7708, 128
    %7782 = vxpose.xlu0.b32.cont [8/16] %v7710, 128
    %7783 = vxpose.xlu0.b32.cont [9/16] %v7720, 128
    %7784 = vxpose.xlu0.b32.cont [10/16] %v7722, 128
    %7785 = vxpose.xlu0.b32.cont [11/16] %v7724, 128
    %7786 = vxpose.xlu0.b32.cont [12/16] %v7726, 128
    %7787 = vxpose.xlu0.b32.cont [13/16] %v7728, 128
    %7788 = vxpose.xlu0.b32.cont [14/16] %v7730, 128
    %7789 = vxpose.xlu0.b32.cont [15/16] %v7732, 128
    %7790 = vxpose.xlu0.b32.end [16/16] %v7734, 128
    %v7791 = vpop.trf.xlu0
    %v7792 = vpop.trf.xlu0
    %v7793 = vpop.trf.xlu0
    %v7794 = vpop.trf.xlu0
    %v7795 = vpop.trf.xlu0
    %v7796 = vpop.trf.xlu0
    %v7797 = vpop.trf.xlu0
    %v7798 = vpop.trf.xlu0
    %v7799 = vpop.trf.xlu0
    %v7800 = vpop.trf.xlu0
    %v7801 = vpop.trf.xlu0
    %v7802 = vpop.trf.xlu0
    %v7803 = vpop.trf.xlu0
    %v7804 = vpop.trf.xlu0
    %v7805 = vpop.trf.xlu0
    %v7806 = vpop.trf.xlu0
    %v7807 = vpack.c.bf16 %v7759, %v7759
    %v7808 = vpack.c.bf16 %v7791, %v7791
    %v7809 = vld [vmem:[%s49] sm:$0xff]
    %v7810 = vld [vmem:[%s49 + $0x8] sm:$0xff]
    %v7811 = vld [vmem:[%s49 + $0x10] sm:$0xff]
    %v7812 = vld [vmem:[%s49 + $0x18] sm:$0xff]
    %v7813 = vld [vmem:[%s49 + $0x20] sm:$0xff]
    %v7814 = vld [vmem:[%s49 + $0x28] sm:$0xff]
    %v7815 = vld [vmem:[%s49 + $0x30] sm:$0xff]
    %v7816 = vld [vmem:[%s49 + $0x38] sm:$0xff]
    %v7817 = vld [vmem:[%s49 + $0x40] sm:$0xff]
    %v7818 = vld [vmem:[%s49 + $0x48] sm:$0xff]
    %v7819 = vld [vmem:[%s49 + $0x50] sm:$0xff]
    %v7820 = vld [vmem:[%s49 + $0x58] sm:$0xff]
    %v7821 = vld [vmem:[%s49 + $0x60] sm:$0xff]
    %v7822 = vld [vmem:[%s49 + $0x68] sm:$0xff]
    %v7823 = vld [vmem:[%s49 + $0x70] sm:$0xff]
    %v7824 = vld [vmem:[%s49 + $0x78] sm:$0xff]
    %v7825 = vld [vmem:[%s49 + $0x80] sm:$0xff]
    %v7826 = vld [vmem:[%s49 + $0x88] sm:$0xff]
    %v7827 = vld [vmem:[%s49 + $0x90] sm:$0xff]
    %v7828 = vld [vmem:[%s49 + $0x98] sm:$0xff]
    %v7829 = vld [vmem:[%s49 + $0xa0] sm:$0xff]
    %v7830 = vld [vmem:[%s49 + $0xa8] sm:$0xff]
    %v7831 = vld [vmem:[%s49 + $0xb0] sm:$0xff]
    %v7832 = vld [vmem:[%s49 + $0xb8] sm:$0xff]
    %v7833 = vld [vmem:[%s49 + $0xc0] sm:$0xff]
    %v7834 = vld [vmem:[%s49 + $0xc8] sm:$0xff]
    %v7835 = vld [vmem:[%s49 + $0xd0] sm:$0xff]
    %v7836 = vld [vmem:[%s49 + $0xd8] sm:$0xff]
    %v7837 = vld [vmem:[%s49 + $0xe0] sm:$0xff]
    %v7838 = vld [vmem:[%s49 + $0xe8] sm:$0xff]
    %v7839 = vld [vmem:[%s49 + $0xf0] sm:$0xff]
    %v7840 = vld [vmem:[%s49 + $0xf8] sm:$0xff]
    %v7841 = vld [vmem:[%s49 + $0x100] sm:$0xff]
    %v7842 = vld [vmem:[%s49 + $0x108] sm:$0xff]
    %v7843 = vld [vmem:[%s49 + $0x110] sm:$0xff]
    %v7844 = vld [vmem:[%s49 + $0x118] sm:$0xff]
    %v7845 = vld [vmem:[%s49 + $0x120] sm:$0xff]
    %v7846 = vld [vmem:[%s49 + $0x128] sm:$0xff]
    %v7847 = vld [vmem:[%s49 + $0x130] sm:$0xff]
    %v7848 = vld [vmem:[%s49 + $0x138] sm:$0xff]
    %v7849 = vld [vmem:[%s49 + $0x140] sm:$0xff]
    %v7850 = vld [vmem:[%s49 + $0x148] sm:$0xff]
    %v7851 = vld [vmem:[%s49 + $0x150] sm:$0xff]
    %v7852 = vld [vmem:[%s49 + $0x158] sm:$0xff]
    %v7853 = vld [vmem:[%s49 + $0x160] sm:$0xff]
    %v7854 = vld [vmem:[%s49 + $0x168] sm:$0xff]
    %v7855 = vld [vmem:[%s49 + $0x170] sm:$0xff]
    %v7856 = vld [vmem:[%s49 + $0x178] sm:$0xff]
    %v7857 = vld [vmem:[%s49 + $0x180] sm:$0xff]
    %v7858 = vld [vmem:[%s49 + $0x188] sm:$0xff]
    %v7859 = vld [vmem:[%s49 + $0x190] sm:$0xff]
    %v7860 = vld [vmem:[%s49 + $0x198] sm:$0xff]
    %v7861 = vld [vmem:[%s49 + $0x1a0] sm:$0xff]
    %v7862 = vld [vmem:[%s49 + $0x1a8] sm:$0xff]
    %v7863 = vld [vmem:[%s49 + $0x1b0] sm:$0xff]
    %v7864 = vld [vmem:[%s49 + $0x1b8] sm:$0xff]
    %v7865 = vld [vmem:[%s49 + $0x1c0] sm:$0xff]
    %v7866 = vld [vmem:[%s49 + $0x1c8] sm:$0xff]
    %v7867 = vld [vmem:[%s49 + $0x1d0] sm:$0xff]
    %v7868 = vld [vmem:[%s49 + $0x1d8] sm:$0xff]
    %v7869 = vld [vmem:[%s49 + $0x1e0] sm:$0xff]
    %v7870 = vld [vmem:[%s49 + $0x1e8] sm:$0xff]
    %v7871 = vld [vmem:[%s49 + $0x1f0] sm:$0xff]
    %v7872 = vld [vmem:[%s49 + $0x1f8] sm:$0xff]
    %v7873 = vld [vmem:[%s49 + $0x200] sm:$0xff]
    %v7874 = vld [vmem:[%s49 + $0x208] sm:$0xff]
    %v7875 = vld [vmem:[%s49 + $0x210] sm:$0xff]
    %v7876 = vld [vmem:[%s49 + $0x218] sm:$0xff]
    %v7877 = vld [vmem:[%s49 + $0x220] sm:$0xff]
    %v7878 = vld [vmem:[%s49 + $0x228] sm:$0xff]
    %v7879 = vld [vmem:[%s49 + $0x230] sm:$0xff]
    %v7880 = vld [vmem:[%s49 + $0x238] sm:$0xff]
    %v7881 = vld [vmem:[%s49 + $0x240] sm:$0xff]
    %v7882 = vld [vmem:[%s49 + $0x248] sm:$0xff]
    %v7883 = vld [vmem:[%s49 + $0x250] sm:$0xff]
    %v7884 = vld [vmem:[%s49 + $0x258] sm:$0xff]
    %v7885 = vld [vmem:[%s49 + $0x260] sm:$0xff]
    %v7886 = vld [vmem:[%s49 + $0x268] sm:$0xff]
    %v7887 = vld [vmem:[%s49 + $0x270] sm:$0xff]
    %v7888 = vld [vmem:[%s49 + $0x278] sm:$0xff]
    %v7889 = vld [vmem:[%s49 + $0x280] sm:$0xff]
    %v7890 = vld [vmem:[%s49 + $0x288] sm:$0xff]
    %v7891 = vld [vmem:[%s49 + $0x290] sm:$0xff]
    %v7892 = vld [vmem:[%s49 + $0x298] sm:$0xff]
    %v7893 = vld [vmem:[%s49 + $0x2a0] sm:$0xff]
    %v7894 = vld [vmem:[%s49 + $0x2a8] sm:$0xff]
    %v7895 = vld [vmem:[%s49 + $0x2b0] sm:$0xff]
    %v7896 = vld [vmem:[%s49 + $0x2b8] sm:$0xff]
    %v7897 = vld [vmem:[%s49 + $0x2c0] sm:$0xff]
    %v7898 = vld [vmem:[%s49 + $0x2c8] sm:$0xff]
    %v7899 = vld [vmem:[%s49 + $0x2d0] sm:$0xff]
    %v7900 = vld [vmem:[%s49 + $0x2d8] sm:$0xff]
    %v7901 = vld [vmem:[%s49 + $0x2e0] sm:$0xff]
    %v7902 = vld [vmem:[%s49 + $0x2e8] sm:$0xff]
    %v7903 = vld [vmem:[%s49 + $0x2f0] sm:$0xff]
    %v7904 = vld [vmem:[%s49 + $0x2f8] sm:$0xff]
    %v7905 = vld [vmem:[%s49 + $0x300] sm:$0xff]
    %v7906 = vld [vmem:[%s49 + $0x308] sm:$0xff]
    %v7907 = vld [vmem:[%s49 + $0x310] sm:$0xff]
    %v7908 = vld [vmem:[%s49 + $0x318] sm:$0xff]
    %v7909 = vld [vmem:[%s49 + $0x320] sm:$0xff]
    %v7910 = vld [vmem:[%s49 + $0x328] sm:$0xff]
    %v7911 = vld [vmem:[%s49 + $0x330] sm:$0xff]
    %v7912 = vld [vmem:[%s49 + $0x338] sm:$0xff]
    %v7913 = vld [vmem:[%s49 + $0x340] sm:$0xff]
    %v7914 = vld [vmem:[%s49 + $0x348] sm:$0xff]
    %v7915 = vld [vmem:[%s49 + $0x350] sm:$0xff]
    %v7916 = vld [vmem:[%s49 + $0x358] sm:$0xff]
    %v7917 = vld [vmem:[%s49 + $0x360] sm:$0xff]
    %v7918 = vld [vmem:[%s49 + $0x368] sm:$0xff]
    %v7919 = vld [vmem:[%s49 + $0x370] sm:$0xff]
    %v7920 = vld [vmem:[%s49 + $0x378] sm:$0xff]
    %v7921 = vld [vmem:[%s49 + $0x380] sm:$0xff]
    %v7922 = vld [vmem:[%s49 + $0x388] sm:$0xff]
    %v7923 = vld [vmem:[%s49 + $0x390] sm:$0xff]
    %v7924 = vld [vmem:[%s49 + $0x398] sm:$0xff]
    %v7925 = vld [vmem:[%s49 + $0x3a0] sm:$0xff]
    %v7926 = vld [vmem:[%s49 + $0x3a8] sm:$0xff]
    %v7927 = vld [vmem:[%s49 + $0x3b0] sm:$0xff]
    %v7928 = vld [vmem:[%s49 + $0x3b8] sm:$0xff]
    %v7929 = vld [vmem:[%s49 + $0x3c0] sm:$0xff]
    %v7930 = vld [vmem:[%s49 + $0x3c8] sm:$0xff]
    %v7931 = vld [vmem:[%s49 + $0x3d0] sm:$0xff]
    %v7932 = vld [vmem:[%s49 + $0x3d8] sm:$0xff]
    %v7933 = vld [vmem:[%s49 + $0x3e0] sm:$0xff]
    %v7934 = vld [vmem:[%s49 + $0x3e8] sm:$0xff]
    %v7935 = vld [vmem:[%s49 + $0x3f0] sm:$0xff]
    %v7936 = vld [vmem:[%s49 + $0x3f8] sm:$0xff]
    %v8065 = vunpack.c.l.b16 %v7809
    %v8066 = vunpack.c.h.b16 %v7809
    %v8067 = vunpack.c.l.b16 %v7810
    %v8068 = vunpack.c.h.b16 %v7810
    %v8069 = vunpack.c.l.b16 %v7811
    %v8070 = vunpack.c.h.b16 %v7811
    %v8071 = vunpack.c.l.b16 %v7812
    %v8072 = vunpack.c.h.b16 %v7812
    %v8073 = vunpack.c.l.b16 %v7813
    %v8074 = vunpack.c.h.b16 %v7813
    %v8075 = vunpack.c.l.b16 %v7814
    %v8076 = vunpack.c.h.b16 %v7814
    %v8077 = vunpack.c.l.b16 %v7815
    %v8078 = vunpack.c.h.b16 %v7815
    %v8079 = vunpack.c.l.b16 %v7816
    %v8080 = vunpack.c.h.b16 %v7816
    %v8081 = vunpack.c.l.b16 %v7817
    %v8082 = vunpack.c.h.b16 %v7817
    %v8083 = vunpack.c.l.b16 %v7818
    %v8084 = vunpack.c.h.b16 %v7818
    %v8085 = vunpack.c.l.b16 %v7819
    %v8086 = vunpack.c.h.b16 %v7819
    %v8087 = vunpack.c.l.b16 %v7820
    %v8088 = vunpack.c.h.b16 %v7820
    %v8089 = vunpack.c.l.b16 %v7821
    %v8090 = vunpack.c.h.b16 %v7821
    %v8091 = vunpack.c.l.b16 %v7822
    %v8092 = vunpack.c.h.b16 %v7822
    %v8093 = vunpack.c.l.b16 %v7823
    %v8094 = vunpack.c.h.b16 %v7823
    %v8095 = vunpack.c.l.b16 %v7824
    %v8096 = vunpack.c.h.b16 %v7824
    %v8097 = vunpack.c.l.b16 %v7825
    %v8098 = vunpack.c.h.b16 %v7825
    %v8099 = vunpack.c.l.b16 %v7826
    %v8100 = vunpack.c.h.b16 %v7826
    %v8101 = vunpack.c.l.b16 %v7827
    %v8102 = vunpack.c.h.b16 %v7827
    %v8103 = vunpack.c.l.b16 %v7828
    %v8104 = vunpack.c.h.b16 %v7828
    %v8105 = vunpack.c.l.b16 %v7829
    %v8106 = vunpack.c.h.b16 %v7829
    %v8107 = vunpack.c.l.b16 %v7830
    %v8108 = vunpack.c.h.b16 %v7830
    %v8109 = vunpack.c.l.b16 %v7831
    %v8110 = vunpack.c.h.b16 %v7831
    %v8111 = vunpack.c.l.b16 %v7832
    %v8112 = vunpack.c.h.b16 %v7832
    %v8113 = vunpack.c.l.b16 %v7833
    %v8114 = vunpack.c.h.b16 %v7833
    %v8115 = vunpack.c.l.b16 %v7834
    %v8116 = vunpack.c.h.b16 %v7834
    %v8117 = vunpack.c.l.b16 %v7835
    %v8118 = vunpack.c.h.b16 %v7835
    %v8119 = vunpack.c.l.b16 %v7836
    %v8120 = vunpack.c.h.b16 %v7836
    %v8121 = vunpack.c.l.b16 %v7837
    %v8122 = vunpack.c.h.b16 %v7837
    %v8123 = vunpack.c.l.b16 %v7838
    %v8124 = vunpack.c.h.b16 %v7838
    %v8125 = vunpack.c.l.b16 %v7839
    %v8126 = vunpack.c.h.b16 %v7839
    %v8127 = vunpack.c.l.b16 %v7840
    %v8128 = vunpack.c.h.b16 %v7840
    %v8129 = vunpack.c.l.b16 %v7841
    %v8130 = vunpack.c.h.b16 %v7841
    %v8131 = vunpack.c.l.b16 %v7842
    %v8132 = vunpack.c.h.b16 %v7842
    %v8133 = vunpack.c.l.b16 %v7843
    %v8134 = vunpack.c.h.b16 %v7843
    %v8135 = vunpack.c.l.b16 %v7844
    %v8136 = vunpack.c.h.b16 %v7844
    %v8137 = vunpack.c.l.b16 %v7845
    %v8138 = vunpack.c.h.b16 %v7845
    %v8139 = vunpack.c.l.b16 %v7846
    %v8140 = vunpack.c.h.b16 %v7846
    %v8141 = vunpack.c.l.b16 %v7847
    %v8142 = vunpack.c.h.b16 %v7847
    %v8143 = vunpack.c.l.b16 %v7848
    %v8144 = vunpack.c.h.b16 %v7848
    %v8145 = vunpack.c.l.b16 %v7849
    %v8146 = vunpack.c.h.b16 %v7849
    %v8147 = vunpack.c.l.b16 %v7850
    %v8148 = vunpack.c.h.b16 %v7850
    %v8149 = vunpack.c.l.b16 %v7851
    %v8150 = vunpack.c.h.b16 %v7851
    %v8151 = vunpack.c.l.b16 %v7852
    %v8152 = vunpack.c.h.b16 %v7852
    %v8153 = vunpack.c.l.b16 %v7853
    %v8154 = vunpack.c.h.b16 %v7853
    %v8155 = vunpack.c.l.b16 %v7854
    %v8156 = vunpack.c.h.b16 %v7854
    %v8157 = vunpack.c.l.b16 %v7855
    %v8158 = vunpack.c.h.b16 %v7855
    %v8159 = vunpack.c.l.b16 %v7856
    %v8160 = vunpack.c.h.b16 %v7856
    %v8161 = vunpack.c.l.b16 %v7857
    %v8162 = vunpack.c.h.b16 %v7857
    %v8163 = vunpack.c.l.b16 %v7858
    %v8164 = vunpack.c.h.b16 %v7858
    %v8165 = vunpack.c.l.b16 %v7859
    %v8166 = vunpack.c.h.b16 %v7859
    %v8167 = vunpack.c.l.b16 %v7860
    %v8168 = vunpack.c.h.b16 %v7860
    %v8169 = vunpack.c.l.b16 %v7861
    %v8170 = vunpack.c.h.b16 %v7861
    %v8171 = vunpack.c.l.b16 %v7862
    %v8172 = vunpack.c.h.b16 %v7862
    %v8173 = vunpack.c.l.b16 %v7863
    %v8174 = vunpack.c.h.b16 %v7863
    %v8175 = vunpack.c.l.b16 %v7864
    %v8176 = vunpack.c.h.b16 %v7864
    %v8177 = vunpack.c.l.b16 %v7865
    %v8178 = vunpack.c.h.b16 %v7865
    %v8179 = vunpack.c.l.b16 %v7866
    %v8180 = vunpack.c.h.b16 %v7866
    %v8181 = vunpack.c.l.b16 %v7867
    %v8182 = vunpack.c.h.b16 %v7867
    %v8183 = vunpack.c.l.b16 %v7868
    %v8184 = vunpack.c.h.b16 %v7868
    %v8185 = vunpack.c.l.b16 %v7869
    %v8186 = vunpack.c.h.b16 %v7869
    %v8187 = vunpack.c.l.b16 %v7870
    %v8188 = vunpack.c.h.b16 %v7870
    %v8189 = vunpack.c.l.b16 %v7871
    %v8190 = vunpack.c.h.b16 %v7871
    %v8191 = vunpack.c.l.b16 %v7872
    %v8192 = vunpack.c.h.b16 %v7872
    %v8193 = vunpack.c.l.b16 %v7873
    %v8194 = vunpack.c.h.b16 %v7873
    %v8195 = vunpack.c.l.b16 %v7874
    %v8196 = vunpack.c.h.b16 %v7874
    %v8197 = vunpack.c.l.b16 %v7875
    %v8198 = vunpack.c.h.b16 %v7875
    %v8199 = vunpack.c.l.b16 %v7876
    %v8200 = vunpack.c.h.b16 %v7876
    %v8201 = vunpack.c.l.b16 %v7877
    %v8202 = vunpack.c.h.b16 %v7877
    %v8203 = vunpack.c.l.b16 %v7878
    %v8204 = vunpack.c.h.b16 %v7878
    %v8205 = vunpack.c.l.b16 %v7879
    %v8206 = vunpack.c.h.b16 %v7879
    %v8207 = vunpack.c.l.b16 %v7880
    %v8208 = vunpack.c.h.b16 %v7880
    %v8209 = vunpack.c.l.b16 %v7881
    %v8210 = vunpack.c.h.b16 %v7881
    %v8211 = vunpack.c.l.b16 %v7882
    %v8212 = vunpack.c.h.b16 %v7882
    %v8213 = vunpack.c.l.b16 %v7883
    %v8214 = vunpack.c.h.b16 %v7883
    %v8215 = vunpack.c.l.b16 %v7884
    %v8216 = vunpack.c.h.b16 %v7884
    %v8217 = vunpack.c.l.b16 %v7885
    %v8218 = vunpack.c.h.b16 %v7885
    %v8219 = vunpack.c.l.b16 %v7886
    %v8220 = vunpack.c.h.b16 %v7886
    %v8221 = vunpack.c.l.b16 %v7887
    %v8222 = vunpack.c.h.b16 %v7887
    %v8223 = vunpack.c.l.b16 %v7888
    %v8224 = vunpack.c.h.b16 %v7888
    %v8225 = vunpack.c.l.b16 %v7889
    %v8226 = vunpack.c.h.b16 %v7889
    %v8227 = vunpack.c.l.b16 %v7890
    %v8228 = vunpack.c.h.b16 %v7890
    %v8229 = vunpack.c.l.b16 %v7891
    %v8230 = vunpack.c.h.b16 %v7891
    %v8231 = vunpack.c.l.b16 %v7892
    %v8232 = vunpack.c.h.b16 %v7892
    %v8233 = vunpack.c.l.b16 %v7893
    %v8234 = vunpack.c.h.b16 %v7893
    %v8235 = vunpack.c.l.b16 %v7894
    %v8236 = vunpack.c.h.b16 %v7894
    %v8237 = vunpack.c.l.b16 %v7895
    %v8238 = vunpack.c.h.b16 %v7895
    %v8239 = vunpack.c.l.b16 %v7896
    %v8240 = vunpack.c.h.b16 %v7896
    %v8241 = vunpack.c.l.b16 %v7897
    %v8242 = vunpack.c.h.b16 %v7897
    %v8243 = vunpack.c.l.b16 %v7898
    %v8244 = vunpack.c.h.b16 %v7898
    %v8245 = vunpack.c.l.b16 %v7899
    %v8246 = vunpack.c.h.b16 %v7899
    %v8247 = vunpack.c.l.b16 %v7900
    %v8248 = vunpack.c.h.b16 %v7900
    %v8249 = vunpack.c.l.b16 %v7901
    %v8250 = vunpack.c.h.b16 %v7901
    %v8251 = vunpack.c.l.b16 %v7902
    %v8252 = vunpack.c.h.b16 %v7902
    %v8253 = vunpack.c.l.b16 %v7903
    %v8254 = vunpack.c.h.b16 %v7903
    %v8255 = vunpack.c.l.b16 %v7904
    %v8256 = vunpack.c.h.b16 %v7904
    %v8257 = vunpack.c.l.b16 %v7905
    %v8258 = vunpack.c.h.b16 %v7905
    %v8259 = vunpack.c.l.b16 %v7906
    %v8260 = vunpack.c.h.b16 %v7906
    %v8261 = vunpack.c.l.b16 %v7907
    %v8262 = vunpack.c.h.b16 %v7907
    %v8263 = vunpack.c.l.b16 %v7908
    %v8264 = vunpack.c.h.b16 %v7908
    %v8265 = vunpack.c.l.b16 %v7909
    %v8266 = vunpack.c.h.b16 %v7909
    %v8267 = vunpack.c.l.b16 %v7910
    %v8268 = vunpack.c.h.b16 %v7910
    %v8269 = vunpack.c.l.b16 %v7911
    %v8270 = vunpack.c.h.b16 %v7911
    %v8271 = vunpack.c.l.b16 %v7912
    %v8272 = vunpack.c.h.b16 %v7912
    %v8273 = vunpack.c.l.b16 %v7913
    %v8274 = vunpack.c.h.b16 %v7913
    %v8275 = vunpack.c.l.b16 %v7914
    %v8276 = vunpack.c.h.b16 %v7914
    %v8277 = vunpack.c.l.b16 %v7915
    %v8278 = vunpack.c.h.b16 %v7915
    %v8279 = vunpack.c.l.b16 %v7916
    %v8280 = vunpack.c.h.b16 %v7916
    %v8281 = vunpack.c.l.b16 %v7917
    %v8282 = vunpack.c.h.b16 %v7917
    %v8283 = vunpack.c.l.b16 %v7918
    %v8284 = vunpack.c.h.b16 %v7918
    %v8285 = vunpack.c.l.b16 %v7919
    %v8286 = vunpack.c.h.b16 %v7919
    %v8287 = vunpack.c.l.b16 %v7920
    %v8288 = vunpack.c.h.b16 %v7920
    %v8289 = vunpack.c.l.b16 %v7921
    %v8290 = vunpack.c.h.b16 %v7921
    %v8291 = vunpack.c.l.b16 %v7922
    %v8292 = vunpack.c.h.b16 %v7922
    %v8293 = vunpack.c.l.b16 %v7923
    %v8294 = vunpack.c.h.b16 %v7923
    %v8295 = vunpack.c.l.b16 %v7924
    %v8296 = vunpack.c.h.b16 %v7924
    %v8297 = vunpack.c.l.b16 %v7925
    %v8298 = vunpack.c.h.b16 %v7925
    %v8299 = vunpack.c.l.b16 %v7926
    %v8300 = vunpack.c.h.b16 %v7926
    %v8301 = vunpack.c.l.b16 %v7927
    %v8302 = vunpack.c.h.b16 %v7927
    %v8303 = vunpack.c.l.b16 %v7928
    %v8304 = vunpack.c.h.b16 %v7928
    %v8305 = vunpack.c.l.b16 %v7929
    %v8306 = vunpack.c.h.b16 %v7929
    %v8307 = vunpack.c.l.b16 %v7930
    %v8308 = vunpack.c.h.b16 %v7930
    %v8309 = vunpack.c.l.b16 %v7931
    %v8310 = vunpack.c.h.b16 %v7931
    %v8311 = vunpack.c.l.b16 %v7932
    %v8312 = vunpack.c.h.b16 %v7932
    %v8313 = vunpack.c.l.b16 %v7933
    %v8314 = vunpack.c.h.b16 %v7933
    %v8315 = vunpack.c.l.b16 %v7934
    %v8316 = vunpack.c.h.b16 %v7934
    %v8317 = vunpack.c.l.b16 %v7935
    %v8318 = vunpack.c.h.b16 %v7935
    %v8319 = vunpack.c.l.b16 %v7936
    %v8320 = vunpack.c.h.b16 %v7936
    %v8321 = vpack.c.b16 %v8073, %v8065
    %v8322 = vpack.c.b16 %v8074, %v8066
    %v8323 = vpack.c.b16 %v8075, %v8067
    %v8324 = vpack.c.b16 %v8076, %v8068
    %v8325 = vpack.c.b16 %v8077, %v8069
    %v8326 = vpack.c.b16 %v8078, %v8070
    %v8327 = vpack.c.b16 %v8079, %v8071
    %v8328 = vpack.c.b16 %v8080, %v8072
    %v8329 = vpack.c.b16 %v8089, %v8081
    %v8330 = vpack.c.b16 %v8090, %v8082
    %v8331 = vpack.c.b16 %v8091, %v8083
    %v8332 = vpack.c.b16 %v8092, %v8084
    %v8333 = vpack.c.b16 %v8093, %v8085
    %v8334 = vpack.c.b16 %v8094, %v8086
    %v8335 = vpack.c.b16 %v8095, %v8087
    %v8336 = vpack.c.b16 %v8096, %v8088
    %v8337 = vpack.c.b16 %v8105, %v8097
    %v8338 = vpack.c.b16 %v8106, %v8098
    %v8339 = vpack.c.b16 %v8107, %v8099
    %v8340 = vpack.c.b16 %v8108, %v8100
    %v8341 = vpack.c.b16 %v8109, %v8101
    %v8342 = vpack.c.b16 %v8110, %v8102
    %v8343 = vpack.c.b16 %v8111, %v8103
    %v8344 = vpack.c.b16 %v8112, %v8104
    %v8345 = vpack.c.b16 %v8121, %v8113
    %v8346 = vpack.c.b16 %v8122, %v8114
    %v8347 = vpack.c.b16 %v8123, %v8115
    %v8348 = vpack.c.b16 %v8124, %v8116
    %v8349 = vpack.c.b16 %v8125, %v8117
    %v8350 = vpack.c.b16 %v8126, %v8118
    %v8351 = vpack.c.b16 %v8127, %v8119
    %v8352 = vpack.c.b16 %v8128, %v8120
    %v8353 = vpack.c.b16 %v8137, %v8129
    %v8354 = vpack.c.b16 %v8138, %v8130
    %v8355 = vpack.c.b16 %v8139, %v8131
    %v8356 = vpack.c.b16 %v8140, %v8132
    %v8357 = vpack.c.b16 %v8141, %v8133
    %v8358 = vpack.c.b16 %v8142, %v8134
    %v8359 = vpack.c.b16 %v8143, %v8135
    %v8360 = vpack.c.b16 %v8144, %v8136
    %v8361 = vpack.c.b16 %v8153, %v8145
    %v8362 = vpack.c.b16 %v8154, %v8146
    %v8363 = vpack.c.b16 %v8155, %v8147
    %v8364 = vpack.c.b16 %v8156, %v8148
    %v8365 = vpack.c.b16 %v8157, %v8149
    %v8366 = vpack.c.b16 %v8158, %v8150
    %v8367 = vpack.c.b16 %v8159, %v8151
    %v8368 = vpack.c.b16 %v8160, %v8152
    %v8369 = vpack.c.b16 %v8169, %v8161
    %v8370 = vpack.c.b16 %v8170, %v8162
    %v8371 = vpack.c.b16 %v8171, %v8163
    %v8372 = vpack.c.b16 %v8172, %v8164
    %v8373 = vpack.c.b16 %v8173, %v8165
    %v8374 = vpack.c.b16 %v8174, %v8166
    %v8375 = vpack.c.b16 %v8175, %v8167
    %v8376 = vpack.c.b16 %v8176, %v8168
    %v8377 = vpack.c.b16 %v8185, %v8177
    %v8378 = vpack.c.b16 %v8186, %v8178
    %v8379 = vpack.c.b16 %v8187, %v8179
    %v8380 = vpack.c.b16 %v8188, %v8180
    %v8381 = vpack.c.b16 %v8189, %v8181
    %v8382 = vpack.c.b16 %v8190, %v8182
    %v8383 = vpack.c.b16 %v8191, %v8183
    %v8384 = vpack.c.b16 %v8192, %v8184
    %v8385 = vpack.c.b16 %v8201, %v8193
    %v8386 = vpack.c.b16 %v8202, %v8194
    %v8387 = vpack.c.b16 %v8203, %v8195
    %v8388 = vpack.c.b16 %v8204, %v8196
    %v8389 = vpack.c.b16 %v8205, %v8197
    %v8390 = vpack.c.b16 %v8206, %v8198
    %v8391 = vpack.c.b16 %v8207, %v8199
    %v8392 = vpack.c.b16 %v8208, %v8200
    %v8393 = vpack.c.b16 %v8217, %v8209
    %v8394 = vpack.c.b16 %v8218, %v8210
    %v8395 = vpack.c.b16 %v8219, %v8211
    %v8396 = vpack.c.b16 %v8220, %v8212
    %v8397 = vpack.c.b16 %v8221, %v8213
    %v8398 = vpack.c.b16 %v8222, %v8214
    %v8399 = vpack.c.b16 %v8223, %v8215
    %v8400 = vpack.c.b16 %v8224, %v8216
    %v8401 = vpack.c.b16 %v8233, %v8225
    %v8402 = vpack.c.b16 %v8234, %v8226
    %v8403 = vpack.c.b16 %v8235, %v8227
    %v8404 = vpack.c.b16 %v8236, %v8228
    %v8405 = vpack.c.b16 %v8237, %v8229
    %v8406 = vpack.c.b16 %v8238, %v8230
    %v8407 = vpack.c.b16 %v8239, %v8231
    %v8408 = vpack.c.b16 %v8240, %v8232
    %v8409 = vpack.c.b16 %v8249, %v8241
    %v8410 = vpack.c.b16 %v8250, %v8242
    %v8411 = vpack.c.b16 %v8251, %v8243
    %v8412 = vpack.c.b16 %v8252, %v8244
    %v8413 = vpack.c.b16 %v8253, %v8245
    %v8414 = vpack.c.b16 %v8254, %v8246
    %v8415 = vpack.c.b16 %v8255, %v8247
    %v8416 = vpack.c.b16 %v8256, %v8248
    %v8417 = vpack.c.b16 %v8265, %v8257
    %v8418 = vpack.c.b16 %v8266, %v8258
    %v8419 = vpack.c.b16 %v8267, %v8259
    %v8420 = vpack.c.b16 %v8268, %v8260
    %v8421 = vpack.c.b16 %v8269, %v8261
    %v8422 = vpack.c.b16 %v8270, %v8262
    %v8423 = vpack.c.b16 %v8271, %v8263
    %v8424 = vpack.c.b16 %v8272, %v8264
    %v8425 = vpack.c.b16 %v8281, %v8273
    %v8426 = vpack.c.b16 %v8282, %v8274
    %v8427 = vpack.c.b16 %v8283, %v8275
    %v8428 = vpack.c.b16 %v8284, %v8276
    %v8429 = vpack.c.b16 %v8285, %v8277
    %v8430 = vpack.c.b16 %v8286, %v8278
    %v8431 = vpack.c.b16 %v8287, %v8279
    %v8432 = vpack.c.b16 %v8288, %v8280
    %v8433 = vpack.c.b16 %v8297, %v8289
    %v8434 = vpack.c.b16 %v8298, %v8290
    %v8435 = vpack.c.b16 %v8299, %v8291
    %v8436 = vpack.c.b16 %v8300, %v8292
    %v8437 = vpack.c.b16 %v8301, %v8293
    %v8438 = vpack.c.b16 %v8302, %v8294
    %v8439 = vpack.c.b16 %v8303, %v8295
    %v8440 = vpack.c.b16 %v8304, %v8296
    %v8441 = vpack.c.b16 %v8313, %v8305
    %v8442 = vpack.c.b16 %v8314, %v8306
    %v8443 = vpack.c.b16 %v8315, %v8307
    %v8444 = vpack.c.b16 %v8316, %v8308
    %v8445 = vpack.c.b16 %v8317, %v8309
    %v8446 = vpack.c.b16 %v8318, %v8310
    %v8447 = vpack.c.b16 %v8319, %v8311
    %v8448 = vpack.c.b16 %v8320, %v8312
    %8577 = vmatprep.subr.bf16.mxu0 %v8322
    %8578 = vmatpush1.bf16.msra.mxu0 %v8321
    %8579 = vmatprep.subr.bf16.mxu0 %v8330
    %8580 = vmatpush1.bf16.msra.mxu0 %v8329
    %8581 = vmatprep.subr.bf16.mxu0 %v8338
    %8582 = vmatpush1.bf16.msra.mxu0 %v8337
    %8583 = vmatprep.subr.bf16.mxu0 %v8346
    %8584 = vmatpush1.bf16.msra.mxu0 %v8345
    %8585 = vmatprep.subr.bf16.mxu0 %v8354
    %8586 = vmatpush1.bf16.msra.mxu0 %v8353
    %8587 = vmatprep.subr.bf16.mxu0 %v8362
    %8588 = vmatpush1.bf16.msra.mxu0 %v8361
    %8589 = vmatprep.subr.bf16.mxu0 %v8370
    %8590 = vmatpush1.bf16.msra.mxu0 %v8369
    %8591 = vmatprep.subr.bf16.mxu0 %v8378
    %8592 = vmatpush1.bf16.msra.mxu0 %v8377
    %8593 = vmatprep.subr.bf16.mxu0 %v8386
    %8594 = vmatpush1.bf16.msra.mxu0 %v8385
    %8595 = vmatprep.subr.bf16.mxu0 %v8394
    %8596 = vmatpush1.bf16.msra.mxu0 %v8393
    %8597 = vmatprep.subr.bf16.mxu0 %v8402
    %8598 = vmatpush1.bf16.msra.mxu0 %v8401
    %8599 = vmatprep.subr.bf16.mxu0 %v8410
    %8600 = vmatpush1.bf16.msra.mxu0 %v8409
    %8601 = vmatprep.subr.bf16.mxu0 %v8418
    %8602 = vmatpush1.bf16.msra.mxu0 %v8417
    %8603 = vmatprep.subr.bf16.mxu0 %v8426
    %8604 = vmatpush1.bf16.msra.mxu0 %v8425
    %8605 = vmatprep.subr.bf16.mxu0 %v8434
    %8606 = vmatpush1.bf16.msra.mxu0 %v8433
    %8607 = vmatprep.subr.bf16.mxu0 %v8442
    %8608 = vmatpush1.bf16.msra.mxu0 %v8441
    %8609 = vmatprep.mubr.bf16.mxu0 %v7808
    %8610 = vmatmul.mubr.bf16.gmra.mrb[0].mxu0 %v7807
    %v8611 = vpop.f32.mrb[0].mxu0
    %v8612 = vadd.f32 0.0, %v8611
    %v8613 = vpop.f32.mrb[0].mxu0
    %v8614 = vadd.f32 0.0, %v8613
    %v8615 = vpop.f32.mrb[0].mxu0
    %v8616 = vpop.f32.mrb[0].mxu0
    %8617 = vdwg.mxu0
    %8618 = vmatprep.subr.bf16.mxu0 %v8324
    %8619 = vmatpush1.bf16.msra.mxu0 %v8323
    %8620 = vmatprep.subr.bf16.mxu0 %v8332
    %8621 = vmatpush1.bf16.msra.mxu0 %v8331
    %8622 = vmatprep.subr.bf16.mxu0 %v8340
    %8623 = vmatpush1.bf16.msra.mxu0 %v8339
    %8624 = vmatprep.subr.bf16.mxu0 %v8348
    %8625 = vmatpush1.bf16.msra.mxu0 %v8347
    %8626 = vmatprep.subr.bf16.mxu0 %v8356
    %8627 = vmatpush1.bf16.msra.mxu0 %v8355
    %8628 = vmatprep.subr.bf16.mxu0 %v8364
    %8629 = vmatpush1.bf16.msra.mxu0 %v8363
    %8630 = vmatprep.subr.bf16.mxu0 %v8372
    %8631 = vmatpush1.bf16.msra.mxu0 %v8371
    %8632 = vmatprep.subr.bf16.mxu0 %v8380
    %8633 = vmatpush1.bf16.msra.mxu0 %v8379
    %8634 = vmatprep.subr.bf16.mxu0 %v8388
    %8635 = vmatpush1.bf16.msra.mxu0 %v8387
    %8636 = vmatprep.subr.bf16.mxu0 %v8396
    %8637 = vmatpush1.bf16.msra.mxu0 %v8395
    %8638 = vmatprep.subr.bf16.mxu0 %v8404
    %8639 = vmatpush1.bf16.msra.mxu0 %v8403
    %8640 = vmatprep.subr.bf16.mxu0 %v8412
    %8641 = vmatpush1.bf16.msra.mxu0 %v8411
    %8642 = vmatprep.subr.bf16.mxu0 %v8420
    %8643 = vmatpush1.bf16.msra.mxu0 %v8419
    %8644 = vmatprep.subr.bf16.mxu0 %v8428
    %8645 = vmatpush1.bf16.msra.mxu0 %v8427
    %8646 = vmatprep.subr.bf16.mxu0 %v8436
    %8647 = vmatpush1.bf16.msra.mxu0 %v8435
    %8648 = vmatprep.subr.bf16.mxu0 %v8444
    %8649 = vmatpush1.bf16.msra.mxu0 %v8443
    %8650 = vmatprep.mubr.bf16.mxu0 %v7808
    %8651 = vmatmul.mubr.bf16.gmra.mrb[0].mxu0 %v7807
    %v8652 = vpop.f32.mrb[0].mxu0
    %v8653 = vadd.f32 0.0, %v8652
    %v8654 = vpop.f32.mrb[0].mxu0
    %v8655 = vadd.f32 0.0, %v8654
    %v8656 = vpop.f32.mrb[0].mxu0
    %v8657 = vpop.f32.mrb[0].mxu0
    %8658 = vdwg.mxu0
    %8659 = vmatprep.subr.bf16.mxu0 %v8326
    %8660 = vmatpush1.bf16.msra.mxu0 %v8325
    %8661 = vmatprep.subr.bf16.mxu0 %v8334
    %8662 = vmatpush1.bf16.msra.mxu0 %v8333
    %8663 = vmatprep.subr.bf16.mxu0 %v8342
    %8664 = vmatpush1.bf16.msra.mxu0 %v8341
    %8665 = vmatprep.subr.bf16.mxu0 %v8350
    %8666 = vmatpush1.bf16.msra.mxu0 %v8349
    %8667 = vmatprep.subr.bf16.mxu0 %v8358
    %8668 = vmatpush1.bf16.msra.mxu0 %v8357
    %8669 = vmatprep.subr.bf16.mxu0 %v8366
    %8670 = vmatpush1.bf16.msra.mxu0 %v8365
    %8671 = vmatprep.subr.bf16.mxu0 %v8374
    %8672 = vmatpush1.bf16.msra.mxu0 %v8373
    %8673 = vmatprep.subr.bf16.mxu0 %v8382
    %8674 = vmatpush1.bf16.msra.mxu0 %v8381
    %8675 = vmatprep.subr.bf16.mxu0 %v8390
    %8676 = vmatpush1.bf16.msra.mxu0 %v8389
    %8677 = vmatprep.subr.bf16.mxu0 %v8398
    %8678 = vmatpush1.bf16.msra.mxu0 %v8397
    %8679 = vmatprep.subr.bf16.mxu0 %v8406
    %8680 = vmatpush1.bf16.msra.mxu0 %v8405
    %8681 = vmatprep.subr.bf16.mxu0 %v8414
    %8682 = vmatpush1.bf16.msra.mxu0 %v8413
    %8683 = vmatprep.subr.bf16.mxu0 %v8422
    %8684 = vmatpush1.bf16.msra.mxu0 %v8421
    %8685 = vmatprep.subr.bf16.mxu0 %v8430
    %8686 = vmatpush1.bf16.msra.mxu0 %v8429
    %8687 = vmatprep.subr.bf16.mxu0 %v8438
    %8688 = vmatpush1.bf16.msra.mxu0 %v8437
    %8689 = vmatprep.subr.bf16.mxu0 %v8446
    %8690 = vmatpush1.bf16.msra.mxu0 %v8445
    %8691 = vmatprep.mubr.bf16.mxu0 %v7808
    %8692 = vmatmul.mubr.bf16.gmra.mrb[0].mxu0 %v7807
    %v8693 = vpop.f32.mrb[0].mxu0
    %v8694 = vadd.f32 0.0, %v8693
    %v8695 = vpop.f32.mrb[0].mxu0
    %v8696 = vadd.f32 0.0, %v8695
    %v8697 = vpop.f32.mrb[0].mxu0
    %v8698 = vpop.f32.mrb[0].mxu0
    %8699 = vdwg.mxu0
    %8700 = vmatprep.subr.bf16.mxu0 %v8328
    %8701 = vmatpush1.bf16.msra.mxu0 %v8327
    %8702 = vmatprep.subr.bf16.mxu0 %v8336
    %8703 = vmatpush1.bf16.msra.mxu0 %v8335
    %8704 = vmatprep.subr.bf16.mxu0 %v8344
    %8705 = vmatpush1.bf16.msra.mxu0 %v8343
    %8706 = vmatprep.subr.bf16.mxu0 %v8352
    %8707 = vmatpush1.bf16.msra.mxu0 %v8351
    %8708 = vmatprep.subr.bf16.mxu0 %v8360
    %8709 = vmatpush1.bf16.msra.mxu0 %v8359
    %8710 = vmatprep.subr.bf16.mxu0 %v8368
    %8711 = vmatpush1.bf16.msra.mxu0 %v8367
    %8712 = vmatprep.subr.bf16.mxu0 %v8376
    %8713 = vmatpush1.bf16.msra.mxu0 %v8375
    %8714 = vmatprep.subr.bf16.mxu0 %v8384
    %8715 = vmatpush1.bf16.msra.mxu0 %v8383
    %8716 = vmatprep.subr.bf16.mxu0 %v8392
    %8717 = vmatpush1.bf16.msra.mxu0 %v8391
    %8718 = vmatprep.subr.bf16.mxu0 %v8400
    %8719 = vmatpush1.bf16.msra.mxu0 %v8399
    %8720 = vmatprep.subr.bf16.mxu0 %v8408
    %8721 = vmatpush1.bf16.msra.mxu0 %v8407
    %8722 = vmatprep.subr.bf16.mxu0 %v8416
    %8723 = vmatpush1.bf16.msra.mxu0 %v8415
    %8724 = vmatprep.subr.bf16.mxu0 %v8424
    %8725 = vmatpush1.bf16.msra.mxu0 %v8423
    %8726 = vmatprep.subr.bf16.mxu0 %v8432
    %8727 = vmatpush1.bf16.msra.mxu0 %v8431
    %8728 = vmatprep.subr.bf16.mxu0 %v8440
    %8729 = vmatpush1.bf16.msra.mxu0 %v8439
    %8730 = vmatprep.subr.bf16.mxu0 %v8448
    %8731 = vmatpush1.bf16.msra.mxu0 %v8447
    %8732 = vmatprep.mubr.bf16.mxu0 %v7808
    %8733 = vmatmul.mubr.bf16.gmra.mrb[0].mxu0 %v7807
    %v8734 = vpop.f32.mrb[0].mxu0
    %v8735 = vadd.f32 0.0, %v8734
    %v8736 = vpop.f32.mrb[0].mxu0
    %v8737 = vadd.f32 0.0, %v8736
    %v8738 = vpop.f32.mrb[0].mxu0
    %v8739 = vpop.f32.mrb[0].mxu0
    %8740 = vdwg.mxu0
    %8741 = vst [vmem:[%s71] sm:$0x7] %v8612
    %8742 = vst [vmem:[%s71 + $0x8] sm:$0x7] %v8614
    %8743 = vst [vmem:[%s71 + $0x10] sm:$0x7] %v8653
    %8744 = vst [vmem:[%s71 + $0x18] sm:$0x7] %v8655
    %8745 = vst [vmem:[%s71 + $0x20] sm:$0x7] %v8694
    %8746 = vst [vmem:[%s71 + $0x28] sm:$0x7] %v8696
    %8747 = vst [vmem:[%s71 + $0x30] sm:$0x7] %v8735
    %8748 = vst [vmem:[%s71 + $0x38] sm:$0x7] %v8737
    %8749 = vrot.lane.b32.xlu0 %v7657, 3
    %v8750 = vpop.permute.xlu0 %8749
    %8751 = vrot.lane.b32.xlu0 %v7658, 3
    %v8752 = vpop.permute.xlu0 %8751
    %8755 = vrot.lane.b32.xlu0 %v7659, 6
    %v8756 = vpop.permute.xlu0 %8755
    %8757 = vrot.lane.b32.xlu0 %v7660, 6
    %v8758 = vpop.permute.xlu0 %8757
    %8761 = vrot.lane.b32.xlu0 %v7661, 9
    %v8762 = vpop.permute.xlu0 %8761
    %8763 = vrot.lane.b32.xlu0 %v7662, 9
    %v8764 = vpop.permute.xlu0 %8763
    %8767 = vrot.lane.b32.xlu0 %v7672, 12
    %v8768 = vpop.permute.xlu0 %8767
    %8769 = vrot.lane.b32.xlu0 %v7674, 12
    %v8770 = vpop.permute.xlu0 %8769
    %8773 = vrot.lane.b32.xlu0 %v7676, 15
    %v8774 = vpop.permute.xlu0 %8773
    %8775 = vrot.lane.b32.xlu0 %v7678, 15
    %v8776 = vpop.permute.xlu0 %8775
    %8779 = vrot.lane.b32.xlu0 %v7680, 18
    %v8780 = vpop.permute.xlu0 %8779
    %8781 = vrot.lane.b32.xlu0 %v7682, 18
    %v8782 = vpop.permute.xlu0 %8781
    %8785 = vrot.lane.b32.xlu0 %v7684, 21
    %v8786 = vpop.permute.xlu0 %8785
    %8787 = vrot.lane.b32.xlu0 %v7686, 21
    %v8788 = vpop.permute.xlu0 %8787
    %8791 = vrot.lane.b32.xlu0 %v7696, 24
    %v8792 = vpop.permute.xlu0 %8791
    %8793 = vrot.lane.b32.xlu0 %v7698, 24
    %v8794 = vpop.permute.xlu0 %8793
    %8797 = vrot.lane.b32.xlu0 %v7700, 27
    %v8798 = vpop.permute.xlu0 %8797
    %8799 = vrot.lane.b32.xlu0 %v7702, 27
    %v8800 = vpop.permute.xlu0 %8799
    %8803 = vrot.lane.b32.xlu0 %v7704, 30
    %v8804 = vpop.permute.xlu0 %8803
    %8805 = vrot.lane.b32.xlu0 %v7706, 30
    %v8806 = vpop.permute.xlu0 %8805
    %8809 = vrot.lane.b32.xlu0 %v7708, 33
    %v8810 = vpop.permute.xlu0 %8809
    %8811 = vrot.lane.b32.xlu0 %v7710, 33
    %v8812 = vpop.permute.xlu0 %8811
    %8815 = vrot.lane.b32.xlu0 %v7720, 36
    %v8816 = vpop.permute.xlu0 %8815
    %8817 = vrot.lane.b32.xlu0 %v7722, 36
    %v8818 = vpop.permute.xlu0 %8817
    %8821 = vrot.lane.b32.xlu0 %v7724, 39
    %v8822 = vpop.permute.xlu0 %8821
    %8823 = vrot.lane.b32.xlu0 %v7726, 39
    %v8824 = vpop.permute.xlu0 %8823
    %8827 = vrot.lane.b32.xlu0 %v7728, 42
    %v8828 = vpop.permute.xlu0 %8827
    %8829 = vrot.lane.b32.xlu0 %v7730, 42
    %v8830 = vpop.permute.xlu0 %8829
    %8833 = vrot.lane.b32.xlu0 %v7732, 45
    %v8834 = vpop.permute.xlu0 %8833
    %8835 = vrot.lane.b32.xlu0 %v7734, 45
    %v8836 = vpop.permute.xlu0 %8835
    %vm8839 = vcmask 23552
    %v8840 = vsel %vm8839, %v7655, %v8750
    %v8841 = vsel %vm8839, %v7656, %v8752
    %vm8842 = vcmask 48128
    %v8843 = vsel %vm8842, %v8840, %v8756
    %v8844 = vsel %vm8842, %v8841, %v8758
    %vm8845 = vcmask 72704
    %v8846 = vsel %vm8845, %v8843, %v8762
    %v8847 = vsel %vm8845, %v8844, %v8764
    %vm8848 = vcmask 97280
    %v8849 = vsel %vm8848, %v8846, %v8768
    %v8850 = vsel %vm8848, %v8847, %v8770
    %vm8851 = vcmask 121856
    %v8852 = vsel %vm8851, %v8849, %v8774
    %v8853 = vsel %vm8851, %v8850, %v8776
    %vm8854 = vcmask 146432
    %v8855 = vsel %vm8854, %v8852, %v8780
    %v8856 = vsel %vm8854, %v8853, %v8782
    %vm8857 = vcmask 171008
    %v8858 = vsel %vm8857, %v8855, %v8786
    %v8859 = vsel %vm8857, %v8856, %v8788
    %vm8860 = vcmask 195584
    %v8861 = vsel %vm8860, %v8858, %v8792
    %v8862 = vsel %vm8860, %v8859, %v8794
    %v8863 = vsel %vm268, %v8861, %v8798
    %v8864 = vsel %vm268, %v8862, %v8800
    %vm8865 = vcmask 244736
    %v8866 = vsel %vm8865, %v8863, %v8804
    %v8867 = vsel %vm8865, %v8864, %v8806
    %vm8868 = vcmask 269312
    %v8869 = vsel %vm8868, %v8866, %v8810
    %v8870 = vsel %vm8868, %v8867, %v8812
    %vm8871 = vcmask 293888
    %v8872 = vsel %vm8871, %v8869, %v8816
    %v8873 = vsel %vm8871, %v8870, %v8818
    %vm8874 = vcmask 318464
    %v8875 = vsel %vm8874, %v8872, %v8822
    %v8876 = vsel %vm8874, %v8873, %v8824
    %vm8877 = vcmask 343040
    %v8878 = vsel %vm8877, %v8875, %v8828
    %v8879 = vsel %vm8877, %v8876, %v8830
    %vm8880 = vcmask 367616
    %v8881 = vsel %vm8880, %v8878, %v8834
    %v8882 = vsel %vm8880, %v8879, %v8836
    %v8883 = vpack.c.bf16 %v8882, %v8881
    %v8884 = vld [vmem:[%s53] sm:$0xf]
    %v8885 = vld [vmem:[%s53 + $0x4] sm:$0xf]
    %v8886 = vld [vmem:[%s53 + $0x8] sm:$0xf]
    %v8887 = vld [vmem:[%s53 + $0xc] sm:$0xf]
    %v8888 = vld [vmem:[%s53 + $0x10] sm:$0xf]
    %v8889 = vld [vmem:[%s53 + $0x14] sm:$0xf]
    %v8890 = vld [vmem:[%s55] sm:$0x1]
    %v8892 = vlaneseq
    %v8893 = vshrl.u32 %v8892, 7
    %v8894 = vsub.s32 0, %v8893
    %v8895 = vrot.slane %v8890, %v8894
    %v8903 = vunpack.c.l.b16 %v8884
    %v8904 = vunpack.c.l.b16 %v8885
    %v8905 = vunpack.c.l.b16 %v8886
    %v8906 = vunpack.c.l.b16 %v8887
    %v8907 = vunpack.c.l.b16 %v8888
    %v8908 = vunpack.c.l.b16 %v8889
    %v8909 = vpack.c.b16 %v8904, %v8903
    %v8910 = vpack.c.b16 %v8906, %v8905
    %v8911 = vpack.c.b16 %v8908, %v8907
    %v8916 = vsel %vm2136, %v8883, 0
    %8918 = vmatprep.subr.bf16.mxu0 0
    %8919 = vmatpush1.bf16.msra.mxu0 %v8909
    %8920 = vmatprep.subr.bf16.mxu0 0
    %8921 = vmatpush1.bf16.msra.mxu0 %v8910
    %8922 = vmatprep.subr.bf16.mxu0 0
    %8923 = vmatpush1.bf16.msra.mxu0 %v8911
    %8924 = vmatprep.subr.bf16.mxu0 0
    %8925 = vmatpush1.bf16.msra.mxu0 0
    %8926 = vmatprep.subr.bf16.mxu0 0
    %8927 = vmatpush1.bf16.msra.mxu0 0
    %8928 = vmatprep.subr.bf16.mxu0 0
    %8929 = vmatpush1.bf16.msra.mxu0 0
    %8930 = vmatprep.subr.bf16.mxu0 0
    %8931 = vmatpush1.bf16.msra.mxu0 0
    %8932 = vmatprep.subr.bf16.mxu0 0
    %8933 = vmatpush1.bf16.msra.mxu0 0
    %8934 = vmatprep.subr.bf16.mxu0 0
    %8935 = vmatpush1.bf16.msra.mxu0 0
    %8936 = vmatprep.subr.bf16.mxu0 0
    %8937 = vmatpush1.bf16.msra.mxu0 0
    %8938 = vmatprep.subr.bf16.mxu0 0
    %8939 = vmatpush1.bf16.msra.mxu0 0
    %8940 = vmatprep.subr.bf16.mxu0 0
    %8941 = vmatpush1.bf16.msra.mxu0 0
    %8942 = vmatprep.subr.bf16.mxu0 0
    %8943 = vmatpush1.bf16.msra.mxu0 0
    %8944 = vmatprep.subr.bf16.mxu0 0
    %8945 = vmatpush1.bf16.msra.mxu0 0
    %8946 = vmatprep.subr.bf16.mxu0 0
    %8947 = vmatpush1.bf16.msra.mxu0 0
    %8948 = vmatprep.subr.bf16.mxu0 0
    %8949 = vmatpush1.bf16.msra.mxu0 0
    %8950 = vmatprep.mubr.bf16.mxu0 0
    %8951 = vmatmul.mubr.bf16.gmra.mrb[0].mxu0 %v8916
    %v8952 = vpop.f32.mrb[0].mxu0
    %v8953 = vadd.f32 %v8895, %v8952
    %v8954 = vpop.f32.mrb[0].mxu0
    %v8955 = vpop.f32.mrb[0].mxu0
    %v8956 = vadd.f32 %v8895, %v8955
    %v8957 = vpop.f32.mrb[0].mxu0
    %8958 = vdwg.mxu0
    %v8959 = vmax.f32 %v8953, 0.0
    %v8960 = vmax.f32 %v8956, 0.0
    %v8961 = vsel %vm2127, %v8959, 0.0
    %v8962 = vsel %vm2127, %v8960, 0.0
    %v8963 = vadd.f32 %v8961, %v8962
    %v8964 = vrot.slane %v8963, 4
    %v8965 = vadd.f32 %v8963, %v8964
    %v8966 = vrot.slane %v8965, 2
    %v8967 = vadd.f32 %v8965, %v8966
    %v8968 = vrot.slane %v8967, 1
    %v8969 = vadd.f32 %v8967, %v8968
    %v8970 = vrcp.pop 16.0
    %v8971 = vmul.f32 %v8969, %v8970
    %v8972 = vlaneseq
    %v8973 = vshrl.u32 %v8972, 7
    %v8974 = vsub.s32 1, %v8973
    %v8975 = vrot.slane %v7037, %v8974
    %v8976 = vlaneseq
    %v8977 = vshrl.u32 %v8976, 7
    %v8978 = vsub.s32 3, %v8977
    %v8979 = vrot.slane %v7037, %v8978
    %v8982 = vpack.c.bf16 %v8975, %v8975
    %v8983 = vpack.c.bf16 %v8979, %v8979
    %v8984 = vld [vmem:[%s33] sm:$0xff]
    %v8985 = vld [vmem:[%s33 + $0x8] sm:$0xff]
    %v8986 = vld [vmem:[%s33 + $0x10] sm:$0xff]
    %v8987 = vld [vmem:[%s33 + $0x18] sm:$0xff]
    %v8988 = vld [vmem:[%s33 + $0x20] sm:$0xff]
    %v8989 = vld [vmem:[%s33 + $0x28] sm:$0xff]
    %v8990 = vld [vmem:[%s33 + $0x30] sm:$0xff]
    %v8991 = vld [vmem:[%s33 + $0x38] sm:$0xff]
    %v8992 = vld [vmem:[%s33 + $0x40] sm:$0xff]
    %v8993 = vld [vmem:[%s33 + $0x48] sm:$0xff]
    %v8994 = vld [vmem:[%s33 + $0x50] sm:$0xff]
    %v8995 = vld [vmem:[%s33 + $0x58] sm:$0xff]
    %v8996 = vld [vmem:[%s33 + $0x60] sm:$0xff]
    %v8997 = vld [vmem:[%s33 + $0x68] sm:$0xff]
    %v8998 = vld [vmem:[%s33 + $0x70] sm:$0xff]
    %v8999 = vld [vmem:[%s33 + $0x78] sm:$0xff]
    %v9000 = vld [vmem:[%s33 + $0x80] sm:$0xff]
    %v9001 = vld [vmem:[%s33 + $0x88] sm:$0xff]
    %v9002 = vld [vmem:[%s33 + $0x90] sm:$0xff]
    %v9003 = vld [vmem:[%s33 + $0x98] sm:$0xff]
    %v9004 = vld [vmem:[%s33 + $0xa0] sm:$0xff]
    %v9005 = vld [vmem:[%s33 + $0xa8] sm:$0xff]
    %v9006 = vld [vmem:[%s33 + $0xb0] sm:$0xff]
    %v9007 = vld [vmem:[%s33 + $0xb8] sm:$0xff]
    %v9008 = vld [vmem:[%s33 + $0xc0] sm:$0xff]
    %v9009 = vld [vmem:[%s33 + $0xc8] sm:$0xff]
    %v9010 = vld [vmem:[%s33 + $0xd0] sm:$0xff]
    %v9011 = vld [vmem:[%s33 + $0xd8] sm:$0xff]
    %v9012 = vld [vmem:[%s33 + $0xe0] sm:$0xff]
    %v9013 = vld [vmem:[%s33 + $0xe8] sm:$0xff]
    %v9014 = vld [vmem:[%s33 + $0xf0] sm:$0xff]
    %v9015 = vld [vmem:[%s33 + $0xf8] sm:$0xff]
    %v9016 = vld [vmem:[%s35] sm:$0x3]
    %v9018 = vshrl.u32 %v8982, 16
    %v9021 = vshrl.u32 %v8983, 16
    %v9057 = vunpack.c.l.b16 %v8984
    %v9058 = vunpack.c.h.b16 %v8984
    %v9059 = vunpack.c.l.b16 %v8985
    %v9060 = vunpack.c.h.b16 %v8985
    %v9061 = vunpack.c.l.b16 %v8986
    %v9062 = vunpack.c.h.b16 %v8986
    %v9063 = vunpack.c.l.b16 %v8987
    %v9064 = vunpack.c.h.b16 %v8987
    %v9065 = vunpack.c.l.b16 %v8988
    %v9066 = vunpack.c.h.b16 %v8988
    %v9067 = vunpack.c.l.b16 %v8989
    %v9068 = vunpack.c.h.b16 %v8989
    %v9069 = vunpack.c.l.b16 %v8990
    %v9070 = vunpack.c.h.b16 %v8990
    %v9071 = vunpack.c.l.b16 %v8991
    %v9072 = vunpack.c.h.b16 %v8991
    %v9073 = vunpack.c.l.b16 %v8992
    %v9074 = vunpack.c.h.b16 %v8992
    %v9075 = vunpack.c.l.b16 %v8993
    %v9076 = vunpack.c.h.b16 %v8993
    %v9077 = vunpack.c.l.b16 %v8994
    %v9078 = vunpack.c.h.b16 %v8994
    %v9079 = vunpack.c.l.b16 %v8995
    %v9080 = vunpack.c.h.b16 %v8995
    %v9081 = vunpack.c.l.b16 %v8996
    %v9082 = vunpack.c.h.b16 %v8996
    %v9083 = vunpack.c.l.b16 %v8997
    %v9084 = vunpack.c.h.b16 %v8997
    %v9085 = vunpack.c.l.b16 %v8998
    %v9086 = vunpack.c.h.b16 %v8998
    %v9087 = vunpack.c.l.b16 %v8999
    %v9088 = vunpack.c.h.b16 %v8999
    %v9089 = vunpack.c.l.b16 %v9000
    %v9090 = vunpack.c.h.b16 %v9000
    %v9091 = vunpack.c.l.b16 %v9001
    %v9092 = vunpack.c.h.b16 %v9001
    %v9093 = vunpack.c.l.b16 %v9002
    %v9094 = vunpack.c.h.b16 %v9002
    %v9095 = vunpack.c.l.b16 %v9003
    %v9096 = vunpack.c.h.b16 %v9003
    %v9097 = vunpack.c.l.b16 %v9004
    %v9098 = vunpack.c.h.b16 %v9004
    %v9099 = vunpack.c.l.b16 %v9005
    %v9100 = vunpack.c.h.b16 %v9005
    %v9101 = vunpack.c.l.b16 %v9006
    %v9102 = vunpack.c.h.b16 %v9006
    %v9103 = vunpack.c.l.b16 %v9007
    %v9104 = vunpack.c.h.b16 %v9007
    %v9105 = vunpack.c.l.b16 %v9008
    %v9106 = vunpack.c.h.b16 %v9008
    %v9107 = vunpack.c.l.b16 %v9009
    %v9108 = vunpack.c.h.b16 %v9009
    %v9109 = vunpack.c.l.b16 %v9010
    %v9110 = vunpack.c.h.b16 %v9010
    %v9111 = vunpack.c.l.b16 %v9011
    %v9112 = vunpack.c.h.b16 %v9011
    %v9113 = vunpack.c.l.b16 %v9012
    %v9114 = vunpack.c.h.b16 %v9012
    %v9115 = vunpack.c.l.b16 %v9013
    %v9116 = vunpack.c.h.b16 %v9013
    %v9117 = vunpack.c.l.b16 %v9014
    %v9118 = vunpack.c.h.b16 %v9014
    %v9119 = vunpack.c.l.b16 %v9015
    %v9120 = vunpack.c.h.b16 %v9015
    %v9121 = vpack.c.b16 %v9059, %v9057
    %v9122 = vpack.c.b16 %v9060, %v9058
    %v9123 = vpack.c.b16 %v9063, %v9061
    %v9124 = vpack.c.b16 %v9064, %v9062
    %v9125 = vpack.c.b16 %v9067, %v9065
    %v9126 = vpack.c.b16 %v9068, %v9066
    %v9127 = vpack.c.b16 %v9071, %v9069
    %v9128 = vpack.c.b16 %v9072, %v9070
    %v9129 = vpack.c.b16 %v9075, %v9073
    %v9130 = vpack.c.b16 %v9076, %v9074
    %v9131 = vpack.c.b16 %v9079, %v9077
    %v9132 = vpack.c.b16 %v9080, %v9078
    %v9133 = vpack.c.b16 %v9083, %v9081
    %v9134 = vpack.c.b16 %v9084, %v9082
    %v9135 = vpack.c.b16 %v9087, %v9085
    %v9136 = vpack.c.b16 %v9088, %v9086
    %v9137 = vpack.c.b16 %v9091, %v9089
    %v9138 = vpack.c.b16 %v9092, %v9090
    %v9139 = vpack.c.b16 %v9095, %v9093
    %v9140 = vpack.c.b16 %v9096, %v9094
    %v9141 = vpack.c.b16 %v9099, %v9097
    %v9142 = vpack.c.b16 %v9100, %v9098
    %v9143 = vpack.c.b16 %v9103, %v9101
    %v9144 = vpack.c.b16 %v9104, %v9102
    %v9145 = vpack.c.b16 %v9107, %v9105
    %v9146 = vpack.c.b16 %v9108, %v9106
    %v9147 = vpack.c.b16 %v9111, %v9109
    %v9148 = vpack.c.b16 %v9112, %v9110
    %v9149 = vpack.c.b16 %v9115, %v9113
    %v9150 = vpack.c.b16 %v9116, %v9114
    %v9151 = vpack.c.b16 %v9119, %v9117
    %v9152 = vpack.c.b16 %v9120, %v9118
    %v9186 = vlaneseq
    %v9187 = vshrl.u32 %v9186, 7
    %v9188 = vsub.s32 0, %v9187
    %v9189 = vrot.slane %v9016, %v9188
    %v9190 = vlaneseq
    %v9191 = vshrl.u32 %v9190, 7
    %v9192 = vsub.s32 1, %v9191
    %v9193 = vrot.slane %v9016, %v9192
    %9196 = vmatprep.subr.bf16.mxu0 %v9122
    %9197 = vmatpush1.bf16.msra.mxu0 %v9121
    %9198 = vmatprep.subr.bf16.mxu0 %v9124
    %9199 = vmatpush1.bf16.msra.mxu0 %v9123
    %9200 = vmatprep.subr.bf16.mxu0 %v9126
    %9201 = vmatpush1.bf16.msra.mxu0 %v9125
    %9202 = vmatprep.subr.bf16.mxu0 %v9128
    %9203 = vmatpush1.bf16.msra.mxu0 %v9127
    %9204 = vmatprep.subr.bf16.mxu0 %v9130
    %9205 = vmatpush1.bf16.msra.mxu0 %v9129
    %9206 = vmatprep.subr.bf16.mxu0 %v9132
    %9207 = vmatpush1.bf16.msra.mxu0 %v9131
    %9208 = vmatprep.subr.bf16.mxu0 %v9134
    %9209 = vmatpush1.bf16.msra.mxu0 %v9133
    %9210 = vmatprep.subr.bf16.mxu0 %v9136
    %9211 = vmatpush1.bf16.msra.mxu0 %v9135
    %9212 = vmatprep.subr.bf16.mxu0 %v9138
    %9213 = vmatpush1.bf16.msra.mxu0 %v9137
    %9214 = vmatprep.subr.bf16.mxu0 %v9140
    %9215 = vmatpush1.bf16.msra.mxu0 %v9139
    %9216 = vmatprep.subr.bf16.mxu0 %v9142
    %9217 = vmatpush1.bf16.msra.mxu0 %v9141
    %9218 = vmatprep.subr.bf16.mxu0 %v9144
    %9219 = vmatpush1.bf16.msra.mxu0 %v9143
    %9220 = vmatprep.subr.bf16.mxu0 %v9146
    %9221 = vmatpush1.bf16.msra.mxu0 %v9145
    %9222 = vmatprep.subr.bf16.mxu0 %v9148
    %9223 = vmatpush1.bf16.msra.mxu0 %v9147
    %9224 = vmatprep.subr.bf16.mxu0 %v9150
    %9225 = vmatpush1.bf16.msra.mxu0 %v9149
    %9226 = vmatprep.subr.bf16.mxu0 %v9152
    %9227 = vmatpush1.bf16.msra.mxu0 %v9151
    %9228 = vmatprep.mubr.bf16.mxu0 %v9021
    %9229 = vmatmul.mubr.bf16.gmra.mrb[0].mxu0 %v9018
    %v9230 = vpop.f32.mrb[0].mxu0
    %v9231 = vadd.f32 %v9189, %v9230
    %v9232 = vpop.f32.mrb[0].mxu0
    %v9233 = vadd.f32 %v9193, %v9232
    %v9234 = vpop.f32.mrb[0].mxu0
    %v9235 = vpop.f32.mrb[0].mxu0
    %9236 = vdwg.mxu0
    %vm9237 = vcmp.ge.f32.partialorder %v9231, 0.0
    %vm9238 = vcmp.ge.f32.partialorder %v9233, 0.0
    %v9239 = vmul.f32 %v9231, 0.01
    %v9240 = vmul.f32 %v9233, 0.01
    %v9241 = vsel %vm9237, %v9231, %v9239
    %v9242 = vsel %vm9238, %v9233, %v9240
    %v9244 = vrot.slane %v9241, 7
    %9245 = vrot.lane.b32.xlu0 %v9244, 64
    %v9246 = vpop.permute.xlu0 %9245
    %v9249 = vrot.slane %v9242, 6
    %v9251 = vrot.slane %v9242, 5
    %9252 = vrot.lane.b32.xlu0 %v9251, 64
    %v9253 = vpop.permute.xlu0 %9252
    %v9255 = vsel %vm6044, %v9241, %v9246
    %v9256 = vsel %vm7050, %v9255, %v9249
    %v9257 = vsel %vm7347, %v9256, %v9253
    %v9258 = vpack.c.bf16 %v9257, %v9257
    %v9259 = vld [vmem:[%s37] sm:$0xf]
    %v9260 = vld [vmem:[%s37 + $0x4] sm:$0xf]
    %v9261 = vld [vmem:[%s37 + $0x8] sm:$0xf]
    %v9262 = vld [vmem:[%s37 + $0xc] sm:$0xf]
    %v9263 = vld [vmem:[%s37 + $0x10] sm:$0xf]
    %v9264 = vld [vmem:[%s37 + $0x14] sm:$0xf]
    %v9265 = vld [vmem:[%s37 + $0x18] sm:$0xf]
    %v9266 = vld [vmem:[%s37 + $0x1c] sm:$0xf]
    %v9267 = vld [vmem:[%s39] sm:$0x1]
    %v9269 = vlaneseq
    %v9270 = vshrl.u32 %v9269, 7
    %v9271 = vsub.s32 0, %v9270
    %v9272 = vrot.slane %v9267, %v9271
    %v9282 = vunpack.c.l.b16 %v9259
    %v9283 = vunpack.c.l.b16 %v9260
    %v9284 = vunpack.c.l.b16 %v9261
    %v9285 = vunpack.c.l.b16 %v9262
    %v9286 = vunpack.c.l.b16 %v9263
    %v9287 = vunpack.c.l.b16 %v9264
    %v9288 = vunpack.c.l.b16 %v9265
    %v9289 = vunpack.c.l.b16 %v9266
    %v9290 = vpack.c.b16 %v9283, %v9282
    %v9291 = vpack.c.b16 %v9285, %v9284
    %v9292 = vpack.c.b16 %v9287, %v9286
    %v9293 = vpack.c.b16 %v9289, %v9288
    %v9299 = vsel %vm2145, %v9258, 0
    %9301 = vmatprep.subr.bf16.mxu0 0
    %9302 = vmatpush1.bf16.msra.mxu0 %v9290
    %9303 = vmatprep.subr.bf16.mxu0 0
    %9304 = vmatpush1.bf16.msra.mxu0 %v9291
    %9305 = vmatprep.subr.bf16.mxu0 0
    %9306 = vmatpush1.bf16.msra.mxu0 %v9292
    %9307 = vmatprep.subr.bf16.mxu0 0
    %9308 = vmatpush1.bf16.msra.mxu0 %v9293
    %9309 = vmatprep.subr.bf16.mxu0 0
    %9310 = vmatpush1.bf16.msra.mxu0 0
    %9311 = vmatprep.subr.bf16.mxu0 0
    %9312 = vmatpush1.bf16.msra.mxu0 0
    %9313 = vmatprep.subr.bf16.mxu0 0
    %9314 = vmatpush1.bf16.msra.mxu0 0
    %9315 = vmatprep.subr.bf16.mxu0 0
    %9316 = vmatpush1.bf16.msra.mxu0 0
    %9317 = vmatprep.subr.bf16.mxu0 0
    %9318 = vmatpush1.bf16.msra.mxu0 0
    %9319 = vmatprep.subr.bf16.mxu0 0
    %9320 = vmatpush1.bf16.msra.mxu0 0
    %9321 = vmatprep.subr.bf16.mxu0 0
    %9322 = vmatpush1.bf16.msra.mxu0 0
    %9323 = vmatprep.subr.bf16.mxu0 0
    %9324 = vmatpush1.bf16.msra.mxu0 0
    %9325 = vmatprep.subr.bf16.mxu0 0
    %9326 = vmatpush1.bf16.msra.mxu0 0
    %9327 = vmatprep.subr.bf16.mxu0 0
    %9328 = vmatpush1.bf16.msra.mxu0 0
    %9329 = vmatprep.subr.bf16.mxu0 0
    %9330 = vmatpush1.bf16.msra.mxu0 0
    %9331 = vmatprep.subr.bf16.mxu0 0
    %9332 = vmatpush1.bf16.msra.mxu0 0
    %9333 = vmatprep.mubr.bf16.mxu0 0
    %9334 = vmatmul.mubr.bf16.gmra.mrb[0].mxu0 %v9299
    %v9335 = vpop.f32.mrb[0].mxu0
    %v9336 = vadd.f32 %v9272, %v9335
    %v9337 = vpop.f32.mrb[0].mxu0
    %v9338 = vpop.f32.mrb[0].mxu0
    %v9339 = vpop.f32.mrb[0].mxu0
    %9340 = vdwg.mxu0
    %vm9341 = vcmp.ge.f32.partialorder %v9336, 0.0
    %v9342 = vmul.f32 %v9336, 0.01
    %v9343 = vsel %vm9341, %v9336, %v9342
    %v9345 = vrot.slane %v9343, 4
    %9346 = vrot.lane.b32.xlu0 %v9345, 96
    %v9347 = vpop.permute.xlu0 %9346
    %9349 = vrot.lane.b32.xlu0 %v9343, 64
    %v9350 = vpop.permute.xlu0 %9349
    %9352 = vrot.lane.b32.xlu0 %v9345, 32
    %v9353 = vpop.permute.xlu0 %9352
    %v9355 = vsel %vm7446, %v9343, %v9347
    %v9356 = vsel %vm7446, %v9350, %v9353
    %v9357 = vpack.c.bf16 %v9356, %v9355
    %v9358 = vld [vmem:[%s41] sm:$0xf]
    %v9359 = vld [vmem:[%s41 + $0x4] sm:$0xf]
    %v9360 = vld [vmem:[%s41 + $0x8] sm:$0xf]
    %v9361 = vld [vmem:[%s41 + $0xc] sm:$0xf]
    %v9362 = vld [vmem:[%s43] sm:$0x1]
    %v9364 = vlaneseq
    %v9365 = vshrl.u32 %v9364, 7
    %v9366 = vsub.s32 0, %v9365
    %v9367 = vrot.slane %v9362, %v9366
    %v9373 = vunpack.c.l.b16 %v9358
    %v9374 = vunpack.c.l.b16 %v9359
    %v9375 = vunpack.c.l.b16 %v9360
    %v9376 = vunpack.c.l.b16 %v9361
    %v9377 = vpack.c.b16 %v9374, %v9373
    %v9378 = vpack.c.b16 %v9376, %v9375
    %v9382 = vsel %vm2127, %v9357, 0
    %9384 = vmatprep.subr.bf16.mxu0 0
    %9385 = vmatpush1.bf16.msra.mxu0 %v9377
    %9386 = vmatprep.subr.bf16.mxu0 0
    %9387 = vmatpush1.bf16.msra.mxu0 %v9378
    %9388 = vmatprep.subr.bf16.mxu0 0
    %9389 = vmatpush1.bf16.msra.mxu0 0
    %9390 = vmatprep.subr.bf16.mxu0 0
    %9391 = vmatpush1.bf16.msra.mxu0 0
    %9392 = vmatprep.subr.bf16.mxu0 0
    %9393 = vmatpush1.bf16.msra.mxu0 0
    %9394 = vmatprep.subr.bf16.mxu0 0
    %9395 = vmatpush1.bf16.msra.mxu0 0
    %9396 = vmatprep.subr.bf16.mxu0 0
    %9397 = vmatpush1.bf16.msra.mxu0 0
    %9398 = vmatprep.subr.bf16.mxu0 0
    %9399 = vmatpush1.bf16.msra.mxu0 0
    %9400 = vmatprep.subr.bf16.mxu0 0
    %9401 = vmatpush1.bf16.msra.mxu0 0
    %9402 = vmatprep.subr.bf16.mxu0 0
    %9403 = vmatpush1.bf16.msra.mxu0 0
    %9404 = vmatprep.subr.bf16.mxu0 0
    %9405 = vmatpush1.bf16.msra.mxu0 0
    %9406 = vmatprep.subr.bf16.mxu0 0
    %9407 = vmatpush1.bf16.msra.mxu0 0
    %9408 = vmatprep.subr.bf16.mxu0 0
    %9409 = vmatpush1.bf16.msra.mxu0 0
    %9410 = vmatprep.subr.bf16.mxu0 0
    %9411 = vmatpush1.bf16.msra.mxu0 0
    %9412 = vmatprep.subr.bf16.mxu0 0
    %9413 = vmatpush1.bf16.msra.mxu0 0
    %9414 = vmatprep.subr.bf16.mxu0 0
    %9415 = vmatpush1.bf16.msra.mxu0 0
    %9416 = vmatprep.mubr.bf16.mxu0 0
    %9417 = vmatmul.mubr.bf16.gmra.mrb[0].mxu0 %v9382
    %v9418 = vpop.f32.mrb[0].mxu0
    %v9419 = vadd.f32 %v9367, %v9418
    %v9420 = vpop.f32.mrb[0].mxu0
    %v9421 = vpop.f32.mrb[0].mxu0
    %v9422 = vadd.f32 %v9367, %v9421
    %v9423 = vpop.f32.mrb[0].mxu0
    %9424 = vdwg.mxu0
    %vm9425 = vcmp.ge.f32.partialorder %v9419, 0.0
    %vm9426 = vcmp.ge.f32.partialorder %v9422, 0.0
    %v9427 = vmul.f32 %v9419, 0.01
    %v9428 = vmul.f32 %v9422, 0.01
    %v9429 = vsel %vm9425, %v9419, %v9427
    %v9430 = vsel %vm9426, %v9422, %v9428
    %9433 = vrot.lane.b32.xlu0 %v9429, 112
    %v9434 = vpop.permute.xlu0 %9433
    %9435 = vrot.lane.b32.xlu0 %v9430, 112
    %v9436 = vpop.permute.xlu0 %9435
    %9439 = vrot.lane.b32.xlu0 %v9429, 96
    %v9440 = vpop.permute.xlu0 %9439
    %9441 = vrot.lane.b32.xlu0 %v9430, 96
    %v9442 = vpop.permute.xlu0 %9441
    %9445 = vrot.lane.b32.xlu0 %v9429, 80
    %v9446 = vpop.permute.xlu0 %9445
    %9447 = vrot.lane.b32.xlu0 %v9430, 80
    %v9448 = vpop.permute.xlu0 %9447
    %v9451 = vpack.c.bf16 %v9430, %v9429
    %v9452 = vpack.c.bf16 %v9436, %v9434
    %v9453 = vpack.c.bf16 %v9442, %v9440
    %v9454 = vpack.c.bf16 %v9448, %v9446
    %v9455 = vld [vmem:[%s45] sm:$0xf]
    %v9456 = vld [vmem:[%s45 + $0x4] sm:$0xf]
    %v9457 = vld [vmem:[%s47] sm:$0x1]
    %v9459 = vlaneseq
    %v9460 = vshrl.u32 %v9459, 7
    %v9461 = vsub.s32 0, %v9460
    %v9462 = vrot.slane %v9457, %v9461
    %v9466 = vunpack.c.l.b16 %v9455
    %v9467 = vunpack.c.l.b16 %v9456
    %v9468 = vpack.c.b16 %v9467, %v9466
    %v9471 = vsel %vm2118, %v9451, 0
    %v9474 = vsel %vm2118, %v9452, 0
    %v9477 = vsel %vm2118, %v9453, 0
    %v9480 = vsel %vm2118, %v9454, 0
    %9482 = vmatprep.subr.bf16.mxu0 0
    %9483 = vmatpush1.bf16.msra.mxu0 %v9468
    %9484 = vmatprep.subr.bf16.mxu0 0
    %9485 = vmatpush1.bf16.msra.mxu0 0
    %9486 = vmatprep.subr.bf16.mxu0 0
    %9487 = vmatpush1.bf16.msra.mxu0 0
    %9488 = vmatprep.subr.bf16.mxu0 0
    %9489 = vmatpush1.bf16.msra.mxu0 0
    %9490 = vmatprep.subr.bf16.mxu0 0
    %9491 = vmatpush1.bf16.msra.mxu0 0
    %9492 = vmatprep.subr.bf16.mxu0 0
    %9493 = vmatpush1.bf16.msra.mxu0 0
    %9494 = vmatprep.subr.bf16.mxu0 0
    %9495 = vmatpush1.bf16.msra.mxu0 0
    %9496 = vmatprep.subr.bf16.mxu0 0
    %9497 = vmatpush1.bf16.msra.mxu0 0
    %9498 = vmatprep.subr.bf16.mxu0 0
    %9499 = vmatpush1.bf16.msra.mxu0 0
    %9500 = vmatprep.subr.bf16.mxu0 0
    %9501 = vmatpush1.bf16.msra.mxu0 0
    %9502 = vmatprep.subr.bf16.mxu0 0
    %9503 = vmatpush1.bf16.msra.mxu0 0
    %9504 = vmatprep.subr.bf16.mxu0 0
    %9505 = vmatpush1.bf16.msra.mxu0 0
    %9506 = vmatprep.subr.bf16.mxu0 0
    %9507 = vmatpush1.bf16.msra.mxu0 0
    %9508 = vmatprep.subr.bf16.mxu0 0
    %9509 = vmatpush1.bf16.msra.mxu0 0
    %9510 = vmatprep.subr.bf16.mxu0 0
    %9511 = vmatpush1.bf16.msra.mxu0 0
    %9512 = vmatprep.subr.bf16.mxu0 0
    %9513 = vmatpush1.bf16.msra.mxu0 0
    %9514 = vmatprep.mubr.bf16.mxu0 0
    %9515 = vmatmul.mubr.bf16.gmra.mrb[0].mxu0 %v9471
    %v9516 = vpop.f32.mrb[0].mxu0
    %v9517 = vadd.f32 %v9462, %v9516
    %v9518 = vpop.f32.mrb[0].mxu0
    %v9519 = vpop.f32.mrb[0].mxu0
    %v9520 = vadd.f32 %v9462, %v9519
    %v9521 = vpop.f32.mrb[0].mxu0
    %9522 = vmatprep.mubr.bf16.mxu0 0
    %9523 = vmatmul.mubr.bf16.gmra.mrb[0].mxu0 %v9474
    %v9524 = vpop.f32.mrb[0].mxu0
    %v9525 = vadd.f32 %v9462, %v9524
    %v9526 = vpop.f32.mrb[0].mxu0
    %v9527 = vpop.f32.mrb[0].mxu0
    %v9528 = vadd.f32 %v9462, %v9527
    %v9529 = vpop.f32.mrb[0].mxu0
    %9530 = vmatprep.mubr.bf16.mxu0 0
    %9531 = vmatmul.mubr.bf16.gmra.mrb[0].mxu0 %v9477
    %v9532 = vpop.f32.mrb[0].mxu0
    %v9533 = vadd.f32 %v9462, %v9532
    %v9534 = vpop.f32.mrb[0].mxu0
    %v9535 = vpop.f32.mrb[0].mxu0
    %v9536 = vadd.f32 %v9462, %v9535
    %v9537 = vpop.f32.mrb[0].mxu0
    %9538 = vmatprep.mubr.bf16.mxu0 0
    %9539 = vmatmul.mubr.bf16.gmra.mrb[0].mxu0 %v9480
    %v9540 = vpop.f32.mrb[0].mxu0
    %v9541 = vadd.f32 %v9462, %v9540
    %v9542 = vpop.f32.mrb[0].mxu0
    %v9543 = vpop.f32.mrb[0].mxu0
    %v9544 = vadd.f32 %v9462, %v9543
    %v9545 = vpop.f32.mrb[0].mxu0
    %9546 = vdwg.mxu0
    %vm9547 = vcmp.ge.f32.partialorder %v9517, 0.0
    %vm9548 = vcmp.ge.f32.partialorder %v9520, 0.0
    %vm9549 = vcmp.ge.f32.partialorder %v9525, 0.0
    %vm9550 = vcmp.ge.f32.partialorder %v9528, 0.0
    %vm9551 = vcmp.ge.f32.partialorder %v9533, 0.0
    %vm9552 = vcmp.ge.f32.partialorder %v9536, 0.0
    %vm9553 = vcmp.ge.f32.partialorder %v9541, 0.0
    %vm9554 = vcmp.ge.f32.partialorder %v9544, 0.0
    %v9555 = vmul.f32 %v9517, 0.01
    %v9556 = vmul.f32 %v9520, 0.01
    %v9557 = vmul.f32 %v9525, 0.01
    %v9558 = vmul.f32 %v9528, 0.01
    %v9559 = vmul.f32 %v9533, 0.01
    %v9560 = vmul.f32 %v9536, 0.01
    %v9561 = vmul.f32 %v9541, 0.01
    %v9562 = vmul.f32 %v9544, 0.01
    %v9563 = vsel %vm9547, %v9517, %v9555
    %v9564 = vsel %vm9548, %v9520, %v9556
    %v9565 = vsel %vm9549, %v9525, %v9557
    %v9566 = vsel %vm9550, %v9528, %v9558
    %v9567 = vsel %vm9551, %v9533, %v9559
    %v9568 = vsel %vm9552, %v9536, %v9560
    %v9569 = vsel %vm9553, %v9541, %v9561
    %v9570 = vsel %vm9554, %v9544, %v9562
    %9579 = vrot.lane.b32.xlu0 %v9563, 125
    %v9580 = vpop.permute.xlu0 %9579
    %9581 = vrot.lane.b32.xlu0 %v9564, 125
    %v9582 = vpop.permute.xlu0 %9581
    %9583 = vrot.lane.b32.xlu0 %v9565, 125
    %v9584 = vpop.permute.xlu0 %9583
    %9585 = vrot.lane.b32.xlu0 %v9566, 125
    %v9586 = vpop.permute.xlu0 %9585
    %9587 = vrot.lane.b32.xlu0 %v9567, 125
    %v9588 = vpop.permute.xlu0 %9587
    %9589 = vrot.lane.b32.xlu0 %v9568, 125
    %v9590 = vpop.permute.xlu0 %9589
    %9591 = vrot.lane.b32.xlu0 %v9569, 125
    %v9592 = vpop.permute.xlu0 %9591
    %9593 = vrot.lane.b32.xlu0 %v9570, 125
    %v9594 = vpop.permute.xlu0 %9593
    %9603 = vrot.lane.b32.xlu0 %v9563, 122
    %v9604 = vpop.permute.xlu0 %9603
    %9605 = vrot.lane.b32.xlu0 %v9564, 122
    %v9606 = vpop.permute.xlu0 %9605
    %9607 = vrot.lane.b32.xlu0 %v9565, 122
    %v9608 = vpop.permute.xlu0 %9607
    %9609 = vrot.lane.b32.xlu0 %v9566, 122
    %v9610 = vpop.permute.xlu0 %9609
    %9611 = vrot.lane.b32.xlu0 %v9567, 122
    %v9612 = vpop.permute.xlu0 %9611
    %9613 = vrot.lane.b32.xlu0 %v9568, 122
    %v9614 = vpop.permute.xlu0 %9613
    %9615 = vrot.lane.b32.xlu0 %v9569, 122
    %v9616 = vpop.permute.xlu0 %9615
    %9617 = vrot.lane.b32.xlu0 %v9570, 122
    %v9618 = vpop.permute.xlu0 %9617
    %9627 = vrot.lane.b32.xlu0 %v9563, 119
    %v9628 = vpop.permute.xlu0 %9627
    %9629 = vrot.lane.b32.xlu0 %v9564, 119
    %v9630 = vpop.permute.xlu0 %9629
    %9631 = vrot.lane.b32.xlu0 %v9565, 119
    %v9632 = vpop.permute.xlu0 %9631
    %9633 = vrot.lane.b32.xlu0 %v9566, 119
    %v9634 = vpop.permute.xlu0 %9633
    %9635 = vrot.lane.b32.xlu0 %v9567, 119
    %v9636 = vpop.permute.xlu0 %9635
    %9637 = vrot.lane.b32.xlu0 %v9568, 119
    %v9638 = vpop.permute.xlu0 %9637
    %9639 = vrot.lane.b32.xlu0 %v9569, 119
    %v9640 = vpop.permute.xlu0 %9639
    %9641 = vrot.lane.b32.xlu0 %v9570, 119
    %v9642 = vpop.permute.xlu0 %9641
    %9651 = vxpose.xlu0.b32.start [1/16] %v9563, 128
    %9652 = vxpose.xlu0.b32.cont [2/16] %v9564, 128
    %9653 = vxpose.xlu0.b32.cont [3/16] %v9565, 128
    %9654 = vxpose.xlu0.b32.cont [4/16] %v9566, 128
    %9655 = vxpose.xlu0.b32.cont [5/16] %v9567, 128
    %9656 = vxpose.xlu0.b32.cont [6/16] %v9568, 128
    %9657 = vxpose.xlu0.b32.cont [7/16] %v9569, 128
    %9658 = vxpose.xlu0.b32.cont [8/16] %v9570, 128
    %9659 = vxpose.xlu0.b32.cont [9/16] %v9580, 128
    %9660 = vxpose.xlu0.b32.cont [10/16] %v9582, 128
    %9661 = vxpose.xlu0.b32.cont [11/16] %v9584, 128
    %9662 = vxpose.xlu0.b32.cont [12/16] %v9586, 128
    %9663 = vxpose.xlu0.b32.cont [13/16] %v9588, 128
    %9664 = vxpose.xlu0.b32.cont [14/16] %v9590, 128
    %9665 = vxpose.xlu0.b32.cont [15/16] %v9592, 128
    %9666 = vxpose.xlu0.b32.end [16/16] %v9594, 128
    %v9667 = vpop.trf.xlu0
    %v9668 = vpop.trf.xlu0
    %v9669 = vpop.trf.xlu0
    %v9670 = vpop.trf.xlu0
    %v9671 = vpop.trf.xlu0
    %v9672 = vpop.trf.xlu0
    %v9673 = vpop.trf.xlu0
    %v9674 = vpop.trf.xlu0
    %v9675 = vpop.trf.xlu0
    %v9676 = vpop.trf.xlu0
    %v9677 = vpop.trf.xlu0
    %v9678 = vpop.trf.xlu0
    %v9679 = vpop.trf.xlu0
    %v9680 = vpop.trf.xlu0
    %v9681 = vpop.trf.xlu0
    %v9682 = vpop.trf.xlu0
    %9683 = vxpose.xlu0.b32.start [1/16] %v9604, 128
    %9684 = vxpose.xlu0.b32.cont [2/16] %v9606, 128
    %9685 = vxpose.xlu0.b32.cont [3/16] %v9608, 128
    %9686 = vxpose.xlu0.b32.cont [4/16] %v9610, 128
    %9687 = vxpose.xlu0.b32.cont [5/16] %v9612, 128
    %9688 = vxpose.xlu0.b32.cont [6/16] %v9614, 128
    %9689 = vxpose.xlu0.b32.cont [7/16] %v9616, 128
    %9690 = vxpose.xlu0.b32.cont [8/16] %v9618, 128
    %9691 = vxpose.xlu0.b32.cont [9/16] %v9628, 128
    %9692 = vxpose.xlu0.b32.cont [10/16] %v9630, 128
    %9693 = vxpose.xlu0.b32.cont [11/16] %v9632, 128
    %9694 = vxpose.xlu0.b32.cont [12/16] %v9634, 128
    %9695 = vxpose.xlu0.b32.cont [13/16] %v9636, 128
    %9696 = vxpose.xlu0.b32.cont [14/16] %v9638, 128
    %9697 = vxpose.xlu0.b32.cont [15/16] %v9640, 128
    %9698 = vxpose.xlu0.b32.end [16/16] %v9642, 128
    %v9699 = vpop.trf.xlu0
    %v9700 = vpop.trf.xlu0
    %v9701 = vpop.trf.xlu0
    %v9702 = vpop.trf.xlu0
    %v9703 = vpop.trf.xlu0
    %v9704 = vpop.trf.xlu0
    %v9705 = vpop.trf.xlu0
    %v9706 = vpop.trf.xlu0
    %v9707 = vpop.trf.xlu0
    %v9708 = vpop.trf.xlu0
    %v9709 = vpop.trf.xlu0
    %v9710 = vpop.trf.xlu0
    %v9711 = vpop.trf.xlu0
    %v9712 = vpop.trf.xlu0
    %v9713 = vpop.trf.xlu0
    %v9714 = vpop.trf.xlu0
    %v9715 = vpack.c.bf16 %v9667, %v9667
    %v9716 = vpack.c.bf16 %v9699, %v9699
    %v9717 = vld [vmem:[%s49] sm:$0xff]
    %v9718 = vld [vmem:[%s49 + $0x8] sm:$0xff]
    %v9719 = vld [vmem:[%s49 + $0x10] sm:$0xff]
    %v9720 = vld [vmem:[%s49 + $0x18] sm:$0xff]
    %v9721 = vld [vmem:[%s49 + $0x20] sm:$0xff]
    %v9722 = vld [vmem:[%s49 + $0x28] sm:$0xff]
    %v9723 = vld [vmem:[%s49 + $0x30] sm:$0xff]
    %v9724 = vld [vmem:[%s49 + $0x38] sm:$0xff]
    %v9725 = vld [vmem:[%s49 + $0x40] sm:$0xff]
    %v9726 = vld [vmem:[%s49 + $0x48] sm:$0xff]
    %v9727 = vld [vmem:[%s49 + $0x50] sm:$0xff]
    %v9728 = vld [vmem:[%s49 + $0x58] sm:$0xff]
    %v9729 = vld [vmem:[%s49 + $0x60] sm:$0xff]
    %v9730 = vld [vmem:[%s49 + $0x68] sm:$0xff]
    %v9731 = vld [vmem:[%s49 + $0x70] sm:$0xff]
    %v9732 = vld [vmem:[%s49 + $0x78] sm:$0xff]
    %v9733 = vld [vmem:[%s49 + $0x80] sm:$0xff]
    %v9734 = vld [vmem:[%s49 + $0x88] sm:$0xff]
    %v9735 = vld [vmem:[%s49 + $0x90] sm:$0xff]
    %v9736 = vld [vmem:[%s49 + $0x98] sm:$0xff]
    %v9737 = vld [vmem:[%s49 + $0xa0] sm:$0xff]
    %v9738 = vld [vmem:[%s49 + $0xa8] sm:$0xff]
    %v9739 = vld [vmem:[%s49 + $0xb0] sm:$0xff]
    %v9740 = vld [vmem:[%s49 + $0xb8] sm:$0xff]
    %v9741 = vld [vmem:[%s49 + $0xc0] sm:$0xff]
    %v9742 = vld [vmem:[%s49 + $0xc8] sm:$0xff]
    %v9743 = vld [vmem:[%s49 + $0xd0] sm:$0xff]
    %v9744 = vld [vmem:[%s49 + $0xd8] sm:$0xff]
    %v9745 = vld [vmem:[%s49 + $0xe0] sm:$0xff]
    %v9746 = vld [vmem:[%s49 + $0xe8] sm:$0xff]
    %v9747 = vld [vmem:[%s49 + $0xf0] sm:$0xff]
    %v9748 = vld [vmem:[%s49 + $0xf8] sm:$0xff]
    %v9749 = vld [vmem:[%s49 + $0x100] sm:$0xff]
    %v9750 = vld [vmem:[%s49 + $0x108] sm:$0xff]
    %v9751 = vld [vmem:[%s49 + $0x110] sm:$0xff]
    %v9752 = vld [vmem:[%s49 + $0x118] sm:$0xff]
    %v9753 = vld [vmem:[%s49 + $0x120] sm:$0xff]
    %v9754 = vld [vmem:[%s49 + $0x128] sm:$0xff]
    %v9755 = vld [vmem:[%s49 + $0x130] sm:$0xff]
    %v9756 = vld [vmem:[%s49 + $0x138] sm:$0xff]
    %v9757 = vld [vmem:[%s49 + $0x140] sm:$0xff]
    %v9758 = vld [vmem:[%s49 + $0x148] sm:$0xff]
    %v9759 = vld [vmem:[%s49 + $0x150] sm:$0xff]
    %v9760 = vld [vmem:[%s49 + $0x158] sm:$0xff]
    %v9761 = vld [vmem:[%s49 + $0x160] sm:$0xff]
    %v9762 = vld [vmem:[%s49 + $0x168] sm:$0xff]
    %v9763 = vld [vmem:[%s49 + $0x170] sm:$0xff]
    %v9764 = vld [vmem:[%s49 + $0x178] sm:$0xff]
    %v9765 = vld [vmem:[%s49 + $0x180] sm:$0xff]
    %v9766 = vld [vmem:[%s49 + $0x188] sm:$0xff]
    %v9767 = vld [vmem:[%s49 + $0x190] sm:$0xff]
    %v9768 = vld [vmem:[%s49 + $0x198] sm:$0xff]
    %v9769 = vld [vmem:[%s49 + $0x1a0] sm:$0xff]
    %v9770 = vld [vmem:[%s49 + $0x1a8] sm:$0xff]
    %v9771 = vld [vmem:[%s49 + $0x1b0] sm:$0xff]
    %v9772 = vld [vmem:[%s49 + $0x1b8] sm:$0xff]
    %v9773 = vld [vmem:[%s49 + $0x1c0] sm:$0xff]
    %v9774 = vld [vmem:[%s49 + $0x1c8] sm:$0xff]
    %v9775 = vld [vmem:[%s49 + $0x1d0] sm:$0xff]
    %v9776 = vld [vmem:[%s49 + $0x1d8] sm:$0xff]
    %v9777 = vld [vmem:[%s49 + $0x1e0] sm:$0xff]
    %v9778 = vld [vmem:[%s49 + $0x1e8] sm:$0xff]
    %v9779 = vld [vmem:[%s49 + $0x1f0] sm:$0xff]
    %v9780 = vld [vmem:[%s49 + $0x1f8] sm:$0xff]
    %v9781 = vld [vmem:[%s49 + $0x200] sm:$0xff]
    %v9782 = vld [vmem:[%s49 + $0x208] sm:$0xff]
    %v9783 = vld [vmem:[%s49 + $0x210] sm:$0xff]
    %v9784 = vld [vmem:[%s49 + $0x218] sm:$0xff]
    %v9785 = vld [vmem:[%s49 + $0x220] sm:$0xff]
    %v9786 = vld [vmem:[%s49 + $0x228] sm:$0xff]
    %v9787 = vld [vmem:[%s49 + $0x230] sm:$0xff]
    %v9788 = vld [vmem:[%s49 + $0x238] sm:$0xff]
    %v9789 = vld [vmem:[%s49 + $0x240] sm:$0xff]
    %v9790 = vld [vmem:[%s49 + $0x248] sm:$0xff]
    %v9791 = vld [vmem:[%s49 + $0x250] sm:$0xff]
    %v9792 = vld [vmem:[%s49 + $0x258] sm:$0xff]
    %v9793 = vld [vmem:[%s49 + $0x260] sm:$0xff]
    %v9794 = vld [vmem:[%s49 + $0x268] sm:$0xff]
    %v9795 = vld [vmem:[%s49 + $0x270] sm:$0xff]
    %v9796 = vld [vmem:[%s49 + $0x278] sm:$0xff]
    %v9797 = vld [vmem:[%s49 + $0x280] sm:$0xff]
    %v9798 = vld [vmem:[%s49 + $0x288] sm:$0xff]
    %v9799 = vld [vmem:[%s49 + $0x290] sm:$0xff]
    %v9800 = vld [vmem:[%s49 + $0x298] sm:$0xff]
    %v9801 = vld [vmem:[%s49 + $0x2a0] sm:$0xff]
    %v9802 = vld [vmem:[%s49 + $0x2a8] sm:$0xff]
    %v9803 = vld [vmem:[%s49 + $0x2b0] sm:$0xff]
    %v9804 = vld [vmem:[%s49 + $0x2b8] sm:$0xff]
    %v9805 = vld [vmem:[%s49 + $0x2c0] sm:$0xff]
    %v9806 = vld [vmem:[%s49 + $0x2c8] sm:$0xff]
    %v9807 = vld [vmem:[%s49 + $0x2d0] sm:$0xff]
    %v9808 = vld [vmem:[%s49 + $0x2d8] sm:$0xff]
    %v9809 = vld [vmem:[%s49 + $0x2e0] sm:$0xff]
    %v9810 = vld [vmem:[%s49 + $0x2e8] sm:$0xff]
    %v9811 = vld [vmem:[%s49 + $0x2f0] sm:$0xff]
    %v9812 = vld [vmem:[%s49 + $0x2f8] sm:$0xff]
    %v9813 = vld [vmem:[%s49 + $0x300] sm:$0xff]
    %v9814 = vld [vmem:[%s49 + $0x308] sm:$0xff]
    %v9815 = vld [vmem:[%s49 + $0x310] sm:$0xff]
    %v9816 = vld [vmem:[%s49 + $0x318] sm:$0xff]
    %v9817 = vld [vmem:[%s49 + $0x320] sm:$0xff]
    %v9818 = vld [vmem:[%s49 + $0x328] sm:$0xff]
    %v9819 = vld [vmem:[%s49 + $0x330] sm:$0xff]
    %v9820 = vld [vmem:[%s49 + $0x338] sm:$0xff]
    %v9821 = vld [vmem:[%s49 + $0x340] sm:$0xff]
    %v9822 = vld [vmem:[%s49 + $0x348] sm:$0xff]
    %v9823 = vld [vmem:[%s49 + $0x350] sm:$0xff]
    %v9824 = vld [vmem:[%s49 + $0x358] sm:$0xff]
    %v9825 = vld [vmem:[%s49 + $0x360] sm:$0xff]
    %v9826 = vld [vmem:[%s49 + $0x368] sm:$0xff]
    %v9827 = vld [vmem:[%s49 + $0x370] sm:$0xff]
    %v9828 = vld [vmem:[%s49 + $0x378] sm:$0xff]
    %v9829 = vld [vmem:[%s49 + $0x380] sm:$0xff]
    %v9830 = vld [vmem:[%s49 + $0x388] sm:$0xff]
    %v9831 = vld [vmem:[%s49 + $0x390] sm:$0xff]
    %v9832 = vld [vmem:[%s49 + $0x398] sm:$0xff]
    %v9833 = vld [vmem:[%s49 + $0x3a0] sm:$0xff]
    %v9834 = vld [vmem:[%s49 + $0x3a8] sm:$0xff]
    %v9835 = vld [vmem:[%s49 + $0x3b0] sm:$0xff]
    %v9836 = vld [vmem:[%s49 + $0x3b8] sm:$0xff]
    %v9837 = vld [vmem:[%s49 + $0x3c0] sm:$0xff]
    %v9838 = vld [vmem:[%s49 + $0x3c8] sm:$0xff]
    %v9839 = vld [vmem:[%s49 + $0x3d0] sm:$0xff]
    %v9840 = vld [vmem:[%s49 + $0x3d8] sm:$0xff]
    %v9841 = vld [vmem:[%s49 + $0x3e0] sm:$0xff]
    %v9842 = vld [vmem:[%s49 + $0x3e8] sm:$0xff]
    %v9843 = vld [vmem:[%s49 + $0x3f0] sm:$0xff]
    %v9844 = vld [vmem:[%s49 + $0x3f8] sm:$0xff]
    %v9973 = vunpack.c.l.b16 %v9717
    %v9974 = vunpack.c.h.b16 %v9717
    %v9975 = vunpack.c.l.b16 %v9718
    %v9976 = vunpack.c.h.b16 %v9718
    %v9977 = vunpack.c.l.b16 %v9719
    %v9978 = vunpack.c.h.b16 %v9719
    %v9979 = vunpack.c.l.b16 %v9720
    %v9980 = vunpack.c.h.b16 %v9720
    %v9981 = vunpack.c.l.b16 %v9721
    %v9982 = vunpack.c.h.b16 %v9721
    %v9983 = vunpack.c.l.b16 %v9722
    %v9984 = vunpack.c.h.b16 %v9722
    %v9985 = vunpack.c.l.b16 %v9723
    %v9986 = vunpack.c.h.b16 %v9723
    %v9987 = vunpack.c.l.b16 %v9724
    %v9988 = vunpack.c.h.b16 %v9724
    %v9989 = vunpack.c.l.b16 %v9725
    %v9990 = vunpack.c.h.b16 %v9725
    %v9991 = vunpack.c.l.b16 %v9726
    %v9992 = vunpack.c.h.b16 %v9726
    %v9993 = vunpack.c.l.b16 %v9727
    %v9994 = vunpack.c.h.b16 %v9727
    %v9995 = vunpack.c.l.b16 %v9728
    %v9996 = vunpack.c.h.b16 %v9728
    %v9997 = vunpack.c.l.b16 %v9729
    %v9998 = vunpack.c.h.b16 %v9729
    %v9999 = vunpack.c.l.b16 %v9730
    %v10000 = vunpack.c.h.b16 %v9730
    %v10001 = vunpack.c.l.b16 %v9731
    %v10002 = vunpack.c.h.b16 %v9731
    %v10003 = vunpack.c.l.b16 %v9732
    %v10004 = vunpack.c.h.b16 %v9732
    %v10005 = vunpack.c.l.b16 %v9733
    %v10006 = vunpack.c.h.b16 %v9733
    %v10007 = vunpack.c.l.b16 %v9734
    %v10008 = vunpack.c.h.b16 %v9734
    %v10009 = vunpack.c.l.b16 %v9735
    %v10010 = vunpack.c.h.b16 %v9735
    %v10011 = vunpack.c.l.b16 %v9736
    %v10012 = vunpack.c.h.b16 %v9736
    %v10013 = vunpack.c.l.b16 %v9737
    %v10014 = vunpack.c.h.b16 %v9737
    %v10015 = vunpack.c.l.b16 %v9738
    %v10016 = vunpack.c.h.b16 %v9738
    %v10017 = vunpack.c.l.b16 %v9739
    %v10018 = vunpack.c.h.b16 %v9739
    %v10019 = vunpack.c.l.b16 %v9740
    %v10020 = vunpack.c.h.b16 %v9740
    %v10021 = vunpack.c.l.b16 %v9741
    %v10022 = vunpack.c.h.b16 %v9741
    %v10023 = vunpack.c.l.b16 %v9742
    %v10024 = vunpack.c.h.b16 %v9742
    %v10025 = vunpack.c.l.b16 %v9743
    %v10026 = vunpack.c.h.b16 %v9743
    %v10027 = vunpack.c.l.b16 %v9744
    %v10028 = vunpack.c.h.b16 %v9744
    %v10029 = vunpack.c.l.b16 %v9745
    %v10030 = vunpack.c.h.b16 %v9745
    %v10031 = vunpack.c.l.b16 %v9746
    %v10032 = vunpack.c.h.b16 %v9746
    %v10033 = vunpack.c.l.b16 %v9747
    %v10034 = vunpack.c.h.b16 %v9747
    %v10035 = vunpack.c.l.b16 %v9748
    %v10036 = vunpack.c.h.b16 %v9748
    %v10037 = vunpack.c.l.b16 %v9749
    %v10038 = vunpack.c.h.b16 %v9749
    %v10039 = vunpack.c.l.b16 %v9750
    %v10040 = vunpack.c.h.b16 %v9750
    %v10041 = vunpack.c.l.b16 %v9751
    %v10042 = vunpack.c.h.b16 %v9751
    %v10043 = vunpack.c.l.b16 %v9752
    %v10044 = vunpack.c.h.b16 %v9752
    %v10045 = vunpack.c.l.b16 %v9753
    %v10046 = vunpack.c.h.b16 %v9753
    %v10047 = vunpack.c.l.b16 %v9754
    %v10048 = vunpack.c.h.b16 %v9754
    %v10049 = vunpack.c.l.b16 %v9755
    %v10050 = vunpack.c.h.b16 %v9755
    %v10051 = vunpack.c.l.b16 %v9756
    %v10052 = vunpack.c.h.b16 %v9756
    %v10053 = vunpack.c.l.b16 %v9757
    %v10054 = vunpack.c.h.b16 %v9757
    %v10055 = vunpack.c.l.b16 %v9758
    %v10056 = vunpack.c.h.b16 %v9758
    %v10057 = vunpack.c.l.b16 %v9759
    %v10058 = vunpack.c.h.b16 %v9759
    %v10059 = vunpack.c.l.b16 %v9760
    %v10060 = vunpack.c.h.b16 %v9760
    %v10061 = vunpack.c.l.b16 %v9761
    %v10062 = vunpack.c.h.b16 %v9761
    %v10063 = vunpack.c.l.b16 %v9762
    %v10064 = vunpack.c.h.b16 %v9762
    %v10065 = vunpack.c.l.b16 %v9763
    %v10066 = vunpack.c.h.b16 %v9763
    %v10067 = vunpack.c.l.b16 %v9764
    %v10068 = vunpack.c.h.b16 %v9764
    %v10069 = vunpack.c.l.b16 %v9765
    %v10070 = vunpack.c.h.b16 %v9765
    %v10071 = vunpack.c.l.b16 %v9766
    %v10072 = vunpack.c.h.b16 %v9766
    %v10073 = vunpack.c.l.b16 %v9767
    %v10074 = vunpack.c.h.b16 %v9767
    %v10075 = vunpack.c.l.b16 %v9768
    %v10076 = vunpack.c.h.b16 %v9768
    %v10077 = vunpack.c.l.b16 %v9769
    %v10078 = vunpack.c.h.b16 %v9769
    %v10079 = vunpack.c.l.b16 %v9770
    %v10080 = vunpack.c.h.b16 %v9770
    %v10081 = vunpack.c.l.b16 %v9771
    %v10082 = vunpack.c.h.b16 %v9771
    %v10083 = vunpack.c.l.b16 %v9772
    %v10084 = vunpack.c.h.b16 %v9772
    %v10085 = vunpack.c.l.b16 %v9773
    %v10086 = vunpack.c.h.b16 %v9773
    %v10087 = vunpack.c.l.b16 %v9774
    %v10088 = vunpack.c.h.b16 %v9774
    %v10089 = vunpack.c.l.b16 %v9775
    %v10090 = vunpack.c.h.b16 %v9775
    %v10091 = vunpack.c.l.b16 %v9776
    %v10092 = vunpack.c.h.b16 %v9776
    %v10093 = vunpack.c.l.b16 %v9777
    %v10094 = vunpack.c.h.b16 %v9777
    %v10095 = vunpack.c.l.b16 %v9778
    %v10096 = vunpack.c.h.b16 %v9778
    %v10097 = vunpack.c.l.b16 %v9779
    %v10098 = vunpack.c.h.b16 %v9779
    %v10099 = vunpack.c.l.b16 %v9780
    %v10100 = vunpack.c.h.b16 %v9780
    %v10101 = vunpack.c.l.b16 %v9781
    %v10102 = vunpack.c.h.b16 %v9781
    %v10103 = vunpack.c.l.b16 %v9782
    %v10104 = vunpack.c.h.b16 %v9782
    %v10105 = vunpack.c.l.b16 %v9783
    %v10106 = vunpack.c.h.b16 %v9783
    %v10107 = vunpack.c.l.b16 %v9784
    %v10108 = vunpack.c.h.b16 %v9784
    %v10109 = vunpack.c.l.b16 %v9785
    %v10110 = vunpack.c.h.b16 %v9785
    %v10111 = vunpack.c.l.b16 %v9786
    %v10112 = vunpack.c.h.b16 %v9786
    %v10113 = vunpack.c.l.b16 %v9787
    %v10114 = vunpack.c.h.b16 %v9787
    %v10115 = vunpack.c.l.b16 %v9788
    %v10116 = vunpack.c.h.b16 %v9788
    %v10117 = vunpack.c.l.b16 %v9789
    %v10118 = vunpack.c.h.b16 %v9789
    %v10119 = vunpack.c.l.b16 %v9790
    %v10120 = vunpack.c.h.b16 %v9790
    %v10121 = vunpack.c.l.b16 %v9791
    %v10122 = vunpack.c.h.b16 %v9791
    %v10123 = vunpack.c.l.b16 %v9792
    %v10124 = vunpack.c.h.b16 %v9792
    %v10125 = vunpack.c.l.b16 %v9793
    %v10126 = vunpack.c.h.b16 %v9793
    %v10127 = vunpack.c.l.b16 %v9794
    %v10128 = vunpack.c.h.b16 %v9794
    %v10129 = vunpack.c.l.b16 %v9795
    %v10130 = vunpack.c.h.b16 %v9795
    %v10131 = vunpack.c.l.b16 %v9796
    %v10132 = vunpack.c.h.b16 %v9796
    %v10133 = vunpack.c.l.b16 %v9797
    %v10134 = vunpack.c.h.b16 %v9797
    %v10135 = vunpack.c.l.b16 %v9798
    %v10136 = vunpack.c.h.b16 %v9798
    %v10137 = vunpack.c.l.b16 %v9799
    %v10138 = vunpack.c.h.b16 %v9799
    %v10139 = vunpack.c.l.b16 %v9800
    %v10140 = vunpack.c.h.b16 %v9800
    %v10141 = vunpack.c.l.b16 %v9801
    %v10142 = vunpack.c.h.b16 %v9801
    %v10143 = vunpack.c.l.b16 %v9802
    %v10144 = vunpack.c.h.b16 %v9802
    %v10145 = vunpack.c.l.b16 %v9803
    %v10146 = vunpack.c.h.b16 %v9803
    %v10147 = vunpack.c.l.b16 %v9804
    %v10148 = vunpack.c.h.b16 %v9804
    %v10149 = vunpack.c.l.b16 %v9805
    %v10150 = vunpack.c.h.b16 %v9805
    %v10151 = vunpack.c.l.b16 %v9806
    %v10152 = vunpack.c.h.b16 %v9806
    %v10153 = vunpack.c.l.b16 %v9807
    %v10154 = vunpack.c.h.b16 %v9807
    %v10155 = vunpack.c.l.b16 %v9808
    %v10156 = vunpack.c.h.b16 %v9808
    %v10157 = vunpack.c.l.b16 %v9809
    %v10158 = vunpack.c.h.b16 %v9809
    %v10159 = vunpack.c.l.b16 %v9810
    %v10160 = vunpack.c.h.b16 %v9810
    %v10161 = vunpack.c.l.b16 %v9811
    %v10162 = vunpack.c.h.b16 %v9811
    %v10163 = vunpack.c.l.b16 %v9812
    %v10164 = vunpack.c.h.b16 %v9812
    %v10165 = vunpack.c.l.b16 %v9813
    %v10166 = vunpack.c.h.b16 %v9813
    %v10167 = vunpack.c.l.b16 %v9814
    %v10168 = vunpack.c.h.b16 %v9814
    %v10169 = vunpack.c.l.b16 %v9815
    %v10170 = vunpack.c.h.b16 %v9815
    %v10171 = vunpack.c.l.b16 %v9816
    %v10172 = vunpack.c.h.b16 %v9816
    %v10173 = vunpack.c.l.b16 %v9817
    %v10174 = vunpack.c.h.b16 %v9817
    %v10175 = vunpack.c.l.b16 %v9818
    %v10176 = vunpack.c.h.b16 %v9818
    %v10177 = vunpack.c.l.b16 %v9819
    %v10178 = vunpack.c.h.b16 %v9819
    %v10179 = vunpack.c.l.b16 %v9820
    %v10180 = vunpack.c.h.b16 %v9820
    %v10181 = vunpack.c.l.b16 %v9821
    %v10182 = vunpack.c.h.b16 %v9821
    %v10183 = vunpack.c.l.b16 %v9822
    %v10184 = vunpack.c.h.b16 %v9822
    %v10185 = vunpack.c.l.b16 %v9823
    %v10186 = vunpack.c.h.b16 %v9823
    %v10187 = vunpack.c.l.b16 %v9824
    %v10188 = vunpack.c.h.b16 %v9824
    %v10189 = vunpack.c.l.b16 %v9825
    %v10190 = vunpack.c.h.b16 %v9825
    %v10191 = vunpack.c.l.b16 %v9826
    %v10192 = vunpack.c.h.b16 %v9826
    %v10193 = vunpack.c.l.b16 %v9827
    %v10194 = vunpack.c.h.b16 %v9827
    %v10195 = vunpack.c.l.b16 %v9828
    %v10196 = vunpack.c.h.b16 %v9828
    %v10197 = vunpack.c.l.b16 %v9829
    %v10198 = vunpack.c.h.b16 %v9829
    %v10199 = vunpack.c.l.b16 %v9830
    %v10200 = vunpack.c.h.b16 %v9830
    %v10201 = vunpack.c.l.b16 %v9831
    %v10202 = vunpack.c.h.b16 %v9831
    %v10203 = vunpack.c.l.b16 %v9832
    %v10204 = vunpack.c.h.b16 %v9832
    %v10205 = vunpack.c.l.b16 %v9833
    %v10206 = vunpack.c.h.b16 %v9833
    %v10207 = vunpack.c.l.b16 %v9834
    %v10208 = vunpack.c.h.b16 %v9834
    %v10209 = vunpack.c.l.b16 %v9835
    %v10210 = vunpack.c.h.b16 %v9835
    %v10211 = vunpack.c.l.b16 %v9836
    %v10212 = vunpack.c.h.b16 %v9836
    %v10213 = vunpack.c.l.b16 %v9837
    %v10214 = vunpack.c.h.b16 %v9837
    %v10215 = vunpack.c.l.b16 %v9838
    %v10216 = vunpack.c.h.b16 %v9838
    %v10217 = vunpack.c.l.b16 %v9839
    %v10218 = vunpack.c.h.b16 %v9839
    %v10219 = vunpack.c.l.b16 %v9840
    %v10220 = vunpack.c.h.b16 %v9840
    %v10221 = vunpack.c.l.b16 %v9841
    %v10222 = vunpack.c.h.b16 %v9841
    %v10223 = vunpack.c.l.b16 %v9842
    %v10224 = vunpack.c.h.b16 %v9842
    %v10225 = vunpack.c.l.b16 %v9843
    %v10226 = vunpack.c.h.b16 %v9843
    %v10227 = vunpack.c.l.b16 %v9844
    %v10228 = vunpack.c.h.b16 %v9844
    %v10229 = vpack.c.b16 %v9981, %v9973
    %v10230 = vpack.c.b16 %v9982, %v9974
    %v10231 = vpack.c.b16 %v9983, %v9975
    %v10232 = vpack.c.b16 %v9984, %v9976
    %v10233 = vpack.c.b16 %v9985, %v9977
    %v10234 = vpack.c.b16 %v9986, %v9978
    %v10235 = vpack.c.b16 %v9987, %v9979
    %v10236 = vpack.c.b16 %v9988, %v9980
    %v10237 = vpack.c.b16 %v9997, %v9989
    %v10238 = vpack.c.b16 %v9998, %v9990
    %v10239 = vpack.c.b16 %v9999, %v9991
    %v10240 = vpack.c.b16 %v10000, %v9992
    %v10241 = vpack.c.b16 %v10001, %v9993
    %v10242 = vpack.c.b16 %v10002, %v9994
    %v10243 = vpack.c.b16 %v10003, %v9995
    %v10244 = vpack.c.b16 %v10004, %v9996
    %v10245 = vpack.c.b16 %v10013, %v10005
    %v10246 = vpack.c.b16 %v10014, %v10006
    %v10247 = vpack.c.b16 %v10015, %v10007
    %v10248 = vpack.c.b16 %v10016, %v10008
    %v10249 = vpack.c.b16 %v10017, %v10009
    %v10250 = vpack.c.b16 %v10018, %v10010
    %v10251 = vpack.c.b16 %v10019, %v10011
    %v10252 = vpack.c.b16 %v10020, %v10012
    %v10253 = vpack.c.b16 %v10029, %v10021
    %v10254 = vpack.c.b16 %v10030, %v10022
    %v10255 = vpack.c.b16 %v10031, %v10023
    %v10256 = vpack.c.b16 %v10032, %v10024
    %v10257 = vpack.c.b16 %v10033, %v10025
    %v10258 = vpack.c.b16 %v10034, %v10026
    %v10259 = vpack.c.b16 %v10035, %v10027
    %v10260 = vpack.c.b16 %v10036, %v10028
    %v10261 = vpack.c.b16 %v10045, %v10037
    %v10262 = vpack.c.b16 %v10046, %v10038
    %v10263 = vpack.c.b16 %v10047, %v10039
    %v10264 = vpack.c.b16 %v10048, %v10040
    %v10265 = vpack.c.b16 %v10049, %v10041
    %v10266 = vpack.c.b16 %v10050, %v10042
    %v10267 = vpack.c.b16 %v10051, %v10043
    %v10268 = vpack.c.b16 %v10052, %v10044
    %v10269 = vpack.c.b16 %v10061, %v10053
    %v10270 = vpack.c.b16 %v10062, %v10054
    %v10271 = vpack.c.b16 %v10063, %v10055
    %v10272 = vpack.c.b16 %v10064, %v10056
    %v10273 = vpack.c.b16 %v10065, %v10057
    %v10274 = vpack.c.b16 %v10066, %v10058
    %v10275 = vpack.c.b16 %v10067, %v10059
    %v10276 = vpack.c.b16 %v10068, %v10060
    %v10277 = vpack.c.b16 %v10077, %v10069
    %v10278 = vpack.c.b16 %v10078, %v10070
    %v10279 = vpack.c.b16 %v10079, %v10071
    %v10280 = vpack.c.b16 %v10080, %v10072
    %v10281 = vpack.c.b16 %v10081, %v10073
    %v10282 = vpack.c.b16 %v10082, %v10074
    %v10283 = vpack.c.b16 %v10083, %v10075
    %v10284 = vpack.c.b16 %v10084, %v10076
    %v10285 = vpack.c.b16 %v10093, %v10085
    %v10286 = vpack.c.b16 %v10094, %v10086
    %v10287 = vpack.c.b16 %v10095, %v10087
    %v10288 = vpack.c.b16 %v10096, %v10088
    %v10289 = vpack.c.b16 %v10097, %v10089
    %v10290 = vpack.c.b16 %v10098, %v10090
    %v10291 = vpack.c.b16 %v10099, %v10091
    %v10292 = vpack.c.b16 %v10100, %v10092
    %v10293 = vpack.c.b16 %v10109, %v10101
    %v10294 = vpack.c.b16 %v10110, %v10102
    %v10295 = vpack.c.b16 %v10111, %v10103
    %v10296 = vpack.c.b16 %v10112, %v10104
    %v10297 = vpack.c.b16 %v10113, %v10105
    %v10298 = vpack.c.b16 %v10114, %v10106
    %v10299 = vpack.c.b16 %v10115, %v10107
    %v10300 = vpack.c.b16 %v10116, %v10108
    %v10301 = vpack.c.b16 %v10125, %v10117
    %v10302 = vpack.c.b16 %v10126, %v10118
    %v10303 = vpack.c.b16 %v10127, %v10119
    %v10304 = vpack.c.b16 %v10128, %v10120
    %v10305 = vpack.c.b16 %v10129, %v10121
    %v10306 = vpack.c.b16 %v10130, %v10122
    %v10307 = vpack.c.b16 %v10131, %v10123
    %v10308 = vpack.c.b16 %v10132, %v10124
    %v10309 = vpack.c.b16 %v10141, %v10133
    %v10310 = vpack.c.b16 %v10142, %v10134
    %v10311 = vpack.c.b16 %v10143, %v10135
    %v10312 = vpack.c.b16 %v10144, %v10136
    %v10313 = vpack.c.b16 %v10145, %v10137
    %v10314 = vpack.c.b16 %v10146, %v10138
    %v10315 = vpack.c.b16 %v10147, %v10139
    %v10316 = vpack.c.b16 %v10148, %v10140
    %v10317 = vpack.c.b16 %v10157, %v10149
    %v10318 = vpack.c.b16 %v10158, %v10150
    %v10319 = vpack.c.b16 %v10159, %v10151
    %v10320 = vpack.c.b16 %v10160, %v10152
    %v10321 = vpack.c.b16 %v10161, %v10153
    %v10322 = vpack.c.b16 %v10162, %v10154
    %v10323 = vpack.c.b16 %v10163, %v10155
    %v10324 = vpack.c.b16 %v10164, %v10156
    %v10325 = vpack.c.b16 %v10173, %v10165
    %v10326 = vpack.c.b16 %v10174, %v10166
    %v10327 = vpack.c.b16 %v10175, %v10167
    %v10328 = vpack.c.b16 %v10176, %v10168
    %v10329 = vpack.c.b16 %v10177, %v10169
    %v10330 = vpack.c.b16 %v10178, %v10170
    %v10331 = vpack.c.b16 %v10179, %v10171
    %v10332 = vpack.c.b16 %v10180, %v10172
    %v10333 = vpack.c.b16 %v10189, %v10181
    %v10334 = vpack.c.b16 %v10190, %v10182
    %v10335 = vpack.c.b16 %v10191, %v10183
    %v10336 = vpack.c.b16 %v10192, %v10184
    %v10337 = vpack.c.b16 %v10193, %v10185
    %v10338 = vpack.c.b16 %v10194, %v10186
    %v10339 = vpack.c.b16 %v10195, %v10187
    %v10340 = vpack.c.b16 %v10196, %v10188
    %v10341 = vpack.c.b16 %v10205, %v10197
    %v10342 = vpack.c.b16 %v10206, %v10198
    %v10343 = vpack.c.b16 %v10207, %v10199
    %v10344 = vpack.c.b16 %v10208, %v10200
    %v10345 = vpack.c.b16 %v10209, %v10201
    %v10346 = vpack.c.b16 %v10210, %v10202
    %v10347 = vpack.c.b16 %v10211, %v10203
    %v10348 = vpack.c.b16 %v10212, %v10204
    %v10349 = vpack.c.b16 %v10221, %v10213
    %v10350 = vpack.c.b16 %v10222, %v10214
    %v10351 = vpack.c.b16 %v10223, %v10215
    %v10352 = vpack.c.b16 %v10224, %v10216
    %v10353 = vpack.c.b16 %v10225, %v10217
    %v10354 = vpack.c.b16 %v10226, %v10218
    %v10355 = vpack.c.b16 %v10227, %v10219
    %v10356 = vpack.c.b16 %v10228, %v10220
    %10485 = vmatprep.subr.bf16.mxu0 %v10230
    %10486 = vmatpush1.bf16.msra.mxu0 %v10229
    %10487 = vmatprep.subr.bf16.mxu0 %v10238
    %10488 = vmatpush1.bf16.msra.mxu0 %v10237
    %10489 = vmatprep.subr.bf16.mxu0 %v10246
    %10490 = vmatpush1.bf16.msra.mxu0 %v10245
    %10491 = vmatprep.subr.bf16.mxu0 %v10254
    %10492 = vmatpush1.bf16.msra.mxu0 %v10253
    %10493 = vmatprep.subr.bf16.mxu0 %v10262
    %10494 = vmatpush1.bf16.msra.mxu0 %v10261
    %10495 = vmatprep.subr.bf16.mxu0 %v10270
    %10496 = vmatpush1.bf16.msra.mxu0 %v10269
    %10497 = vmatprep.subr.bf16.mxu0 %v10278
    %10498 = vmatpush1.bf16.msra.mxu0 %v10277
    %10499 = vmatprep.subr.bf16.mxu0 %v10286
    %10500 = vmatpush1.bf16.msra.mxu0 %v10285
    %10501 = vmatprep.subr.bf16.mxu0 %v10294
    %10502 = vmatpush1.bf16.msra.mxu0 %v10293
    %10503 = vmatprep.subr.bf16.mxu0 %v10302
    %10504 = vmatpush1.bf16.msra.mxu0 %v10301
    %10505 = vmatprep.subr.bf16.mxu0 %v10310
    %10506 = vmatpush1.bf16.msra.mxu0 %v10309
    %10507 = vmatprep.subr.bf16.mxu0 %v10318
    %10508 = vmatpush1.bf16.msra.mxu0 %v10317
    %10509 = vmatprep.subr.bf16.mxu0 %v10326
    %10510 = vmatpush1.bf16.msra.mxu0 %v10325
    %10511 = vmatprep.subr.bf16.mxu0 %v10334
    %10512 = vmatpush1.bf16.msra.mxu0 %v10333
    %10513 = vmatprep.subr.bf16.mxu0 %v10342
    %10514 = vmatpush1.bf16.msra.mxu0 %v10341
    %10515 = vmatprep.subr.bf16.mxu0 %v10350
    %10516 = vmatpush1.bf16.msra.mxu0 %v10349
    %10517 = vmatprep.mubr.bf16.mxu0 %v9716
    %10518 = vmatmul.mubr.bf16.gmra.mrb[0].mxu0 %v9715
    %v10519 = vpop.f32.mrb[0].mxu0
    %v10520 = vadd.f32 0.0, %v10519
    %v10521 = vpop.f32.mrb[0].mxu0
    %v10522 = vadd.f32 0.0, %v10521
    %v10523 = vpop.f32.mrb[0].mxu0
    %v10524 = vpop.f32.mrb[0].mxu0
    %10525 = vdwg.mxu0
    %10526 = vmatprep.subr.bf16.mxu0 %v10232
    %10527 = vmatpush1.bf16.msra.mxu0 %v10231
    %10528 = vmatprep.subr.bf16.mxu0 %v10240
    %10529 = vmatpush1.bf16.msra.mxu0 %v10239
    %10530 = vmatprep.subr.bf16.mxu0 %v10248
    %10531 = vmatpush1.bf16.msra.mxu0 %v10247
    %10532 = vmatprep.subr.bf16.mxu0 %v10256
    %10533 = vmatpush1.bf16.msra.mxu0 %v10255
    %10534 = vmatprep.subr.bf16.mxu0 %v10264
    %10535 = vmatpush1.bf16.msra.mxu0 %v10263
    %10536 = vmatprep.subr.bf16.mxu0 %v10272
    %10537 = vmatpush1.bf16.msra.mxu0 %v10271
    %10538 = vmatprep.subr.bf16.mxu0 %v10280
    %10539 = vmatpush1.bf16.msra.mxu0 %v10279
    %10540 = vmatprep.subr.bf16.mxu0 %v10288
    %10541 = vmatpush1.bf16.msra.mxu0 %v10287
    %10542 = vmatprep.subr.bf16.mxu0 %v10296
    %10543 = vmatpush1.bf16.msra.mxu0 %v10295
    %10544 = vmatprep.subr.bf16.mxu0 %v10304
    %10545 = vmatpush1.bf16.msra.mxu0 %v10303
    %10546 = vmatprep.subr.bf16.mxu0 %v10312
    %10547 = vmatpush1.bf16.msra.mxu0 %v10311
    %10548 = vmatprep.subr.bf16.mxu0 %v10320
    %10549 = vmatpush1.bf16.msra.mxu0 %v10319
    %10550 = vmatprep.subr.bf16.mxu0 %v10328
    %10551 = vmatpush1.bf16.msra.mxu0 %v10327
    %10552 = vmatprep.subr.bf16.mxu0 %v10336
    %10553 = vmatpush1.bf16.msra.mxu0 %v10335
    %10554 = vmatprep.subr.bf16.mxu0 %v10344
    %10555 = vmatpush1.bf16.msra.mxu0 %v10343
    %10556 = vmatprep.subr.bf16.mxu0 %v10352
    %10557 = vmatpush1.bf16.msra.mxu0 %v10351
    %10558 = vmatprep.mubr.bf16.mxu0 %v9716
    %10559 = vmatmul.mubr.bf16.gmra.mrb[0].mxu0 %v9715
    %v10560 = vpop.f32.mrb[0].mxu0
    %v10561 = vadd.f32 0.0, %v10560
    %v10562 = vpop.f32.mrb[0].mxu0
    %v10563 = vadd.f32 0.0, %v10562
    %v10564 = vpop.f32.mrb[0].mxu0
    %v10565 = vpop.f32.mrb[0].mxu0
    %10566 = vdwg.mxu0
    %10567 = vmatprep.subr.bf16.mxu0 %v10234
    %10568 = vmatpush1.bf16.msra.mxu0 %v10233
    %10569 = vmatprep.subr.bf16.mxu0 %v10242
    %10570 = vmatpush1.bf16.msra.mxu0 %v10241
    %10571 = vmatprep.subr.bf16.mxu0 %v10250
    %10572 = vmatpush1.bf16.msra.mxu0 %v10249
    %10573 = vmatprep.subr.bf16.mxu0 %v10258
    %10574 = vmatpush1.bf16.msra.mxu0 %v10257
    %10575 = vmatprep.subr.bf16.mxu0 %v10266
    %10576 = vmatpush1.bf16.msra.mxu0 %v10265
    %10577 = vmatprep.subr.bf16.mxu0 %v10274
    %10578 = vmatpush1.bf16.msra.mxu0 %v10273
    %10579 = vmatprep.subr.bf16.mxu0 %v10282
    %10580 = vmatpush1.bf16.msra.mxu0 %v10281
    %10581 = vmatprep.subr.bf16.mxu0 %v10290
    %10582 = vmatpush1.bf16.msra.mxu0 %v10289
    %10583 = vmatprep.subr.bf16.mxu0 %v10298
    %10584 = vmatpush1.bf16.msra.mxu0 %v10297
    %10585 = vmatprep.subr.bf16.mxu0 %v10306
    %10586 = vmatpush1.bf16.msra.mxu0 %v10305
    %10587 = vmatprep.subr.bf16.mxu0 %v10314
    %10588 = vmatpush1.bf16.msra.mxu0 %v10313
    %10589 = vmatprep.subr.bf16.mxu0 %v10322
    %10590 = vmatpush1.bf16.msra.mxu0 %v10321
    %10591 = vmatprep.subr.bf16.mxu0 %v10330
    %10592 = vmatpush1.bf16.msra.mxu0 %v10329
    %10593 = vmatprep.subr.bf16.mxu0 %v10338
    %10594 = vmatpush1.bf16.msra.mxu0 %v10337
    %10595 = vmatprep.subr.bf16.mxu0 %v10346
    %10596 = vmatpush1.bf16.msra.mxu0 %v10345
    %10597 = vmatprep.subr.bf16.mxu0 %v10354
    %10598 = vmatpush1.bf16.msra.mxu0 %v10353
    %10599 = vmatprep.mubr.bf16.mxu0 %v9716
    %10600 = vmatmul.mubr.bf16.gmra.mrb[0].mxu0 %v9715
    %v10601 = vpop.f32.mrb[0].mxu0
    %v10602 = vadd.f32 0.0, %v10601
    %v10603 = vpop.f32.mrb[0].mxu0
    %v10604 = vadd.f32 0.0, %v10603
    %v10605 = vpop.f32.mrb[0].mxu0
    %v10606 = vpop.f32.mrb[0].mxu0
    %10607 = vdwg.mxu0
    %10608 = vmatprep.subr.bf16.mxu0 %v10236
    %10609 = vmatpush1.bf16.msra.mxu0 %v10235
    %10610 = vmatprep.subr.bf16.mxu0 %v10244
    %10611 = vmatpush1.bf16.msra.mxu0 %v10243
    %10612 = vmatprep.subr.bf16.mxu0 %v10252
    %10613 = vmatpush1.bf16.msra.mxu0 %v10251
    %10614 = vmatprep.subr.bf16.mxu0 %v10260
    %10615 = vmatpush1.bf16.msra.mxu0 %v10259
    %10616 = vmatprep.subr.bf16.mxu0 %v10268
    %10617 = vmatpush1.bf16.msra.mxu0 %v10267
    %10618 = vmatprep.subr.bf16.mxu0 %v10276
    %10619 = vmatpush1.bf16.msra.mxu0 %v10275
    %10620 = vmatprep.subr.bf16.mxu0 %v10284
    %10621 = vmatpush1.bf16.msra.mxu0 %v10283
    %10622 = vmatprep.subr.bf16.mxu0 %v10292
    %10623 = vmatpush1.bf16.msra.mxu0 %v10291
    %10624 = vmatprep.subr.bf16.mxu0 %v10300
    %10625 = vmatpush1.bf16.msra.mxu0 %v10299
    %10626 = vmatprep.subr.bf16.mxu0 %v10308
    %10627 = vmatpush1.bf16.msra.mxu0 %v10307
    %10628 = vmatprep.subr.bf16.mxu0 %v10316
    %10629 = vmatpush1.bf16.msra.mxu0 %v10315
    %10630 = vmatprep.subr.bf16.mxu0 %v10324
    %10631 = vmatpush1.bf16.msra.mxu0 %v10323
    %10632 = vmatprep.subr.bf16.mxu0 %v10332
    %10633 = vmatpush1.bf16.msra.mxu0 %v10331
    %10634 = vmatprep.subr.bf16.mxu0 %v10340
    %10635 = vmatpush1.bf16.msra.mxu0 %v10339
    %10636 = vmatprep.subr.bf16.mxu0 %v10348
    %10637 = vmatpush1.bf16.msra.mxu0 %v10347
    %10638 = vmatprep.subr.bf16.mxu0 %v10356
    %10639 = vmatpush1.bf16.msra.mxu0 %v10355
    %10640 = vmatprep.mubr.bf16.mxu0 %v9716
    %10641 = vmatmul.mubr.bf16.gmra.mrb[0].mxu0 %v9715
    %v10642 = vpop.f32.mrb[0].mxu0
    %v10643 = vadd.f32 0.0, %v10642
    %v10644 = vpop.f32.mrb[0].mxu0
    %v10645 = vadd.f32 0.0, %v10644
    %v10646 = vpop.f32.mrb[0].mxu0
    %v10647 = vpop.f32.mrb[0].mxu0
    %10648 = vdwg.mxu0
    %v10657 = vrot.slane %v10520, 5
    %v10658 = vrot.slane %v10522, 5
    %v10659 = vrot.slane %v10561, 5
    %v10660 = vrot.slane %v10563, 5
    %v10661 = vrot.slane %v10602, 5
    %v10662 = vrot.slane %v10604, 5
    %v10663 = vrot.slane %v10643, 5
    %v10664 = vrot.slane %v10645, 5
    %10673 = vst [vmem:[%s71] sm:$0x38] %v10657
    %10674 = vst [vmem:[%s71 + $0x8] sm:$0x38] %v10658
    %10675 = vst [vmem:[%s71 + $0x10] sm:$0x38] %v10659
    %10676 = vst [vmem:[%s71 + $0x18] sm:$0x38] %v10660
    %10677 = vst [vmem:[%s71 + $0x20] sm:$0x38] %v10661
    %10678 = vst [vmem:[%s71 + $0x28] sm:$0x38] %v10662
    %10679 = vst [vmem:[%s71 + $0x30] sm:$0x38] %v10663
    %10680 = vst [vmem:[%s71 + $0x38] sm:$0x38] %v10664
    %10681 = vrot.lane.b32.xlu0 %v9565, 3
    %v10682 = vpop.permute.xlu0 %10681
    %10683 = vrot.lane.b32.xlu0 %v9566, 3
    %v10684 = vpop.permute.xlu0 %10683
    %10687 = vrot.lane.b32.xlu0 %v9567, 6
    %v10688 = vpop.permute.xlu0 %10687
    %10689 = vrot.lane.b32.xlu0 %v9568, 6
    %v10690 = vpop.permute.xlu0 %10689
    %10693 = vrot.lane.b32.xlu0 %v9569, 9
    %v10694 = vpop.permute.xlu0 %10693
    %10695 = vrot.lane.b32.xlu0 %v9570, 9
    %v10696 = vpop.permute.xlu0 %10695
    %10699 = vrot.lane.b32.xlu0 %v9580, 12
    %v10700 = vpop.permute.xlu0 %10699
    %10701 = vrot.lane.b32.xlu0 %v9582, 12
    %v10702 = vpop.permute.xlu0 %10701
    %10705 = vrot.lane.b32.xlu0 %v9584, 15
    %v10706 = vpop.permute.xlu0 %10705
    %10707 = vrot.lane.b32.xlu0 %v9586, 15
    %v10708 = vpop.permute.xlu0 %10707
    %10711 = vrot.lane.b32.xlu0 %v9588, 18
    %v10712 = vpop.permute.xlu0 %10711
    %10713 = vrot.lane.b32.xlu0 %v9590, 18
    %v10714 = vpop.permute.xlu0 %10713
    %10717 = vrot.lane.b32.xlu0 %v9592, 21
    %v10718 = vpop.permute.xlu0 %10717
    %10719 = vrot.lane.b32.xlu0 %v9594, 21
    %v10720 = vpop.permute.xlu0 %10719
    %10723 = vrot.lane.b32.xlu0 %v9604, 24
    %v10724 = vpop.permute.xlu0 %10723
    %10725 = vrot.lane.b32.xlu0 %v9606, 24
    %v10726 = vpop.permute.xlu0 %10725
    %10729 = vrot.lane.b32.xlu0 %v9608, 27
    %v10730 = vpop.permute.xlu0 %10729
    %10731 = vrot.lane.b32.xlu0 %v9610, 27
    %v10732 = vpop.permute.xlu0 %10731
    %10735 = vrot.lane.b32.xlu0 %v9612, 30
    %v10736 = vpop.permute.xlu0 %10735
    %10737 = vrot.lane.b32.xlu0 %v9614, 30
    %v10738 = vpop.permute.xlu0 %10737
    %10741 = vrot.lane.b32.xlu0 %v9616, 33
    %v10742 = vpop.permute.xlu0 %10741
    %10743 = vrot.lane.b32.xlu0 %v9618, 33
    %v10744 = vpop.permute.xlu0 %10743
    %10747 = vrot.lane.b32.xlu0 %v9628, 36
    %v10748 = vpop.permute.xlu0 %10747
    %10749 = vrot.lane.b32.xlu0 %v9630, 36
    %v10750 = vpop.permute.xlu0 %10749
    %10753 = vrot.lane.b32.xlu0 %v9632, 39
    %v10754 = vpop.permute.xlu0 %10753
    %10755 = vrot.lane.b32.xlu0 %v9634, 39
    %v10756 = vpop.permute.xlu0 %10755
    %10759 = vrot.lane.b32.xlu0 %v9636, 42
    %v10760 = vpop.permute.xlu0 %10759
    %10761 = vrot.lane.b32.xlu0 %v9638, 42
    %v10762 = vpop.permute.xlu0 %10761
    %10765 = vrot.lane.b32.xlu0 %v9640, 45
    %v10766 = vpop.permute.xlu0 %10765
    %10767 = vrot.lane.b32.xlu0 %v9642, 45
    %v10768 = vpop.permute.xlu0 %10767
    %v10771 = vsel %vm8839, %v9563, %v10682
    %v10772 = vsel %vm8839, %v9564, %v10684
    %v10773 = vsel %vm8842, %v10771, %v10688
    %v10774 = vsel %vm8842, %v10772, %v10690
    %v10775 = vsel %vm8845, %v10773, %v10694
    %v10776 = vsel %vm8845, %v10774, %v10696
    %v10777 = vsel %vm8848, %v10775, %v10700
    %v10778 = vsel %vm8848, %v10776, %v10702
    %v10779 = vsel %vm8851, %v10777, %v10706
    %v10780 = vsel %vm8851, %v10778, %v10708
    %v10781 = vsel %vm8854, %v10779, %v10712
    %v10782 = vsel %vm8854, %v10780, %v10714
    %v10783 = vsel %vm8857, %v10781, %v10718
    %v10784 = vsel %vm8857, %v10782, %v10720
    %v10785 = vsel %vm8860, %v10783, %v10724
    %v10786 = vsel %vm8860, %v10784, %v10726
    %v10787 = vsel %vm268, %v10785, %v10730
    %v10788 = vsel %vm268, %v10786, %v10732
    %v10789 = vsel %vm8865, %v10787, %v10736
    %v10790 = vsel %vm8865, %v10788, %v10738
    %v10791 = vsel %vm8868, %v10789, %v10742
    %v10792 = vsel %vm8868, %v10790, %v10744
    %v10793 = vsel %vm8871, %v10791, %v10748
    %v10794 = vsel %vm8871, %v10792, %v10750
    %v10795 = vsel %vm8874, %v10793, %v10754
    %v10796 = vsel %vm8874, %v10794, %v10756
    %v10797 = vsel %vm8877, %v10795, %v10760
    %v10798 = vsel %vm8877, %v10796, %v10762
    %v10799 = vsel %vm8880, %v10797, %v10766
    %v10800 = vsel %vm8880, %v10798, %v10768
    %v10801 = vpack.c.bf16 %v10800, %v10799
    %v10802 = vld [vmem:[%s53] sm:$0xf]
    %v10803 = vld [vmem:[%s53 + $0x4] sm:$0xf]
    %v10804 = vld [vmem:[%s53 + $0x8] sm:$0xf]
    %v10805 = vld [vmem:[%s53 + $0xc] sm:$0xf]
    %v10806 = vld [vmem:[%s53 + $0x10] sm:$0xf]
    %v10807 = vld [vmem:[%s53 + $0x14] sm:$0xf]
    %v10808 = vld [vmem:[%s55] sm:$0x1]
    %v10810 = vlaneseq
    %v10811 = vshrl.u32 %v10810, 7
    %v10812 = vsub.s32 0, %v10811
    %v10813 = vrot.slane %v10808, %v10812
    %v10821 = vunpack.c.l.b16 %v10802
    %v10822 = vunpack.c.l.b16 %v10803
    %v10823 = vunpack.c.l.b16 %v10804
    %v10824 = vunpack.c.l.b16 %v10805
    %v10825 = vunpack.c.l.b16 %v10806
    %v10826 = vunpack.c.l.b16 %v10807
    %v10827 = vpack.c.b16 %v10822, %v10821
    %v10828 = vpack.c.b16 %v10824, %v10823
    %v10829 = vpack.c.b16 %v10826, %v10825
    %v10834 = vsel %vm2136, %v10801, 0
    %10836 = vmatprep.subr.bf16.mxu0 0
    %10837 = vmatpush1.bf16.msra.mxu0 %v10827
    %10838 = vmatprep.subr.bf16.mxu0 0
    %10839 = vmatpush1.bf16.msra.mxu0 %v10828
    %10840 = vmatprep.subr.bf16.mxu0 0
    %10841 = vmatpush1.bf16.msra.mxu0 %v10829
    %10842 = vmatprep.subr.bf16.mxu0 0
    %10843 = vmatpush1.bf16.msra.mxu0 0
    %10844 = vmatprep.subr.bf16.mxu0 0
    %10845 = vmatpush1.bf16.msra.mxu0 0
    %10846 = vmatprep.subr.bf16.mxu0 0
    %10847 = vmatpush1.bf16.msra.mxu0 0
    %10848 = vmatprep.subr.bf16.mxu0 0
    %10849 = vmatpush1.bf16.msra.mxu0 0
    %10850 = vmatprep.subr.bf16.mxu0 0
    %10851 = vmatpush1.bf16.msra.mxu0 0
    %10852 = vmatprep.subr.bf16.mxu0 0
    %10853 = vmatpush1.bf16.msra.mxu0 0
    %10854 = vmatprep.subr.bf16.mxu0 0
    %10855 = vmatpush1.bf16.msra.mxu0 0
    %10856 = vmatprep.subr.bf16.mxu0 0
    %10857 = vmatpush1.bf16.msra.mxu0 0
    %10858 = vmatprep.subr.bf16.mxu0 0
    %10859 = vmatpush1.bf16.msra.mxu0 0
    %10860 = vmatprep.subr.bf16.mxu0 0
    %10861 = vmatpush1.bf16.msra.mxu0 0
    %10862 = vmatprep.subr.bf16.mxu0 0
    %10863 = vmatpush1.bf16.msra.mxu0 0
    %10864 = vmatprep.subr.bf16.mxu0 0
    %10865 = vmatpush1.bf16.msra.mxu0 0
    %10866 = vmatprep.subr.bf16.mxu0 0
    %10867 = vmatpush1.bf16.msra.mxu0 0
    %10868 = vmatprep.mubr.bf16.mxu0 0
    %10869 = vmatmul.mubr.bf16.gmra.mrb[0].mxu0 %v10834
    %v10870 = vpop.f32.mrb[0].mxu0
    %v10871 = vadd.f32 %v10813, %v10870
    %v10872 = vpop.f32.mrb[0].mxu0
    %v10873 = vpop.f32.mrb[0].mxu0
    %v10874 = vadd.f32 %v10813, %v10873
    %v10875 = vpop.f32.mrb[0].mxu0
    %10876 = vdwg.mxu0
    %v10877 = vmax.f32 %v10871, 0.0
    %v10878 = vmax.f32 %v10874, 0.0
    %v10879 = vsel %vm2127, %v10877, 0.0
    %v10880 = vsel %vm2127, %v10878, 0.0
    %v10881 = vadd.f32 %v10879, %v10880
    %v10882 = vrot.slane %v10881, 4
    %v10883 = vadd.f32 %v10881, %v10882
    %v10884 = vrot.slane %v10883, 2
    %v10885 = vadd.f32 %v10883, %v10884
    %v10886 = vrot.slane %v10885, 1
    %v10887 = vadd.f32 %v10885, %v10886
    %v10888 = vmul.f32 %v10887, %v8970
    %v10889 = vsel %vm6044, %v8971, %v10888
    %v10890 = vld [vmem:[%s3] sm:$0xff]
    %v10891 = vld [vmem:[%s3 + $0x8] sm:$0xff]
    %v10892 = vld [vmem:[%s3 + $0x10] sm:$0xff]
    %v10893 = vld [vmem:[%s3 + $0x18] sm:$0xff]
    %v10894 = vld [vmem:[%s3 + $0x20] sm:$0xff]
    %v10895 = vld [vmem:[%s3 + $0x28] sm:$0xff]
    %v10896 = vld [vmem:[%s3 + $0x30] sm:$0xff]
    %v10897 = vld [vmem:[%s3 + $0x38] sm:$0xff]
    %v10898 = vld [vmem:[%s3 + $0x40] sm:$0xff]
    %v10899 = vld [vmem:[%s3 + $0x48] sm:$0xff]
    %v10900 = vld [vmem:[%s3 + $0x50] sm:$0xff]
    %v10901 = vld [vmem:[%s3 + $0x58] sm:$0xff]
    %v10902 = vld [vmem:[%s3 + $0x60] sm:$0xff]
    %v10903 = vld [vmem:[%s3 + $0x68] sm:$0xff]
    %v10904 = vld [vmem:[%s3 + $0x70] sm:$0xff]
    %v10905 = vld [vmem:[%s3 + $0x78] sm:$0xff]
    %v10906 = vpack.c.bf16 %v10891, %v10890
    %v10907 = vpack.c.bf16 %v10893, %v10892
    %v10908 = vpack.c.bf16 %v10895, %v10894
    %v10909 = vpack.c.bf16 %v10897, %v10896
    %v10910 = vpack.c.bf16 %v10899, %v10898
    %v10911 = vpack.c.bf16 %v10901, %v10900
    %v10912 = vpack.c.bf16 %v10903, %v10902
    %v10913 = vpack.c.bf16 %v10905, %v10904
    %v10914 = vld [vmem:[%s51] sm:$0xf]
    %v10915 = vld [vmem:[%s51 + $0x4] sm:$0xf]
    %v10916 = vld [vmem:[%s51 + $0x8] sm:$0xf]
    %v10917 = vld [vmem:[%s51 + $0xc] sm:$0xf]
    %v10918 = vld [vmem:[%s51 + $0x10] sm:$0xf]
    %v10919 = vld [vmem:[%s51 + $0x14] sm:$0xf]
    %v10926 = vunpack.c.l.b16 %v10914
    %v10927 = vunpack.c.l.b16 %v10915
    %v10928 = vunpack.c.l.b16 %v10916
    %v10929 = vunpack.c.l.b16 %v10917
    %v10930 = vunpack.c.l.b16 %v10918
    %v10931 = vunpack.c.l.b16 %v10919
    %v10932 = vpack.c.b16 %v10927, %v10926
    %v10933 = vpack.c.b16 %v10929, %v10928
    %v10934 = vpack.c.b16 %v10931, %v10930
    %v10939 = vsel %vm2136, %v10906, 0
    %v10942 = vsel %vm2136, %v10907, 0
    %v10945 = vsel %vm2136, %v10908, 0
    %v10948 = vsel %vm2136, %v10909, 0
    %v10951 = vsel %vm2136, %v10910, 0
    %v10954 = vsel %vm2136, %v10911, 0
    %v10957 = vsel %vm2136, %v10912, 0
    %v10960 = vsel %vm2136, %v10913, 0
    %10962 = vmatprep.subr.bf16.mxu0 0
    %10963 = vmatpush1.bf16.msra.mxu0 %v10932
    %10964 = vmatprep.subr.bf16.mxu0 0
    %10965 = vmatpush1.bf16.msra.mxu0 %v10933
    %10966 = vmatprep.subr.bf16.mxu0 0
    %10967 = vmatpush1.bf16.msra.mxu0 %v10934
    %10968 = vmatprep.subr.bf16.mxu0 0
    %10969 = vmatpush1.bf16.msra.mxu0 0
    %10970 = vmatprep.subr.bf16.mxu0 0
    %10971 = vmatpush1.bf16.msra.mxu0 0
    %10972 = vmatprep.subr.bf16.mxu0 0
    %10973 = vmatpush1.bf16.msra.mxu0 0
    %10974 = vmatprep.subr.bf16.mxu0 0
    %10975 = vmatpush1.bf16.msra.mxu0 0
    %10976 = vmatprep.subr.bf16.mxu0 0
    %10977 = vmatpush1.bf16.msra.mxu0 0
    %10978 = vmatprep.subr.bf16.mxu0 0
    %10979 = vmatpush1.bf16.msra.mxu0 0
    %10980 = vmatprep.subr.bf16.mxu0 0
    %10981 = vmatpush1.bf16.msra.mxu0 0
    %10982 = vmatprep.subr.bf16.mxu0 0
    %10983 = vmatpush1.bf16.msra.mxu0 0
    %10984 = vmatprep.subr.bf16.mxu0 0
    %10985 = vmatpush1.bf16.msra.mxu0 0
    %10986 = vmatprep.subr.bf16.mxu0 0
    %10987 = vmatpush1.bf16.msra.mxu0 0
    %10988 = vmatprep.subr.bf16.mxu0 0
    %10989 = vmatpush1.bf16.msra.mxu0 0
    %10990 = vmatprep.subr.bf16.mxu0 0
    %10991 = vmatpush1.bf16.msra.mxu0 0
    %10992 = vmatprep.subr.bf16.mxu0 0
    %10993 = vmatpush1.bf16.msra.mxu0 0
    %10994 = vmatprep.mubr.bf16.mxu0 0
    %10995 = vmatmul.mubr.bf16.gmra.mrb[0].mxu0 %v10939
    %v10996 = vpop.f32.mrb[0].mxu0
    %v10997 = vadd.f32 %v10813, %v10996
    %v10998 = vpop.f32.mrb[0].mxu0
    %v10999 = vpop.f32.mrb[0].mxu0
    %v11000 = vadd.f32 %v10813, %v10999
    %v11001 = vpop.f32.mrb[0].mxu0
    %11002 = vmatprep.mubr.bf16.mxu0 0
    %11003 = vmatmul.mubr.bf16.gmra.mrb[0].mxu0 %v10942
    %v11004 = vpop.f32.mrb[0].mxu0
    %v11005 = vadd.f32 %v10813, %v11004
    %v11006 = vpop.f32.mrb[0].mxu0
    %v11007 = vpop.f32.mrb[0].mxu0
    %v11008 = vadd.f32 %v10813, %v11007
    %v11009 = vpop.f32.mrb[0].mxu0
    %11010 = vmatprep.mubr.bf16.mxu0 0
    %11011 = vmatmul.mubr.bf16.gmra.mrb[0].mxu0 %v10945
    %v11012 = vpop.f32.mrb[0].mxu0
    %v11013 = vadd.f32 %v10813, %v11012
    %v11014 = vpop.f32.mrb[0].mxu0
    %v11015 = vpop.f32.mrb[0].mxu0
    %v11016 = vadd.f32 %v10813, %v11015
    %v11017 = vpop.f32.mrb[0].mxu0
    %11018 = vmatprep.mubr.bf16.mxu0 0
    %11019 = vmatmul.mubr.bf16.gmra.mrb[0].mxu0 %v10948
    %v11020 = vpop.f32.mrb[0].mxu0
    %v11021 = vadd.f32 %v10813, %v11020
    %v11022 = vpop.f32.mrb[0].mxu0
    %v11023 = vpop.f32.mrb[0].mxu0
    %v11024 = vadd.f32 %v10813, %v11023
    %v11025 = vpop.f32.mrb[0].mxu0
    %11026 = vmatprep.mubr.bf16.mxu0 0
    %11027 = vmatmul.mubr.bf16.gmra.mrb[0].mxu0 %v10951
    %v11028 = vpop.f32.mrb[0].mxu0
    %v11029 = vadd.f32 %v10813, %v11028
    %v11030 = vpop.f32.mrb[0].mxu0
    %v11031 = vpop.f32.mrb[0].mxu0
    %v11032 = vadd.f32 %v10813, %v11031
    %v11033 = vpop.f32.mrb[0].mxu0
    %11034 = vmatprep.mubr.bf16.mxu0 0
    %11035 = vmatmul.mubr.bf16.gmra.mrb[0].mxu0 %v10954
    %v11036 = vpop.f32.mrb[0].mxu0
    %v11037 = vadd.f32 %v10813, %v11036
    %v11038 = vpop.f32.mrb[0].mxu0
    %v11039 = vpop.f32.mrb[0].mxu0
    %v11040 = vadd.f32 %v10813, %v11039
    %v11041 = vpop.f32.mrb[0].mxu0
    %11042 = vmatprep.mubr.bf16.mxu0 0
    %11043 = vmatmul.mubr.bf16.gmra.mrb[0].mxu0 %v10957
    %v11044 = vpop.f32.mrb[0].mxu0
    %v11045 = vadd.f32 %v10813, %v11044
    %v11046 = vpop.f32.mrb[0].mxu0
    %v11047 = vpop.f32.mrb[0].mxu0
    %v11048 = vadd.f32 %v10813, %v11047
    %v11049 = vpop.f32.mrb[0].mxu0
    %11050 = vmatprep.mubr.bf16.mxu0 0
    %11051 = vmatmul.mubr.bf16.gmra.mrb[0].mxu0 %v10960
    %v11052 = vpop.f32.mrb[0].mxu0
    %v11053 = vadd.f32 %v10813, %v11052
    %v11054 = vpop.f32.mrb[0].mxu0
    %v11055 = vpop.f32.mrb[0].mxu0
    %v11056 = vadd.f32 %v10813, %v11055
    %v11057 = vpop.f32.mrb[0].mxu0
    %11058 = vdwg.mxu0
    %v11059 = vmax.f32 %v10997, 0.0
    %v11060 = vmax.f32 %v11000, 0.0
    %v11061 = vmax.f32 %v11005, 0.0
    %v11062 = vmax.f32 %v11008, 0.0
    %v11063 = vmax.f32 %v11013, 0.0
    %v11064 = vmax.f32 %v11016, 0.0
    %v11065 = vmax.f32 %v11021, 0.0
    %v11066 = vmax.f32 %v11024, 0.0
    %v11067 = vmax.f32 %v11029, 0.0
    %v11068 = vmax.f32 %v11032, 0.0
    %v11069 = vmax.f32 %v11037, 0.0
    %v11070 = vmax.f32 %v11040, 0.0
    %v11071 = vmax.f32 %v11045, 0.0
    %v11072 = vmax.f32 %v11048, 0.0
    %v11073 = vmax.f32 %v11053, 0.0
    %v11074 = vmax.f32 %v11056, 0.0
    %v11075 = vsel %vm2127, %v11059, 0.0
    %v11076 = vsel %vm2127, %v11060, 0.0
    %v11077 = vadd.f32 %v11075, %v11076
    %v11078 = vsel %vm2127, %v11061, 0.0
    %v11079 = vadd.f32 %v11077, %v11078
    %v11080 = vsel %vm2127, %v11062, 0.0
    %v11081 = vadd.f32 %v11079, %v11080
    %v11082 = vsel %vm2127, %v11063, 0.0
    %v11083 = vadd.f32 %v11081, %v11082
    %v11084 = vsel %vm2127, %v11064, 0.0
    %v11085 = vadd.f32 %v11083, %v11084
    %v11086 = vsel %vm2127, %v11065, 0.0
    %v11087 = vadd.f32 %v11085, %v11086
    %v11088 = vsel %vm2127, %v11066, 0.0
    %v11089 = vadd.f32 %v11087, %v11088
    %v11090 = vrot.slane %v11089, 4
    %v11091 = vadd.f32 %v11089, %v11090
    %v11092 = vrot.slane %v11091, 2
    %v11093 = vadd.f32 %v11091, %v11092
    %v11094 = vrot.slane %v11093, 1
    %v11095 = vadd.f32 %v11093, %v11094
    %v11096 = vrcp.pop 64.0
    %v11097 = vmul.f32 %v11095, %v11096
    %v11098 = vsel %vm2127, %v11067, 0.0
    %v11099 = vsel %vm2127, %v11068, 0.0
    %v11100 = vadd.f32 %v11098, %v11099
    %v11101 = vsel %vm2127, %v11069, 0.0
    %v11102 = vadd.f32 %v11100, %v11101
    %v11103 = vsel %vm2127, %v11070, 0.0
    %v11104 = vadd.f32 %v11102, %v11103
    %v11105 = vsel %vm2127, %v11071, 0.0
    %v11106 = vadd.f32 %v11104, %v11105
    %v11107 = vsel %vm2127, %v11072, 0.0
    %v11108 = vadd.f32 %v11106, %v11107
    %v11109 = vsel %vm2127, %v11073, 0.0
    %v11110 = vadd.f32 %v11108, %v11109
    %v11111 = vsel %vm2127, %v11074, 0.0
    %v11112 = vadd.f32 %v11110, %v11111
    %v11113 = vrot.slane %v11112, 4
    %v11114 = vadd.f32 %v11112, %v11113
    %v11115 = vrot.slane %v11114, 2
    %v11116 = vadd.f32 %v11114, %v11115
    %v11117 = vrot.slane %v11116, 1
    %v11118 = vadd.f32 %v11116, %v11117
    %v11119 = vmul.f32 %v11118, %v11096
    %v11120 = vsel %vm6044, %v11097, %v11119
    %v11121 = vpack.c.bf16 %v11120, %v11120
    %v11122 = vld [vmem:[%s57] sm:$0xf]
    %v11123 = vld [vmem:[%s57 + $0x4] sm:$0xf]
    %v11124 = vld [vmem:[%s57 + $0x8] sm:$0xf]
    %v11125 = vld [vmem:[%s57 + $0xc] sm:$0xf]
    %v11126 = vld [vmem:[%s59] sm:$0x1]
    %v11128 = vlaneseq
    %v11129 = vshrl.u32 %v11128, 7
    %v11130 = vsub.s32 0, %v11129
    %v11131 = vrot.slane %v11126, %v11130
    %v11137 = vunpack.c.l.b16 %v11122
    %v11138 = vunpack.c.l.b16 %v11123
    %v11139 = vunpack.c.l.b16 %v11124
    %v11140 = vunpack.c.l.b16 %v11125
    %v11141 = vpack.c.b16 %v11138, %v11137
    %v11142 = vpack.c.b16 %v11140, %v11139
    %v11146 = vsel %vm2127, %v11121, 0
    %11148 = vmatprep.subr.bf16.mxu0 0
    %11149 = vmatpush1.bf16.msra.mxu0 %v11141
    %11150 = vmatprep.subr.bf16.mxu0 0
    %11151 = vmatpush1.bf16.msra.mxu0 %v11142
    %11152 = vmatprep.subr.bf16.mxu0 0
    %11153 = vmatpush1.bf16.msra.mxu0 0
    %11154 = vmatprep.subr.bf16.mxu0 0
    %11155 = vmatpush1.bf16.msra.mxu0 0
    %11156 = vmatprep.subr.bf16.mxu0 0
    %11157 = vmatpush1.bf16.msra.mxu0 0
    %11158 = vmatprep.subr.bf16.mxu0 0
    %11159 = vmatpush1.bf16.msra.mxu0 0
    %11160 = vmatprep.subr.bf16.mxu0 0
    %11161 = vmatpush1.bf16.msra.mxu0 0
    %11162 = vmatprep.subr.bf16.mxu0 0
    %11163 = vmatpush1.bf16.msra.mxu0 0
    %11164 = vmatprep.subr.bf16.mxu0 0
    %11165 = vmatpush1.bf16.msra.mxu0 0
    %11166 = vmatprep.subr.bf16.mxu0 0
    %11167 = vmatpush1.bf16.msra.mxu0 0
    %11168 = vmatprep.subr.bf16.mxu0 0
    %11169 = vmatpush1.bf16.msra.mxu0 0
    %11170 = vmatprep.subr.bf16.mxu0 0
    %11171 = vmatpush1.bf16.msra.mxu0 0
    %11172 = vmatprep.subr.bf16.mxu0 0
    %11173 = vmatpush1.bf16.msra.mxu0 0
    %11174 = vmatprep.subr.bf16.mxu0 0
    %11175 = vmatpush1.bf16.msra.mxu0 0
    %11176 = vmatprep.subr.bf16.mxu0 0
    %11177 = vmatpush1.bf16.msra.mxu0 0
    %11178 = vmatprep.subr.bf16.mxu0 0
    %11179 = vmatpush1.bf16.msra.mxu0 0
    %11180 = vmatprep.mubr.bf16.mxu0 0
    %11181 = vmatmul.mubr.bf16.gmra.mrb[0].mxu0 %v11146
    %v11182 = vpop.f32.mrb[0].mxu0
    %v11183 = vadd.f32 %v11131, %v11182
    %v11184 = vpop.f32.mrb[0].mxu0
    %v11185 = vpop.f32.mrb[0].mxu0
    %v11186 = vpop.f32.mrb[0].mxu0
    %11187 = vdwg.mxu0
    %v11188 = vpack.c.bf16 %v10889, %v10889
    %v11190 = vsel %vm2127, %v11188, 0
    %11192 = vmatprep.subr.bf16.mxu0 0
    %11193 = vmatpush1.bf16.msra.mxu0 %v11141
    %11194 = vmatprep.subr.bf16.mxu0 0
    %11195 = vmatpush1.bf16.msra.mxu0 %v11142
    %11196 = vmatprep.subr.bf16.mxu0 0
    %11197 = vmatpush1.bf16.msra.mxu0 0
    %11198 = vmatprep.subr.bf16.mxu0 0
    %11199 = vmatpush1.bf16.msra.mxu0 0
    %11200 = vmatprep.subr.bf16.mxu0 0
    %11201 = vmatpush1.bf16.msra.mxu0 0
    %11202 = vmatprep.subr.bf16.mxu0 0
    %11203 = vmatpush1.bf16.msra.mxu0 0
    %11204 = vmatprep.subr.bf16.mxu0 0
    %11205 = vmatpush1.bf16.msra.mxu0 0
    %11206 = vmatprep.subr.bf16.mxu0 0
    %11207 = vmatpush1.bf16.msra.mxu0 0
    %11208 = vmatprep.subr.bf16.mxu0 0
    %11209 = vmatpush1.bf16.msra.mxu0 0
    %11210 = vmatprep.subr.bf16.mxu0 0
    %11211 = vmatpush1.bf16.msra.mxu0 0
    %11212 = vmatprep.subr.bf16.mxu0 0
    %11213 = vmatpush1.bf16.msra.mxu0 0
    %11214 = vmatprep.subr.bf16.mxu0 0
    %11215 = vmatpush1.bf16.msra.mxu0 0
    %11216 = vmatprep.subr.bf16.mxu0 0
    %11217 = vmatpush1.bf16.msra.mxu0 0
    %11218 = vmatprep.subr.bf16.mxu0 0
    %11219 = vmatpush1.bf16.msra.mxu0 0
    %11220 = vmatprep.subr.bf16.mxu0 0
    %11221 = vmatpush1.bf16.msra.mxu0 0
    %11222 = vmatprep.subr.bf16.mxu0 0
    %11223 = vmatpush1.bf16.msra.mxu0 0
    %11224 = vmatprep.mubr.bf16.mxu0 0
    %11225 = vmatmul.mubr.bf16.gmra.mrb[0].mxu0 %v11190
    %v11226 = vpop.f32.mrb[0].mxu0
    %v11227 = vadd.f32 %v11131, %v11226
    %v11228 = vpop.f32.mrb[0].mxu0
    %v11229 = vpop.f32.mrb[0].mxu0
    %v11230 = vpop.f32.mrb[0].mxu0
    %11231 = vdwg.mxu0
    %v11232 = vmax.f32 %v11183, 0.0
    %v11233 = vmax.f32 %v11227, 0.0
    %11235 = vrot.lane.b32.xlu0 %v11233, 16
    %v11236 = vpop.permute.xlu0 %11235
    %v11238 = vsel %vm2118, %v11232, %v11236
    %v11239 = vpack.c.bf16 %v11238, %v11238
    %v11240 = vld [vmem:[%s61] sm:$0xf]
    %v11241 = vld [vmem:[%s61 + $0x4] sm:$0xf]
    %v11242 = vld [vmem:[%s61 + $0x8] sm:$0xf]
    %v11243 = vld [vmem:[%s61 + $0xc] sm:$0xf]
    %v11244 = vld [vmem:[%s63] sm:$0x1]
    %v11246 = vlaneseq
    %v11247 = vshrl.u32 %v11246, 7
    %v11248 = vsub.s32 0, %v11247
    %v11249 = vrot.slane %v11244, %v11248
    %v11255 = vunpack.c.l.b16 %v11240
    %v11256 = vunpack.c.l.b16 %v11241
    %v11257 = vunpack.c.l.b16 %v11242
    %v11258 = vunpack.c.l.b16 %v11243
    %v11259 = vpack.c.b16 %v11256, %v11255
    %v11260 = vpack.c.b16 %v11258, %v11257
    %v11264 = vsel %vm2127, %v11239, 0
    %11266 = vmatprep.subr.bf16.mxu0 0
    %11267 = vmatpush1.bf16.msra.mxu0 %v11259
    %11268 = vmatprep.subr.bf16.mxu0 0
    %11269 = vmatpush1.bf16.msra.mxu0 %v11260
    %11270 = vmatprep.subr.bf16.mxu0 0
    %11271 = vmatpush1.bf16.msra.mxu0 0
    %11272 = vmatprep.subr.bf16.mxu0 0
    %11273 = vmatpush1.bf16.msra.mxu0 0
    %11274 = vmatprep.subr.bf16.mxu0 0
    %11275 = vmatpush1.bf16.msra.mxu0 0
    %11276 = vmatprep.subr.bf16.mxu0 0
    %11277 = vmatpush1.bf16.msra.mxu0 0
    %11278 = vmatprep.subr.bf16.mxu0 0
    %11279 = vmatpush1.bf16.msra.mxu0 0
    %11280 = vmatprep.subr.bf16.mxu0 0
    %11281 = vmatpush1.bf16.msra.mxu0 0
    %11282 = vmatprep.subr.bf16.mxu0 0
    %11283 = vmatpush1.bf16.msra.mxu0 0
    %11284 = vmatprep.subr.bf16.mxu0 0
    %11285 = vmatpush1.bf16.msra.mxu0 0
    %11286 = vmatprep.subr.bf16.mxu0 0
    %11287 = vmatpush1.bf16.msra.mxu0 0
    %11288 = vmatprep.subr.bf16.mxu0 0
    %11289 = vmatpush1.bf16.msra.mxu0 0
    %11290 = vmatprep.subr.bf16.mxu0 0
    %11291 = vmatpush1.bf16.msra.mxu0 0
    %11292 = vmatprep.subr.bf16.mxu0 0
    %11293 = vmatpush1.bf16.msra.mxu0 0
    %11294 = vmatprep.subr.bf16.mxu0 0
    %11295 = vmatpush1.bf16.msra.mxu0 0
    %11296 = vmatprep.subr.bf16.mxu0 0
    %11297 = vmatpush1.bf16.msra.mxu0 0
    %11298 = vmatprep.mubr.bf16.mxu0 0
    %11299 = vmatmul.mubr.bf16.gmra.mrb[0].mxu0 %v11264
    %v11300 = vpop.f32.mrb[0].mxu0
    %v11301 = vadd.f32 %v11249, %v11300
    %v11302 = vpop.f32.mrb[0].mxu0
    %v11303 = vpop.f32.mrb[0].mxu0
    %v11304 = vpop.f32.mrb[0].mxu0
    %11305 = vdwg.mxu0
    %v11306 = vmax.f32 %v11301, 0.0
    %v11307 = vpack.c.bf16 %v11306, %v11306
    %v11308 = vld [vmem:[%s65] sm:$0xf]
    %v11309 = vld [vmem:[%s67] sm:$0x1]
    %v11311 = vlaneseq
    %v11312 = vshrl.u32 %v11311, 7
    %v11313 = vsub.s32 0, %v11312
    %v11314 = vrot.slane %v11309, %v11313
    %vm11316 = vcmask 64512
    %v11318 = vsel %vm11316, %v11307, 0
    %v11321 = vsel %vm7446, %v11308, 0
    %11323 = vmatprep.subr.bf16.mxu0 0
    %11324 = vmatpush1.bf16.msra.mxu0 %v11321
    %11325 = vmatprep.subr.bf16.mxu0 0
    %11326 = vmatpush1.bf16.msra.mxu0 0
    %11327 = vmatprep.subr.bf16.mxu0 0
    %11328 = vmatpush1.bf16.msra.mxu0 0
    %11329 = vmatprep.subr.bf16.mxu0 0
    %11330 = vmatpush1.bf16.msra.mxu0 0
    %11331 = vmatprep.subr.bf16.mxu0 0
    %11332 = vmatpush1.bf16.msra.mxu0 0
    %11333 = vmatprep.subr.bf16.mxu0 0
    %11334 = vmatpush1.bf16.msra.mxu0 0
    %11335 = vmatprep.subr.bf16.mxu0 0
    %11336 = vmatpush1.bf16.msra.mxu0 0
    %11337 = vmatprep.subr.bf16.mxu0 0
    %11338 = vmatpush1.bf16.msra.mxu0 0
    %11339 = vmatprep.subr.bf16.mxu0 0
    %11340 = vmatpush1.bf16.msra.mxu0 0
    %11341 = vmatprep.subr.bf16.mxu0 0
    %11342 = vmatpush1.bf16.msra.mxu0 0
    %11343 = vmatprep.subr.bf16.mxu0 0
    %11344 = vmatpush1.bf16.msra.mxu0 0
    %11345 = vmatprep.subr.bf16.mxu0 0
    %11346 = vmatpush1.bf16.msra.mxu0 0
    %11347 = vmatprep.subr.bf16.mxu0 0
    %11348 = vmatpush1.bf16.msra.mxu0 0
    %11349 = vmatprep.subr.bf16.mxu0 0
    %11350 = vmatpush1.bf16.msra.mxu0 0
    %11351 = vmatprep.subr.bf16.mxu0 0
    %11352 = vmatpush1.bf16.msra.mxu0 0
    %11353 = vmatprep.subr.bf16.mxu0 0
    %11354 = vmatpush1.bf16.msra.mxu0 0
    %11355 = vmatprep.mubr.bf16.mxu0 0
    %11356 = vmatmul.mubr.bf16.gmra.mrb[0].mxu0 %v11318
    %v11357 = vpop.f32.mrb[0].mxu0
    %v11358 = vadd.f32 %v11314, %v11357
    %v11359 = vpop.f32.mrb[0].mxu0
    %v11360 = vpop.f32.mrb[0].mxu0
    %v11361 = vpop.f32.mrb[0].mxu0
    %11362 = vdwg.mxu0
    %vm11363 = vcmask 9216
    %11364 = vst.msk [vmem:[#allocation2] sm:$0x3] %vm11363, %v11358
    // Predicated region
    $region138: #{genconvit_vae_forward.1} parent=1 // pred_check
      _
    $region139: #{genconvit_vae_forward.1} parent=1 // pred_check_branch
      %11366 = sbr.rel (0) target = $region141
    $region140: #{genconvit_vae_forward.1} parent=1 // pred_region
      %s11368 = ssub.s32 32, 32
      %11369 = vsyncadd [#allocation3], %s11368
      %s11371 = sshll.u32 [#allocation2], 4
      %s11372 = int_to_ptr.vmem [resolvable:$true] %s11371
      %11374 = dma.vmem_to_hbm [thread:$0]  %s11372, 32, %s69, [#allocation3]
    $region141: #{genconvit_vae_forward.1} parent=1 // pred_fallthru
      _
    // Predicated region
    $region142: #{genconvit_vae_forward.1} parent=1 // pred_check
      _
    $region143: #{genconvit_vae_forward.1} parent=1 // pred_check_branch
      %11376 = sbr.rel (0) target = $region145
    $region144: #{genconvit_vae_forward.1} parent=1 // pred_region
      _
    $region145: #{genconvit_vae_forward.1} parent=1 // pred_fallthru
      _
    // Predicated region
    $region146: #{genconvit_vae_forward.1} parent=1 // pred_check
      _
    $region147: #{genconvit_vae_forward.1} parent=1 // pred_check_branch
      %11378 = sbr.rel (0) target = $region149
    $region148: #{genconvit_vae_forward.1} parent=1 // pred_region
      %s11380 = ssub.s32 16, 16
      %11381 = vsyncadd [#allocation5], %s11380
      %s11383 = sshll.u32 [#allocation4], 4
      %s11384 = int_to_ptr.vmem [resolvable:$true] %s11383
      %11386 = dma.vmem_to_hbm [thread:$0]  %s11384, 16, %s73, [#allocation5]
    $region149: #{genconvit_vae_forward.1} parent=1 // pred_fallthru
      _
    // Predicated region
    $region150: #{genconvit_vae_forward.1} parent=1 // pred_check
      _
    $region151: #{genconvit_vae_forward.1} parent=1 // pred_check_branch
      %11388 = sbr.rel (0) target = $region153
    $region152: #{genconvit_vae_forward.1} parent=1 // pred_region
      %11389 = dma.done [#allocation3], 32
    $region153: #{genconvit_vae_forward.1} parent=1 // pred_fallthru
      _
    // Predicated region
    $region154: #{genconvit_vae_forward.1} parent=1 // pred_check
      _
    $region155: #{genconvit_vae_forward.1} parent=1 // pred_check_branch
      %11391 = sbr.rel (0) target = $region157
    $region156: #{genconvit_vae_forward.1} parent=1 // pred_region
      _
    $region157: #{genconvit_vae_forward.1} parent=1 // pred_fallthru
      _
    // Predicated region
    $region158: #{genconvit_vae_forward.1} parent=1 // pred_check
      _
    $region159: #{genconvit_vae_forward.1} parent=1 // pred_check_branch
      %11393 = sbr.rel (0) target = $region161
    $region160: #{genconvit_vae_forward.1} parent=1 // pred_region
      %11394 = dma.done [#allocation5], 16
    $region161: #{genconvit_vae_forward.1} parent=1 // pred_fallthru
      _
    %11395 = vsyncpa [#allocation3], 1
    %11396 = vsyncpa [#allocation5], 1

</llo_original>
